<compile_context>
chip_gen: v7x
topology: tpu7x:2x2x1
jax: 0.10.0
libtpu: 0.0.40
codegen_flags: <defaults>
</compile_context>

<pallas_src>
import functools

import jax
import jax.numpy as jnp
from jax.experimental import pallas as pl
from jax.experimental.pallas import tpu as pltpu


def _attention_kernel(x_ref, wq_ref, wk_ref, wv_ref, rp_ref, wp_ref, bp_ref,
                      o_ref, *, batch, seq, num_heads, qk_head_dim, v_head_dim,
                      scale):
    """Single invocation: full problem resident in VMEM.

    x_ref : (B*N, C)       tokens, all batches flattened
    wq/wk : (C, qk_dim)    q / k projection weights (bias=False)
    wv    : (C, C)         v projection weights (bias=False)
    rp    : (H, N, N)      relative position bias (shared across batch)
    wp    : (C, C)         output projection weight
    bp    : (1, C)         output projection bias
    o_ref : (B*N, C)       output tokens
    """
    f32 = jnp.float32
    x = x_ref[...]                                               # (B*N, C)

    # Fused QKV projections across the whole batch (one dot each, M = B*N).
    q = jnp.dot(x, wq_ref[...], preferred_element_type=f32)     # (B*N, qk_dim)
    k = jnp.dot(x, wk_ref[...], preferred_element_type=f32)     # (B*N, qk_dim)
    v = jnp.dot(x, wv_ref[...], preferred_element_type=f32)     # (B*N, C)

    qk_dim = num_heads * qk_head_dim
    c_dim = num_heads * v_head_dim

    # Per-head channel masks built from compile-time iota compares.  Masking
    # q (with the softmax scale folded in) and v per head replaces the
    # lane-sparse head slices and the final concat of the previous version.
    q_lane = jax.lax.broadcasted_iota(jnp.int32, (1, qk_dim), 1)
    v_lane = jax.lax.broadcasted_iota(jnp.int32, (1, c_dim), 1)

    dn_qkt = (((1,), (1,)), ((), ()))   # contract last dims: q @ k^T, no transpose
    dn_pv = (((1,), (0,)), ((), ()))    # plain matmul

    accs = [jnp.zeros((seq, c_dim), f32) for _ in range(batch)]
    for h in range(num_heads):
        q_sel = (q_lane >= h * qk_head_dim) & (q_lane < (h + 1) * qk_head_dim)
        v_sel = (v_lane >= h * v_head_dim) & (v_lane < (h + 1) * v_head_dim)
        q_h = q * jnp.where(q_sel, scale, 0.0).astype(f32)       # (B*N, qk_dim)
        v_h = v * jnp.where(v_sel, 1.0, 0.0).astype(f32)         # (B*N, C)
        rp_h = rp_ref[h]                                         # (N, N)
        for b in range(batch):
            r0, r1 = b * seq, (b + 1) * seq                      # aligned row slice
            s = jax.lax.dot_general(q_h[r0:r1], k[r0:r1], dn_qkt,
                                    preferred_element_type=f32)  # (N, N)
            s = s + rp_h
            # numerically stable softmax; normalize via EUP reciprocal
            s = s - jnp.max(s, axis=-1, keepdims=True)
            p = jnp.exp(s)
            p = p * pl.reciprocal(jnp.sum(p, axis=-1, keepdims=True), approx=True)
            # masked v => head output lands directly in its own channel lanes;
            # summing over heads is the head-concat.
            accs[b] = accs[b] + jax.lax.dot_general(
                p, v_h[r0:r1], dn_pv, preferred_element_type=f32)

    # Row-axis (sublane) concat of per-batch results is cheap (64 | 8).
    o = accs[0] if batch == 1 else jnp.concatenate(accs, axis=0)  # (B*N, C)

    # Output projection (with bias), one fused matmul for the whole batch.
    o = jnp.dot(o, wp_ref[...], preferred_element_type=f32) + bp_ref[...]
    o_ref[...] = o.astype(o_ref.dtype)


def attention_pallas(x, wq, wk, wv, relative_pos, wp, bp, *, num_heads, scale):
    B, N, C = x.shape
    qk_dim = wq.shape[1]
    assert qk_dim % num_heads == 0 and C % num_heads == 0, (
        "qk_dim and C must be divisible by num_heads")
    qk_head_dim = qk_dim // num_heads
    v_head_dim = C // num_heads
    H = num_heads

    x2 = x.reshape(B * N, C)        # contiguous -> free reshape
    bp2 = bp.reshape(1, C)

    kernel = functools.partial(
        _attention_kernel,
        batch=B, seq=N, num_heads=H,
        qk_head_dim=qk_head_dim, v_head_dim=v_head_dim,
        scale=float(scale),
    )

    # Advisory cost estimate (head_dim=4 caps MXU use; this is a tiny kernel).
    flops = (2 * B * N * C * qk_dim * 2        # q, k projections
             + 2 * B * N * C * C               # v projection
             + B * H * 2 * N * N * qk_dim      # scores (masked-K form)
             + B * H * 2 * N * N * C           # attn @ v (masked form)
             + 2 * B * N * C * C)              # output projection
    transcendentals = B * H * N * N + B * H * N
    bytes_accessed = 4 * (x2.size + wq.size + wk.size + wv.size
                          + relative_pos.size + wp.size + bp2.size + B * N * C)

    out2 = pl.pallas_call(
        kernel,
        out_shape=jax.ShapeDtypeStruct((B * N, C), x.dtype),
        grid_spec=pltpu.PrefetchScalarGridSpec(
            num_scalar_prefetch=0,
            grid=(1,),
            in_specs=[
                pl.BlockSpec((B * N, C), lambda i: (0, 0)),       # x (flattened)
                pl.BlockSpec((C, qk_dim), lambda i: (0, 0)),      # Wq
                pl.BlockSpec((C, qk_dim), lambda i: (0, 0)),      # Wk
                pl.BlockSpec((C, C), lambda i: (0, 0)),           # Wv
                pl.BlockSpec((H, N, N), lambda i: (0, 0, 0)),     # relative_pos
                pl.BlockSpec((C, C), lambda i: (0, 0)),           # Wproj
                pl.BlockSpec((1, C), lambda i: (0, 0)),           # bproj
            ],
            out_specs=pl.BlockSpec((B * N, C), lambda i: (0, 0)),
        ),
        compiler_params=pltpu.CompilerParams(
            dimension_semantics=("arbitrary",),
        ),
        cost_estimate=pl.CostEstimate(
            flops=flops,
            transcendentals=transcendentals,
            bytes_accessed=bytes_accessed,
        ),
    )(x2, wq, wk, wv, relative_pos, wp, bp2)

    return out2.reshape(B, N, C)


def attention_reference(x, wq, wk, wv, relative_pos, wp, bp, *, num_heads, scale):
    """Plain-JAX mirror of the PyTorch forward (sr_ratio=1, dropout=0)."""
    B, N, C = x.shape
    qk_dim = wq.shape[1]
    hd_qk = qk_dim // num_heads
    hd_v = C // num_heads

    q = (x @ wq).reshape(B, N, num_heads, hd_qk).transpose(0, 2, 1, 3)
    k = (x @ wk).reshape(B, N, num_heads, hd_qk).transpose(0, 2, 1, 3)
    v = (x @ wv).reshape(B, N, num_heads, hd_v).transpose(0, 2, 1, 3)

    attn = jnp.einsum("bhnd,bhmd->bhnm", q, k) * scale
    attn = attn + relative_pos[None]          # broadcast over batch
    attn = jax.nn.softmax(attn, axis=-1)
    out = jnp.einsum("bhnm,bhmd->bhnd", attn, v)
    out = out.transpose(0, 2, 1, 3).reshape(B, N, C)
    return out @ wp + bp[None, None, :]


if __name__ == "__main__":
    # Small shapes consistent with the module: dim=32, 8 heads, H=W=8 -> N=64.
    B = 2
    dim = 32
    num_heads = 8
    Hsp = Wsp = 8
    N = Hsp * Wsp
    qk_ratio = 1
    qk_dim = dim // qk_ratio
    head_dim = dim // num_heads
    scale = head_dim ** (-0.5)

    key = jax.random.PRNGKey(0)
    kx, kq, kk, kv, kr, kp, kb = jax.random.split(key, 7)

    x = jax.random.normal(kx, (B, N, dim), dtype=jnp.float32)
    # Linear weights stored as [in, out] (i.e. torch weight transposed); qkv_bias=False.
    wq = jax.random.normal(kq, (dim, qk_dim), dtype=jnp.float32) * 0.1
    wk = jax.random.normal(kk, (dim, qk_dim), dtype=jnp.float32) * 0.1
    wv = jax.random.normal(kv, (dim, dim), dtype=jnp.float32) * 0.1
    relative_pos = jax.random.normal(kr, (num_heads, N, N), dtype=jnp.float32) * 0.1
    wp = jax.random.normal(kp, (dim, dim), dtype=jnp.float32) * 0.1
    bp = jax.random.normal(kb, (dim,), dtype=jnp.float32) * 0.1

    out = attention_pallas(x, wq, wk, wv, relative_pos, wp, bp,
                           num_heads=num_heads, scale=scale)
    out = jax.block_until_ready(out)

    ref = attention_reference(x, wq, wk, wv, relative_pos, wp, bp,
                              num_heads=num_heads, scale=scale)
    ref = jax.block_until_ready(ref)

    assert out.shape == (B, N, dim)
    # Tolerance accounts for the EUP approximate reciprocal in the softmax.
    assert jnp.allclose(out, ref, atol=5e-3, rtol=5e-3), (
        f"max abs err = {jnp.max(jnp.abs(out - ref))}")

    print("KERNEL_OK")
</pallas_src>

<mosaic_0001>
module attributes {stable_mosaic.version = 11 : i64} {
  func.func @_attention_kernel(%arg0: i32, %arg1: memref<128x32xf32, #tpu.memory_space<vmem>>, %arg2: memref<32x32xf32, #tpu.memory_space<vmem>>, %arg3: memref<32x32xf32, #tpu.memory_space<vmem>>, %arg4: memref<32x32xf32, #tpu.memory_space<vmem>>, %arg5: memref<8x64x64xf32, #tpu.memory_space<vmem>>, %arg6: memref<32x32xf32, #tpu.memory_space<vmem>>, %arg7: memref<1x32xf32, #tpu.memory_space<vmem>>, %arg8: memref<128x32xf32, #tpu.memory_space<vmem>>) attributes {dimension_semantics = [#tpu.dimension_semantics<arbitrary>], iteration_bounds = array<i64: 1>, scalar_prefetch = 0 : i64, scratch_operands = 0 : i64, tpu.core_type = #tpu.core_type<tc>, window_params = [{pipeline_mode = #tpu.pipeline_mode<synchronous>, transform_indices = @transform_0, window_bounds = array<i64: 128, 32>}, {pipeline_mode = #tpu.pipeline_mode<synchronous>, transform_indices = @transform_1, window_bounds = array<i64: 32, 32>}, {pipeline_mode = #tpu.pipeline_mode<synchronous>, transform_indices = @transform_2, window_bounds = array<i64: 32, 32>}, {pipeline_mode = #tpu.pipeline_mode<synchronous>, transform_indices = @transform_3, window_bounds = array<i64: 32, 32>}, {pipeline_mode = #tpu.pipeline_mode<synchronous>, transform_indices = @transform_4, window_bounds = array<i64: 8, 64, 64>}, {pipeline_mode = #tpu.pipeline_mode<synchronous>, transform_indices = @transform_5, window_bounds = array<i64: 32, 32>}, {pipeline_mode = #tpu.pipeline_mode<synchronous>, transform_indices = @transform_6, window_bounds = array<i64: 1, 32>}, {pipeline_mode = #tpu.pipeline_mode<synchronous>, transform_indices = @transform_7, window_bounds = array<i64: 128, 32>}]} {
    %c0 = arith.constant 0 : index
    %c0_0 = arith.constant 0 : index
    %0 = vector.load %arg1[%c0, %c0_0] : memref<128x32xf32, #tpu.memory_space<vmem>>, vector<128x32xf32>
    %c0_1 = arith.constant 0 : index
    %c0_2 = arith.constant 0 : index
    %1 = vector.load %arg2[%c0_1, %c0_2] : memref<32x32xf32, #tpu.memory_space<vmem>>, vector<32x32xf32>
    %cst = arith.constant dense<0.000000e+00> : vector<128x32xf32>
    %2 = tpu.matmul %0, %1, %cst {dimension_numbers = #tpu.dot_dimension_numbers<[1], [0], [0], [1], [0, 0, 1, 1], [], []>} : vector<128x32xf32>, vector<32x32xf32>, vector<128x32xf32> -> vector<128x32xf32>
    %c0_3 = arith.constant 0 : index
    %c0_4 = arith.constant 0 : index
    %3 = vector.load %arg3[%c0_3, %c0_4] : memref<32x32xf32, #tpu.memory_space<vmem>>, vector<32x32xf32>
    %cst_5 = arith.constant dense<0.000000e+00> : vector<128x32xf32>
    %4 = tpu.matmul %0, %3, %cst_5 {dimension_numbers = #tpu.dot_dimension_numbers<[1], [0], [0], [1], [0, 0, 1, 1], [], []>} : vector<128x32xf32>, vector<32x32xf32>, vector<128x32xf32> -> vector<128x32xf32>
    %c0_6 = arith.constant 0 : index
    %c0_7 = arith.constant 0 : index
    %5 = vector.load %arg4[%c0_6, %c0_7] : memref<32x32xf32, #tpu.memory_space<vmem>>, vector<32x32xf32>
    %cst_8 = arith.constant dense<0.000000e+00> : vector<128x32xf32>
    %6 = tpu.matmul %0, %5, %cst_8 {dimension_numbers = #tpu.dot_dimension_numbers<[1], [0], [0], [1], [0, 0, 1, 1], [], []>} : vector<128x32xf32>, vector<32x32xf32>, vector<128x32xf32> -> vector<128x32xf32>
    %7 = tpu.iota {dimensions = array<i32: 1>} : vector<1x32xi32>
    %8 = tpu.iota {dimensions = array<i32: 1>} : vector<1x32xi32>
    %cst_9 = arith.constant 0.000000e+00 : f32
    %9 = vector.broadcast %cst_9 : f32 to vector<64x32xf32>
    %cst_10 = arith.constant 0.000000e+00 : f32
    %10 = vector.broadcast %cst_10 : f32 to vector<64x32xf32>
    %c0_i32 = arith.constant 0 : i32
    %11 = vector.broadcast %c0_i32 : i32 to vector<1x32xi32>
    %12 = arith.cmpi sge, %7, %11 : vector<1x32xi32>
    %c4_i32 = arith.constant 4 : i32
    %13 = vector.broadcast %c4_i32 : i32 to vector<1x32xi32>
    %14 = arith.cmpi slt, %7, %13 : vector<1x32xi32>
    %15 = arith.andi %12, %14 : vector<1x32xi1>
    %c0_i32_11 = arith.constant 0 : i32
    %16 = vector.broadcast %c0_i32_11 : i32 to vector<1x32xi32>
    %17 = arith.cmpi sge, %8, %16 : vector<1x32xi32>
    %c4_i32_12 = arith.constant 4 : i32
    %18 = vector.broadcast %c4_i32_12 : i32 to vector<1x32xi32>
    %19 = arith.cmpi slt, %8, %18 : vector<1x32xi32>
    %20 = arith.andi %17, %19 : vector<1x32xi1>
    %cst_13 = arith.constant 5.000000e-01 : f32
    %cst_14 = arith.constant 0.000000e+00 : f32
    %21 = vector.broadcast %cst_13 : f32 to vector<1x32xf32>
    %22 = vector.broadcast %cst_14 : f32 to vector<1x32xf32>
    %23 = arith.select %15, %21, %22 : vector<1x32xi1>, vector<1x32xf32>
    %24 = vector.broadcast %23 : vector<1x32xf32> to vector<128x32xf32>
    %25 = arith.mulf %2, %24 : vector<128x32xf32>
    %cst_15 = arith.constant 1.000000e+00 : f32
    %cst_16 = arith.constant 0.000000e+00 : f32
    %26 = vector.broadcast %cst_15 : f32 to vector<1x32xf32>
    %27 = vector.broadcast %cst_16 : f32 to vector<1x32xf32>
    %28 = arith.select %20, %26, %27 : vector<1x32xi1>, vector<1x32xf32>
    %29 = vector.broadcast %28 : vector<1x32xf32> to vector<128x32xf32>
    %30 = arith.mulf %6, %29 : vector<128x32xf32>
    %c0_17 = arith.constant 0 : index
    %c0_18 = arith.constant 0 : index
    %c0_19 = arith.constant 0 : index
    %31 = vector.load %arg5[%c0_17, %c0_18, %c0_19] : memref<8x64x64xf32, #tpu.memory_space<vmem>>, vector<1x64x64xf32>
    %32 = vector.shape_cast %31 : vector<1x64x64xf32> to vector<64x64xf32>
    %33 = vector.extract_strided_slice %25 {offsets = [0, 0], sizes = [64, 32], strides = [1, 1]} : vector<128x32xf32> to vector<64x32xf32>
    %34 = vector.extract_strided_slice %4 {offsets = [0, 0], sizes = [64, 32], strides = [1, 1]} : vector<128x32xf32> to vector<64x32xf32>
    %cst_20 = arith.constant dense<0.000000e+00> : vector<64x64xf32>
    %35 = tpu.matmul %33, %34, %cst_20 {dimension_numbers = #tpu.dot_dimension_numbers<[1], [1], [0], [0], [0, 0, 1, 0], [], []>} : vector<64x32xf32>, vector<64x32xf32>, vector<64x64xf32> -> vector<64x64xf32>
    %36 = arith.addf %35, %32 : vector<64x64xf32>
    %cst_21 = arith.constant dense<0xFF800000> : vector<64xf32>
    %37 = vector.multi_reduction <maximumf>, %36, %cst_21 [1] : vector<64x64xf32> to vector<64xf32>
    %38 = vector.shape_cast %37 : vector<64xf32> to vector<64x1xf32>
    %39 = vector.broadcast %38 : vector<64x1xf32> to vector<64x64xf32>
    %40 = arith.subf %36, %39 : vector<64x64xf32>
    %41 = math.exp %40 : vector<64x64xf32>
    %cst_22 = arith.constant dense<0.000000e+00> : vector<64xf32>
    %42 = vector.multi_reduction <add>, %41, %cst_22 [1] : vector<64x64xf32> to vector<64xf32>
    %43 = vector.shape_cast %42 : vector<64xf32> to vector<64x1xf32>
    %44 = tpu.reciprocal %43 {approx = true} : vector<64x1xf32> -> vector<64x1xf32>
    %45 = vector.broadcast %44 : vector<64x1xf32> to vector<64x64xf32>
    %46 = arith.mulf %41, %45 : vector<64x64xf32>
    %47 = vector.extract_strided_slice %30 {offsets = [0, 0], sizes = [64, 32], strides = [1, 1]} : vector<128x32xf32> to vector<64x32xf32>
    %cst_23 = arith.constant dense<0.000000e+00> : vector<64x32xf32>
    %48 = tpu.matmul %46, %47, %cst_23 {dimension_numbers = #tpu.dot_dimension_numbers<[1], [0], [0], [1], [0, 0, 1, 1], [], []>} : vector<64x64xf32>, vector<64x32xf32>, vector<64x32xf32> -> vector<64x32xf32>
    %49 = arith.addf %9, %48 : vector<64x32xf32>
    %50 = vector.extract_strided_slice %25 {offsets = [64, 0], sizes = [64, 32], strides = [1, 1]} : vector<128x32xf32> to vector<64x32xf32>
    %51 = vector.extract_strided_slice %4 {offsets = [64, 0], sizes = [64, 32], strides = [1, 1]} : vector<128x32xf32> to vector<64x32xf32>
    %cst_24 = arith.constant dense<0.000000e+00> : vector<64x64xf32>
    %52 = tpu.matmul %50, %51, %cst_24 {dimension_numbers = #tpu.dot_dimension_numbers<[1], [1], [0], [0], [0, 0, 1, 0], [], []>} : vector<64x32xf32>, vector<64x32xf32>, vector<64x64xf32> -> vector<64x64xf32>
    %53 = arith.addf %52, %32 : vector<64x64xf32>
    %cst_25 = arith.constant dense<0xFF800000> : vector<64xf32>
    %54 = vector.multi_reduction <maximumf>, %53, %cst_25 [1] : vector<64x64xf32> to vector<64xf32>
    %55 = vector.shape_cast %54 : vector<64xf32> to vector<64x1xf32>
    %56 = vector.broadcast %55 : vector<64x1xf32> to vector<64x64xf32>
    %57 = arith.subf %53, %56 : vector<64x64xf32>
    %58 = math.exp %57 : vector<64x64xf32>
    %cst_26 = arith.constant dense<0.000000e+00> : vector<64xf32>
    %59 = vector.multi_reduction <add>, %58, %cst_26 [1] : vector<64x64xf32> to vector<64xf32>
    %60 = vector.shape_cast %59 : vector<64xf32> to vector<64x1xf32>
    %61 = tpu.reciprocal %60 {approx = true} : vector<64x1xf32> -> vector<64x1xf32>
    %62 = vector.broadcast %61 : vector<64x1xf32> to vector<64x64xf32>
    %63 = arith.mulf %58, %62 : vector<64x64xf32>
    %64 = vector.extract_strided_slice %30 {offsets = [64, 0], sizes = [64, 32], strides = [1, 1]} : vector<128x32xf32> to vector<64x32xf32>
    %cst_27 = arith.constant dense<0.000000e+00> : vector<64x32xf32>
    %65 = tpu.matmul %63, %64, %cst_27 {dimension_numbers = #tpu.dot_dimension_numbers<[1], [0], [0], [1], [0, 0, 1, 1], [], []>} : vector<64x64xf32>, vector<64x32xf32>, vector<64x32xf32> -> vector<64x32xf32>
    %66 = arith.addf %10, %65 : vector<64x32xf32>
    %c4_i32_28 = arith.constant 4 : i32
    %67 = vector.broadcast %c4_i32_28 : i32 to vector<1x32xi32>
    %68 = arith.cmpi sge, %7, %67 : vector<1x32xi32>
    %c8_i32 = arith.constant 8 : i32
    %69 = vector.broadcast %c8_i32 : i32 to vector<1x32xi32>
    %70 = arith.cmpi slt, %7, %69 : vector<1x32xi32>
    %71 = arith.andi %68, %70 : vector<1x32xi1>
    %c4_i32_29 = arith.constant 4 : i32
    %72 = vector.broadcast %c4_i32_29 : i32 to vector<1x32xi32>
    %73 = arith.cmpi sge, %8, %72 : vector<1x32xi32>
    %c8_i32_30 = arith.constant 8 : i32
    %74 = vector.broadcast %c8_i32_30 : i32 to vector<1x32xi32>
    %75 = arith.cmpi slt, %8, %74 : vector<1x32xi32>
    %76 = arith.andi %73, %75 : vector<1x32xi1>
    %cst_31 = arith.constant 5.000000e-01 : f32
    %cst_32 = arith.constant 0.000000e+00 : f32
    %77 = vector.broadcast %cst_31 : f32 to vector<1x32xf32>
    %78 = vector.broadcast %cst_32 : f32 to vector<1x32xf32>
    %79 = arith.select %71, %77, %78 : vector<1x32xi1>, vector<1x32xf32>
    %80 = vector.broadcast %79 : vector<1x32xf32> to vector<128x32xf32>
    %81 = arith.mulf %2, %80 : vector<128x32xf32>
    %cst_33 = arith.constant 1.000000e+00 : f32
    %cst_34 = arith.constant 0.000000e+00 : f32
    %82 = vector.broadcast %cst_33 : f32 to vector<1x32xf32>
    %83 = vector.broadcast %cst_34 : f32 to vector<1x32xf32>
    %84 = arith.select %76, %82, %83 : vector<1x32xi1>, vector<1x32xf32>
    %85 = vector.broadcast %84 : vector<1x32xf32> to vector<128x32xf32>
    %86 = arith.mulf %6, %85 : vector<128x32xf32>
    %c1 = arith.constant 1 : index
    %c0_35 = arith.constant 0 : index
    %c0_36 = arith.constant 0 : index
    %87 = vector.load %arg5[%c1, %c0_35, %c0_36] : memref<8x64x64xf32, #tpu.memory_space<vmem>>, vector<1x64x64xf32>
    %88 = vector.shape_cast %87 : vector<1x64x64xf32> to vector<64x64xf32>
    %89 = vector.extract_strided_slice %81 {offsets = [0, 0], sizes = [64, 32], strides = [1, 1]} : vector<128x32xf32> to vector<64x32xf32>
    %90 = vector.extract_strided_slice %4 {offsets = [0, 0], sizes = [64, 32], strides = [1, 1]} : vector<128x32xf32> to vector<64x32xf32>
    %cst_37 = arith.constant dense<0.000000e+00> : vector<64x64xf32>
    %91 = tpu.matmul %89, %90, %cst_37 {dimension_numbers = #tpu.dot_dimension_numbers<[1], [1], [0], [0], [0, 0, 1, 0], [], []>} : vector<64x32xf32>, vector<64x32xf32>, vector<64x64xf32> -> vector<64x64xf32>
    %92 = arith.addf %91, %88 : vector<64x64xf32>
    %cst_38 = arith.constant dense<0xFF800000> : vector<64xf32>
    %93 = vector.multi_reduction <maximumf>, %92, %cst_38 [1] : vector<64x64xf32> to vector<64xf32>
    %94 = vector.shape_cast %93 : vector<64xf32> to vector<64x1xf32>
    %95 = vector.broadcast %94 : vector<64x1xf32> to vector<64x64xf32>
    %96 = arith.subf %92, %95 : vector<64x64xf32>
    %97 = math.exp %96 : vector<64x64xf32>
    %cst_39 = arith.constant dense<0.000000e+00> : vector<64xf32>
    %98 = vector.multi_reduction <add>, %97, %cst_39 [1] : vector<64x64xf32> to vector<64xf32>
    %99 = vector.shape_cast %98 : vector<64xf32> to vector<64x1xf32>
    %100 = tpu.reciprocal %99 {approx = true} : vector<64x1xf32> -> vector<64x1xf32>
    %101 = vector.broadcast %100 : vector<64x1xf32> to vector<64x64xf32>
    %102 = arith.mulf %97, %101 : vector<64x64xf32>
    %103 = vector.extract_strided_slice %86 {offsets = [0, 0], sizes = [64, 32], strides = [1, 1]} : vector<128x32xf32> to vector<64x32xf32>
    %cst_40 = arith.constant dense<0.000000e+00> : vector<64x32xf32>
    %104 = tpu.matmul %102, %103, %cst_40 {dimension_numbers = #tpu.dot_dimension_numbers<[1], [0], [0], [1], [0, 0, 1, 1], [], []>} : vector<64x64xf32>, vector<64x32xf32>, vector<64x32xf32> -> vector<64x32xf32>
    %105 = arith.addf %49, %104 : vector<64x32xf32>
    %106 = vector.extract_strided_slice %81 {offsets = [64, 0], sizes = [64, 32], strides = [1, 1]} : vector<128x32xf32> to vector<64x32xf32>
    %107 = vector.extract_strided_slice %4 {offsets = [64, 0], sizes = [64, 32], strides = [1, 1]} : vector<128x32xf32> to vector<64x32xf32>
    %cst_41 = arith.constant dense<0.000000e+00> : vector<64x64xf32>
    %108 = tpu.matmul %106, %107, %cst_41 {dimension_numbers = #tpu.dot_dimension_numbers<[1], [1], [0], [0], [0, 0, 1, 0], [], []>} : vector<64x32xf32>, vector<64x32xf32>, vector<64x64xf32> -> vector<64x64xf32>
    %109 = arith.addf %108, %88 : vector<64x64xf32>
    %cst_42 = arith.constant dense<0xFF800000> : vector<64xf32>
    %110 = vector.multi_reduction <maximumf>, %109, %cst_42 [1] : vector<64x64xf32> to vector<64xf32>
    %111 = vector.shape_cast %110 : vector<64xf32> to vector<64x1xf32>
    %112 = vector.broadcast %111 : vector<64x1xf32> to vector<64x64xf32>
    %113 = arith.subf %109, %112 : vector<64x64xf32>
    %114 = math.exp %113 : vector<64x64xf32>
    %cst_43 = arith.constant dense<0.000000e+00> : vector<64xf32>
    %115 = vector.multi_reduction <add>, %114, %cst_43 [1] : vector<64x64xf32> to vector<64xf32>
    %116 = vector.shape_cast %115 : vector<64xf32> to vector<64x1xf32>
    %117 = tpu.reciprocal %116 {approx = true} : vector<64x1xf32> -> vector<64x1xf32>
    %118 = vector.broadcast %117 : vector<64x1xf32> to vector<64x64xf32>
    %119 = arith.mulf %114, %118 : vector<64x64xf32>
    %120 = vector.extract_strided_slice %86 {offsets = [64, 0], sizes = [64, 32], strides = [1, 1]} : vector<128x32xf32> to vector<64x32xf32>
    %cst_44 = arith.constant dense<0.000000e+00> : vector<64x32xf32>
    %121 = tpu.matmul %119, %120, %cst_44 {dimension_numbers = #tpu.dot_dimension_numbers<[1], [0], [0], [1], [0, 0, 1, 1], [], []>} : vector<64x64xf32>, vector<64x32xf32>, vector<64x32xf32> -> vector<64x32xf32>
    %122 = arith.addf %66, %121 : vector<64x32xf32>
    %c8_i32_45 = arith.constant 8 : i32
    %123 = vector.broadcast %c8_i32_45 : i32 to vector<1x32xi32>
    %124 = arith.cmpi sge, %7, %123 : vector<1x32xi32>
    %c12_i32 = arith.constant 12 : i32
    %125 = vector.broadcast %c12_i32 : i32 to vector<1x32xi32>
    %126 = arith.cmpi slt, %7, %125 : vector<1x32xi32>
    %127 = arith.andi %124, %126 : vector<1x32xi1>
    %c8_i32_46 = arith.constant 8 : i32
    %128 = vector.broadcast %c8_i32_46 : i32 to vector<1x32xi32>
    %129 = arith.cmpi sge, %8, %128 : vector<1x32xi32>
    %c12_i32_47 = arith.constant 12 : i32
    %130 = vector.broadcast %c12_i32_47 : i32 to vector<1x32xi32>
    %131 = arith.cmpi slt, %8, %130 : vector<1x32xi32>
    %132 = arith.andi %129, %131 : vector<1x32xi1>
    %cst_48 = arith.constant 5.000000e-01 : f32
    %cst_49 = arith.constant 0.000000e+00 : f32
    %133 = vector.broadcast %cst_48 : f32 to vector<1x32xf32>
    %134 = vector.broadcast %cst_49 : f32 to vector<1x32xf32>
    %135 = arith.select %127, %133, %134 : vector<1x32xi1>, vector<1x32xf32>
    %136 = vector.broadcast %135 : vector<1x32xf32> to vector<128x32xf32>
    %137 = arith.mulf %2, %136 : vector<128x32xf32>
    %cst_50 = arith.constant 1.000000e+00 : f32
    %cst_51 = arith.constant 0.000000e+00 : f32
    %138 = vector.broadcast %cst_50 : f32 to vector<1x32xf32>
    %139 = vector.broadcast %cst_51 : f32 to vector<1x32xf32>
    %140 = arith.select %132, %138, %139 : vector<1x32xi1>, vector<1x32xf32>
    %141 = vector.broadcast %140 : vector<1x32xf32> to vector<128x32xf32>
    %142 = arith.mulf %6, %141 : vector<128x32xf32>
    %c2 = arith.constant 2 : index
    %c0_52 = arith.constant 0 : index
    %c0_53 = arith.constant 0 : index
    %143 = vector.load %arg5[%c2, %c0_52, %c0_53] : memref<8x64x64xf32, #tpu.memory_space<vmem>>, vector<1x64x64xf32>
    %144 = vector.shape_cast %143 : vector<1x64x64xf32> to vector<64x64xf32>
    %145 = vector.extract_strided_slice %137 {offsets = [0, 0], sizes = [64, 32], strides = [1, 1]} : vector<128x32xf32> to vector<64x32xf32>
    %146 = vector.extract_strided_slice %4 {offsets = [0, 0], sizes = [64, 32], strides = [1, 1]} : vector<128x32xf32> to vector<64x32xf32>
    %cst_54 = arith.constant dense<0.000000e+00> : vector<64x64xf32>
    %147 = tpu.matmul %145, %146, %cst_54 {dimension_numbers = #tpu.dot_dimension_numbers<[1], [1], [0], [0], [0, 0, 1, 0], [], []>} : vector<64x32xf32>, vector<64x32xf32>, vector<64x64xf32> -> vector<64x64xf32>
    %148 = arith.addf %147, %144 : vector<64x64xf32>
    %cst_55 = arith.constant dense<0xFF800000> : vector<64xf32>
    %149 = vector.multi_reduction <maximumf>, %148, %cst_55 [1] : vector<64x64xf32> to vector<64xf32>
    %150 = vector.shape_cast %149 : vector<64xf32> to vector<64x1xf32>
    %151 = vector.broadcast %150 : vector<64x1xf32> to vector<64x64xf32>
    %152 = arith.subf %148, %151 : vector<64x64xf32>
    %153 = math.exp %152 : vector<64x64xf32>
    %cst_56 = arith.constant dense<0.000000e+00> : vector<64xf32>
    %154 = vector.multi_reduction <add>, %153, %cst_56 [1] : vector<64x64xf32> to vector<64xf32>
    %155 = vector.shape_cast %154 : vector<64xf32> to vector<64x1xf32>
    %156 = tpu.reciprocal %155 {approx = true} : vector<64x1xf32> -> vector<64x1xf32>
    %157 = vector.broadcast %156 : vector<64x1xf32> to vector<64x64xf32>
    %158 = arith.mulf %153, %157 : vector<64x64xf32>
    %159 = vector.extract_strided_slice %142 {offsets = [0, 0], sizes = [64, 32], strides = [1, 1]} : vector<128x32xf32> to vector<64x32xf32>
    %cst_57 = arith.constant dense<0.000000e+00> : vector<64x32xf32>
    %160 = tpu.matmul %158, %159, %cst_57 {dimension_numbers = #tpu.dot_dimension_numbers<[1], [0], [0], [1], [0, 0, 1, 1], [], []>} : vector<64x64xf32>, vector<64x32xf32>, vector<64x32xf32> -> vector<64x32xf32>
    %161 = arith.addf %105, %160 : vector<64x32xf32>
    %162 = vector.extract_strided_slice %137 {offsets = [64, 0], sizes = [64, 32], strides = [1, 1]} : vector<128x32xf32> to vector<64x32xf32>
    %163 = vector.extract_strided_slice %4 {offsets = [64, 0], sizes = [64, 32], strides = [1, 1]} : vector<128x32xf32> to vector<64x32xf32>
    %cst_58 = arith.constant dense<0.000000e+00> : vector<64x64xf32>
    %164 = tpu.matmul %162, %163, %cst_58 {dimension_numbers = #tpu.dot_dimension_numbers<[1], [1], [0], [0], [0, 0, 1, 0], [], []>} : vector<64x32xf32>, vector<64x32xf32>, vector<64x64xf32> -> vector<64x64xf32>
    %165 = arith.addf %164, %144 : vector<64x64xf32>
    %cst_59 = arith.constant dense<0xFF800000> : vector<64xf32>
    %166 = vector.multi_reduction <maximumf>, %165, %cst_59 [1] : vector<64x64xf32> to vector<64xf32>
    %167 = vector.shape_cast %166 : vector<64xf32> to vector<64x1xf32>
    %168 = vector.broadcast %167 : vector<64x1xf32> to vector<64x64xf32>
    %169 = arith.subf %165, %168 : vector<64x64xf32>
    %170 = math.exp %169 : vector<64x64xf32>
    %cst_60 = arith.constant dense<0.000000e+00> : vector<64xf32>
    %171 = vector.multi_reduction <add>, %170, %cst_60 [1] : vector<64x64xf32> to vector<64xf32>
    %172 = vector.shape_cast %171 : vector<64xf32> to vector<64x1xf32>
    %173 = tpu.reciprocal %172 {approx = true} : vector<64x1xf32> -> vector<64x1xf32>
    %174 = vector.broadcast %173 : vector<64x1xf32> to vector<64x64xf32>
    %175 = arith.mulf %170, %174 : vector<64x64xf32>
    %176 = vector.extract_strided_slice %142 {offsets = [64, 0], sizes = [64, 32], strides = [1, 1]} : vector<128x32xf32> to vector<64x32xf32>
    %cst_61 = arith.constant dense<0.000000e+00> : vector<64x32xf32>
    %177 = tpu.matmul %175, %176, %cst_61 {dimension_numbers = #tpu.dot_dimension_numbers<[1], [0], [0], [1], [0, 0, 1, 1], [], []>} : vector<64x64xf32>, vector<64x32xf32>, vector<64x32xf32> -> vector<64x32xf32>
    %178 = arith.addf %122, %177 : vector<64x32xf32>
    %c12_i32_62 = arith.constant 12 : i32
    %179 = vector.broadcast %c12_i32_62 : i32 to vector<1x32xi32>
    %180 = arith.cmpi sge, %7, %179 : vector<1x32xi32>
    %c16_i32 = arith.constant 16 : i32
    %181 = vector.broadcast %c16_i32 : i32 to vector<1x32xi32>
    %182 = arith.cmpi slt, %7, %181 : vector<1x32xi32>
    %183 = arith.andi %180, %182 : vector<1x32xi1>
    %c12_i32_63 = arith.constant 12 : i32
    %184 = vector.broadcast %c12_i32_63 : i32 to vector<1x32xi32>
    %185 = arith.cmpi sge, %8, %184 : vector<1x32xi32>
    %c16_i32_64 = arith.constant 16 : i32
    %186 = vector.broadcast %c16_i32_64 : i32 to vector<1x32xi32>
    %187 = arith.cmpi slt, %8, %186 : vector<1x32xi32>
    %188 = arith.andi %185, %187 : vector<1x32xi1>
    %cst_65 = arith.constant 5.000000e-01 : f32
    %cst_66 = arith.constant 0.000000e+00 : f32
    %189 = vector.broadcast %cst_65 : f32 to vector<1x32xf32>
    %190 = vector.broadcast %cst_66 : f32 to vector<1x32xf32>
    %191 = arith.select %183, %189, %190 : vector<1x32xi1>, vector<1x32xf32>
    %192 = vector.broadcast %191 : vector<1x32xf32> to vector<128x32xf32>
    %193 = arith.mulf %2, %192 : vector<128x32xf32>
    %cst_67 = arith.constant 1.000000e+00 : f32
    %cst_68 = arith.constant 0.000000e+00 : f32
    %194 = vector.broadcast %cst_67 : f32 to vector<1x32xf32>
    %195 = vector.broadcast %cst_68 : f32 to vector<1x32xf32>
    %196 = arith.select %188, %194, %195 : vector<1x32xi1>, vector<1x32xf32>
    %197 = vector.broadcast %196 : vector<1x32xf32> to vector<128x32xf32>
    %198 = arith.mulf %6, %197 : vector<128x32xf32>
    %c3 = arith.constant 3 : index
    %c0_69 = arith.constant 0 : index
    %c0_70 = arith.constant 0 : index
    %199 = vector.load %arg5[%c3, %c0_69, %c0_70] : memref<8x64x64xf32, #tpu.memory_space<vmem>>, vector<1x64x64xf32>
    %200 = vector.shape_cast %199 : vector<1x64x64xf32> to vector<64x64xf32>
    %201 = vector.extract_strided_slice %193 {offsets = [0, 0], sizes = [64, 32], strides = [1, 1]} : vector<128x32xf32> to vector<64x32xf32>
    %202 = vector.extract_strided_slice %4 {offsets = [0, 0], sizes = [64, 32], strides = [1, 1]} : vector<128x32xf32> to vector<64x32xf32>
    %cst_71 = arith.constant dense<0.000000e+00> : vector<64x64xf32>
    %203 = tpu.matmul %201, %202, %cst_71 {dimension_numbers = #tpu.dot_dimension_numbers<[1], [1], [0], [0], [0, 0, 1, 0], [], []>} : vector<64x32xf32>, vector<64x32xf32>, vector<64x64xf32> -> vector<64x64xf32>
    %204 = arith.addf %203, %200 : vector<64x64xf32>
    %cst_72 = arith.constant dense<0xFF800000> : vector<64xf32>
    %205 = vector.multi_reduction <maximumf>, %204, %cst_72 [1] : vector<64x64xf32> to vector<64xf32>
    %206 = vector.shape_cast %205 : vector<64xf32> to vector<64x1xf32>
    %207 = vector.broadcast %206 : vector<64x1xf32> to vector<64x64xf32>
    %208 = arith.subf %204, %207 : vector<64x64xf32>
    %209 = math.exp %208 : vector<64x64xf32>
    %cst_73 = arith.constant dense<0.000000e+00> : vector<64xf32>
    %210 = vector.multi_reduction <add>, %209, %cst_73 [1] : vector<64x64xf32> to vector<64xf32>
    %211 = vector.shape_cast %210 : vector<64xf32> to vector<64x1xf32>
    %212 = tpu.reciprocal %211 {approx = true} : vector<64x1xf32> -> vector<64x1xf32>
    %213 = vector.broadcast %212 : vector<64x1xf32> to vector<64x64xf32>
    %214 = arith.mulf %209, %213 : vector<64x64xf32>
    %215 = vector.extract_strided_slice %198 {offsets = [0, 0], sizes = [64, 32], strides = [1, 1]} : vector<128x32xf32> to vector<64x32xf32>
    %cst_74 = arith.constant dense<0.000000e+00> : vector<64x32xf32>
    %216 = tpu.matmul %214, %215, %cst_74 {dimension_numbers = #tpu.dot_dimension_numbers<[1], [0], [0], [1], [0, 0, 1, 1], [], []>} : vector<64x64xf32>, vector<64x32xf32>, vector<64x32xf32> -> vector<64x32xf32>
    %217 = arith.addf %161, %216 : vector<64x32xf32>
    %218 = vector.extract_strided_slice %193 {offsets = [64, 0], sizes = [64, 32], strides = [1, 1]} : vector<128x32xf32> to vector<64x32xf32>
    %219 = vector.extract_strided_slice %4 {offsets = [64, 0], sizes = [64, 32], strides = [1, 1]} : vector<128x32xf32> to vector<64x32xf32>
    %cst_75 = arith.constant dense<0.000000e+00> : vector<64x64xf32>
    %220 = tpu.matmul %218, %219, %cst_75 {dimension_numbers = #tpu.dot_dimension_numbers<[1], [1], [0], [0], [0, 0, 1, 0], [], []>} : vector<64x32xf32>, vector<64x32xf32>, vector<64x64xf32> -> vector<64x64xf32>
    %221 = arith.addf %220, %200 : vector<64x64xf32>
    %cst_76 = arith.constant dense<0xFF800000> : vector<64xf32>
    %222 = vector.multi_reduction <maximumf>, %221, %cst_76 [1] : vector<64x64xf32> to vector<64xf32>
    %223 = vector.shape_cast %222 : vector<64xf32> to vector<64x1xf32>
    %224 = vector.broadcast %223 : vector<64x1xf32> to vector<64x64xf32>
    %225 = arith.subf %221, %224 : vector<64x64xf32>
    %226 = math.exp %225 : vector<64x64xf32>
    %cst_77 = arith.constant dense<0.000000e+00> : vector<64xf32>
    %227 = vector.multi_reduction <add>, %226, %cst_77 [1] : vector<64x64xf32> to vector<64xf32>
    %228 = vector.shape_cast %227 : vector<64xf32> to vector<64x1xf32>
    %229 = tpu.reciprocal %228 {approx = true} : vector<64x1xf32> -> vector<64x1xf32>
    %230 = vector.broadcast %229 : vector<64x1xf32> to vector<64x64xf32>
    %231 = arith.mulf %226, %230 : vector<64x64xf32>
    %232 = vector.extract_strided_slice %198 {offsets = [64, 0], sizes = [64, 32], strides = [1, 1]} : vector<128x32xf32> to vector<64x32xf32>
    %cst_78 = arith.constant dense<0.000000e+00> : vector<64x32xf32>
    %233 = tpu.matmul %231, %232, %cst_78 {dimension_numbers = #tpu.dot_dimension_numbers<[1], [0], [0], [1], [0, 0, 1, 1], [], []>} : vector<64x64xf32>, vector<64x32xf32>, vector<64x32xf32> -> vector<64x32xf32>
    %234 = arith.addf %178, %233 : vector<64x32xf32>
    %c16_i32_79 = arith.constant 16 : i32
    %235 = vector.broadcast %c16_i32_79 : i32 to vector<1x32xi32>
    %236 = arith.cmpi sge, %7, %235 : vector<1x32xi32>
    %c20_i32 = arith.constant 20 : i32
    %237 = vector.broadcast %c20_i32 : i32 to vector<1x32xi32>
    %238 = arith.cmpi slt, %7, %237 : vector<1x32xi32>
    %239 = arith.andi %236, %238 : vector<1x32xi1>
    %c16_i32_80 = arith.constant 16 : i32
    %240 = vector.broadcast %c16_i32_80 : i32 to vector<1x32xi32>
    %241 = arith.cmpi sge, %8, %240 : vector<1x32xi32>
    %c20_i32_81 = arith.constant 20 : i32
    %242 = vector.broadcast %c20_i32_81 : i32 to vector<1x32xi32>
    %243 = arith.cmpi slt, %8, %242 : vector<1x32xi32>
    %244 = arith.andi %241, %243 : vector<1x32xi1>
    %cst_82 = arith.constant 5.000000e-01 : f32
    %cst_83 = arith.constant 0.000000e+00 : f32
    %245 = vector.broadcast %cst_82 : f32 to vector<1x32xf32>
    %246 = vector.broadcast %cst_83 : f32 to vector<1x32xf32>
    %247 = arith.select %239, %245, %246 : vector<1x32xi1>, vector<1x32xf32>
    %248 = vector.broadcast %247 : vector<1x32xf32> to vector<128x32xf32>
    %249 = arith.mulf %2, %248 : vector<128x32xf32>
    %cst_84 = arith.constant 1.000000e+00 : f32
    %cst_85 = arith.constant 0.000000e+00 : f32
    %250 = vector.broadcast %cst_84 : f32 to vector<1x32xf32>
    %251 = vector.broadcast %cst_85 : f32 to vector<1x32xf32>
    %252 = arith.select %244, %250, %251 : vector<1x32xi1>, vector<1x32xf32>
    %253 = vector.broadcast %252 : vector<1x32xf32> to vector<128x32xf32>
    %254 = arith.mulf %6, %253 : vector<128x32xf32>
    %c4 = arith.constant 4 : index
    %c0_86 = arith.constant 0 : index
    %c0_87 = arith.constant 0 : index
    %255 = vector.load %arg5[%c4, %c0_86, %c0_87] : memref<8x64x64xf32, #tpu.memory_space<vmem>>, vector<1x64x64xf32>
    %256 = vector.shape_cast %255 : vector<1x64x64xf32> to vector<64x64xf32>
    %257 = vector.extract_strided_slice %249 {offsets = [0, 0], sizes = [64, 32], strides = [1, 1]} : vector<128x32xf32> to vector<64x32xf32>
    %258 = vector.extract_strided_slice %4 {offsets = [0, 0], sizes = [64, 32], strides = [1, 1]} : vector<128x32xf32> to vector<64x32xf32>
    %cst_88 = arith.constant dense<0.000000e+00> : vector<64x64xf32>
    %259 = tpu.matmul %257, %258, %cst_88 {dimension_numbers = #tpu.dot_dimension_numbers<[1], [1], [0], [0], [0, 0, 1, 0], [], []>} : vector<64x32xf32>, vector<64x32xf32>, vector<64x64xf32> -> vector<64x64xf32>
    %260 = arith.addf %259, %256 : vector<64x64xf32>
    %cst_89 = arith.constant dense<0xFF800000> : vector<64xf32>
    %261 = vector.multi_reduction <maximumf>, %260, %cst_89 [1] : vector<64x64xf32> to vector<64xf32>
    %262 = vector.shape_cast %261 : vector<64xf32> to vector<64x1xf32>
    %263 = vector.broadcast %262 : vector<64x1xf32> to vector<64x64xf32>
    %264 = arith.subf %260, %263 : vector<64x64xf32>
    %265 = math.exp %264 : vector<64x64xf32>
    %cst_90 = arith.constant dense<0.000000e+00> : vector<64xf32>
    %266 = vector.multi_reduction <add>, %265, %cst_90 [1] : vector<64x64xf32> to vector<64xf32>
    %267 = vector.shape_cast %266 : vector<64xf32> to vector<64x1xf32>
    %268 = tpu.reciprocal %267 {approx = true} : vector<64x1xf32> -> vector<64x1xf32>
    %269 = vector.broadcast %268 : vector<64x1xf32> to vector<64x64xf32>
    %270 = arith.mulf %265, %269 : vector<64x64xf32>
    %271 = vector.extract_strided_slice %254 {offsets = [0, 0], sizes = [64, 32], strides = [1, 1]} : vector<128x32xf32> to vector<64x32xf32>
    %cst_91 = arith.constant dense<0.000000e+00> : vector<64x32xf32>
    %272 = tpu.matmul %270, %271, %cst_91 {dimension_numbers = #tpu.dot_dimension_numbers<[1], [0], [0], [1], [0, 0, 1, 1], [], []>} : vector<64x64xf32>, vector<64x32xf32>, vector<64x32xf32> -> vector<64x32xf32>
    %273 = arith.addf %217, %272 : vector<64x32xf32>
    %274 = vector.extract_strided_slice %249 {offsets = [64, 0], sizes = [64, 32], strides = [1, 1]} : vector<128x32xf32> to vector<64x32xf32>
    %275 = vector.extract_strided_slice %4 {offsets = [64, 0], sizes = [64, 32], strides = [1, 1]} : vector<128x32xf32> to vector<64x32xf32>
    %cst_92 = arith.constant dense<0.000000e+00> : vector<64x64xf32>
    %276 = tpu.matmul %274, %275, %cst_92 {dimension_numbers = #tpu.dot_dimension_numbers<[1], [1], [0], [0], [0, 0, 1, 0], [], []>} : vector<64x32xf32>, vector<64x32xf32>, vector<64x64xf32> -> vector<64x64xf32>
    %277 = arith.addf %276, %256 : vector<64x64xf32>
    %cst_93 = arith.constant dense<0xFF800000> : vector<64xf32>
    %278 = vector.multi_reduction <maximumf>, %277, %cst_93 [1] : vector<64x64xf32> to vector<64xf32>
    %279 = vector.shape_cast %278 : vector<64xf32> to vector<64x1xf32>
    %280 = vector.broadcast %279 : vector<64x1xf32> to vector<64x64xf32>
    %281 = arith.subf %277, %280 : vector<64x64xf32>
    %282 = math.exp %281 : vector<64x64xf32>
    %cst_94 = arith.constant dense<0.000000e+00> : vector<64xf32>
    %283 = vector.multi_reduction <add>, %282, %cst_94 [1] : vector<64x64xf32> to vector<64xf32>
    %284 = vector.shape_cast %283 : vector<64xf32> to vector<64x1xf32>
    %285 = tpu.reciprocal %284 {approx = true} : vector<64x1xf32> -> vector<64x1xf32>
    %286 = vector.broadcast %285 : vector<64x1xf32> to vector<64x64xf32>
    %287 = arith.mulf %282, %286 : vector<64x64xf32>
    %288 = vector.extract_strided_slice %254 {offsets = [64, 0], sizes = [64, 32], strides = [1, 1]} : vector<128x32xf32> to vector<64x32xf32>
    %cst_95 = arith.constant dense<0.000000e+00> : vector<64x32xf32>
    %289 = tpu.matmul %287, %288, %cst_95 {dimension_numbers = #tpu.dot_dimension_numbers<[1], [0], [0], [1], [0, 0, 1, 1], [], []>} : vector<64x64xf32>, vector<64x32xf32>, vector<64x32xf32> -> vector<64x32xf32>
    %290 = arith.addf %234, %289 : vector<64x32xf32>
    %c20_i32_96 = arith.constant 20 : i32
    %291 = vector.broadcast %c20_i32_96 : i32 to vector<1x32xi32>
    %292 = arith.cmpi sge, %7, %291 : vector<1x32xi32>
    %c24_i32 = arith.constant 24 : i32
    %293 = vector.broadcast %c24_i32 : i32 to vector<1x32xi32>
    %294 = arith.cmpi slt, %7, %293 : vector<1x32xi32>
    %295 = arith.andi %292, %294 : vector<1x32xi1>
    %c20_i32_97 = arith.constant 20 : i32
    %296 = vector.broadcast %c20_i32_97 : i32 to vector<1x32xi32>
    %297 = arith.cmpi sge, %8, %296 : vector<1x32xi32>
    %c24_i32_98 = arith.constant 24 : i32
    %298 = vector.broadcast %c24_i32_98 : i32 to vector<1x32xi32>
    %299 = arith.cmpi slt, %8, %298 : vector<1x32xi32>
    %300 = arith.andi %297, %299 : vector<1x32xi1>
    %cst_99 = arith.constant 5.000000e-01 : f32
    %cst_100 = arith.constant 0.000000e+00 : f32
    %301 = vector.broadcast %cst_99 : f32 to vector<1x32xf32>
    %302 = vector.broadcast %cst_100 : f32 to vector<1x32xf32>
    %303 = arith.select %295, %301, %302 : vector<1x32xi1>, vector<1x32xf32>
    %304 = vector.broadcast %303 : vector<1x32xf32> to vector<128x32xf32>
    %305 = arith.mulf %2, %304 : vector<128x32xf32>
    %cst_101 = arith.constant 1.000000e+00 : f32
    %cst_102 = arith.constant 0.000000e+00 : f32
    %306 = vector.broadcast %cst_101 : f32 to vector<1x32xf32>
    %307 = vector.broadcast %cst_102 : f32 to vector<1x32xf32>
    %308 = arith.select %300, %306, %307 : vector<1x32xi1>, vector<1x32xf32>
    %309 = vector.broadcast %308 : vector<1x32xf32> to vector<128x32xf32>
    %310 = arith.mulf %6, %309 : vector<128x32xf32>
    %c5 = arith.constant 5 : index
    %c0_103 = arith.constant 0 : index
    %c0_104 = arith.constant 0 : index
    %311 = vector.load %arg5[%c5, %c0_103, %c0_104] : memref<8x64x64xf32, #tpu.memory_space<vmem>>, vector<1x64x64xf32>
    %312 = vector.shape_cast %311 : vector<1x64x64xf32> to vector<64x64xf32>
    %313 = vector.extract_strided_slice %305 {offsets = [0, 0], sizes = [64, 32], strides = [1, 1]} : vector<128x32xf32> to vector<64x32xf32>
    %314 = vector.extract_strided_slice %4 {offsets = [0, 0], sizes = [64, 32], strides = [1, 1]} : vector<128x32xf32> to vector<64x32xf32>
    %cst_105 = arith.constant dense<0.000000e+00> : vector<64x64xf32>
    %315 = tpu.matmul %313, %314, %cst_105 {dimension_numbers = #tpu.dot_dimension_numbers<[1], [1], [0], [0], [0, 0, 1, 0], [], []>} : vector<64x32xf32>, vector<64x32xf32>, vector<64x64xf32> -> vector<64x64xf32>
    %316 = arith.addf %315, %312 : vector<64x64xf32>
    %cst_106 = arith.constant dense<0xFF800000> : vector<64xf32>
    %317 = vector.multi_reduction <maximumf>, %316, %cst_106 [1] : vector<64x64xf32> to vector<64xf32>
    %318 = vector.shape_cast %317 : vector<64xf32> to vector<64x1xf32>
    %319 = vector.broadcast %318 : vector<64x1xf32> to vector<64x64xf32>
    %320 = arith.subf %316, %319 : vector<64x64xf32>
    %321 = math.exp %320 : vector<64x64xf32>
    %cst_107 = arith.constant dense<0.000000e+00> : vector<64xf32>
    %322 = vector.multi_reduction <add>, %321, %cst_107 [1] : vector<64x64xf32> to vector<64xf32>
    %323 = vector.shape_cast %322 : vector<64xf32> to vector<64x1xf32>
    %324 = tpu.reciprocal %323 {approx = true} : vector<64x1xf32> -> vector<64x1xf32>
    %325 = vector.broadcast %324 : vector<64x1xf32> to vector<64x64xf32>
    %326 = arith.mulf %321, %325 : vector<64x64xf32>
    %327 = vector.extract_strided_slice %310 {offsets = [0, 0], sizes = [64, 32], strides = [1, 1]} : vector<128x32xf32> to vector<64x32xf32>
    %cst_108 = arith.constant dense<0.000000e+00> : vector<64x32xf32>
    %328 = tpu.matmul %326, %327, %cst_108 {dimension_numbers = #tpu.dot_dimension_numbers<[1], [0], [0], [1], [0, 0, 1, 1], [], []>} : vector<64x64xf32>, vector<64x32xf32>, vector<64x32xf32> -> vector<64x32xf32>
    %329 = arith.addf %273, %328 : vector<64x32xf32>
    %330 = vector.extract_strided_slice %305 {offsets = [64, 0], sizes = [64, 32], strides = [1, 1]} : vector<128x32xf32> to vector<64x32xf32>
    %331 = vector.extract_strided_slice %4 {offsets = [64, 0], sizes = [64, 32], strides = [1, 1]} : vector<128x32xf32> to vector<64x32xf32>
    %cst_109 = arith.constant dense<0.000000e+00> : vector<64x64xf32>
    %332 = tpu.matmul %330, %331, %cst_109 {dimension_numbers = #tpu.dot_dimension_numbers<[1], [1], [0], [0], [0, 0, 1, 0], [], []>} : vector<64x32xf32>, vector<64x32xf32>, vector<64x64xf32> -> vector<64x64xf32>
    %333 = arith.addf %332, %312 : vector<64x64xf32>
    %cst_110 = arith.constant dense<0xFF800000> : vector<64xf32>
    %334 = vector.multi_reduction <maximumf>, %333, %cst_110 [1] : vector<64x64xf32> to vector<64xf32>
    %335 = vector.shape_cast %334 : vector<64xf32> to vector<64x1xf32>
    %336 = vector.broadcast %335 : vector<64x1xf32> to vector<64x64xf32>
    %337 = arith.subf %333, %336 : vector<64x64xf32>
    %338 = math.exp %337 : vector<64x64xf32>
    %cst_111 = arith.constant dense<0.000000e+00> : vector<64xf32>
    %339 = vector.multi_reduction <add>, %338, %cst_111 [1] : vector<64x64xf32> to vector<64xf32>
    %340 = vector.shape_cast %339 : vector<64xf32> to vector<64x1xf32>
    %341 = tpu.reciprocal %340 {approx = true} : vector<64x1xf32> -> vector<64x1xf32>
    %342 = vector.broadcast %341 : vector<64x1xf32> to vector<64x64xf32>
    %343 = arith.mulf %338, %342 : vector<64x64xf32>
    %344 = vector.extract_strided_slice %310 {offsets = [64, 0], sizes = [64, 32], strides = [1, 1]} : vector<128x32xf32> to vector<64x32xf32>
    %cst_112 = arith.constant dense<0.000000e+00> : vector<64x32xf32>
    %345 = tpu.matmul %343, %344, %cst_112 {dimension_numbers = #tpu.dot_dimension_numbers<[1], [0], [0], [1], [0, 0, 1, 1], [], []>} : vector<64x64xf32>, vector<64x32xf32>, vector<64x32xf32> -> vector<64x32xf32>
    %346 = arith.addf %290, %345 : vector<64x32xf32>
    %c24_i32_113 = arith.constant 24 : i32
    %347 = vector.broadcast %c24_i32_113 : i32 to vector<1x32xi32>
    %348 = arith.cmpi sge, %7, %347 : vector<1x32xi32>
    %c28_i32 = arith.constant 28 : i32
    %349 = vector.broadcast %c28_i32 : i32 to vector<1x32xi32>
    %350 = arith.cmpi slt, %7, %349 : vector<1x32xi32>
    %351 = arith.andi %348, %350 : vector<1x32xi1>
    %c24_i32_114 = arith.constant 24 : i32
    %352 = vector.broadcast %c24_i32_114 : i32 to vector<1x32xi32>
    %353 = arith.cmpi sge, %8, %352 : vector<1x32xi32>
    %c28_i32_115 = arith.constant 28 : i32
    %354 = vector.broadcast %c28_i32_115 : i32 to vector<1x32xi32>
    %355 = arith.cmpi slt, %8, %354 : vector<1x32xi32>
    %356 = arith.andi %353, %355 : vector<1x32xi1>
    %cst_116 = arith.constant 5.000000e-01 : f32
    %cst_117 = arith.constant 0.000000e+00 : f32
    %357 = vector.broadcast %cst_116 : f32 to vector<1x32xf32>
    %358 = vector.broadcast %cst_117 : f32 to vector<1x32xf32>
    %359 = arith.select %351, %357, %358 : vector<1x32xi1>, vector<1x32xf32>
    %360 = vector.broadcast %359 : vector<1x32xf32> to vector<128x32xf32>
    %361 = arith.mulf %2, %360 : vector<128x32xf32>
    %cst_118 = arith.constant 1.000000e+00 : f32
    %cst_119 = arith.constant 0.000000e+00 : f32
    %362 = vector.broadcast %cst_118 : f32 to vector<1x32xf32>
    %363 = vector.broadcast %cst_119 : f32 to vector<1x32xf32>
    %364 = arith.select %356, %362, %363 : vector<1x32xi1>, vector<1x32xf32>
    %365 = vector.broadcast %364 : vector<1x32xf32> to vector<128x32xf32>
    %366 = arith.mulf %6, %365 : vector<128x32xf32>
    %c6 = arith.constant 6 : index
    %c0_120 = arith.constant 0 : index
    %c0_121 = arith.constant 0 : index
    %367 = vector.load %arg5[%c6, %c0_120, %c0_121] : memref<8x64x64xf32, #tpu.memory_space<vmem>>, vector<1x64x64xf32>
    %368 = vector.shape_cast %367 : vector<1x64x64xf32> to vector<64x64xf32>
    %369 = vector.extract_strided_slice %361 {offsets = [0, 0], sizes = [64, 32], strides = [1, 1]} : vector<128x32xf32> to vector<64x32xf32>
    %370 = vector.extract_strided_slice %4 {offsets = [0, 0], sizes = [64, 32], strides = [1, 1]} : vector<128x32xf32> to vector<64x32xf32>
    %cst_122 = arith.constant dense<0.000000e+00> : vector<64x64xf32>
    %371 = tpu.matmul %369, %370, %cst_122 {dimension_numbers = #tpu.dot_dimension_numbers<[1], [1], [0], [0], [0, 0, 1, 0], [], []>} : vector<64x32xf32>, vector<64x32xf32>, vector<64x64xf32> -> vector<64x64xf32>
    %372 = arith.addf %371, %368 : vector<64x64xf32>
    %cst_123 = arith.constant dense<0xFF800000> : vector<64xf32>
    %373 = vector.multi_reduction <maximumf>, %372, %cst_123 [1] : vector<64x64xf32> to vector<64xf32>
    %374 = vector.shape_cast %373 : vector<64xf32> to vector<64x1xf32>
    %375 = vector.broadcast %374 : vector<64x1xf32> to vector<64x64xf32>
    %376 = arith.subf %372, %375 : vector<64x64xf32>
    %377 = math.exp %376 : vector<64x64xf32>
    %cst_124 = arith.constant dense<0.000000e+00> : vector<64xf32>
    %378 = vector.multi_reduction <add>, %377, %cst_124 [1] : vector<64x64xf32> to vector<64xf32>
    %379 = vector.shape_cast %378 : vector<64xf32> to vector<64x1xf32>
    %380 = tpu.reciprocal %379 {approx = true} : vector<64x1xf32> -> vector<64x1xf32>
    %381 = vector.broadcast %380 : vector<64x1xf32> to vector<64x64xf32>
    %382 = arith.mulf %377, %381 : vector<64x64xf32>
    %383 = vector.extract_strided_slice %366 {offsets = [0, 0], sizes = [64, 32], strides = [1, 1]} : vector<128x32xf32> to vector<64x32xf32>
    %cst_125 = arith.constant dense<0.000000e+00> : vector<64x32xf32>
    %384 = tpu.matmul %382, %383, %cst_125 {dimension_numbers = #tpu.dot_dimension_numbers<[1], [0], [0], [1], [0, 0, 1, 1], [], []>} : vector<64x64xf32>, vector<64x32xf32>, vector<64x32xf32> -> vector<64x32xf32>
    %385 = arith.addf %329, %384 : vector<64x32xf32>
    %386 = vector.extract_strided_slice %361 {offsets = [64, 0], sizes = [64, 32], strides = [1, 1]} : vector<128x32xf32> to vector<64x32xf32>
    %387 = vector.extract_strided_slice %4 {offsets = [64, 0], sizes = [64, 32], strides = [1, 1]} : vector<128x32xf32> to vector<64x32xf32>
    %cst_126 = arith.constant dense<0.000000e+00> : vector<64x64xf32>
    %388 = tpu.matmul %386, %387, %cst_126 {dimension_numbers = #tpu.dot_dimension_numbers<[1], [1], [0], [0], [0, 0, 1, 0], [], []>} : vector<64x32xf32>, vector<64x32xf32>, vector<64x64xf32> -> vector<64x64xf32>
    %389 = arith.addf %388, %368 : vector<64x64xf32>
    %cst_127 = arith.constant dense<0xFF800000> : vector<64xf32>
    %390 = vector.multi_reduction <maximumf>, %389, %cst_127 [1] : vector<64x64xf32> to vector<64xf32>
    %391 = vector.shape_cast %390 : vector<64xf32> to vector<64x1xf32>
    %392 = vector.broadcast %391 : vector<64x1xf32> to vector<64x64xf32>
    %393 = arith.subf %389, %392 : vector<64x64xf32>
    %394 = math.exp %393 : vector<64x64xf32>
    %cst_128 = arith.constant dense<0.000000e+00> : vector<64xf32>
    %395 = vector.multi_reduction <add>, %394, %cst_128 [1] : vector<64x64xf32> to vector<64xf32>
    %396 = vector.shape_cast %395 : vector<64xf32> to vector<64x1xf32>
    %397 = tpu.reciprocal %396 {approx = true} : vector<64x1xf32> -> vector<64x1xf32>
    %398 = vector.broadcast %397 : vector<64x1xf32> to vector<64x64xf32>
    %399 = arith.mulf %394, %398 : vector<64x64xf32>
    %400 = vector.extract_strided_slice %366 {offsets = [64, 0], sizes = [64, 32], strides = [1, 1]} : vector<128x32xf32> to vector<64x32xf32>
    %cst_129 = arith.constant dense<0.000000e+00> : vector<64x32xf32>
    %401 = tpu.matmul %399, %400, %cst_129 {dimension_numbers = #tpu.dot_dimension_numbers<[1], [0], [0], [1], [0, 0, 1, 1], [], []>} : vector<64x64xf32>, vector<64x32xf32>, vector<64x32xf32> -> vector<64x32xf32>
    %402 = arith.addf %346, %401 : vector<64x32xf32>
    %c28_i32_130 = arith.constant 28 : i32
    %403 = vector.broadcast %c28_i32_130 : i32 to vector<1x32xi32>
    %404 = arith.cmpi sge, %7, %403 : vector<1x32xi32>
    %c32_i32 = arith.constant 32 : i32
    %405 = vector.broadcast %c32_i32 : i32 to vector<1x32xi32>
    %406 = arith.cmpi slt, %7, %405 : vector<1x32xi32>
    %407 = arith.andi %404, %406 : vector<1x32xi1>
    %c28_i32_131 = arith.constant 28 : i32
    %408 = vector.broadcast %c28_i32_131 : i32 to vector<1x32xi32>
    %409 = arith.cmpi sge, %8, %408 : vector<1x32xi32>
    %c32_i32_132 = arith.constant 32 : i32
    %410 = vector.broadcast %c32_i32_132 : i32 to vector<1x32xi32>
    %411 = arith.cmpi slt, %8, %410 : vector<1x32xi32>
    %412 = arith.andi %409, %411 : vector<1x32xi1>
    %cst_133 = arith.constant 5.000000e-01 : f32
    %cst_134 = arith.constant 0.000000e+00 : f32
    %413 = vector.broadcast %cst_133 : f32 to vector<1x32xf32>
    %414 = vector.broadcast %cst_134 : f32 to vector<1x32xf32>
    %415 = arith.select %407, %413, %414 : vector<1x32xi1>, vector<1x32xf32>
    %416 = vector.broadcast %415 : vector<1x32xf32> to vector<128x32xf32>
    %417 = arith.mulf %2, %416 : vector<128x32xf32>
    %cst_135 = arith.constant 1.000000e+00 : f32
    %cst_136 = arith.constant 0.000000e+00 : f32
    %418 = vector.broadcast %cst_135 : f32 to vector<1x32xf32>
    %419 = vector.broadcast %cst_136 : f32 to vector<1x32xf32>
    %420 = arith.select %412, %418, %419 : vector<1x32xi1>, vector<1x32xf32>
    %421 = vector.broadcast %420 : vector<1x32xf32> to vector<128x32xf32>
    %422 = arith.mulf %6, %421 : vector<128x32xf32>
    %c7 = arith.constant 7 : index
    %c0_137 = arith.constant 0 : index
    %c0_138 = arith.constant 0 : index
    %423 = vector.load %arg5[%c7, %c0_137, %c0_138] : memref<8x64x64xf32, #tpu.memory_space<vmem>>, vector<1x64x64xf32>
    %424 = vector.shape_cast %423 : vector<1x64x64xf32> to vector<64x64xf32>
    %425 = vector.extract_strided_slice %417 {offsets = [0, 0], sizes = [64, 32], strides = [1, 1]} : vector<128x32xf32> to vector<64x32xf32>
    %426 = vector.extract_strided_slice %4 {offsets = [0, 0], sizes = [64, 32], strides = [1, 1]} : vector<128x32xf32> to vector<64x32xf32>
    %cst_139 = arith.constant dense<0.000000e+00> : vector<64x64xf32>
    %427 = tpu.matmul %425, %426, %cst_139 {dimension_numbers = #tpu.dot_dimension_numbers<[1], [1], [0], [0], [0, 0, 1, 0], [], []>} : vector<64x32xf32>, vector<64x32xf32>, vector<64x64xf32> -> vector<64x64xf32>
    %428 = arith.addf %427, %424 : vector<64x64xf32>
    %cst_140 = arith.constant dense<0xFF800000> : vector<64xf32>
    %429 = vector.multi_reduction <maximumf>, %428, %cst_140 [1] : vector<64x64xf32> to vector<64xf32>
    %430 = vector.shape_cast %429 : vector<64xf32> to vector<64x1xf32>
    %431 = vector.broadcast %430 : vector<64x1xf32> to vector<64x64xf32>
    %432 = arith.subf %428, %431 : vector<64x64xf32>
    %433 = math.exp %432 : vector<64x64xf32>
    %cst_141 = arith.constant dense<0.000000e+00> : vector<64xf32>
    %434 = vector.multi_reduction <add>, %433, %cst_141 [1] : vector<64x64xf32> to vector<64xf32>
    %435 = vector.shape_cast %434 : vector<64xf32> to vector<64x1xf32>
    %436 = tpu.reciprocal %435 {approx = true} : vector<64x1xf32> -> vector<64x1xf32>
    %437 = vector.broadcast %436 : vector<64x1xf32> to vector<64x64xf32>
    %438 = arith.mulf %433, %437 : vector<64x64xf32>
    %439 = vector.extract_strided_slice %422 {offsets = [0, 0], sizes = [64, 32], strides = [1, 1]} : vector<128x32xf32> to vector<64x32xf32>
    %cst_142 = arith.constant dense<0.000000e+00> : vector<64x32xf32>
    %440 = tpu.matmul %438, %439, %cst_142 {dimension_numbers = #tpu.dot_dimension_numbers<[1], [0], [0], [1], [0, 0, 1, 1], [], []>} : vector<64x64xf32>, vector<64x32xf32>, vector<64x32xf32> -> vector<64x32xf32>
    %441 = arith.addf %385, %440 : vector<64x32xf32>
    %442 = vector.extract_strided_slice %417 {offsets = [64, 0], sizes = [64, 32], strides = [1, 1]} : vector<128x32xf32> to vector<64x32xf32>
    %443 = vector.extract_strided_slice %4 {offsets = [64, 0], sizes = [64, 32], strides = [1, 1]} : vector<128x32xf32> to vector<64x32xf32>
    %cst_143 = arith.constant dense<0.000000e+00> : vector<64x64xf32>
    %444 = tpu.matmul %442, %443, %cst_143 {dimension_numbers = #tpu.dot_dimension_numbers<[1], [1], [0], [0], [0, 0, 1, 0], [], []>} : vector<64x32xf32>, vector<64x32xf32>, vector<64x64xf32> -> vector<64x64xf32>
    %445 = arith.addf %444, %424 : vector<64x64xf32>
    %cst_144 = arith.constant dense<0xFF800000> : vector<64xf32>
    %446 = vector.multi_reduction <maximumf>, %445, %cst_144 [1] : vector<64x64xf32> to vector<64xf32>
    %447 = vector.shape_cast %446 : vector<64xf32> to vector<64x1xf32>
    %448 = vector.broadcast %447 : vector<64x1xf32> to vector<64x64xf32>
    %449 = arith.subf %445, %448 : vector<64x64xf32>
    %450 = math.exp %449 : vector<64x64xf32>
    %cst_145 = arith.constant dense<0.000000e+00> : vector<64xf32>
    %451 = vector.multi_reduction <add>, %450, %cst_145 [1] : vector<64x64xf32> to vector<64xf32>
    %452 = vector.shape_cast %451 : vector<64xf32> to vector<64x1xf32>
    %453 = tpu.reciprocal %452 {approx = true} : vector<64x1xf32> -> vector<64x1xf32>
    %454 = vector.broadcast %453 : vector<64x1xf32> to vector<64x64xf32>
    %455 = arith.mulf %450, %454 : vector<64x64xf32>
    %456 = vector.extract_strided_slice %422 {offsets = [64, 0], sizes = [64, 32], strides = [1, 1]} : vector<128x32xf32> to vector<64x32xf32>
    %cst_146 = arith.constant dense<0.000000e+00> : vector<64x32xf32>
    %457 = tpu.matmul %455, %456, %cst_146 {dimension_numbers = #tpu.dot_dimension_numbers<[1], [0], [0], [1], [0, 0, 1, 1], [], []>} : vector<64x64xf32>, vector<64x32xf32>, vector<64x32xf32> -> vector<64x32xf32>
    %458 = arith.addf %402, %457 : vector<64x32xf32>
    %459 = tpu.concatenate %441, %458 in 0 : vector<64x32xf32>, vector<64x32xf32> -> vector<128x32xf32>
    %c0_147 = arith.constant 0 : index
    %c0_148 = arith.constant 0 : index
    %460 = vector.load %arg6[%c0_147, %c0_148] : memref<32x32xf32, #tpu.memory_space<vmem>>, vector<32x32xf32>
    %cst_149 = arith.constant dense<0.000000e+00> : vector<128x32xf32>
    %461 = tpu.matmul %459, %460, %cst_149 {dimension_numbers = #tpu.dot_dimension_numbers<[1], [0], [0], [1], [0, 0, 1, 1], [], []>} : vector<128x32xf32>, vector<32x32xf32>, vector<128x32xf32> -> vector<128x32xf32>
    %c0_150 = arith.constant 0 : index
    %c0_151 = arith.constant 0 : index
    %462 = vector.load %arg7[%c0_150, %c0_151] : memref<1x32xf32, #tpu.memory_space<vmem>>, vector<1x32xf32>
    %463 = vector.broadcast %462 : vector<1x32xf32> to vector<128x32xf32>
    %464 = arith.addf %461, %463 : vector<128x32xf32>
    %c0_152 = arith.constant 0 : index
    %c0_153 = arith.constant 0 : index
    %465 = vector.load %arg8[%c0_152, %c0_153] : memref<128x32xf32, #tpu.memory_space<vmem>>, vector<128x32xf32>
    tpu.vector_store %arg8[%c0_152, %c0_153], %464 {strides = array<i32>} : memref<128x32xf32, #tpu.memory_space<vmem>>, vector<128x32xf32>,
    return
  }
  func.func @transform_0(%arg0: i32) -> (i32, i32) {
    %c0_i32 = arith.constant 0 : i32
    %c0_i32_0 = arith.constant 0 : i32
    %c0_i32_1 = arith.constant 0 : i32
    return %c0_i32, %c0_i32_0 : i32, i32
  }
  func.func @transform_1(%arg0: i32) -> (i32, i32) {
    %c0_i32 = arith.constant 0 : i32
    %c0_i32_0 = arith.constant 0 : i32
    %c0_i32_1 = arith.constant 0 : i32
    return %c0_i32, %c0_i32_0 : i32, i32
  }
  func.func @transform_2(%arg0: i32) -> (i32, i32) {
    %c0_i32 = arith.constant 0 : i32
    %c0_i32_0 = arith.constant 0 : i32
    %c0_i32_1 = arith.constant 0 : i32
    return %c0_i32, %c0_i32_0 : i32, i32
  }
  func.func @transform_3(%arg0: i32) -> (i32, i32) {
    %c0_i32 = arith.constant 0 : i32
    %c0_i32_0 = arith.constant 0 : i32
    %c0_i32_1 = arith.constant 0 : i32
    return %c0_i32, %c0_i32_0 : i32, i32
  }
  func.func @transform_4(%arg0: i32) -> (i32, i32, i32) {
    %c0_i32 = arith.constant 0 : i32
    %c0_i32_0 = arith.constant 0 : i32
    %c0_i32_1 = arith.constant 0 : i32
    %c0_i32_2 = arith.constant 0 : i32
    return %c0_i32, %c0_i32_0, %c0_i32_1 : i32, i32, i32
  }
  func.func @transform_5(%arg0: i32) -> (i32, i32) {
    %c0_i32 = arith.constant 0 : i32
    %c0_i32_0 = arith.constant 0 : i32
    %c0_i32_1 = arith.constant 0 : i32
    return %c0_i32, %c0_i32_0 : i32, i32
  }
  func.func @transform_6(%arg0: i32) -> (i32, i32) {
    %c0_i32 = arith.constant 0 : i32
    %c0_i32_0 = arith.constant 0 : i32
    %c0_i32_1 = arith.constant 0 : i32
    return %c0_i32, %c0_i32_0 : i32, i32
  }
  func.func @transform_7(%arg0: i32) -> (i32, i32) {
    %c0_i32 = arith.constant 0 : i32
    %c0_i32_0 = arith.constant 0 : i32
    %c0_i32_1 = arith.constant 0 : i32
    return %c0_i32, %c0_i32_0 : i32, i32
  }
}

</mosaic_0001>

<llo_original>
// kernel: tpu_custom_call.1
$region0: #{tpu_custom_call.1}
  #allocation0 [shape = 'u32[]', space=smem, size = 0x4, offset = 0x4, fixed_abs, tag = 'smem constant byte address 0x4 - core index']
  #allocation1 [shape = 'u32[144,128]{1,0:T(1,128)}', space=vmem, size = 0x12000, scoped, tag = 'internal scratch']
  %s0 = inlined_call_operand.vmem [shape: f32[128,32], index: 0, kind: input, shape index: {}]
  %s1 = inlined_call_operand.vmem [shape: f32[32,32], index: 1, kind: input, shape index: {}]
  %s2 = inlined_call_operand.vmem [shape: f32[32,32], index: 2, kind: input, shape index: {}]
  %s3 = inlined_call_operand.vmem [shape: f32[32,32], index: 3, kind: input, shape index: {}]
  %s4 = inlined_call_operand.hbm [shape: f32[8,64,64], index: 4, kind: input, shape index: {}]
  %s5 = inlined_call_operand.vmem [shape: f32[32,32], index: 5, kind: input, shape index: {}]
  %s6 = inlined_call_operand.vmem [shape: f32[1,32], index: 6, kind: input, shape index: {}]
  %s7 = inlined_call_operand.vmem [shape: f32[128,32], index: 7, kind: output, shape index: {}]
  %s8 = sld [smem:[#allocation0]]
  $region42: #{tpu_custom_call.1} parent=0
    _
  %s10 = ssub.s32 1, %s8
  %s11 = scalar_select 0, %s10, %s8
  $region1: #{tpu_custom_call.1} parent=0
    #allocation2 [shape = 'u8[262144]{0}', space=vmem, size = 0x40000, scoped, tag = 'input window, operand 4, single buffered']
    #allocation3 [shape = 's32[1]{0}', space=sflag, size = 0x4, scoped, tag = 'scoped memory for tpu_custom_call.1']
    %12 = vsyncpa [#allocation3], 0
    // Predicated region
    $region2: #{tpu_custom_call.1} parent=1 // pred_check
      _
    $region3: #{tpu_custom_call.1} parent=1 // pred_check_branch
      %14 = sbr.rel (0) target = $region5
    $region4: #{tpu_custom_call.1} parent=1 // pred_region
      _
    $region5: #{tpu_custom_call.1} parent=1 // pred_fallthru
      _
    // Predicated region
    $region6: #{tpu_custom_call.1} parent=1 // pred_check
      _
    $region7: #{tpu_custom_call.1} parent=1 // pred_check_branch
      %16 = sbr.rel (0) target = $region9
    $region8: #{tpu_custom_call.1} parent=1 // pred_region
      _
    $region9: #{tpu_custom_call.1} parent=1 // pred_fallthru
      _
    // Predicated region
    $region10: #{tpu_custom_call.1} parent=1 // pred_check
      _
    $region11: #{tpu_custom_call.1} parent=1 // pred_check_branch
      %18 = sbr.rel (0) target = $region13
    $region12: #{tpu_custom_call.1} parent=1 // pred_region
      _
    $region13: #{tpu_custom_call.1} parent=1 // pred_fallthru
      _
    // Predicated region
    $region14: #{tpu_custom_call.1} parent=1 // pred_check
      _
    $region15: #{tpu_custom_call.1} parent=1 // pred_check_branch
      %20 = sbr.rel (0) target = $region17
    $region16: #{tpu_custom_call.1} parent=1 // pred_region
      _
    $region17: #{tpu_custom_call.1} parent=1 // pred_fallthru
      _
    // Predicated region
    $region18: #{tpu_custom_call.1} parent=1 // pred_check
      _
    $region19: #{tpu_custom_call.1} parent=1 // pred_check_branch
      %22 = sbr.rel (0) target = $region21
    $region20: #{tpu_custom_call.1} parent=1 // pred_region
      %s24 = ssub.s32 8192, 8192
      %25 = vsyncadd [#allocation3], %s24
      %s26 = sshll.u32 [#allocation2], 4
      %s27 = int_to_ptr.vmem [resolvable:$true] %s26
      %32 = dma.hbm_to_vmem [thread:$0]  %s4, 8192, %s27, [#allocation3], 128, 128, 8
    $region21: #{tpu_custom_call.1} parent=1 // pred_fallthru
      _
    // Predicated region
    $region22: #{tpu_custom_call.1} parent=1 // pred_check
      _
    $region23: #{tpu_custom_call.1} parent=1 // pred_check_branch
      %34 = sbr.rel (0) target = $region25
    $region24: #{tpu_custom_call.1} parent=1 // pred_region
      _
    $region25: #{tpu_custom_call.1} parent=1 // pred_fallthru
      _
    // Predicated region
    $region26: #{tpu_custom_call.1} parent=1 // pred_check
      _
    $region27: #{tpu_custom_call.1} parent=1 // pred_check_branch
      %36 = sbr.rel (0) target = $region29
    $region28: #{tpu_custom_call.1} parent=1 // pred_region
      _
    $region29: #{tpu_custom_call.1} parent=1 // pred_fallthru
      _
    // Predicated region
    $region30: #{tpu_custom_call.1} parent=1 // pred_check
      _
    $region31: #{tpu_custom_call.1} parent=1 // pred_check_branch
      %38 = sbr.rel (0) target = $region33
    $region32: #{tpu_custom_call.1} parent=1 // pred_region
      %39 = dma.done [#allocation3], 8192
    $region33: #{tpu_custom_call.1} parent=1 // pred_fallthru
      _
    %v40 = vld [vmem:[%s0] sm:$0xff]
    %v41 = vld [vmem:[%s0 + $0x8] sm:$0xff]
    %v42 = vld [vmem:[%s0 + $0x10] sm:$0xff]
    %v43 = vld [vmem:[%s0 + $0x18] sm:$0xff]
    %v44 = vld [vmem:[%s0 + $0x20] sm:$0xff]
    %v45 = vld [vmem:[%s0 + $0x28] sm:$0xff]
    %v46 = vld [vmem:[%s0 + $0x30] sm:$0xff]
    %v47 = vld [vmem:[%s0 + $0x38] sm:$0xff]
    %v48 = vld [vmem:[%s0 + $0x40] sm:$0xff]
    %v49 = vld [vmem:[%s0 + $0x48] sm:$0xff]
    %v50 = vld [vmem:[%s0 + $0x50] sm:$0xff]
    %v51 = vld [vmem:[%s0 + $0x58] sm:$0xff]
    %v52 = vld [vmem:[%s0 + $0x60] sm:$0xff]
    %v53 = vld [vmem:[%s0 + $0x68] sm:$0xff]
    %v54 = vld [vmem:[%s0 + $0x70] sm:$0xff]
    %v55 = vld [vmem:[%s0 + $0x78] sm:$0xff]
    %v56 = vld [vmem:[%s1] sm:$0xff]
    %v57 = vld [vmem:[%s1 + $0x8] sm:$0xff]
    %v58 = vld [vmem:[%s1 + $0x10] sm:$0xff]
    %v59 = vld [vmem:[%s1 + $0x18] sm:$0xff]
    %vm60 = vcmask 261120
    %v62 = vsel %vm60, %v40, 0
    %v65 = vsel %vm60, %v41, 0
    %v68 = vsel %vm60, %v42, 0
    %v71 = vsel %vm60, %v43, 0
    %v74 = vsel %vm60, %v44, 0
    %v77 = vsel %vm60, %v45, 0
    %v80 = vsel %vm60, %v46, 0
    %v83 = vsel %vm60, %v47, 0
    %v86 = vsel %vm60, %v48, 0
    %v89 = vsel %vm60, %v49, 0
    %v92 = vsel %vm60, %v50, 0
    %v95 = vsel %vm60, %v51, 0
    %v98 = vsel %vm60, %v52, 0
    %v101 = vsel %vm60, %v53, 0
    %v104 = vsel %vm60, %v54, 0
    %v107 = vsel %vm60, %v55, 0
    %109 = vmatprep.subr.mxu0 0.0
    %110 = vmatpush1.msra.mxu0 %v56
    %111 = vmatprep.subr.mxu0 0.0
    %112 = vmatpush1.msra.mxu0 %v57
    %113 = vmatprep.subr.mxu0 0.0
    %114 = vmatpush1.msra.mxu0 %v58
    %115 = vmatprep.subr.mxu0 0.0
    %116 = vmatpush1.msra.mxu0 %v59
    %117 = vmatprep.subr.mxu0 0.0
    %118 = vmatpush1.msra.mxu0 0.0
    %119 = vmatprep.subr.mxu0 0.0
    %120 = vmatpush1.msra.mxu0 0.0
    %121 = vmatprep.subr.mxu0 0.0
    %122 = vmatpush1.msra.mxu0 0.0
    %123 = vmatprep.subr.mxu0 0.0
    %124 = vmatpush1.msra.mxu0 0.0
    %125 = vmatprep.subr.mxu0 0.0
    %126 = vmatpush1.msra.mxu0 0.0
    %127 = vmatprep.subr.mxu0 0.0
    %128 = vmatpush1.msra.mxu0 0.0
    %129 = vmatprep.subr.mxu0 0.0
    %130 = vmatpush1.msra.mxu0 0.0
    %131 = vmatprep.subr.mxu0 0.0
    %132 = vmatpush1.msra.mxu0 0.0
    %133 = vmatprep.subr.mxu0 0.0
    %134 = vmatpush1.msra.mxu0 0.0
    %135 = vmatprep.subr.mxu0 0.0
    %136 = vmatpush1.msra.mxu0 0.0
    %137 = vmatprep.subr.mxu0 0.0
    %138 = vmatpush1.msra.mxu0 0.0
    %139 = vmatprep.subr.mxu0 0.0
    %140 = vmatpush1.msra.mxu0 0.0
    %141 = vmatprep.subr.mxu0 0.0
    %142 = vmatpush1.msra.mxu0 0.0
    %143 = vmatprep.subr.mxu0 0.0
    %144 = vmatpush1.msra.mxu0 0.0
    %145 = vmatprep.subr.mxu0 0.0
    %146 = vmatpush1.msra.mxu0 0.0
    %147 = vmatprep.subr.mxu0 0.0
    %148 = vmatpush1.msra.mxu0 0.0
    %149 = vmatprep.subr.mxu0 0.0
    %150 = vmatpush1.msra.mxu0 0.0
    %151 = vmatprep.subr.mxu0 0.0
    %152 = vmatpush1.msra.mxu0 0.0
    %153 = vmatprep.subr.mxu0 0.0
    %154 = vmatpush1.msra.mxu0 0.0
    %155 = vmatprep.subr.mxu0 0.0
    %156 = vmatpush1.msra.mxu0 0.0
    %157 = vmatprep.subr.mxu0 0.0
    %158 = vmatpush1.msra.mxu0 0.0
    %159 = vmatprep.subr.mxu0 0.0
    %160 = vmatpush1.msra.mxu0 0.0
    %161 = vmatprep.subr.mxu0 0.0
    %162 = vmatpush1.msra.mxu0 0.0
    %163 = vmatprep.subr.mxu0 0.0
    %164 = vmatpush1.msra.mxu0 0.0
    %165 = vmatprep.subr.mxu0 0.0
    %166 = vmatpush1.msra.mxu0 0.0
    %167 = vmatprep.subr.mxu0 0.0
    %168 = vmatpush1.msra.mxu0 0.0
    %169 = vmatprep.subr.mxu0 0.0
    %170 = vmatpush1.msra.mxu0 0.0
    %171 = vmatprep.subr.mxu0 0.0
    %172 = vmatpush1.msra.mxu0 0.0
    %173 = vmatprep.mubr.f32.mxu0 0.0
    %174 = vmatmul.mubr.f32.gmra.mrb[0].mxu0 %v62
    %v175 = vpop.f32.mrb[0].mxu0
    %v176 = vadd.f32 0.0, %v175
    %v177 = vpop.f32.mrb[0].mxu0
    %178 = vmatprep.mubr.f32.mxu0 0.0
    %179 = vmatmul.mubr.f32.gmra.mrb[0].mxu0 %v65
    %v180 = vpop.f32.mrb[0].mxu0
    %v181 = vadd.f32 0.0, %v180
    %v182 = vpop.f32.mrb[0].mxu0
    %183 = vmatprep.mubr.f32.mxu0 0.0
    %184 = vmatmul.mubr.f32.gmra.mrb[0].mxu0 %v68
    %v185 = vpop.f32.mrb[0].mxu0
    %v186 = vadd.f32 0.0, %v185
    %v187 = vpop.f32.mrb[0].mxu0
    %188 = vmatprep.mubr.f32.mxu0 0.0
    %189 = vmatmul.mubr.f32.gmra.mrb[0].mxu0 %v71
    %v190 = vpop.f32.mrb[0].mxu0
    %v191 = vadd.f32 0.0, %v190
    %v192 = vpop.f32.mrb[0].mxu0
    %193 = vmatprep.mubr.f32.mxu0 0.0
    %194 = vmatmul.mubr.f32.gmra.mrb[0].mxu0 %v74
    %v195 = vpop.f32.mrb[0].mxu0
    %v196 = vadd.f32 0.0, %v195
    %v197 = vpop.f32.mrb[0].mxu0
    %198 = vmatprep.mubr.f32.mxu0 0.0
    %199 = vmatmul.mubr.f32.gmra.mrb[0].mxu0 %v77
    %v200 = vpop.f32.mrb[0].mxu0
    %v201 = vadd.f32 0.0, %v200
    %v202 = vpop.f32.mrb[0].mxu0
    %203 = vmatprep.mubr.f32.mxu0 0.0
    %204 = vmatmul.mubr.f32.gmra.mrb[0].mxu0 %v80
    %v205 = vpop.f32.mrb[0].mxu0
    %v206 = vadd.f32 0.0, %v205
    %v207 = vpop.f32.mrb[0].mxu0
    %208 = vmatprep.mubr.f32.mxu0 0.0
    %209 = vmatmul.mubr.f32.gmra.mrb[0].mxu0 %v83
    %v210 = vpop.f32.mrb[0].mxu0
    %v211 = vadd.f32 0.0, %v210
    %v212 = vpop.f32.mrb[0].mxu0
    %213 = vmatprep.mubr.f32.mxu0 0.0
    %214 = vmatmul.mubr.f32.gmra.mrb[0].mxu0 %v86
    %v215 = vpop.f32.mrb[0].mxu0
    %v216 = vadd.f32 0.0, %v215
    %v217 = vpop.f32.mrb[0].mxu0
    %218 = vmatprep.mubr.f32.mxu0 0.0
    %219 = vmatmul.mubr.f32.gmra.mrb[0].mxu0 %v89
    %v220 = vpop.f32.mrb[0].mxu0
    %v221 = vadd.f32 0.0, %v220
    %v222 = vpop.f32.mrb[0].mxu0
    %223 = vmatprep.mubr.f32.mxu0 0.0
    %224 = vmatmul.mubr.f32.gmra.mrb[0].mxu0 %v92
    %v225 = vpop.f32.mrb[0].mxu0
    %v226 = vadd.f32 0.0, %v225
    %v227 = vpop.f32.mrb[0].mxu0
    %228 = vmatprep.mubr.f32.mxu0 0.0
    %229 = vmatmul.mubr.f32.gmra.mrb[0].mxu0 %v95
    %v230 = vpop.f32.mrb[0].mxu0
    %v231 = vadd.f32 0.0, %v230
    %v232 = vpop.f32.mrb[0].mxu0
    %233 = vmatprep.mubr.f32.mxu0 0.0
    %234 = vmatmul.mubr.f32.gmra.mrb[0].mxu0 %v98
    %v235 = vpop.f32.mrb[0].mxu0
    %v236 = vadd.f32 0.0, %v235
    %v237 = vpop.f32.mrb[0].mxu0
    %238 = vmatprep.mubr.f32.mxu0 0.0
    %239 = vmatmul.mubr.f32.gmra.mrb[0].mxu0 %v101
    %v240 = vpop.f32.mrb[0].mxu0
    %v241 = vadd.f32 0.0, %v240
    %v242 = vpop.f32.mrb[0].mxu0
    %243 = vmatprep.mubr.f32.mxu0 0.0
    %244 = vmatmul.mubr.f32.gmra.mrb[0].mxu0 %v104
    %v245 = vpop.f32.mrb[0].mxu0
    %v246 = vadd.f32 0.0, %v245
    %v247 = vpop.f32.mrb[0].mxu0
    %248 = vmatprep.mubr.f32.mxu0 0.0
    %249 = vmatmul.mubr.f32.gmra.mrb[0].mxu0 %v107
    %v250 = vpop.f32.mrb[0].mxu0
    %v251 = vadd.f32 0.0, %v250
    %v252 = vpop.f32.mrb[0].mxu0
    %253 = vdwg.mxu0
    %v254 = vld [vmem:[%s2] sm:$0xff]
    %v255 = vld [vmem:[%s2 + $0x8] sm:$0xff]
    %v256 = vld [vmem:[%s2 + $0x10] sm:$0xff]
    %v257 = vld [vmem:[%s2 + $0x18] sm:$0xff]
    %258 = vmatprep.subr.mxu0 0.0
    %259 = vmatpush1.msra.mxu0 %v254
    %260 = vmatprep.subr.mxu0 0.0
    %261 = vmatpush1.msra.mxu0 %v255
    %262 = vmatprep.subr.mxu0 0.0
    %263 = vmatpush1.msra.mxu0 %v256
    %264 = vmatprep.subr.mxu0 0.0
    %265 = vmatpush1.msra.mxu0 %v257
    %266 = vmatprep.subr.mxu0 0.0
    %267 = vmatpush1.msra.mxu0 0.0
    %268 = vmatprep.subr.mxu0 0.0
    %269 = vmatpush1.msra.mxu0 0.0
    %270 = vmatprep.subr.mxu0 0.0
    %271 = vmatpush1.msra.mxu0 0.0
    %272 = vmatprep.subr.mxu0 0.0
    %273 = vmatpush1.msra.mxu0 0.0
    %274 = vmatprep.subr.mxu0 0.0
    %275 = vmatpush1.msra.mxu0 0.0
    %276 = vmatprep.subr.mxu0 0.0
    %277 = vmatpush1.msra.mxu0 0.0
    %278 = vmatprep.subr.mxu0 0.0
    %279 = vmatpush1.msra.mxu0 0.0
    %280 = vmatprep.subr.mxu0 0.0
    %281 = vmatpush1.msra.mxu0 0.0
    %282 = vmatprep.subr.mxu0 0.0
    %283 = vmatpush1.msra.mxu0 0.0
    %284 = vmatprep.subr.mxu0 0.0
    %285 = vmatpush1.msra.mxu0 0.0
    %286 = vmatprep.subr.mxu0 0.0
    %287 = vmatpush1.msra.mxu0 0.0
    %288 = vmatprep.subr.mxu0 0.0
    %289 = vmatpush1.msra.mxu0 0.0
    %290 = vmatprep.subr.mxu0 0.0
    %291 = vmatpush1.msra.mxu0 0.0
    %292 = vmatprep.subr.mxu0 0.0
    %293 = vmatpush1.msra.mxu0 0.0
    %294 = vmatprep.subr.mxu0 0.0
    %295 = vmatpush1.msra.mxu0 0.0
    %296 = vmatprep.subr.mxu0 0.0
    %297 = vmatpush1.msra.mxu0 0.0
    %298 = vmatprep.subr.mxu0 0.0
    %299 = vmatpush1.msra.mxu0 0.0
    %300 = vmatprep.subr.mxu0 0.0
    %301 = vmatpush1.msra.mxu0 0.0
    %302 = vmatprep.subr.mxu0 0.0
    %303 = vmatpush1.msra.mxu0 0.0
    %304 = vmatprep.subr.mxu0 0.0
    %305 = vmatpush1.msra.mxu0 0.0
    %306 = vmatprep.subr.mxu0 0.0
    %307 = vmatpush1.msra.mxu0 0.0
    %308 = vmatprep.subr.mxu0 0.0
    %309 = vmatpush1.msra.mxu0 0.0
    %310 = vmatprep.subr.mxu0 0.0
    %311 = vmatpush1.msra.mxu0 0.0
    %312 = vmatprep.subr.mxu0 0.0
    %313 = vmatpush1.msra.mxu0 0.0
    %314 = vmatprep.subr.mxu0 0.0
    %315 = vmatpush1.msra.mxu0 0.0
    %316 = vmatprep.subr.mxu0 0.0
    %317 = vmatpush1.msra.mxu0 0.0
    %318 = vmatprep.subr.mxu0 0.0
    %319 = vmatpush1.msra.mxu0 0.0
    %320 = vmatprep.subr.mxu0 0.0
    %321 = vmatpush1.msra.mxu0 0.0
    %322 = vmatprep.mubr.f32.mxu0 0.0
    %323 = vmatmul.mubr.f32.gmra.mrb[0].mxu0 %v62
    %v324 = vpop.f32.mrb[0].mxu0
    %v325 = vadd.f32 0.0, %v324
    %v326 = vpop.f32.mrb[0].mxu0
    %327 = vmatprep.mubr.f32.mxu0 0.0
    %328 = vmatmul.mubr.f32.gmra.mrb[0].mxu0 %v65
    %v329 = vpop.f32.mrb[0].mxu0
    %v330 = vadd.f32 0.0, %v329
    %v331 = vpop.f32.mrb[0].mxu0
    %332 = vmatprep.mubr.f32.mxu0 0.0
    %333 = vmatmul.mubr.f32.gmra.mrb[0].mxu0 %v68
    %v334 = vpop.f32.mrb[0].mxu0
    %v335 = vadd.f32 0.0, %v334
    %v336 = vpop.f32.mrb[0].mxu0
    %337 = vmatprep.mubr.f32.mxu0 0.0
    %338 = vmatmul.mubr.f32.gmra.mrb[0].mxu0 %v71
    %v339 = vpop.f32.mrb[0].mxu0
    %v340 = vadd.f32 0.0, %v339
    %v341 = vpop.f32.mrb[0].mxu0
    %342 = vmatprep.mubr.f32.mxu0 0.0
    %343 = vmatmul.mubr.f32.gmra.mrb[0].mxu0 %v74
    %v344 = vpop.f32.mrb[0].mxu0
    %v345 = vadd.f32 0.0, %v344
    %v346 = vpop.f32.mrb[0].mxu0
    %347 = vmatprep.mubr.f32.mxu0 0.0
    %348 = vmatmul.mubr.f32.gmra.mrb[0].mxu0 %v77
    %v349 = vpop.f32.mrb[0].mxu0
    %v350 = vadd.f32 0.0, %v349
    %v351 = vpop.f32.mrb[0].mxu0
    %352 = vmatprep.mubr.f32.mxu0 0.0
    %353 = vmatmul.mubr.f32.gmra.mrb[0].mxu0 %v80
    %v354 = vpop.f32.mrb[0].mxu0
    %v355 = vadd.f32 0.0, %v354
    %v356 = vpop.f32.mrb[0].mxu0
    %357 = vmatprep.mubr.f32.mxu0 0.0
    %358 = vmatmul.mubr.f32.gmra.mrb[0].mxu0 %v83
    %v359 = vpop.f32.mrb[0].mxu0
    %v360 = vadd.f32 0.0, %v359
    %v361 = vpop.f32.mrb[0].mxu0
    %362 = vmatprep.mubr.f32.mxu0 0.0
    %363 = vmatmul.mubr.f32.gmra.mrb[0].mxu0 %v86
    %v364 = vpop.f32.mrb[0].mxu0
    %v365 = vadd.f32 0.0, %v364
    %v366 = vpop.f32.mrb[0].mxu0
    %367 = vmatprep.mubr.f32.mxu0 0.0
    %368 = vmatmul.mubr.f32.gmra.mrb[0].mxu0 %v89
    %v369 = vpop.f32.mrb[0].mxu0
    %v370 = vadd.f32 0.0, %v369
    %v371 = vpop.f32.mrb[0].mxu0
    %372 = vmatprep.mubr.f32.mxu0 0.0
    %373 = vmatmul.mubr.f32.gmra.mrb[0].mxu0 %v92
    %v374 = vpop.f32.mrb[0].mxu0
    %v375 = vadd.f32 0.0, %v374
    %v376 = vpop.f32.mrb[0].mxu0
    %377 = vmatprep.mubr.f32.mxu0 0.0
    %378 = vmatmul.mubr.f32.gmra.mrb[0].mxu0 %v95
    %v379 = vpop.f32.mrb[0].mxu0
    %v380 = vadd.f32 0.0, %v379
    %v381 = vpop.f32.mrb[0].mxu0
    %382 = vmatprep.mubr.f32.mxu0 0.0
    %383 = vmatmul.mubr.f32.gmra.mrb[0].mxu0 %v98
    %v384 = vpop.f32.mrb[0].mxu0
    %v385 = vadd.f32 0.0, %v384
    %v386 = vpop.f32.mrb[0].mxu0
    %387 = vmatprep.mubr.f32.mxu0 0.0
    %388 = vmatmul.mubr.f32.gmra.mrb[0].mxu0 %v101
    %v389 = vpop.f32.mrb[0].mxu0
    %v390 = vadd.f32 0.0, %v389
    %v391 = vpop.f32.mrb[0].mxu0
    %392 = vmatprep.mubr.f32.mxu0 0.0
    %393 = vmatmul.mubr.f32.gmra.mrb[0].mxu0 %v104
    %v394 = vpop.f32.mrb[0].mxu0
    %v395 = vadd.f32 0.0, %v394
    %v396 = vpop.f32.mrb[0].mxu0
    %397 = vmatprep.mubr.f32.mxu0 0.0
    %398 = vmatmul.mubr.f32.gmra.mrb[0].mxu0 %v107
    %v399 = vpop.f32.mrb[0].mxu0
    %v400 = vadd.f32 0.0, %v399
    %v401 = vpop.f32.mrb[0].mxu0
    %402 = vdwg.mxu0
    %v403 = vld [vmem:[%s3] sm:$0xff]
    %v404 = vld [vmem:[%s3 + $0x8] sm:$0xff]
    %v405 = vld [vmem:[%s3 + $0x10] sm:$0xff]
    %v406 = vld [vmem:[%s3 + $0x18] sm:$0xff]
    %407 = vmatprep.subr.mxu0 0.0
    %408 = vmatpush1.msra.mxu0 %v403
    %409 = vmatprep.subr.mxu0 0.0
    %410 = vmatpush1.msra.mxu0 %v404
    %411 = vmatprep.subr.mxu0 0.0
    %412 = vmatpush1.msra.mxu0 %v405
    %413 = vmatprep.subr.mxu0 0.0
    %414 = vmatpush1.msra.mxu0 %v406
    %415 = vmatprep.subr.mxu0 0.0
    %416 = vmatpush1.msra.mxu0 0.0
    %417 = vmatprep.subr.mxu0 0.0
    %418 = vmatpush1.msra.mxu0 0.0
    %419 = vmatprep.subr.mxu0 0.0
    %420 = vmatpush1.msra.mxu0 0.0
    %421 = vmatprep.subr.mxu0 0.0
    %422 = vmatpush1.msra.mxu0 0.0
    %423 = vmatprep.subr.mxu0 0.0
    %424 = vmatpush1.msra.mxu0 0.0
    %425 = vmatprep.subr.mxu0 0.0
    %426 = vmatpush1.msra.mxu0 0.0
    %427 = vmatprep.subr.mxu0 0.0
    %428 = vmatpush1.msra.mxu0 0.0
    %429 = vmatprep.subr.mxu0 0.0
    %430 = vmatpush1.msra.mxu0 0.0
    %431 = vmatprep.subr.mxu0 0.0
    %432 = vmatpush1.msra.mxu0 0.0
    %433 = vmatprep.subr.mxu0 0.0
    %434 = vmatpush1.msra.mxu0 0.0
    %435 = vmatprep.subr.mxu0 0.0
    %436 = vmatpush1.msra.mxu0 0.0
    %437 = vmatprep.subr.mxu0 0.0
    %438 = vmatpush1.msra.mxu0 0.0
    %439 = vmatprep.subr.mxu0 0.0
    %440 = vmatpush1.msra.mxu0 0.0
    %441 = vmatprep.subr.mxu0 0.0
    %442 = vmatpush1.msra.mxu0 0.0
    %443 = vmatprep.subr.mxu0 0.0
    %444 = vmatpush1.msra.mxu0 0.0
    %445 = vmatprep.subr.mxu0 0.0
    %446 = vmatpush1.msra.mxu0 0.0
    %447 = vmatprep.subr.mxu0 0.0
    %448 = vmatpush1.msra.mxu0 0.0
    %449 = vmatprep.subr.mxu0 0.0
    %450 = vmatpush1.msra.mxu0 0.0
    %451 = vmatprep.subr.mxu0 0.0
    %452 = vmatpush1.msra.mxu0 0.0
    %453 = vmatprep.subr.mxu0 0.0
    %454 = vmatpush1.msra.mxu0 0.0
    %455 = vmatprep.subr.mxu0 0.0
    %456 = vmatpush1.msra.mxu0 0.0
    %457 = vmatprep.subr.mxu0 0.0
    %458 = vmatpush1.msra.mxu0 0.0
    %459 = vmatprep.subr.mxu0 0.0
    %460 = vmatpush1.msra.mxu0 0.0
    %461 = vmatprep.subr.mxu0 0.0
    %462 = vmatpush1.msra.mxu0 0.0
    %463 = vmatprep.subr.mxu0 0.0
    %464 = vmatpush1.msra.mxu0 0.0
    %465 = vmatprep.subr.mxu0 0.0
    %466 = vmatpush1.msra.mxu0 0.0
    %467 = vmatprep.subr.mxu0 0.0
    %468 = vmatpush1.msra.mxu0 0.0
    %469 = vmatprep.subr.mxu0 0.0
    %470 = vmatpush1.msra.mxu0 0.0
    %471 = vmatprep.mubr.f32.mxu0 0.0
    %472 = vmatmul.mubr.f32.gmra.mrb[0].mxu0 %v62
    %v473 = vpop.f32.mrb[0].mxu0
    %v474 = vadd.f32 0.0, %v473
    %v475 = vpop.f32.mrb[0].mxu0
    %476 = vmatprep.mubr.f32.mxu0 0.0
    %477 = vmatmul.mubr.f32.gmra.mrb[0].mxu0 %v65
    %v478 = vpop.f32.mrb[0].mxu0
    %v479 = vadd.f32 0.0, %v478
    %v480 = vpop.f32.mrb[0].mxu0
    %481 = vmatprep.mubr.f32.mxu0 0.0
    %482 = vmatmul.mubr.f32.gmra.mrb[0].mxu0 %v68
    %v483 = vpop.f32.mrb[0].mxu0
    %v484 = vadd.f32 0.0, %v483
    %v485 = vpop.f32.mrb[0].mxu0
    %486 = vmatprep.mubr.f32.mxu0 0.0
    %487 = vmatmul.mubr.f32.gmra.mrb[0].mxu0 %v71
    %v488 = vpop.f32.mrb[0].mxu0
    %v489 = vadd.f32 0.0, %v488
    %v490 = vpop.f32.mrb[0].mxu0
    %491 = vmatprep.mubr.f32.mxu0 0.0
    %492 = vmatmul.mubr.f32.gmra.mrb[0].mxu0 %v74
    %v493 = vpop.f32.mrb[0].mxu0
    %v494 = vadd.f32 0.0, %v493
    %v495 = vpop.f32.mrb[0].mxu0
    %496 = vmatprep.mubr.f32.mxu0 0.0
    %497 = vmatmul.mubr.f32.gmra.mrb[0].mxu0 %v77
    %v498 = vpop.f32.mrb[0].mxu0
    %v499 = vadd.f32 0.0, %v498
    %v500 = vpop.f32.mrb[0].mxu0
    %501 = vmatprep.mubr.f32.mxu0 0.0
    %502 = vmatmul.mubr.f32.gmra.mrb[0].mxu0 %v80
    %v503 = vpop.f32.mrb[0].mxu0
    %v504 = vadd.f32 0.0, %v503
    %v505 = vpop.f32.mrb[0].mxu0
    %506 = vmatprep.mubr.f32.mxu0 0.0
    %507 = vmatmul.mubr.f32.gmra.mrb[0].mxu0 %v83
    %v508 = vpop.f32.mrb[0].mxu0
    %v509 = vadd.f32 0.0, %v508
    %v510 = vpop.f32.mrb[0].mxu0
    %511 = vmatprep.mubr.f32.mxu0 0.0
    %512 = vmatmul.mubr.f32.gmra.mrb[0].mxu0 %v86
    %v513 = vpop.f32.mrb[0].mxu0
    %v514 = vadd.f32 0.0, %v513
    %v515 = vpop.f32.mrb[0].mxu0
    %516 = vmatprep.mubr.f32.mxu0 0.0
    %517 = vmatmul.mubr.f32.gmra.mrb[0].mxu0 %v89
    %v518 = vpop.f32.mrb[0].mxu0
    %v519 = vadd.f32 0.0, %v518
    %v520 = vpop.f32.mrb[0].mxu0
    %521 = vmatprep.mubr.f32.mxu0 0.0
    %522 = vmatmul.mubr.f32.gmra.mrb[0].mxu0 %v92
    %v523 = vpop.f32.mrb[0].mxu0
    %v524 = vadd.f32 0.0, %v523
    %v525 = vpop.f32.mrb[0].mxu0
    %526 = vmatprep.mubr.f32.mxu0 0.0
    %527 = vmatmul.mubr.f32.gmra.mrb[0].mxu0 %v95
    %v528 = vpop.f32.mrb[0].mxu0
    %v529 = vadd.f32 0.0, %v528
    %v530 = vpop.f32.mrb[0].mxu0
    %531 = vmatprep.mubr.f32.mxu0 0.0
    %532 = vmatmul.mubr.f32.gmra.mrb[0].mxu0 %v98
    %v533 = vpop.f32.mrb[0].mxu0
    %v534 = vadd.f32 0.0, %v533
    %v535 = vpop.f32.mrb[0].mxu0
    %536 = vmatprep.mubr.f32.mxu0 0.0
    %537 = vmatmul.mubr.f32.gmra.mrb[0].mxu0 %v101
    %v538 = vpop.f32.mrb[0].mxu0
    %v539 = vadd.f32 0.0, %v538
    %v540 = vpop.f32.mrb[0].mxu0
    %541 = vmatprep.mubr.f32.mxu0 0.0
    %542 = vmatmul.mubr.f32.gmra.mrb[0].mxu0 %v104
    %v543 = vpop.f32.mrb[0].mxu0
    %v544 = vadd.f32 0.0, %v543
    %v545 = vpop.f32.mrb[0].mxu0
    %546 = vmatprep.mubr.f32.mxu0 0.0
    %547 = vmatmul.mubr.f32.gmra.mrb[0].mxu0 %v107
    %v548 = vpop.f32.mrb[0].mxu0
    %v549 = vadd.f32 0.0, %v548
    %v550 = vpop.f32.mrb[0].mxu0
    %551 = vdwg.mxu0
    %v552 = vlaneseq
    %v553 = vand.u32 %v552, 127
    %vm554 = vcmp.ge.s32.totalorder %v553, 0
    %vm555 = vcmp.lt.s32.totalorder %v553, 4
    %vm556 = vmand %vm554, %vm555
    %v557 = vsel %vm556, 0.5, 0.0
    %v558 = vmul.f32 %v176, %v557
    %v559 = vmul.f32 %v181, %v557
    %v560 = vmul.f32 %v186, %v557
    %v561 = vmul.f32 %v191, %v557
    %v562 = vmul.f32 %v196, %v557
    %v563 = vmul.f32 %v201, %v557
    %v564 = vmul.f32 %v206, %v557
    %v565 = vmul.f32 %v211, %v557
    %v566 = vmul.f32 %v216, %v557
    %v567 = vmul.f32 %v221, %v557
    %v568 = vmul.f32 %v226, %v557
    %v569 = vmul.f32 %v231, %v557
    %v570 = vmul.f32 %v236, %v557
    %v571 = vmul.f32 %v241, %v557
    %v572 = vmul.f32 %v246, %v557
    %v573 = vmul.f32 %v251, %v557
    %v574 = vsel %vm556, 1.0, 0.0
    %v575 = vmul.f32 %v474, %v574
    %v576 = vmul.f32 %v479, %v574
    %v577 = vmul.f32 %v484, %v574
    %v578 = vmul.f32 %v489, %v574
    %v579 = vmul.f32 %v494, %v574
    %v580 = vmul.f32 %v499, %v574
    %v581 = vmul.f32 %v504, %v574
    %v582 = vmul.f32 %v509, %v574
    %v583 = vmul.f32 %v514, %v574
    %v584 = vmul.f32 %v519, %v574
    %v585 = vmul.f32 %v524, %v574
    %v586 = vmul.f32 %v529, %v574
    %v587 = vmul.f32 %v534, %v574
    %v588 = vmul.f32 %v539, %v574
    %v589 = vmul.f32 %v544, %v574
    %v590 = vmul.f32 %v549, %v574
    %v591 = vld [vmem:[#allocation2] sm:$0xff]
    %v592 = vld [vmem:[#allocation2 + $0x8] sm:$0xff]
    %v593 = vld [vmem:[#allocation2 + $0x10] sm:$0xff]
    %v594 = vld [vmem:[#allocation2 + $0x18] sm:$0xff]
    %v595 = vld [vmem:[#allocation2 + $0x20] sm:$0xff]
    %v596 = vld [vmem:[#allocation2 + $0x28] sm:$0xff]
    %v597 = vld [vmem:[#allocation2 + $0x30] sm:$0xff]
    %v598 = vld [vmem:[#allocation2 + $0x38] sm:$0xff]
    %v600 = vsel %vm60, %v558, 0
    %v603 = vsel %vm60, %v559, 0
    %v606 = vsel %vm60, %v560, 0
    %v609 = vsel %vm60, %v561, 0
    %v612 = vsel %vm60, %v562, 0
    %v615 = vsel %vm60, %v563, 0
    %v618 = vsel %vm60, %v564, 0
    %v621 = vsel %vm60, %v565, 0
    %v624 = vsel %vm60, %v325, 0
    %v627 = vsel %vm60, %v330, 0
    %v630 = vsel %vm60, %v335, 0
    %v633 = vsel %vm60, %v340, 0
    %v636 = vsel %vm60, %v345, 0
    %v639 = vsel %vm60, %v350, 0
    %v642 = vsel %vm60, %v355, 0
    %v645 = vsel %vm60, %v360, 0
    %647 = vmatprep.subr.mxu0 0.0
    %648 = vmatpush1.xpose.msra.mxu0 %v624
    %649 = vmatprep.subr.mxu0 0.0
    %650 = vmatpush1.xpose.msra.mxu0 %v627
    %651 = vmatprep.subr.mxu0 0.0
    %652 = vmatpush1.xpose.msra.mxu0 %v630
    %653 = vmatprep.subr.mxu0 0.0
    %654 = vmatpush1.xpose.msra.mxu0 %v633
    %655 = vmatprep.subr.mxu0 0.0
    %656 = vmatpush1.xpose.msra.mxu0 %v636
    %657 = vmatprep.subr.mxu0 0.0
    %658 = vmatpush1.xpose.msra.mxu0 %v639
    %659 = vmatprep.subr.mxu0 0.0
    %660 = vmatpush1.xpose.msra.mxu0 %v642
    %661 = vmatprep.subr.mxu0 0.0
    %662 = vmatpush1.xpose.msra.mxu0 %v645
    %663 = vmatprep.subr.mxu0 0.0
    %664 = vmatpush1.xpose.msra.mxu0 0.0
    %665 = vmatprep.subr.mxu0 0.0
    %666 = vmatpush1.xpose.msra.mxu0 0.0
    %667 = vmatprep.subr.mxu0 0.0
    %668 = vmatpush1.xpose.msra.mxu0 0.0
    %669 = vmatprep.subr.mxu0 0.0
    %670 = vmatpush1.xpose.msra.mxu0 0.0
    %671 = vmatprep.subr.mxu0 0.0
    %672 = vmatpush1.xpose.msra.mxu0 0.0
    %673 = vmatprep.subr.mxu0 0.0
    %674 = vmatpush1.xpose.msra.mxu0 0.0
    %675 = vmatprep.subr.mxu0 0.0
    %676 = vmatpush1.xpose.msra.mxu0 0.0
    %677 = vmatprep.subr.mxu0 0.0
    %678 = vmatpush1.xpose.msra.mxu0 0.0
    %679 = vmatprep.subr.mxu0 0.0
    %680 = vmatpush1.xpose.msra.mxu0 0.0
    %681 = vmatprep.subr.mxu0 0.0
    %682 = vmatpush1.xpose.msra.mxu0 0.0
    %683 = vmatprep.subr.mxu0 0.0
    %684 = vmatpush1.xpose.msra.mxu0 0.0
    %685 = vmatprep.subr.mxu0 0.0
    %686 = vmatpush1.xpose.msra.mxu0 0.0
    %687 = vmatprep.subr.mxu0 0.0
    %688 = vmatpush1.xpose.msra.mxu0 0.0
    %689 = vmatprep.subr.mxu0 0.0
    %690 = vmatpush1.xpose.msra.mxu0 0.0
    %691 = vmatprep.subr.mxu0 0.0
    %692 = vmatpush1.xpose.msra.mxu0 0.0
    %693 = vmatprep.subr.mxu0 0.0
    %694 = vmatpush1.xpose.msra.mxu0 0.0
    %695 = vmatprep.subr.mxu0 0.0
    %696 = vmatpush1.xpose.msra.mxu0 0.0
    %697 = vmatprep.subr.mxu0 0.0
    %698 = vmatpush1.xpose.msra.mxu0 0.0
    %699 = vmatprep.subr.mxu0 0.0
    %700 = vmatpush1.xpose.msra.mxu0 0.0
    %701 = vmatprep.subr.mxu0 0.0
    %702 = vmatpush1.xpose.msra.mxu0 0.0
    %703 = vmatprep.subr.mxu0 0.0
    %704 = vmatpush1.xpose.msra.mxu0 0.0
    %705 = vmatprep.subr.mxu0 0.0
    %706 = vmatpush1.xpose.msra.mxu0 0.0
    %707 = vmatprep.subr.mxu0 0.0
    %708 = vmatpush1.xpose.msra.mxu0 0.0
    %709 = vmatprep.subr.mxu0 0.0
    %710 = vmatpush1.xpose.msra.mxu0 0.0
    %711 = vmatprep.mubr.f32.mxu0 0.0
    %712 = vmatmul.mubr.f32.gmra.mrb[0].mxu0 %v600
    %v713 = vpop.f32.mrb[0].mxu0
    %v714 = vadd.f32 %v591, %v713
    %v715 = vpop.f32.mrb[0].mxu0
    %716 = vmatprep.mubr.f32.mxu0 0.0
    %717 = vmatmul.mubr.f32.gmra.mrb[0].mxu0 %v603
    %v718 = vpop.f32.mrb[0].mxu0
    %v719 = vadd.f32 %v592, %v718
    %v720 = vpop.f32.mrb[0].mxu0
    %721 = vmatprep.mubr.f32.mxu0 0.0
    %722 = vmatmul.mubr.f32.gmra.mrb[0].mxu0 %v606
    %v723 = vpop.f32.mrb[0].mxu0
    %v724 = vadd.f32 %v593, %v723
    %v725 = vpop.f32.mrb[0].mxu0
    %726 = vmatprep.mubr.f32.mxu0 0.0
    %727 = vmatmul.mubr.f32.gmra.mrb[0].mxu0 %v609
    %v728 = vpop.f32.mrb[0].mxu0
    %v729 = vadd.f32 %v594, %v728
    %v730 = vpop.f32.mrb[0].mxu0
    %731 = vmatprep.mubr.f32.mxu0 0.0
    %732 = vmatmul.mubr.f32.gmra.mrb[0].mxu0 %v612
    %v733 = vpop.f32.mrb[0].mxu0
    %v734 = vadd.f32 %v595, %v733
    %v735 = vpop.f32.mrb[0].mxu0
    %736 = vmatprep.mubr.f32.mxu0 0.0
    %737 = vmatmul.mubr.f32.gmra.mrb[0].mxu0 %v615
    %v738 = vpop.f32.mrb[0].mxu0
    %v739 = vadd.f32 %v596, %v738
    %v740 = vpop.f32.mrb[0].mxu0
    %741 = vmatprep.mubr.f32.mxu0 0.0
    %742 = vmatmul.mubr.f32.gmra.mrb[0].mxu0 %v618
    %v743 = vpop.f32.mrb[0].mxu0
    %v744 = vadd.f32 %v597, %v743
    %v745 = vpop.f32.mrb[0].mxu0
    %746 = vmatprep.mubr.f32.mxu0 0.0
    %747 = vmatmul.mubr.f32.gmra.mrb[0].mxu0 %v621
    %v748 = vpop.f32.mrb[0].mxu0
    %v749 = vadd.f32 %v598, %v748
    %v750 = vpop.f32.mrb[0].mxu0
    %751 = vdwg.mxu0
    %vm752 = vcmask 523264
    %v753 = vsel %vm752, %v714, -inf
    %754 = vmax.xlane.f32.xlu0 %v753
    %v755 = vpop.xlane.xlu0 %754
    %v756 = vsel %vm752, %v719, -inf
    %757 = vmax.xlane.f32.xlu0 %v756
    %v758 = vpop.xlane.xlu0 %757
    %v759 = vsel %vm752, %v724, -inf
    %760 = vmax.xlane.f32.xlu0 %v759
    %v761 = vpop.xlane.xlu0 %760
    %v762 = vsel %vm752, %v729, -inf
    %763 = vmax.xlane.f32.xlu0 %v762
    %v764 = vpop.xlane.xlu0 %763
    %v765 = vsel %vm752, %v734, -inf
    %766 = vmax.xlane.f32.xlu0 %v765
    %v767 = vpop.xlane.xlu0 %766
    %v768 = vsel %vm752, %v739, -inf
    %769 = vmax.xlane.f32.xlu0 %v768
    %v770 = vpop.xlane.xlu0 %769
    %v771 = vsel %vm752, %v744, -inf
    %772 = vmax.xlane.f32.xlu0 %v771
    %v773 = vpop.xlane.xlu0 %772
    %v774 = vsel %vm752, %v749, -inf
    %775 = vmax.xlane.f32.xlu0 %v774
    %v776 = vpop.xlane.xlu0 %775
    %v777 = vsub.f32 %v714, %v755
    %v778 = vsub.f32 %v719, %v758
    %v779 = vsub.f32 %v724, %v761
    %v780 = vsub.f32 %v729, %v764
    %v781 = vsub.f32 %v734, %v767
    %v782 = vsub.f32 %v739, %v770
    %v783 = vsub.f32 %v744, %v773
    %v784 = vsub.f32 %v749, %v776
    %v785 = vmul.f32 %v777, 1.442695
    %v786 = vpow.pop %v785
    %v787 = vmul.f32 %v778, 1.442695
    %v788 = vpow.pop %v787
    %v789 = vmul.f32 %v779, 1.442695
    %v790 = vpow.pop %v789
    %v791 = vmul.f32 %v780, 1.442695
    %v792 = vpow.pop %v791
    %v793 = vmul.f32 %v781, 1.442695
    %v794 = vpow.pop %v793
    %v795 = vmul.f32 %v782, 1.442695
    %v796 = vpow.pop %v795
    %v797 = vmul.f32 %v783, 1.442695
    %v798 = vpow.pop %v797
    %v799 = vmul.f32 %v784, 1.442695
    %v800 = vpow.pop %v799
    %v801 = vsel %vm752, %v786, 0.0
    %802 = vadd.xlane.f32.xlu0 %v801
    %v803 = vpop.xlane.xlu0 %802
    %v804 = vsel %vm752, %v788, 0.0
    %805 = vadd.xlane.f32.xlu0 %v804
    %v806 = vpop.xlane.xlu0 %805
    %v807 = vsel %vm752, %v790, 0.0
    %808 = vadd.xlane.f32.xlu0 %v807
    %v809 = vpop.xlane.xlu0 %808
    %v810 = vsel %vm752, %v792, 0.0
    %811 = vadd.xlane.f32.xlu0 %v810
    %v812 = vpop.xlane.xlu0 %811
    %v813 = vsel %vm752, %v794, 0.0
    %814 = vadd.xlane.f32.xlu0 %v813
    %v815 = vpop.xlane.xlu0 %814
    %v816 = vsel %vm752, %v796, 0.0
    %817 = vadd.xlane.f32.xlu0 %v816
    %v818 = vpop.xlane.xlu0 %817
    %v819 = vsel %vm752, %v798, 0.0
    %820 = vadd.xlane.f32.xlu0 %v819
    %v821 = vpop.xlane.xlu0 %820
    %v822 = vsel %vm752, %v800, 0.0
    %823 = vadd.xlane.f32.xlu0 %v822
    %v824 = vpop.xlane.xlu0 %823
    %v825 = vrcp.pop %v803
    %v826 = vrcp.pop %v806
    %v827 = vrcp.pop %v809
    %v828 = vrcp.pop %v812
    %v829 = vrcp.pop %v815
    %v830 = vrcp.pop %v818
    %v831 = vrcp.pop %v821
    %v832 = vrcp.pop %v824
    %v833 = vmul.f32 %v786, %v825
    %v834 = vmul.f32 %v788, %v826
    %v835 = vmul.f32 %v790, %v827
    %v836 = vmul.f32 %v792, %v828
    %v837 = vmul.f32 %v794, %v829
    %v838 = vmul.f32 %v796, %v830
    %v839 = vmul.f32 %v798, %v831
    %v840 = vmul.f32 %v800, %v832
    %v842 = vsel %vm60, %v566, 0
    %v845 = vsel %vm60, %v567, 0
    %v848 = vsel %vm60, %v568, 0
    %v851 = vsel %vm60, %v569, 0
    %v854 = vsel %vm60, %v570, 0
    %v857 = vsel %vm60, %v571, 0
    %v860 = vsel %vm60, %v572, 0
    %v863 = vsel %vm60, %v573, 0
    %v866 = vsel %vm60, %v365, 0
    %v869 = vsel %vm60, %v370, 0
    %v872 = vsel %vm60, %v375, 0
    %v875 = vsel %vm60, %v380, 0
    %v878 = vsel %vm60, %v385, 0
    %v881 = vsel %vm60, %v390, 0
    %v884 = vsel %vm60, %v395, 0
    %v887 = vsel %vm60, %v400, 0
    %889 = vmatprep.subr.mxu0 0.0
    %890 = vmatpush1.xpose.msra.mxu0 %v866
    %891 = vmatprep.subr.mxu0 0.0
    %892 = vmatpush1.xpose.msra.mxu0 %v869
    %893 = vmatprep.subr.mxu0 0.0
    %894 = vmatpush1.xpose.msra.mxu0 %v872
    %895 = vmatprep.subr.mxu0 0.0
    %896 = vmatpush1.xpose.msra.mxu0 %v875
    %897 = vmatprep.subr.mxu0 0.0
    %898 = vmatpush1.xpose.msra.mxu0 %v878
    %899 = vmatprep.subr.mxu0 0.0
    %900 = vmatpush1.xpose.msra.mxu0 %v881
    %901 = vmatprep.subr.mxu0 0.0
    %902 = vmatpush1.xpose.msra.mxu0 %v884
    %903 = vmatprep.subr.mxu0 0.0
    %904 = vmatpush1.xpose.msra.mxu0 %v887
    %905 = vmatprep.subr.mxu0 0.0
    %906 = vmatpush1.xpose.msra.mxu0 0.0
    %907 = vmatprep.subr.mxu0 0.0
    %908 = vmatpush1.xpose.msra.mxu0 0.0
    %909 = vmatprep.subr.mxu0 0.0
    %910 = vmatpush1.xpose.msra.mxu0 0.0
    %911 = vmatprep.subr.mxu0 0.0
    %912 = vmatpush1.xpose.msra.mxu0 0.0
    %913 = vmatprep.subr.mxu0 0.0
    %914 = vmatpush1.xpose.msra.mxu0 0.0
    %915 = vmatprep.subr.mxu0 0.0
    %916 = vmatpush1.xpose.msra.mxu0 0.0
    %917 = vmatprep.subr.mxu0 0.0
    %918 = vmatpush1.xpose.msra.mxu0 0.0
    %919 = vmatprep.subr.mxu0 0.0
    %920 = vmatpush1.xpose.msra.mxu0 0.0
    %921 = vmatprep.subr.mxu0 0.0
    %922 = vmatpush1.xpose.msra.mxu0 0.0
    %923 = vmatprep.subr.mxu0 0.0
    %924 = vmatpush1.xpose.msra.mxu0 0.0
    %925 = vmatprep.subr.mxu0 0.0
    %926 = vmatpush1.xpose.msra.mxu0 0.0
    %927 = vmatprep.subr.mxu0 0.0
    %928 = vmatpush1.xpose.msra.mxu0 0.0
    %929 = vmatprep.subr.mxu0 0.0
    %930 = vmatpush1.xpose.msra.mxu0 0.0
    %931 = vmatprep.subr.mxu0 0.0
    %932 = vmatpush1.xpose.msra.mxu0 0.0
    %933 = vmatprep.subr.mxu0 0.0
    %934 = vmatpush1.xpose.msra.mxu0 0.0
    %935 = vmatprep.subr.mxu0 0.0
    %936 = vmatpush1.xpose.msra.mxu0 0.0
    %937 = vmatprep.subr.mxu0 0.0
    %938 = vmatpush1.xpose.msra.mxu0 0.0
    %939 = vmatprep.subr.mxu0 0.0
    %940 = vmatpush1.xpose.msra.mxu0 0.0
    %941 = vmatprep.subr.mxu0 0.0
    %942 = vmatpush1.xpose.msra.mxu0 0.0
    %943 = vmatprep.subr.mxu0 0.0
    %944 = vmatpush1.xpose.msra.mxu0 0.0
    %945 = vmatprep.subr.mxu0 0.0
    %946 = vmatpush1.xpose.msra.mxu0 0.0
    %947 = vmatprep.subr.mxu0 0.0
    %948 = vmatpush1.xpose.msra.mxu0 0.0
    %949 = vmatprep.subr.mxu0 0.0
    %950 = vmatpush1.xpose.msra.mxu0 0.0
    %951 = vmatprep.subr.mxu0 0.0
    %952 = vmatpush1.xpose.msra.mxu0 0.0
    %953 = vmatprep.mubr.f32.mxu0 0.0
    %954 = vmatmul.mubr.f32.gmra.mrb[0].mxu0 %v842
    %v955 = vpop.f32.mrb[0].mxu0
    %v956 = vadd.f32 %v591, %v955
    %v957 = vpop.f32.mrb[0].mxu0
    %958 = vmatprep.mubr.f32.mxu0 0.0
    %959 = vmatmul.mubr.f32.gmra.mrb[0].mxu0 %v845
    %v960 = vpop.f32.mrb[0].mxu0
    %v961 = vadd.f32 %v592, %v960
    %v962 = vpop.f32.mrb[0].mxu0
    %963 = vmatprep.mubr.f32.mxu0 0.0
    %964 = vmatmul.mubr.f32.gmra.mrb[0].mxu0 %v848
    %v965 = vpop.f32.mrb[0].mxu0
    %v966 = vadd.f32 %v593, %v965
    %v967 = vpop.f32.mrb[0].mxu0
    %968 = vmatprep.mubr.f32.mxu0 0.0
    %969 = vmatmul.mubr.f32.gmra.mrb[0].mxu0 %v851
    %v970 = vpop.f32.mrb[0].mxu0
    %v971 = vadd.f32 %v594, %v970
    %v972 = vpop.f32.mrb[0].mxu0
    %973 = vmatprep.mubr.f32.mxu0 0.0
    %974 = vmatmul.mubr.f32.gmra.mrb[0].mxu0 %v854
    %v975 = vpop.f32.mrb[0].mxu0
    %v976 = vadd.f32 %v595, %v975
    %v977 = vpop.f32.mrb[0].mxu0
    %978 = vmatprep.mubr.f32.mxu0 0.0
    %979 = vmatmul.mubr.f32.gmra.mrb[0].mxu0 %v857
    %v980 = vpop.f32.mrb[0].mxu0
    %v981 = vadd.f32 %v596, %v980
    %v982 = vpop.f32.mrb[0].mxu0
    %983 = vmatprep.mubr.f32.mxu0 0.0
    %984 = vmatmul.mubr.f32.gmra.mrb[0].mxu0 %v860
    %v985 = vpop.f32.mrb[0].mxu0
    %v986 = vadd.f32 %v597, %v985
    %v987 = vpop.f32.mrb[0].mxu0
    %988 = vmatprep.mubr.f32.mxu0 0.0
    %989 = vmatmul.mubr.f32.gmra.mrb[0].mxu0 %v863
    %v990 = vpop.f32.mrb[0].mxu0
    %v991 = vadd.f32 %v598, %v990
    %v992 = vpop.f32.mrb[0].mxu0
    %993 = vdwg.mxu0
    %v994 = vsel %vm752, %v956, -inf
    %995 = vmax.xlane.f32.xlu0 %v994
    %v996 = vpop.xlane.xlu0 %995
    %v997 = vsel %vm752, %v961, -inf
    %998 = vmax.xlane.f32.xlu0 %v997
    %v999 = vpop.xlane.xlu0 %998
    %v1000 = vsel %vm752, %v966, -inf
    %1001 = vmax.xlane.f32.xlu0 %v1000
    %v1002 = vpop.xlane.xlu0 %1001
    %v1003 = vsel %vm752, %v971, -inf
    %1004 = vmax.xlane.f32.xlu0 %v1003
    %v1005 = vpop.xlane.xlu0 %1004
    %v1006 = vsel %vm752, %v976, -inf
    %1007 = vmax.xlane.f32.xlu0 %v1006
    %v1008 = vpop.xlane.xlu0 %1007
    %v1009 = vsel %vm752, %v981, -inf
    %1010 = vmax.xlane.f32.xlu0 %v1009
    %v1011 = vpop.xlane.xlu0 %1010
    %v1012 = vsel %vm752, %v986, -inf
    %1013 = vmax.xlane.f32.xlu0 %v1012
    %v1014 = vpop.xlane.xlu0 %1013
    %v1015 = vsel %vm752, %v991, -inf
    %1016 = vmax.xlane.f32.xlu0 %v1015
    %v1017 = vpop.xlane.xlu0 %1016
    %v1018 = vsub.f32 %v956, %v996
    %v1019 = vsub.f32 %v961, %v999
    %v1020 = vsub.f32 %v966, %v1002
    %v1021 = vsub.f32 %v971, %v1005
    %v1022 = vsub.f32 %v976, %v1008
    %v1023 = vsub.f32 %v981, %v1011
    %v1024 = vsub.f32 %v986, %v1014
    %v1025 = vsub.f32 %v991, %v1017
    %v1026 = vmul.f32 %v1018, 1.442695
    %v1027 = vpow.pop %v1026
    %v1028 = vmul.f32 %v1019, 1.442695
    %v1029 = vpow.pop %v1028
    %v1030 = vmul.f32 %v1020, 1.442695
    %v1031 = vpow.pop %v1030
    %v1032 = vmul.f32 %v1021, 1.442695
    %v1033 = vpow.pop %v1032
    %v1034 = vmul.f32 %v1022, 1.442695
    %v1035 = vpow.pop %v1034
    %v1036 = vmul.f32 %v1023, 1.442695
    %v1037 = vpow.pop %v1036
    %v1038 = vmul.f32 %v1024, 1.442695
    %v1039 = vpow.pop %v1038
    %v1040 = vmul.f32 %v1025, 1.442695
    %v1041 = vpow.pop %v1040
    %v1042 = vsel %vm752, %v1027, 0.0
    %1043 = vadd.xlane.f32.xlu0 %v1042
    %v1044 = vpop.xlane.xlu0 %1043
    %v1045 = vsel %vm752, %v1029, 0.0
    %1046 = vadd.xlane.f32.xlu0 %v1045
    %v1047 = vpop.xlane.xlu0 %1046
    %v1048 = vsel %vm752, %v1031, 0.0
    %1049 = vadd.xlane.f32.xlu0 %v1048
    %v1050 = vpop.xlane.xlu0 %1049
    %v1051 = vsel %vm752, %v1033, 0.0
    %1052 = vadd.xlane.f32.xlu0 %v1051
    %v1053 = vpop.xlane.xlu0 %1052
    %v1054 = vsel %vm752, %v1035, 0.0
    %1055 = vadd.xlane.f32.xlu0 %v1054
    %v1056 = vpop.xlane.xlu0 %1055
    %v1057 = vsel %vm752, %v1037, 0.0
    %1058 = vadd.xlane.f32.xlu0 %v1057
    %v1059 = vpop.xlane.xlu0 %1058
    %v1060 = vsel %vm752, %v1039, 0.0
    %1061 = vadd.xlane.f32.xlu0 %v1060
    %v1062 = vpop.xlane.xlu0 %1061
    %v1063 = vsel %vm752, %v1041, 0.0
    %1064 = vadd.xlane.f32.xlu0 %v1063
    %v1065 = vpop.xlane.xlu0 %1064
    %v1066 = vrcp.pop %v1044
    %v1067 = vrcp.pop %v1047
    %v1068 = vrcp.pop %v1050
    %v1069 = vrcp.pop %v1053
    %v1070 = vrcp.pop %v1056
    %v1071 = vrcp.pop %v1059
    %v1072 = vrcp.pop %v1062
    %v1073 = vrcp.pop %v1065
    %v1074 = vmul.f32 %v1027, %v1066
    %v1075 = vmul.f32 %v1029, %v1067
    %v1076 = vmul.f32 %v1031, %v1068
    %v1077 = vmul.f32 %v1033, %v1069
    %v1078 = vmul.f32 %v1035, %v1070
    %v1079 = vmul.f32 %v1037, %v1071
    %v1080 = vmul.f32 %v1039, %v1072
    %v1081 = vmul.f32 %v1041, %v1073
    %vm1082 = vcmp.ge.s32.totalorder %v553, 4
    %vm1083 = vcmp.lt.s32.totalorder %v553, 8
    %vm1084 = vmand %vm1082, %vm1083
    %v1085 = vsel %vm1084, 0.5, 0.0
    %v1086 = vmul.f32 %v176, %v1085
    %v1087 = vmul.f32 %v181, %v1085
    %v1088 = vmul.f32 %v186, %v1085
    %v1089 = vmul.f32 %v191, %v1085
    %v1090 = vmul.f32 %v196, %v1085
    %v1091 = vmul.f32 %v201, %v1085
    %v1092 = vmul.f32 %v206, %v1085
    %v1093 = vmul.f32 %v211, %v1085
    %v1094 = vmul.f32 %v216, %v1085
    %v1095 = vmul.f32 %v221, %v1085
    %v1096 = vmul.f32 %v226, %v1085
    %v1097 = vmul.f32 %v231, %v1085
    %v1098 = vmul.f32 %v236, %v1085
    %v1099 = vmul.f32 %v241, %v1085
    %v1100 = vmul.f32 %v246, %v1085
    %v1101 = vmul.f32 %v251, %v1085
    %v1102 = vsel %vm1084, 1.0, 0.0
    %v1103 = vmul.f32 %v474, %v1102
    %v1104 = vmul.f32 %v479, %v1102
    %v1105 = vmul.f32 %v484, %v1102
    %v1106 = vmul.f32 %v489, %v1102
    %v1107 = vmul.f32 %v494, %v1102
    %v1108 = vmul.f32 %v499, %v1102
    %v1109 = vmul.f32 %v504, %v1102
    %v1110 = vmul.f32 %v509, %v1102
    %v1111 = vmul.f32 %v514, %v1102
    %v1112 = vmul.f32 %v519, %v1102
    %v1113 = vmul.f32 %v524, %v1102
    %v1114 = vmul.f32 %v529, %v1102
    %v1115 = vmul.f32 %v534, %v1102
    %v1116 = vmul.f32 %v539, %v1102
    %v1117 = vmul.f32 %v544, %v1102
    %v1118 = vmul.f32 %v549, %v1102
    %s1119 = scalar_lea.vmem [#allocation2], 64
    %v1120 = vld [vmem:[%s1119] sm:$0xff]
    %v1121 = vld [vmem:[%s1119 + $0x8] sm:$0xff]
    %v1122 = vld [vmem:[%s1119 + $0x10] sm:$0xff]
    %v1123 = vld [vmem:[%s1119 + $0x18] sm:$0xff]
    %v1124 = vld [vmem:[%s1119 + $0x20] sm:$0xff]
    %v1125 = vld [vmem:[%s1119 + $0x28] sm:$0xff]
    %v1126 = vld [vmem:[%s1119 + $0x30] sm:$0xff]
    %v1127 = vld [vmem:[%s1119 + $0x38] sm:$0xff]
    %v1129 = vsel %vm60, %v1086, 0
    %v1132 = vsel %vm60, %v1087, 0
    %v1135 = vsel %vm60, %v1088, 0
    %v1138 = vsel %vm60, %v1089, 0
    %v1141 = vsel %vm60, %v1090, 0
    %v1144 = vsel %vm60, %v1091, 0
    %v1147 = vsel %vm60, %v1092, 0
    %v1150 = vsel %vm60, %v1093, 0
    %1152 = vmatprep.subr.mxu0 0.0
    %1153 = vmatpush1.xpose.msra.mxu0 %v624
    %1154 = vmatprep.subr.mxu0 0.0
    %1155 = vmatpush1.xpose.msra.mxu0 %v627
    %1156 = vmatprep.subr.mxu0 0.0
    %1157 = vmatpush1.xpose.msra.mxu0 %v630
    %1158 = vmatprep.subr.mxu0 0.0
    %1159 = vmatpush1.xpose.msra.mxu0 %v633
    %1160 = vmatprep.subr.mxu0 0.0
    %1161 = vmatpush1.xpose.msra.mxu0 %v636
    %1162 = vmatprep.subr.mxu0 0.0
    %1163 = vmatpush1.xpose.msra.mxu0 %v639
    %1164 = vmatprep.subr.mxu0 0.0
    %1165 = vmatpush1.xpose.msra.mxu0 %v642
    %1166 = vmatprep.subr.mxu0 0.0
    %1167 = vmatpush1.xpose.msra.mxu0 %v645
    %1168 = vmatprep.subr.mxu0 0.0
    %1169 = vmatpush1.xpose.msra.mxu0 0.0
    %1170 = vmatprep.subr.mxu0 0.0
    %1171 = vmatpush1.xpose.msra.mxu0 0.0
    %1172 = vmatprep.subr.mxu0 0.0
    %1173 = vmatpush1.xpose.msra.mxu0 0.0
    %1174 = vmatprep.subr.mxu0 0.0
    %1175 = vmatpush1.xpose.msra.mxu0 0.0
    %1176 = vmatprep.subr.mxu0 0.0
    %1177 = vmatpush1.xpose.msra.mxu0 0.0
    %1178 = vmatprep.subr.mxu0 0.0
    %1179 = vmatpush1.xpose.msra.mxu0 0.0
    %1180 = vmatprep.subr.mxu0 0.0
    %1181 = vmatpush1.xpose.msra.mxu0 0.0
    %1182 = vmatprep.subr.mxu0 0.0
    %1183 = vmatpush1.xpose.msra.mxu0 0.0
    %1184 = vmatprep.subr.mxu0 0.0
    %1185 = vmatpush1.xpose.msra.mxu0 0.0
    %1186 = vmatprep.subr.mxu0 0.0
    %1187 = vmatpush1.xpose.msra.mxu0 0.0
    %1188 = vmatprep.subr.mxu0 0.0
    %1189 = vmatpush1.xpose.msra.mxu0 0.0
    %1190 = vmatprep.subr.mxu0 0.0
    %1191 = vmatpush1.xpose.msra.mxu0 0.0
    %1192 = vmatprep.subr.mxu0 0.0
    %1193 = vmatpush1.xpose.msra.mxu0 0.0
    %1194 = vmatprep.subr.mxu0 0.0
    %1195 = vmatpush1.xpose.msra.mxu0 0.0
    %1196 = vmatprep.subr.mxu0 0.0
    %1197 = vmatpush1.xpose.msra.mxu0 0.0
    %1198 = vmatprep.subr.mxu0 0.0
    %1199 = vmatpush1.xpose.msra.mxu0 0.0
    %1200 = vmatprep.subr.mxu0 0.0
    %1201 = vmatpush1.xpose.msra.mxu0 0.0
    %1202 = vmatprep.subr.mxu0 0.0
    %1203 = vmatpush1.xpose.msra.mxu0 0.0
    %1204 = vmatprep.subr.mxu0 0.0
    %1205 = vmatpush1.xpose.msra.mxu0 0.0
    %1206 = vmatprep.subr.mxu0 0.0
    %1207 = vmatpush1.xpose.msra.mxu0 0.0
    %1208 = vmatprep.subr.mxu0 0.0
    %1209 = vmatpush1.xpose.msra.mxu0 0.0
    %1210 = vmatprep.subr.mxu0 0.0
    %1211 = vmatpush1.xpose.msra.mxu0 0.0
    %1212 = vmatprep.subr.mxu0 0.0
    %1213 = vmatpush1.xpose.msra.mxu0 0.0
    %1214 = vmatprep.subr.mxu0 0.0
    %1215 = vmatpush1.xpose.msra.mxu0 0.0
    %1216 = vmatprep.mubr.f32.mxu0 0.0
    %1217 = vmatmul.mubr.f32.gmra.mrb[0].mxu0 %v1129
    %v1218 = vpop.f32.mrb[0].mxu0
    %v1219 = vadd.f32 %v1120, %v1218
    %v1220 = vpop.f32.mrb[0].mxu0
    %1221 = vmatprep.mubr.f32.mxu0 0.0
    %1222 = vmatmul.mubr.f32.gmra.mrb[0].mxu0 %v1132
    %v1223 = vpop.f32.mrb[0].mxu0
    %v1224 = vadd.f32 %v1121, %v1223
    %v1225 = vpop.f32.mrb[0].mxu0
    %1226 = vmatprep.mubr.f32.mxu0 0.0
    %1227 = vmatmul.mubr.f32.gmra.mrb[0].mxu0 %v1135
    %v1228 = vpop.f32.mrb[0].mxu0
    %v1229 = vadd.f32 %v1122, %v1228
    %v1230 = vpop.f32.mrb[0].mxu0
    %1231 = vmatprep.mubr.f32.mxu0 0.0
    %1232 = vmatmul.mubr.f32.gmra.mrb[0].mxu0 %v1138
    %v1233 = vpop.f32.mrb[0].mxu0
    %v1234 = vadd.f32 %v1123, %v1233
    %v1235 = vpop.f32.mrb[0].mxu0
    %1236 = vmatprep.mubr.f32.mxu0 0.0
    %1237 = vmatmul.mubr.f32.gmra.mrb[0].mxu0 %v1141
    %v1238 = vpop.f32.mrb[0].mxu0
    %v1239 = vadd.f32 %v1124, %v1238
    %v1240 = vpop.f32.mrb[0].mxu0
    %1241 = vmatprep.mubr.f32.mxu0 0.0
    %1242 = vmatmul.mubr.f32.gmra.mrb[0].mxu0 %v1144
    %v1243 = vpop.f32.mrb[0].mxu0
    %v1244 = vadd.f32 %v1125, %v1243
    %v1245 = vpop.f32.mrb[0].mxu0
    %1246 = vmatprep.mubr.f32.mxu0 0.0
    %1247 = vmatmul.mubr.f32.gmra.mrb[0].mxu0 %v1147
    %v1248 = vpop.f32.mrb[0].mxu0
    %v1249 = vadd.f32 %v1126, %v1248
    %v1250 = vpop.f32.mrb[0].mxu0
    %1251 = vmatprep.mubr.f32.mxu0 0.0
    %1252 = vmatmul.mubr.f32.gmra.mrb[0].mxu0 %v1150
    %v1253 = vpop.f32.mrb[0].mxu0
    %v1254 = vadd.f32 %v1127, %v1253
    %v1255 = vpop.f32.mrb[0].mxu0
    %1256 = vdwg.mxu0
    %v1257 = vsel %vm752, %v1219, -inf
    %1258 = vmax.xlane.f32.xlu0 %v1257
    %v1259 = vpop.xlane.xlu0 %1258
    %v1260 = vsel %vm752, %v1224, -inf
    %1261 = vmax.xlane.f32.xlu0 %v1260
    %v1262 = vpop.xlane.xlu0 %1261
    %v1263 = vsel %vm752, %v1229, -inf
    %1264 = vmax.xlane.f32.xlu0 %v1263
    %v1265 = vpop.xlane.xlu0 %1264
    %v1266 = vsel %vm752, %v1234, -inf
    %1267 = vmax.xlane.f32.xlu0 %v1266
    %v1268 = vpop.xlane.xlu0 %1267
    %v1269 = vsel %vm752, %v1239, -inf
    %1270 = vmax.xlane.f32.xlu0 %v1269
    %v1271 = vpop.xlane.xlu0 %1270
    %v1272 = vsel %vm752, %v1244, -inf
    %1273 = vmax.xlane.f32.xlu0 %v1272
    %v1274 = vpop.xlane.xlu0 %1273
    %v1275 = vsel %vm752, %v1249, -inf
    %1276 = vmax.xlane.f32.xlu0 %v1275
    %v1277 = vpop.xlane.xlu0 %1276
    %v1278 = vsel %vm752, %v1254, -inf
    %1279 = vmax.xlane.f32.xlu0 %v1278
    %v1280 = vpop.xlane.xlu0 %1279
    %v1281 = vsub.f32 %v1219, %v1259
    %v1282 = vsub.f32 %v1224, %v1262
    %v1283 = vsub.f32 %v1229, %v1265
    %v1284 = vsub.f32 %v1234, %v1268
    %v1285 = vsub.f32 %v1239, %v1271
    %v1286 = vsub.f32 %v1244, %v1274
    %v1287 = vsub.f32 %v1249, %v1277
    %v1288 = vsub.f32 %v1254, %v1280
    %v1289 = vmul.f32 %v1281, 1.442695
    %v1290 = vpow.pop %v1289
    %v1291 = vmul.f32 %v1282, 1.442695
    %v1292 = vpow.pop %v1291
    %v1293 = vmul.f32 %v1283, 1.442695
    %v1294 = vpow.pop %v1293
    %v1295 = vmul.f32 %v1284, 1.442695
    %v1296 = vpow.pop %v1295
    %v1297 = vmul.f32 %v1285, 1.442695
    %v1298 = vpow.pop %v1297
    %v1299 = vmul.f32 %v1286, 1.442695
    %v1300 = vpow.pop %v1299
    %v1301 = vmul.f32 %v1287, 1.442695
    %v1302 = vpow.pop %v1301
    %v1303 = vmul.f32 %v1288, 1.442695
    %v1304 = vpow.pop %v1303
    %v1305 = vsel %vm752, %v1290, 0.0
    %1306 = vadd.xlane.f32.xlu0 %v1305
    %v1307 = vpop.xlane.xlu0 %1306
    %v1308 = vsel %vm752, %v1292, 0.0
    %1309 = vadd.xlane.f32.xlu0 %v1308
    %v1310 = vpop.xlane.xlu0 %1309
    %v1311 = vsel %vm752, %v1294, 0.0
    %1312 = vadd.xlane.f32.xlu0 %v1311
    %v1313 = vpop.xlane.xlu0 %1312
    %v1314 = vsel %vm752, %v1296, 0.0
    %1315 = vadd.xlane.f32.xlu0 %v1314
    %v1316 = vpop.xlane.xlu0 %1315
    %v1317 = vsel %vm752, %v1298, 0.0
    %1318 = vadd.xlane.f32.xlu0 %v1317
    %v1319 = vpop.xlane.xlu0 %1318
    %v1320 = vsel %vm752, %v1300, 0.0
    %1321 = vadd.xlane.f32.xlu0 %v1320
    %v1322 = vpop.xlane.xlu0 %1321
    %v1323 = vsel %vm752, %v1302, 0.0
    %1324 = vadd.xlane.f32.xlu0 %v1323
    %v1325 = vpop.xlane.xlu0 %1324
    %v1326 = vsel %vm752, %v1304, 0.0
    %1327 = vadd.xlane.f32.xlu0 %v1326
    %v1328 = vpop.xlane.xlu0 %1327
    %v1329 = vrcp.pop %v1307
    %v1330 = vrcp.pop %v1310
    %v1331 = vrcp.pop %v1313
    %v1332 = vrcp.pop %v1316
    %v1333 = vrcp.pop %v1319
    %v1334 = vrcp.pop %v1322
    %v1335 = vrcp.pop %v1325
    %v1336 = vrcp.pop %v1328
    %v1337 = vmul.f32 %v1290, %v1329
    %v1338 = vmul.f32 %v1292, %v1330
    %v1339 = vmul.f32 %v1294, %v1331
    %v1340 = vmul.f32 %v1296, %v1332
    %v1341 = vmul.f32 %v1298, %v1333
    %v1342 = vmul.f32 %v1300, %v1334
    %v1343 = vmul.f32 %v1302, %v1335
    %v1344 = vmul.f32 %v1304, %v1336
    %v1346 = vsel %vm752, %v1337, 0
    %v1349 = vsel %vm752, %v1338, 0
    %v1352 = vsel %vm752, %v1339, 0
    %v1355 = vsel %vm752, %v1340, 0
    %v1358 = vsel %vm752, %v1341, 0
    %v1361 = vsel %vm752, %v1342, 0
    %v1364 = vsel %vm752, %v1343, 0
    %v1367 = vsel %vm752, %v1344, 0
    %1369 = vmatprep.subr.mxu0 0.0
    %1370 = vmatpush1.msra.mxu0 %v1103
    %1371 = vmatprep.subr.mxu0 0.0
    %1372 = vmatpush1.msra.mxu0 %v1104
    %1373 = vmatprep.subr.mxu0 0.0
    %1374 = vmatpush1.msra.mxu0 %v1105
    %1375 = vmatprep.subr.mxu0 0.0
    %1376 = vmatpush1.msra.mxu0 %v1106
    %1377 = vmatprep.subr.mxu0 0.0
    %1378 = vmatpush1.msra.mxu0 %v1107
    %1379 = vmatprep.subr.mxu0 0.0
    %1380 = vmatpush1.msra.mxu0 %v1108
    %1381 = vmatprep.subr.mxu0 0.0
    %1382 = vmatpush1.msra.mxu0 %v1109
    %1383 = vmatprep.subr.mxu0 0.0
    %1384 = vmatpush1.msra.mxu0 %v1110
    %1385 = vmatprep.subr.mxu0 0.0
    %1386 = vmatpush1.msra.mxu0 0.0
    %1387 = vmatprep.subr.mxu0 0.0
    %1388 = vmatpush1.msra.mxu0 0.0
    %1389 = vmatprep.subr.mxu0 0.0
    %1390 = vmatpush1.msra.mxu0 0.0
    %1391 = vmatprep.subr.mxu0 0.0
    %1392 = vmatpush1.msra.mxu0 0.0
    %1393 = vmatprep.subr.mxu0 0.0
    %1394 = vmatpush1.msra.mxu0 0.0
    %1395 = vmatprep.subr.mxu0 0.0
    %1396 = vmatpush1.msra.mxu0 0.0
    %1397 = vmatprep.subr.mxu0 0.0
    %1398 = vmatpush1.msra.mxu0 0.0
    %1399 = vmatprep.subr.mxu0 0.0
    %1400 = vmatpush1.msra.mxu0 0.0
    %1401 = vmatprep.subr.mxu0 0.0
    %1402 = vmatpush1.msra.mxu0 0.0
    %1403 = vmatprep.subr.mxu0 0.0
    %1404 = vmatpush1.msra.mxu0 0.0
    %1405 = vmatprep.subr.mxu0 0.0
    %1406 = vmatpush1.msra.mxu0 0.0
    %1407 = vmatprep.subr.mxu0 0.0
    %1408 = vmatpush1.msra.mxu0 0.0
    %1409 = vmatprep.subr.mxu0 0.0
    %1410 = vmatpush1.msra.mxu0 0.0
    %1411 = vmatprep.subr.mxu0 0.0
    %1412 = vmatpush1.msra.mxu0 0.0
    %1413 = vmatprep.subr.mxu0 0.0
    %1414 = vmatpush1.msra.mxu0 0.0
    %1415 = vmatprep.subr.mxu0 0.0
    %1416 = vmatpush1.msra.mxu0 0.0
    %1417 = vmatprep.subr.mxu0 0.0
    %1418 = vmatpush1.msra.mxu0 0.0
    %1419 = vmatprep.subr.mxu0 0.0
    %1420 = vmatpush1.msra.mxu0 0.0
    %1421 = vmatprep.subr.mxu0 0.0
    %1422 = vmatpush1.msra.mxu0 0.0
    %1423 = vmatprep.subr.mxu0 0.0
    %1424 = vmatpush1.msra.mxu0 0.0
    %1425 = vmatprep.subr.mxu0 0.0
    %1426 = vmatpush1.msra.mxu0 0.0
    %1427 = vmatprep.subr.mxu0 0.0
    %1428 = vmatpush1.msra.mxu0 0.0
    %1429 = vmatprep.subr.mxu0 0.0
    %1430 = vmatpush1.msra.mxu0 0.0
    %1431 = vmatprep.subr.mxu0 0.0
    %1432 = vmatpush1.msra.mxu0 0.0
    %1433 = vmatprep.mubr.f32.mxu0 0.0
    %1434 = vmatmul.mubr.f32.gmra.mrb[0].mxu0 %v1346
    %v1435 = vpop.f32.mrb[0].mxu0
    %v1436 = vadd.f32 0.0, %v1435
    %v1437 = vpop.f32.mrb[0].mxu0
    %1438 = vmatprep.mubr.f32.mxu0 0.0
    %1439 = vmatmul.mubr.f32.gmra.mrb[0].mxu0 %v1349
    %v1440 = vpop.f32.mrb[0].mxu0
    %v1441 = vadd.f32 0.0, %v1440
    %v1442 = vpop.f32.mrb[0].mxu0
    %1443 = vmatprep.mubr.f32.mxu0 0.0
    %1444 = vmatmul.mubr.f32.gmra.mrb[0].mxu0 %v1352
    %v1445 = vpop.f32.mrb[0].mxu0
    %v1446 = vadd.f32 0.0, %v1445
    %v1447 = vpop.f32.mrb[0].mxu0
    %1448 = vmatprep.mubr.f32.mxu0 0.0
    %1449 = vmatmul.mubr.f32.gmra.mrb[0].mxu0 %v1355
    %v1450 = vpop.f32.mrb[0].mxu0
    %v1451 = vadd.f32 0.0, %v1450
    %v1452 = vpop.f32.mrb[0].mxu0
    %1453 = vmatprep.mubr.f32.mxu0 0.0
    %1454 = vmatmul.mubr.f32.gmra.mrb[0].mxu0 %v1358
    %v1455 = vpop.f32.mrb[0].mxu0
    %v1456 = vadd.f32 0.0, %v1455
    %v1457 = vpop.f32.mrb[0].mxu0
    %1458 = vmatprep.mubr.f32.mxu0 0.0
    %1459 = vmatmul.mubr.f32.gmra.mrb[0].mxu0 %v1361
    %v1460 = vpop.f32.mrb[0].mxu0
    %v1461 = vadd.f32 0.0, %v1460
    %v1462 = vpop.f32.mrb[0].mxu0
    %1463 = vmatprep.mubr.f32.mxu0 0.0
    %1464 = vmatmul.mubr.f32.gmra.mrb[0].mxu0 %v1364
    %v1465 = vpop.f32.mrb[0].mxu0
    %v1466 = vadd.f32 0.0, %v1465
    %v1467 = vpop.f32.mrb[0].mxu0
    %1468 = vmatprep.mubr.f32.mxu0 0.0
    %1469 = vmatmul.mubr.f32.gmra.mrb[0].mxu0 %v1367
    %v1470 = vpop.f32.mrb[0].mxu0
    %v1471 = vadd.f32 0.0, %v1470
    %v1472 = vpop.f32.mrb[0].mxu0
    %1473 = vdwg.mxu0
    %v1475 = vsel %vm752, %v833, 0
    %v1478 = vsel %vm752, %v834, 0
    %v1481 = vsel %vm752, %v835, 0
    %v1484 = vsel %vm752, %v836, 0
    %v1487 = vsel %vm752, %v837, 0
    %v1490 = vsel %vm752, %v838, 0
    %v1493 = vsel %vm752, %v839, 0
    %v1496 = vsel %vm752, %v840, 0
    %1498 = vmatprep.subr.mxu0 0.0
    %1499 = vmatpush1.msra.mxu0 %v575
    %1500 = vmatprep.subr.mxu0 0.0
    %1501 = vmatpush1.msra.mxu0 %v576
    %1502 = vmatprep.subr.mxu0 0.0
    %1503 = vmatpush1.msra.mxu0 %v577
    %1504 = vmatprep.subr.mxu0 0.0
    %1505 = vmatpush1.msra.mxu0 %v578
    %1506 = vmatprep.subr.mxu0 0.0
    %1507 = vmatpush1.msra.mxu0 %v579
    %1508 = vmatprep.subr.mxu0 0.0
    %1509 = vmatpush1.msra.mxu0 %v580
    %1510 = vmatprep.subr.mxu0 0.0
    %1511 = vmatpush1.msra.mxu0 %v581
    %1512 = vmatprep.subr.mxu0 0.0
    %1513 = vmatpush1.msra.mxu0 %v582
    %1514 = vmatprep.subr.mxu0 0.0
    %1515 = vmatpush1.msra.mxu0 0.0
    %1516 = vmatprep.subr.mxu0 0.0
    %1517 = vmatpush1.msra.mxu0 0.0
    %1518 = vmatprep.subr.mxu0 0.0
    %1519 = vmatpush1.msra.mxu0 0.0
    %1520 = vmatprep.subr.mxu0 0.0
    %1521 = vmatpush1.msra.mxu0 0.0
    %1522 = vmatprep.subr.mxu0 0.0
    %1523 = vmatpush1.msra.mxu0 0.0
    %1524 = vmatprep.subr.mxu0 0.0
    %1525 = vmatpush1.msra.mxu0 0.0
    %1526 = vmatprep.subr.mxu0 0.0
    %1527 = vmatpush1.msra.mxu0 0.0
    %1528 = vmatprep.subr.mxu0 0.0
    %1529 = vmatpush1.msra.mxu0 0.0
    %1530 = vmatprep.subr.mxu0 0.0
    %1531 = vmatpush1.msra.mxu0 0.0
    %1532 = vmatprep.subr.mxu0 0.0
    %1533 = vmatpush1.msra.mxu0 0.0
    %1534 = vmatprep.subr.mxu0 0.0
    %1535 = vmatpush1.msra.mxu0 0.0
    %1536 = vmatprep.subr.mxu0 0.0
    %1537 = vmatpush1.msra.mxu0 0.0
    %1538 = vmatprep.subr.mxu0 0.0
    %1539 = vmatpush1.msra.mxu0 0.0
    %1540 = vmatprep.subr.mxu0 0.0
    %1541 = vmatpush1.msra.mxu0 0.0
    %1542 = vmatprep.subr.mxu0 0.0
    %1543 = vmatpush1.msra.mxu0 0.0
    %1544 = vmatprep.subr.mxu0 0.0
    %1545 = vmatpush1.msra.mxu0 0.0
    %1546 = vmatprep.subr.mxu0 0.0
    %1547 = vmatpush1.msra.mxu0 0.0
    %1548 = vmatprep.subr.mxu0 0.0
    %1549 = vmatpush1.msra.mxu0 0.0
    %1550 = vmatprep.subr.mxu0 0.0
    %1551 = vmatpush1.msra.mxu0 0.0
    %1552 = vmatprep.subr.mxu0 0.0
    %1553 = vmatpush1.msra.mxu0 0.0
    %1554 = vmatprep.subr.mxu0 0.0
    %1555 = vmatpush1.msra.mxu0 0.0
    %1556 = vmatprep.subr.mxu0 0.0
    %1557 = vmatpush1.msra.mxu0 0.0
    %1558 = vmatprep.subr.mxu0 0.0
    %1559 = vmatpush1.msra.mxu0 0.0
    %1560 = vmatprep.subr.mxu0 0.0
    %1561 = vmatpush1.msra.mxu0 0.0
    %1562 = vmatprep.mubr.f32.mxu0 0.0
    %1563 = vmatmul.mubr.f32.gmra.mrb[0].mxu0 %v1475
    %v1564 = vpop.f32.mrb[0].mxu0
    %v1565 = vadd.f32 %v1436, %v1564
    %v1566 = vpop.f32.mrb[0].mxu0
    %1567 = vmatprep.mubr.f32.mxu0 0.0
    %1568 = vmatmul.mubr.f32.gmra.mrb[0].mxu0 %v1478
    %v1569 = vpop.f32.mrb[0].mxu0
    %v1570 = vadd.f32 %v1441, %v1569
    %v1571 = vpop.f32.mrb[0].mxu0
    %1572 = vmatprep.mubr.f32.mxu0 0.0
    %1573 = vmatmul.mubr.f32.gmra.mrb[0].mxu0 %v1481
    %v1574 = vpop.f32.mrb[0].mxu0
    %v1575 = vadd.f32 %v1446, %v1574
    %v1576 = vpop.f32.mrb[0].mxu0
    %1577 = vmatprep.mubr.f32.mxu0 0.0
    %1578 = vmatmul.mubr.f32.gmra.mrb[0].mxu0 %v1484
    %v1579 = vpop.f32.mrb[0].mxu0
    %v1580 = vadd.f32 %v1451, %v1579
    %v1581 = vpop.f32.mrb[0].mxu0
    %1582 = vmatprep.mubr.f32.mxu0 0.0
    %1583 = vmatmul.mubr.f32.gmra.mrb[0].mxu0 %v1487
    %v1584 = vpop.f32.mrb[0].mxu0
    %v1585 = vadd.f32 %v1456, %v1584
    %v1586 = vpop.f32.mrb[0].mxu0
    %1587 = vmatprep.mubr.f32.mxu0 0.0
    %1588 = vmatmul.mubr.f32.gmra.mrb[0].mxu0 %v1490
    %v1589 = vpop.f32.mrb[0].mxu0
    %v1590 = vadd.f32 %v1461, %v1589
    %v1591 = vpop.f32.mrb[0].mxu0
    %1592 = vmatprep.mubr.f32.mxu0 0.0
    %1593 = vmatmul.mubr.f32.gmra.mrb[0].mxu0 %v1493
    %v1594 = vpop.f32.mrb[0].mxu0
    %v1595 = vadd.f32 %v1466, %v1594
    %v1596 = vpop.f32.mrb[0].mxu0
    %1597 = vmatprep.mubr.f32.mxu0 0.0
    %1598 = vmatmul.mubr.f32.gmra.mrb[0].mxu0 %v1496
    %v1599 = vpop.f32.mrb[0].mxu0
    %v1600 = vadd.f32 %v1471, %v1599
    %v1601 = vpop.f32.mrb[0].mxu0
    %1602 = vdwg.mxu0
    %v1604 = vsel %vm60, %v1094, 0
    %v1607 = vsel %vm60, %v1095, 0
    %v1610 = vsel %vm60, %v1096, 0
    %v1613 = vsel %vm60, %v1097, 0
    %v1616 = vsel %vm60, %v1098, 0
    %v1619 = vsel %vm60, %v1099, 0
    %v1622 = vsel %vm60, %v1100, 0
    %v1625 = vsel %vm60, %v1101, 0
    %1627 = vmatprep.subr.mxu0 0.0
    %1628 = vmatpush1.xpose.msra.mxu0 %v866
    %1629 = vmatprep.subr.mxu0 0.0
    %1630 = vmatpush1.xpose.msra.mxu0 %v869
    %1631 = vmatprep.subr.mxu0 0.0
    %1632 = vmatpush1.xpose.msra.mxu0 %v872
    %1633 = vmatprep.subr.mxu0 0.0
    %1634 = vmatpush1.xpose.msra.mxu0 %v875
    %1635 = vmatprep.subr.mxu0 0.0
    %1636 = vmatpush1.xpose.msra.mxu0 %v878
    %1637 = vmatprep.subr.mxu0 0.0
    %1638 = vmatpush1.xpose.msra.mxu0 %v881
    %1639 = vmatprep.subr.mxu0 0.0
    %1640 = vmatpush1.xpose.msra.mxu0 %v884
    %1641 = vmatprep.subr.mxu0 0.0
    %1642 = vmatpush1.xpose.msra.mxu0 %v887
    %1643 = vmatprep.subr.mxu0 0.0
    %1644 = vmatpush1.xpose.msra.mxu0 0.0
    %1645 = vmatprep.subr.mxu0 0.0
    %1646 = vmatpush1.xpose.msra.mxu0 0.0
    %1647 = vmatprep.subr.mxu0 0.0
    %1648 = vmatpush1.xpose.msra.mxu0 0.0
    %1649 = vmatprep.subr.mxu0 0.0
    %1650 = vmatpush1.xpose.msra.mxu0 0.0
    %1651 = vmatprep.subr.mxu0 0.0
    %1652 = vmatpush1.xpose.msra.mxu0 0.0
    %1653 = vmatprep.subr.mxu0 0.0
    %1654 = vmatpush1.xpose.msra.mxu0 0.0
    %1655 = vmatprep.subr.mxu0 0.0
    %1656 = vmatpush1.xpose.msra.mxu0 0.0
    %1657 = vmatprep.subr.mxu0 0.0
    %1658 = vmatpush1.xpose.msra.mxu0 0.0
    %1659 = vmatprep.subr.mxu0 0.0
    %1660 = vmatpush1.xpose.msra.mxu0 0.0
    %1661 = vmatprep.subr.mxu0 0.0
    %1662 = vmatpush1.xpose.msra.mxu0 0.0
    %1663 = vmatprep.subr.mxu0 0.0
    %1664 = vmatpush1.xpose.msra.mxu0 0.0
    %1665 = vmatprep.subr.mxu0 0.0
    %1666 = vmatpush1.xpose.msra.mxu0 0.0
    %1667 = vmatprep.subr.mxu0 0.0
    %1668 = vmatpush1.xpose.msra.mxu0 0.0
    %1669 = vmatprep.subr.mxu0 0.0
    %1670 = vmatpush1.xpose.msra.mxu0 0.0
    %1671 = vmatprep.subr.mxu0 0.0
    %1672 = vmatpush1.xpose.msra.mxu0 0.0
    %1673 = vmatprep.subr.mxu0 0.0
    %1674 = vmatpush1.xpose.msra.mxu0 0.0
    %1675 = vmatprep.subr.mxu0 0.0
    %1676 = vmatpush1.xpose.msra.mxu0 0.0
    %1677 = vmatprep.subr.mxu0 0.0
    %1678 = vmatpush1.xpose.msra.mxu0 0.0
    %1679 = vmatprep.subr.mxu0 0.0
    %1680 = vmatpush1.xpose.msra.mxu0 0.0
    %1681 = vmatprep.subr.mxu0 0.0
    %1682 = vmatpush1.xpose.msra.mxu0 0.0
    %1683 = vmatprep.subr.mxu0 0.0
    %1684 = vmatpush1.xpose.msra.mxu0 0.0
    %1685 = vmatprep.subr.mxu0 0.0
    %1686 = vmatpush1.xpose.msra.mxu0 0.0
    %1687 = vmatprep.subr.mxu0 0.0
    %1688 = vmatpush1.xpose.msra.mxu0 0.0
    %1689 = vmatprep.subr.mxu0 0.0
    %1690 = vmatpush1.xpose.msra.mxu0 0.0
    %1691 = vmatprep.mubr.f32.mxu0 0.0
    %1692 = vmatmul.mubr.f32.gmra.mrb[0].mxu0 %v1604
    %v1693 = vpop.f32.mrb[0].mxu0
    %v1694 = vadd.f32 %v1120, %v1693
    %v1695 = vpop.f32.mrb[0].mxu0
    %1696 = vmatprep.mubr.f32.mxu0 0.0
    %1697 = vmatmul.mubr.f32.gmra.mrb[0].mxu0 %v1607
    %v1698 = vpop.f32.mrb[0].mxu0
    %v1699 = vadd.f32 %v1121, %v1698
    %v1700 = vpop.f32.mrb[0].mxu0
    %1701 = vmatprep.mubr.f32.mxu0 0.0
    %1702 = vmatmul.mubr.f32.gmra.mrb[0].mxu0 %v1610
    %v1703 = vpop.f32.mrb[0].mxu0
    %v1704 = vadd.f32 %v1122, %v1703
    %v1705 = vpop.f32.mrb[0].mxu0
    %1706 = vmatprep.mubr.f32.mxu0 0.0
    %1707 = vmatmul.mubr.f32.gmra.mrb[0].mxu0 %v1613
    %v1708 = vpop.f32.mrb[0].mxu0
    %v1709 = vadd.f32 %v1123, %v1708
    %v1710 = vpop.f32.mrb[0].mxu0
    %1711 = vmatprep.mubr.f32.mxu0 0.0
    %1712 = vmatmul.mubr.f32.gmra.mrb[0].mxu0 %v1616
    %v1713 = vpop.f32.mrb[0].mxu0
    %v1714 = vadd.f32 %v1124, %v1713
    %v1715 = vpop.f32.mrb[0].mxu0
    %1716 = vmatprep.mubr.f32.mxu0 0.0
    %1717 = vmatmul.mubr.f32.gmra.mrb[0].mxu0 %v1619
    %v1718 = vpop.f32.mrb[0].mxu0
    %v1719 = vadd.f32 %v1125, %v1718
    %v1720 = vpop.f32.mrb[0].mxu0
    %1721 = vmatprep.mubr.f32.mxu0 0.0
    %1722 = vmatmul.mubr.f32.gmra.mrb[0].mxu0 %v1622
    %v1723 = vpop.f32.mrb[0].mxu0
    %v1724 = vadd.f32 %v1126, %v1723
    %v1725 = vpop.f32.mrb[0].mxu0
    %1726 = vmatprep.mubr.f32.mxu0 0.0
    %1727 = vmatmul.mubr.f32.gmra.mrb[0].mxu0 %v1625
    %v1728 = vpop.f32.mrb[0].mxu0
    %v1729 = vadd.f32 %v1127, %v1728
    %v1730 = vpop.f32.mrb[0].mxu0
    %1731 = vdwg.mxu0
    %v1732 = vsel %vm752, %v1694, -inf
    %1733 = vmax.xlane.f32.xlu0 %v1732
    %v1734 = vpop.xlane.xlu0 %1733
    %v1735 = vsel %vm752, %v1699, -inf
    %1736 = vmax.xlane.f32.xlu0 %v1735
    %v1737 = vpop.xlane.xlu0 %1736
    %v1738 = vsel %vm752, %v1704, -inf
    %1739 = vmax.xlane.f32.xlu0 %v1738
    %v1740 = vpop.xlane.xlu0 %1739
    %v1741 = vsel %vm752, %v1709, -inf
    %1742 = vmax.xlane.f32.xlu0 %v1741
    %v1743 = vpop.xlane.xlu0 %1742
    %v1744 = vsel %vm752, %v1714, -inf
    %1745 = vmax.xlane.f32.xlu0 %v1744
    %v1746 = vpop.xlane.xlu0 %1745
    %v1747 = vsel %vm752, %v1719, -inf
    %1748 = vmax.xlane.f32.xlu0 %v1747
    %v1749 = vpop.xlane.xlu0 %1748
    %v1750 = vsel %vm752, %v1724, -inf
    %1751 = vmax.xlane.f32.xlu0 %v1750
    %v1752 = vpop.xlane.xlu0 %1751
    %v1753 = vsel %vm752, %v1729, -inf
    %1754 = vmax.xlane.f32.xlu0 %v1753
    %v1755 = vpop.xlane.xlu0 %1754
    %v1756 = vsub.f32 %v1694, %v1734
    %v1757 = vsub.f32 %v1699, %v1737
    %v1758 = vsub.f32 %v1704, %v1740
    %v1759 = vsub.f32 %v1709, %v1743
    %v1760 = vsub.f32 %v1714, %v1746
    %v1761 = vsub.f32 %v1719, %v1749
    %v1762 = vsub.f32 %v1724, %v1752
    %v1763 = vsub.f32 %v1729, %v1755
    %v1764 = vmul.f32 %v1756, 1.442695
    %v1765 = vpow.pop %v1764
    %v1766 = vmul.f32 %v1757, 1.442695
    %v1767 = vpow.pop %v1766
    %v1768 = vmul.f32 %v1758, 1.442695
    %v1769 = vpow.pop %v1768
    %v1770 = vmul.f32 %v1759, 1.442695
    %v1771 = vpow.pop %v1770
    %v1772 = vmul.f32 %v1760, 1.442695
    %v1773 = vpow.pop %v1772
    %v1774 = vmul.f32 %v1761, 1.442695
    %v1775 = vpow.pop %v1774
    %v1776 = vmul.f32 %v1762, 1.442695
    %v1777 = vpow.pop %v1776
    %v1778 = vmul.f32 %v1763, 1.442695
    %v1779 = vpow.pop %v1778
    %v1780 = vsel %vm752, %v1765, 0.0
    %1781 = vadd.xlane.f32.xlu0 %v1780
    %v1782 = vpop.xlane.xlu0 %1781
    %v1783 = vsel %vm752, %v1767, 0.0
    %1784 = vadd.xlane.f32.xlu0 %v1783
    %v1785 = vpop.xlane.xlu0 %1784
    %v1786 = vsel %vm752, %v1769, 0.0
    %1787 = vadd.xlane.f32.xlu0 %v1786
    %v1788 = vpop.xlane.xlu0 %1787
    %v1789 = vsel %vm752, %v1771, 0.0
    %1790 = vadd.xlane.f32.xlu0 %v1789
    %v1791 = vpop.xlane.xlu0 %1790
    %v1792 = vsel %vm752, %v1773, 0.0
    %1793 = vadd.xlane.f32.xlu0 %v1792
    %v1794 = vpop.xlane.xlu0 %1793
    %v1795 = vsel %vm752, %v1775, 0.0
    %1796 = vadd.xlane.f32.xlu0 %v1795
    %v1797 = vpop.xlane.xlu0 %1796
    %v1798 = vsel %vm752, %v1777, 0.0
    %1799 = vadd.xlane.f32.xlu0 %v1798
    %v1800 = vpop.xlane.xlu0 %1799
    %v1801 = vsel %vm752, %v1779, 0.0
    %1802 = vadd.xlane.f32.xlu0 %v1801
    %v1803 = vpop.xlane.xlu0 %1802
    %v1804 = vrcp.pop %v1782
    %v1805 = vrcp.pop %v1785
    %v1806 = vrcp.pop %v1788
    %v1807 = vrcp.pop %v1791
    %v1808 = vrcp.pop %v1794
    %v1809 = vrcp.pop %v1797
    %v1810 = vrcp.pop %v1800
    %v1811 = vrcp.pop %v1803
    %v1812 = vmul.f32 %v1765, %v1804
    %v1813 = vmul.f32 %v1767, %v1805
    %v1814 = vmul.f32 %v1769, %v1806
    %v1815 = vmul.f32 %v1771, %v1807
    %v1816 = vmul.f32 %v1773, %v1808
    %v1817 = vmul.f32 %v1775, %v1809
    %v1818 = vmul.f32 %v1777, %v1810
    %v1819 = vmul.f32 %v1779, %v1811
    %v1821 = vsel %vm752, %v1812, 0
    %v1824 = vsel %vm752, %v1813, 0
    %v1827 = vsel %vm752, %v1814, 0
    %v1830 = vsel %vm752, %v1815, 0
    %v1833 = vsel %vm752, %v1816, 0
    %v1836 = vsel %vm752, %v1817, 0
    %v1839 = vsel %vm752, %v1818, 0
    %v1842 = vsel %vm752, %v1819, 0
    %1844 = vmatprep.subr.mxu0 0.0
    %1845 = vmatpush1.msra.mxu0 %v1111
    %1846 = vmatprep.subr.mxu0 0.0
    %1847 = vmatpush1.msra.mxu0 %v1112
    %1848 = vmatprep.subr.mxu0 0.0
    %1849 = vmatpush1.msra.mxu0 %v1113
    %1850 = vmatprep.subr.mxu0 0.0
    %1851 = vmatpush1.msra.mxu0 %v1114
    %1852 = vmatprep.subr.mxu0 0.0
    %1853 = vmatpush1.msra.mxu0 %v1115
    %1854 = vmatprep.subr.mxu0 0.0
    %1855 = vmatpush1.msra.mxu0 %v1116
    %1856 = vmatprep.subr.mxu0 0.0
    %1857 = vmatpush1.msra.mxu0 %v1117
    %1858 = vmatprep.subr.mxu0 0.0
    %1859 = vmatpush1.msra.mxu0 %v1118
    %1860 = vmatprep.subr.mxu0 0.0
    %1861 = vmatpush1.msra.mxu0 0.0
    %1862 = vmatprep.subr.mxu0 0.0
    %1863 = vmatpush1.msra.mxu0 0.0
    %1864 = vmatprep.subr.mxu0 0.0
    %1865 = vmatpush1.msra.mxu0 0.0
    %1866 = vmatprep.subr.mxu0 0.0
    %1867 = vmatpush1.msra.mxu0 0.0
    %1868 = vmatprep.subr.mxu0 0.0
    %1869 = vmatpush1.msra.mxu0 0.0
    %1870 = vmatprep.subr.mxu0 0.0
    %1871 = vmatpush1.msra.mxu0 0.0
    %1872 = vmatprep.subr.mxu0 0.0
    %1873 = vmatpush1.msra.mxu0 0.0
    %1874 = vmatprep.subr.mxu0 0.0
    %1875 = vmatpush1.msra.mxu0 0.0
    %1876 = vmatprep.subr.mxu0 0.0
    %1877 = vmatpush1.msra.mxu0 0.0
    %1878 = vmatprep.subr.mxu0 0.0
    %1879 = vmatpush1.msra.mxu0 0.0
    %1880 = vmatprep.subr.mxu0 0.0
    %1881 = vmatpush1.msra.mxu0 0.0
    %1882 = vmatprep.subr.mxu0 0.0
    %1883 = vmatpush1.msra.mxu0 0.0
    %1884 = vmatprep.subr.mxu0 0.0
    %1885 = vmatpush1.msra.mxu0 0.0
    %1886 = vmatprep.subr.mxu0 0.0
    %1887 = vmatpush1.msra.mxu0 0.0
    %1888 = vmatprep.subr.mxu0 0.0
    %1889 = vmatpush1.msra.mxu0 0.0
    %1890 = vmatprep.subr.mxu0 0.0
    %1891 = vmatpush1.msra.mxu0 0.0
    %1892 = vmatprep.subr.mxu0 0.0
    %1893 = vmatpush1.msra.mxu0 0.0
    %1894 = vmatprep.subr.mxu0 0.0
    %1895 = vmatpush1.msra.mxu0 0.0
    %1896 = vmatprep.subr.mxu0 0.0
    %1897 = vmatpush1.msra.mxu0 0.0
    %1898 = vmatprep.subr.mxu0 0.0
    %1899 = vmatpush1.msra.mxu0 0.0
    %1900 = vmatprep.subr.mxu0 0.0
    %1901 = vmatpush1.msra.mxu0 0.0
    %1902 = vmatprep.subr.mxu0 0.0
    %1903 = vmatpush1.msra.mxu0 0.0
    %1904 = vmatprep.subr.mxu0 0.0
    %1905 = vmatpush1.msra.mxu0 0.0
    %1906 = vmatprep.subr.mxu0 0.0
    %1907 = vmatpush1.msra.mxu0 0.0
    %1908 = vmatprep.mubr.f32.mxu0 0.0
    %1909 = vmatmul.mubr.f32.gmra.mrb[0].mxu0 %v1821
    %v1910 = vpop.f32.mrb[0].mxu0
    %v1911 = vadd.f32 0.0, %v1910
    %v1912 = vpop.f32.mrb[0].mxu0
    %1913 = vmatprep.mubr.f32.mxu0 0.0
    %1914 = vmatmul.mubr.f32.gmra.mrb[0].mxu0 %v1824
    %v1915 = vpop.f32.mrb[0].mxu0
    %v1916 = vadd.f32 0.0, %v1915
    %v1917 = vpop.f32.mrb[0].mxu0
    %1918 = vmatprep.mubr.f32.mxu0 0.0
    %1919 = vmatmul.mubr.f32.gmra.mrb[0].mxu0 %v1827
    %v1920 = vpop.f32.mrb[0].mxu0
    %v1921 = vadd.f32 0.0, %v1920
    %v1922 = vpop.f32.mrb[0].mxu0
    %1923 = vmatprep.mubr.f32.mxu0 0.0
    %1924 = vmatmul.mubr.f32.gmra.mrb[0].mxu0 %v1830
    %v1925 = vpop.f32.mrb[0].mxu0
    %v1926 = vadd.f32 0.0, %v1925
    %v1927 = vpop.f32.mrb[0].mxu0
    %1928 = vmatprep.mubr.f32.mxu0 0.0
    %1929 = vmatmul.mubr.f32.gmra.mrb[0].mxu0 %v1833
    %v1930 = vpop.f32.mrb[0].mxu0
    %v1931 = vadd.f32 0.0, %v1930
    %v1932 = vpop.f32.mrb[0].mxu0
    %1933 = vmatprep.mubr.f32.mxu0 0.0
    %1934 = vmatmul.mubr.f32.gmra.mrb[0].mxu0 %v1836
    %v1935 = vpop.f32.mrb[0].mxu0
    %v1936 = vadd.f32 0.0, %v1935
    %v1937 = vpop.f32.mrb[0].mxu0
    %1938 = vmatprep.mubr.f32.mxu0 0.0
    %1939 = vmatmul.mubr.f32.gmra.mrb[0].mxu0 %v1839
    %v1940 = vpop.f32.mrb[0].mxu0
    %v1941 = vadd.f32 0.0, %v1940
    %v1942 = vpop.f32.mrb[0].mxu0
    %1943 = vmatprep.mubr.f32.mxu0 0.0
    %1944 = vmatmul.mubr.f32.gmra.mrb[0].mxu0 %v1842
    %v1945 = vpop.f32.mrb[0].mxu0
    %v1946 = vadd.f32 0.0, %v1945
    %v1947 = vpop.f32.mrb[0].mxu0
    %1948 = vdwg.mxu0
    %v1950 = vsel %vm752, %v1074, 0
    %v1953 = vsel %vm752, %v1075, 0
    %v1956 = vsel %vm752, %v1076, 0
    %v1959 = vsel %vm752, %v1077, 0
    %v1962 = vsel %vm752, %v1078, 0
    %v1965 = vsel %vm752, %v1079, 0
    %v1968 = vsel %vm752, %v1080, 0
    %v1971 = vsel %vm752, %v1081, 0
    %1973 = vmatprep.subr.mxu0 0.0
    %1974 = vmatpush1.msra.mxu0 %v583
    %1975 = vmatprep.subr.mxu0 0.0
    %1976 = vmatpush1.msra.mxu0 %v584
    %1977 = vmatprep.subr.mxu0 0.0
    %1978 = vmatpush1.msra.mxu0 %v585
    %1979 = vmatprep.subr.mxu0 0.0
    %1980 = vmatpush1.msra.mxu0 %v586
    %1981 = vmatprep.subr.mxu0 0.0
    %1982 = vmatpush1.msra.mxu0 %v587
    %1983 = vmatprep.subr.mxu0 0.0
    %1984 = vmatpush1.msra.mxu0 %v588
    %1985 = vmatprep.subr.mxu0 0.0
    %1986 = vmatpush1.msra.mxu0 %v589
    %1987 = vmatprep.subr.mxu0 0.0
    %1988 = vmatpush1.msra.mxu0 %v590
    %1989 = vmatprep.subr.mxu0 0.0
    %1990 = vmatpush1.msra.mxu0 0.0
    %1991 = vmatprep.subr.mxu0 0.0
    %1992 = vmatpush1.msra.mxu0 0.0
    %1993 = vmatprep.subr.mxu0 0.0
    %1994 = vmatpush1.msra.mxu0 0.0
    %1995 = vmatprep.subr.mxu0 0.0
    %1996 = vmatpush1.msra.mxu0 0.0
    %1997 = vmatprep.subr.mxu0 0.0
    %1998 = vmatpush1.msra.mxu0 0.0
    %1999 = vmatprep.subr.mxu0 0.0
    %2000 = vmatpush1.msra.mxu0 0.0
    %2001 = vmatprep.subr.mxu0 0.0
    %2002 = vmatpush1.msra.mxu0 0.0
    %2003 = vmatprep.subr.mxu0 0.0
    %2004 = vmatpush1.msra.mxu0 0.0
    %2005 = vmatprep.subr.mxu0 0.0
    %2006 = vmatpush1.msra.mxu0 0.0
    %2007 = vmatprep.subr.mxu0 0.0
    %2008 = vmatpush1.msra.mxu0 0.0
    %2009 = vmatprep.subr.mxu0 0.0
    %2010 = vmatpush1.msra.mxu0 0.0
    %2011 = vmatprep.subr.mxu0 0.0
    %2012 = vmatpush1.msra.mxu0 0.0
    %2013 = vmatprep.subr.mxu0 0.0
    %2014 = vmatpush1.msra.mxu0 0.0
    %2015 = vmatprep.subr.mxu0 0.0
    %2016 = vmatpush1.msra.mxu0 0.0
    %2017 = vmatprep.subr.mxu0 0.0
    %2018 = vmatpush1.msra.mxu0 0.0
    %2019 = vmatprep.subr.mxu0 0.0
    %2020 = vmatpush1.msra.mxu0 0.0
    %2021 = vmatprep.subr.mxu0 0.0
    %2022 = vmatpush1.msra.mxu0 0.0
    %2023 = vmatprep.subr.mxu0 0.0
    %2024 = vmatpush1.msra.mxu0 0.0
    %2025 = vmatprep.subr.mxu0 0.0
    %2026 = vmatpush1.msra.mxu0 0.0
    %2027 = vmatprep.subr.mxu0 0.0
    %2028 = vmatpush1.msra.mxu0 0.0
    %2029 = vmatprep.subr.mxu0 0.0
    %2030 = vmatpush1.msra.mxu0 0.0
    %2031 = vmatprep.subr.mxu0 0.0
    %2032 = vmatpush1.msra.mxu0 0.0
    %2033 = vmatprep.subr.mxu0 0.0
    %2034 = vmatpush1.msra.mxu0 0.0
    %2035 = vmatprep.subr.mxu0 0.0
    %2036 = vmatpush1.msra.mxu0 0.0
    %2037 = vmatprep.mubr.f32.mxu0 0.0
    %2038 = vmatmul.mubr.f32.gmra.mrb[0].mxu0 %v1950
    %v2039 = vpop.f32.mrb[0].mxu0
    %v2040 = vadd.f32 %v1911, %v2039
    %v2041 = vpop.f32.mrb[0].mxu0
    %2042 = vmatprep.mubr.f32.mxu0 0.0
    %2043 = vmatmul.mubr.f32.gmra.mrb[0].mxu0 %v1953
    %v2044 = vpop.f32.mrb[0].mxu0
    %v2045 = vadd.f32 %v1916, %v2044
    %v2046 = vpop.f32.mrb[0].mxu0
    %2047 = vmatprep.mubr.f32.mxu0 0.0
    %2048 = vmatmul.mubr.f32.gmra.mrb[0].mxu0 %v1956
    %v2049 = vpop.f32.mrb[0].mxu0
    %v2050 = vadd.f32 %v1921, %v2049
    %v2051 = vpop.f32.mrb[0].mxu0
    %2052 = vmatprep.mubr.f32.mxu0 0.0
    %2053 = vmatmul.mubr.f32.gmra.mrb[0].mxu0 %v1959
    %v2054 = vpop.f32.mrb[0].mxu0
    %v2055 = vadd.f32 %v1926, %v2054
    %v2056 = vpop.f32.mrb[0].mxu0
    %2057 = vmatprep.mubr.f32.mxu0 0.0
    %2058 = vmatmul.mubr.f32.gmra.mrb[0].mxu0 %v1962
    %v2059 = vpop.f32.mrb[0].mxu0
    %v2060 = vadd.f32 %v1931, %v2059
    %v2061 = vpop.f32.mrb[0].mxu0
    %2062 = vmatprep.mubr.f32.mxu0 0.0
    %2063 = vmatmul.mubr.f32.gmra.mrb[0].mxu0 %v1965
    %v2064 = vpop.f32.mrb[0].mxu0
    %v2065 = vadd.f32 %v1936, %v2064
    %v2066 = vpop.f32.mrb[0].mxu0
    %2067 = vmatprep.mubr.f32.mxu0 0.0
    %2068 = vmatmul.mubr.f32.gmra.mrb[0].mxu0 %v1968
    %v2069 = vpop.f32.mrb[0].mxu0
    %v2070 = vadd.f32 %v1941, %v2069
    %v2071 = vpop.f32.mrb[0].mxu0
    %2072 = vmatprep.mubr.f32.mxu0 0.0
    %2073 = vmatmul.mubr.f32.gmra.mrb[0].mxu0 %v1971
    %v2074 = vpop.f32.mrb[0].mxu0
    %v2075 = vadd.f32 %v1946, %v2074
    %v2076 = vpop.f32.mrb[0].mxu0
    %2077 = vdwg.mxu0
    %vm2078 = vcmp.ge.s32.totalorder %v553, 8
    %vm2079 = vcmp.lt.s32.totalorder %v553, 12
    %vm2080 = vmand %vm2078, %vm2079
    %v2081 = vsel %vm2080, 0.5, 0.0
    %v2082 = vmul.f32 %v176, %v2081
    %v2083 = vmul.f32 %v181, %v2081
    %v2084 = vmul.f32 %v186, %v2081
    %v2085 = vmul.f32 %v191, %v2081
    %v2086 = vmul.f32 %v196, %v2081
    %v2087 = vmul.f32 %v201, %v2081
    %v2088 = vmul.f32 %v206, %v2081
    %v2089 = vmul.f32 %v211, %v2081
    %v2090 = vmul.f32 %v216, %v2081
    %v2091 = vmul.f32 %v221, %v2081
    %v2092 = vmul.f32 %v226, %v2081
    %v2093 = vmul.f32 %v231, %v2081
    %v2094 = vmul.f32 %v236, %v2081
    %v2095 = vmul.f32 %v241, %v2081
    %v2096 = vmul.f32 %v246, %v2081
    %v2097 = vmul.f32 %v251, %v2081
    %v2098 = vsel %vm2080, 1.0, 0.0
    %v2099 = vmul.f32 %v474, %v2098
    %v2100 = vmul.f32 %v479, %v2098
    %v2101 = vmul.f32 %v484, %v2098
    %v2102 = vmul.f32 %v489, %v2098
    %v2103 = vmul.f32 %v494, %v2098
    %v2104 = vmul.f32 %v499, %v2098
    %v2105 = vmul.f32 %v504, %v2098
    %v2106 = vmul.f32 %v509, %v2098
    %v2107 = vmul.f32 %v514, %v2098
    %v2108 = vmul.f32 %v519, %v2098
    %v2109 = vmul.f32 %v524, %v2098
    %v2110 = vmul.f32 %v529, %v2098
    %v2111 = vmul.f32 %v534, %v2098
    %v2112 = vmul.f32 %v539, %v2098
    %v2113 = vmul.f32 %v544, %v2098
    %v2114 = vmul.f32 %v549, %v2098
    %s2115 = scalar_lea.vmem [#allocation2], 128
    %v2116 = vld [vmem:[%s2115] sm:$0xff]
    %v2117 = vld [vmem:[%s2115 + $0x8] sm:$0xff]
    %v2118 = vld [vmem:[%s2115 + $0x10] sm:$0xff]
    %v2119 = vld [vmem:[%s2115 + $0x18] sm:$0xff]
    %v2120 = vld [vmem:[%s2115 + $0x20] sm:$0xff]
    %v2121 = vld [vmem:[%s2115 + $0x28] sm:$0xff]
    %v2122 = vld [vmem:[%s2115 + $0x30] sm:$0xff]
    %v2123 = vld [vmem:[%s2115 + $0x38] sm:$0xff]
    %v2125 = vsel %vm60, %v2082, 0
    %v2128 = vsel %vm60, %v2083, 0
    %v2131 = vsel %vm60, %v2084, 0
    %v2134 = vsel %vm60, %v2085, 0
    %v2137 = vsel %vm60, %v2086, 0
    %v2140 = vsel %vm60, %v2087, 0
    %v2143 = vsel %vm60, %v2088, 0
    %v2146 = vsel %vm60, %v2089, 0
    %2148 = vmatprep.subr.mxu0 0.0
    %2149 = vmatpush1.xpose.msra.mxu0 %v624
    %2150 = vmatprep.subr.mxu0 0.0
    %2151 = vmatpush1.xpose.msra.mxu0 %v627
    %2152 = vmatprep.subr.mxu0 0.0
    %2153 = vmatpush1.xpose.msra.mxu0 %v630
    %2154 = vmatprep.subr.mxu0 0.0
    %2155 = vmatpush1.xpose.msra.mxu0 %v633
    %2156 = vmatprep.subr.mxu0 0.0
    %2157 = vmatpush1.xpose.msra.mxu0 %v636
    %2158 = vmatprep.subr.mxu0 0.0
    %2159 = vmatpush1.xpose.msra.mxu0 %v639
    %2160 = vmatprep.subr.mxu0 0.0
    %2161 = vmatpush1.xpose.msra.mxu0 %v642
    %2162 = vmatprep.subr.mxu0 0.0
    %2163 = vmatpush1.xpose.msra.mxu0 %v645
    %2164 = vmatprep.subr.mxu0 0.0
    %2165 = vmatpush1.xpose.msra.mxu0 0.0
    %2166 = vmatprep.subr.mxu0 0.0
    %2167 = vmatpush1.xpose.msra.mxu0 0.0
    %2168 = vmatprep.subr.mxu0 0.0
    %2169 = vmatpush1.xpose.msra.mxu0 0.0
    %2170 = vmatprep.subr.mxu0 0.0
    %2171 = vmatpush1.xpose.msra.mxu0 0.0
    %2172 = vmatprep.subr.mxu0 0.0
    %2173 = vmatpush1.xpose.msra.mxu0 0.0
    %2174 = vmatprep.subr.mxu0 0.0
    %2175 = vmatpush1.xpose.msra.mxu0 0.0
    %2176 = vmatprep.subr.mxu0 0.0
    %2177 = vmatpush1.xpose.msra.mxu0 0.0
    %2178 = vmatprep.subr.mxu0 0.0
    %2179 = vmatpush1.xpose.msra.mxu0 0.0
    %2180 = vmatprep.subr.mxu0 0.0
    %2181 = vmatpush1.xpose.msra.mxu0 0.0
    %2182 = vmatprep.subr.mxu0 0.0
    %2183 = vmatpush1.xpose.msra.mxu0 0.0
    %2184 = vmatprep.subr.mxu0 0.0
    %2185 = vmatpush1.xpose.msra.mxu0 0.0
    %2186 = vmatprep.subr.mxu0 0.0
    %2187 = vmatpush1.xpose.msra.mxu0 0.0
    %2188 = vmatprep.subr.mxu0 0.0
    %2189 = vmatpush1.xpose.msra.mxu0 0.0
    %2190 = vmatprep.subr.mxu0 0.0
    %2191 = vmatpush1.xpose.msra.mxu0 0.0
    %2192 = vmatprep.subr.mxu0 0.0
    %2193 = vmatpush1.xpose.msra.mxu0 0.0
    %2194 = vmatprep.subr.mxu0 0.0
    %2195 = vmatpush1.xpose.msra.mxu0 0.0
    %2196 = vmatprep.subr.mxu0 0.0
    %2197 = vmatpush1.xpose.msra.mxu0 0.0
    %2198 = vmatprep.subr.mxu0 0.0
    %2199 = vmatpush1.xpose.msra.mxu0 0.0
    %2200 = vmatprep.subr.mxu0 0.0
    %2201 = vmatpush1.xpose.msra.mxu0 0.0
    %2202 = vmatprep.subr.mxu0 0.0
    %2203 = vmatpush1.xpose.msra.mxu0 0.0
    %2204 = vmatprep.subr.mxu0 0.0
    %2205 = vmatpush1.xpose.msra.mxu0 0.0
    %2206 = vmatprep.subr.mxu0 0.0
    %2207 = vmatpush1.xpose.msra.mxu0 0.0
    %2208 = vmatprep.subr.mxu0 0.0
    %2209 = vmatpush1.xpose.msra.mxu0 0.0
    %2210 = vmatprep.subr.mxu0 0.0
    %2211 = vmatpush1.xpose.msra.mxu0 0.0
    %2212 = vmatprep.mubr.f32.mxu0 0.0
    %2213 = vmatmul.mubr.f32.gmra.mrb[0].mxu0 %v2125
    %v2214 = vpop.f32.mrb[0].mxu0
    %v2215 = vadd.f32 %v2116, %v2214
    %v2216 = vpop.f32.mrb[0].mxu0
    %2217 = vmatprep.mubr.f32.mxu0 0.0
    %2218 = vmatmul.mubr.f32.gmra.mrb[0].mxu0 %v2128
    %v2219 = vpop.f32.mrb[0].mxu0
    %v2220 = vadd.f32 %v2117, %v2219
    %v2221 = vpop.f32.mrb[0].mxu0
    %2222 = vmatprep.mubr.f32.mxu0 0.0
    %2223 = vmatmul.mubr.f32.gmra.mrb[0].mxu0 %v2131
    %v2224 = vpop.f32.mrb[0].mxu0
    %v2225 = vadd.f32 %v2118, %v2224
    %v2226 = vpop.f32.mrb[0].mxu0
    %2227 = vmatprep.mubr.f32.mxu0 0.0
    %2228 = vmatmul.mubr.f32.gmra.mrb[0].mxu0 %v2134
    %v2229 = vpop.f32.mrb[0].mxu0
    %v2230 = vadd.f32 %v2119, %v2229
    %v2231 = vpop.f32.mrb[0].mxu0
    %2232 = vmatprep.mubr.f32.mxu0 0.0
    %2233 = vmatmul.mubr.f32.gmra.mrb[0].mxu0 %v2137
    %v2234 = vpop.f32.mrb[0].mxu0
    %v2235 = vadd.f32 %v2120, %v2234
    %v2236 = vpop.f32.mrb[0].mxu0
    %2237 = vmatprep.mubr.f32.mxu0 0.0
    %2238 = vmatmul.mubr.f32.gmra.mrb[0].mxu0 %v2140
    %v2239 = vpop.f32.mrb[0].mxu0
    %v2240 = vadd.f32 %v2121, %v2239
    %v2241 = vpop.f32.mrb[0].mxu0
    %2242 = vmatprep.mubr.f32.mxu0 0.0
    %2243 = vmatmul.mubr.f32.gmra.mrb[0].mxu0 %v2143
    %v2244 = vpop.f32.mrb[0].mxu0
    %v2245 = vadd.f32 %v2122, %v2244
    %v2246 = vpop.f32.mrb[0].mxu0
    %2247 = vmatprep.mubr.f32.mxu0 0.0
    %2248 = vmatmul.mubr.f32.gmra.mrb[0].mxu0 %v2146
    %v2249 = vpop.f32.mrb[0].mxu0
    %v2250 = vadd.f32 %v2123, %v2249
    %v2251 = vpop.f32.mrb[0].mxu0
    %2252 = vdwg.mxu0
    %v2253 = vsel %vm752, %v2215, -inf
    %2254 = vmax.xlane.f32.xlu0 %v2253
    %v2255 = vpop.xlane.xlu0 %2254
    %v2256 = vsel %vm752, %v2220, -inf
    %2257 = vmax.xlane.f32.xlu0 %v2256
    %v2258 = vpop.xlane.xlu0 %2257
    %v2259 = vsel %vm752, %v2225, -inf
    %2260 = vmax.xlane.f32.xlu0 %v2259
    %v2261 = vpop.xlane.xlu0 %2260
    %v2262 = vsel %vm752, %v2230, -inf
    %2263 = vmax.xlane.f32.xlu0 %v2262
    %v2264 = vpop.xlane.xlu0 %2263
    %v2265 = vsel %vm752, %v2235, -inf
    %2266 = vmax.xlane.f32.xlu0 %v2265
    %v2267 = vpop.xlane.xlu0 %2266
    %v2268 = vsel %vm752, %v2240, -inf
    %2269 = vmax.xlane.f32.xlu0 %v2268
    %v2270 = vpop.xlane.xlu0 %2269
    %v2271 = vsel %vm752, %v2245, -inf
    %2272 = vmax.xlane.f32.xlu0 %v2271
    %v2273 = vpop.xlane.xlu0 %2272
    %v2274 = vsel %vm752, %v2250, -inf
    %2275 = vmax.xlane.f32.xlu0 %v2274
    %v2276 = vpop.xlane.xlu0 %2275
    %v2277 = vsub.f32 %v2215, %v2255
    %v2278 = vsub.f32 %v2220, %v2258
    %v2279 = vsub.f32 %v2225, %v2261
    %v2280 = vsub.f32 %v2230, %v2264
    %v2281 = vsub.f32 %v2235, %v2267
    %v2282 = vsub.f32 %v2240, %v2270
    %v2283 = vsub.f32 %v2245, %v2273
    %v2284 = vsub.f32 %v2250, %v2276
    %v2285 = vmul.f32 %v2277, 1.442695
    %v2286 = vpow.pop %v2285
    %v2287 = vmul.f32 %v2278, 1.442695
    %v2288 = vpow.pop %v2287
    %v2289 = vmul.f32 %v2279, 1.442695
    %v2290 = vpow.pop %v2289
    %v2291 = vmul.f32 %v2280, 1.442695
    %v2292 = vpow.pop %v2291
    %v2293 = vmul.f32 %v2281, 1.442695
    %v2294 = vpow.pop %v2293
    %v2295 = vmul.f32 %v2282, 1.442695
    %v2296 = vpow.pop %v2295
    %v2297 = vmul.f32 %v2283, 1.442695
    %v2298 = vpow.pop %v2297
    %v2299 = vmul.f32 %v2284, 1.442695
    %v2300 = vpow.pop %v2299
    %v2301 = vsel %vm752, %v2286, 0.0
    %2302 = vadd.xlane.f32.xlu0 %v2301
    %v2303 = vpop.xlane.xlu0 %2302
    %v2304 = vsel %vm752, %v2288, 0.0
    %2305 = vadd.xlane.f32.xlu0 %v2304
    %v2306 = vpop.xlane.xlu0 %2305
    %v2307 = vsel %vm752, %v2290, 0.0
    %2308 = vadd.xlane.f32.xlu0 %v2307
    %v2309 = vpop.xlane.xlu0 %2308
    %v2310 = vsel %vm752, %v2292, 0.0
    %2311 = vadd.xlane.f32.xlu0 %v2310
    %v2312 = vpop.xlane.xlu0 %2311
    %v2313 = vsel %vm752, %v2294, 0.0
    %2314 = vadd.xlane.f32.xlu0 %v2313
    %v2315 = vpop.xlane.xlu0 %2314
    %v2316 = vsel %vm752, %v2296, 0.0
    %2317 = vadd.xlane.f32.xlu0 %v2316
    %v2318 = vpop.xlane.xlu0 %2317
    %v2319 = vsel %vm752, %v2298, 0.0
    %2320 = vadd.xlane.f32.xlu0 %v2319
    %v2321 = vpop.xlane.xlu0 %2320
    %v2322 = vsel %vm752, %v2300, 0.0
    %2323 = vadd.xlane.f32.xlu0 %v2322
    %v2324 = vpop.xlane.xlu0 %2323
    %v2325 = vrcp.pop %v2303
    %v2326 = vrcp.pop %v2306
    %v2327 = vrcp.pop %v2309
    %v2328 = vrcp.pop %v2312
    %v2329 = vrcp.pop %v2315
    %v2330 = vrcp.pop %v2318
    %v2331 = vrcp.pop %v2321
    %v2332 = vrcp.pop %v2324
    %v2333 = vmul.f32 %v2286, %v2325
    %v2334 = vmul.f32 %v2288, %v2326
    %v2335 = vmul.f32 %v2290, %v2327
    %v2336 = vmul.f32 %v2292, %v2328
    %v2337 = vmul.f32 %v2294, %v2329
    %v2338 = vmul.f32 %v2296, %v2330
    %v2339 = vmul.f32 %v2298, %v2331
    %v2340 = vmul.f32 %v2300, %v2332
    %v2342 = vsel %vm752, %v2333, 0
    %v2345 = vsel %vm752, %v2334, 0
    %v2348 = vsel %vm752, %v2335, 0
    %v2351 = vsel %vm752, %v2336, 0
    %v2354 = vsel %vm752, %v2337, 0
    %v2357 = vsel %vm752, %v2338, 0
    %v2360 = vsel %vm752, %v2339, 0
    %v2363 = vsel %vm752, %v2340, 0
    %2365 = vmatprep.subr.mxu0 0.0
    %2366 = vmatpush1.msra.mxu0 %v2099
    %2367 = vmatprep.subr.mxu0 0.0
    %2368 = vmatpush1.msra.mxu0 %v2100
    %2369 = vmatprep.subr.mxu0 0.0
    %2370 = vmatpush1.msra.mxu0 %v2101
    %2371 = vmatprep.subr.mxu0 0.0
    %2372 = vmatpush1.msra.mxu0 %v2102
    %2373 = vmatprep.subr.mxu0 0.0
    %2374 = vmatpush1.msra.mxu0 %v2103
    %2375 = vmatprep.subr.mxu0 0.0
    %2376 = vmatpush1.msra.mxu0 %v2104
    %2377 = vmatprep.subr.mxu0 0.0
    %2378 = vmatpush1.msra.mxu0 %v2105
    %2379 = vmatprep.subr.mxu0 0.0
    %2380 = vmatpush1.msra.mxu0 %v2106
    %2381 = vmatprep.subr.mxu0 0.0
    %2382 = vmatpush1.msra.mxu0 0.0
    %2383 = vmatprep.subr.mxu0 0.0
    %2384 = vmatpush1.msra.mxu0 0.0
    %2385 = vmatprep.subr.mxu0 0.0
    %2386 = vmatpush1.msra.mxu0 0.0
    %2387 = vmatprep.subr.mxu0 0.0
    %2388 = vmatpush1.msra.mxu0 0.0
    %2389 = vmatprep.subr.mxu0 0.0
    %2390 = vmatpush1.msra.mxu0 0.0
    %2391 = vmatprep.subr.mxu0 0.0
    %2392 = vmatpush1.msra.mxu0 0.0
    %2393 = vmatprep.subr.mxu0 0.0
    %2394 = vmatpush1.msra.mxu0 0.0
    %2395 = vmatprep.subr.mxu0 0.0
    %2396 = vmatpush1.msra.mxu0 0.0
    %2397 = vmatprep.subr.mxu0 0.0
    %2398 = vmatpush1.msra.mxu0 0.0
    %2399 = vmatprep.subr.mxu0 0.0
    %2400 = vmatpush1.msra.mxu0 0.0
    %2401 = vmatprep.subr.mxu0 0.0
    %2402 = vmatpush1.msra.mxu0 0.0
    %2403 = vmatprep.subr.mxu0 0.0
    %2404 = vmatpush1.msra.mxu0 0.0
    %2405 = vmatprep.subr.mxu0 0.0
    %2406 = vmatpush1.msra.mxu0 0.0
    %2407 = vmatprep.subr.mxu0 0.0
    %2408 = vmatpush1.msra.mxu0 0.0
    %2409 = vmatprep.subr.mxu0 0.0
    %2410 = vmatpush1.msra.mxu0 0.0
    %2411 = vmatprep.subr.mxu0 0.0
    %2412 = vmatpush1.msra.mxu0 0.0
    %2413 = vmatprep.subr.mxu0 0.0
    %2414 = vmatpush1.msra.mxu0 0.0
    %2415 = vmatprep.subr.mxu0 0.0
    %2416 = vmatpush1.msra.mxu0 0.0
    %2417 = vmatprep.subr.mxu0 0.0
    %2418 = vmatpush1.msra.mxu0 0.0
    %2419 = vmatprep.subr.mxu0 0.0
    %2420 = vmatpush1.msra.mxu0 0.0
    %2421 = vmatprep.subr.mxu0 0.0
    %2422 = vmatpush1.msra.mxu0 0.0
    %2423 = vmatprep.subr.mxu0 0.0
    %2424 = vmatpush1.msra.mxu0 0.0
    %2425 = vmatprep.subr.mxu0 0.0
    %2426 = vmatpush1.msra.mxu0 0.0
    %2427 = vmatprep.subr.mxu0 0.0
    %2428 = vmatpush1.msra.mxu0 0.0
    %2429 = vmatprep.mubr.f32.mxu0 0.0
    %2430 = vmatmul.mubr.f32.gmra.mrb[0].mxu0 %v2342
    %v2431 = vpop.f32.mrb[0].mxu0
    %v2432 = vadd.f32 0.0, %v2431
    %v2433 = vpop.f32.mrb[0].mxu0
    %2434 = vmatprep.mubr.f32.mxu0 0.0
    %2435 = vmatmul.mubr.f32.gmra.mrb[0].mxu0 %v2345
    %v2436 = vpop.f32.mrb[0].mxu0
    %v2437 = vadd.f32 0.0, %v2436
    %v2438 = vpop.f32.mrb[0].mxu0
    %2439 = vmatprep.mubr.f32.mxu0 0.0
    %2440 = vmatmul.mubr.f32.gmra.mrb[0].mxu0 %v2348
    %v2441 = vpop.f32.mrb[0].mxu0
    %v2442 = vadd.f32 0.0, %v2441
    %v2443 = vpop.f32.mrb[0].mxu0
    %2444 = vmatprep.mubr.f32.mxu0 0.0
    %2445 = vmatmul.mubr.f32.gmra.mrb[0].mxu0 %v2351
    %v2446 = vpop.f32.mrb[0].mxu0
    %v2447 = vadd.f32 0.0, %v2446
    %v2448 = vpop.f32.mrb[0].mxu0
    %2449 = vmatprep.mubr.f32.mxu0 0.0
    %2450 = vmatmul.mubr.f32.gmra.mrb[0].mxu0 %v2354
    %v2451 = vpop.f32.mrb[0].mxu0
    %v2452 = vadd.f32 0.0, %v2451
    %v2453 = vpop.f32.mrb[0].mxu0
    %2454 = vmatprep.mubr.f32.mxu0 0.0
    %2455 = vmatmul.mubr.f32.gmra.mrb[0].mxu0 %v2357
    %v2456 = vpop.f32.mrb[0].mxu0
    %v2457 = vadd.f32 0.0, %v2456
    %v2458 = vpop.f32.mrb[0].mxu0
    %2459 = vmatprep.mubr.f32.mxu0 0.0
    %2460 = vmatmul.mubr.f32.gmra.mrb[0].mxu0 %v2360
    %v2461 = vpop.f32.mrb[0].mxu0
    %v2462 = vadd.f32 0.0, %v2461
    %v2463 = vpop.f32.mrb[0].mxu0
    %2464 = vmatprep.mubr.f32.mxu0 0.0
    %2465 = vmatmul.mubr.f32.gmra.mrb[0].mxu0 %v2363
    %v2466 = vpop.f32.mrb[0].mxu0
    %v2467 = vadd.f32 0.0, %v2466
    %v2468 = vpop.f32.mrb[0].mxu0
    %2469 = vdwg.mxu0
    %v2470 = vadd.f32 %v1565, %v2432
    %v2471 = vadd.f32 %v1570, %v2437
    %v2472 = vadd.f32 %v1575, %v2442
    %v2473 = vadd.f32 %v1580, %v2447
    %v2474 = vadd.f32 %v1585, %v2452
    %v2475 = vadd.f32 %v1590, %v2457
    %v2476 = vadd.f32 %v1595, %v2462
    %v2477 = vadd.f32 %v1600, %v2467
    %v2479 = vsel %vm60, %v2090, 0
    %v2482 = vsel %vm60, %v2091, 0
    %v2485 = vsel %vm60, %v2092, 0
    %v2488 = vsel %vm60, %v2093, 0
    %v2491 = vsel %vm60, %v2094, 0
    %v2494 = vsel %vm60, %v2095, 0
    %v2497 = vsel %vm60, %v2096, 0
    %v2500 = vsel %vm60, %v2097, 0
    %2502 = vmatprep.subr.mxu0 0.0
    %2503 = vmatpush1.xpose.msra.mxu0 %v866
    %2504 = vmatprep.subr.mxu0 0.0
    %2505 = vmatpush1.xpose.msra.mxu0 %v869
    %2506 = vmatprep.subr.mxu0 0.0
    %2507 = vmatpush1.xpose.msra.mxu0 %v872
    %2508 = vmatprep.subr.mxu0 0.0
    %2509 = vmatpush1.xpose.msra.mxu0 %v875
    %2510 = vmatprep.subr.mxu0 0.0
    %2511 = vmatpush1.xpose.msra.mxu0 %v878
    %2512 = vmatprep.subr.mxu0 0.0
    %2513 = vmatpush1.xpose.msra.mxu0 %v881
    %2514 = vmatprep.subr.mxu0 0.0
    %2515 = vmatpush1.xpose.msra.mxu0 %v884
    %2516 = vmatprep.subr.mxu0 0.0
    %2517 = vmatpush1.xpose.msra.mxu0 %v887
    %2518 = vmatprep.subr.mxu0 0.0
    %2519 = vmatpush1.xpose.msra.mxu0 0.0
    %2520 = vmatprep.subr.mxu0 0.0
    %2521 = vmatpush1.xpose.msra.mxu0 0.0
    %2522 = vmatprep.subr.mxu0 0.0
    %2523 = vmatpush1.xpose.msra.mxu0 0.0
    %2524 = vmatprep.subr.mxu0 0.0
    %2525 = vmatpush1.xpose.msra.mxu0 0.0
    %2526 = vmatprep.subr.mxu0 0.0
    %2527 = vmatpush1.xpose.msra.mxu0 0.0
    %2528 = vmatprep.subr.mxu0 0.0
    %2529 = vmatpush1.xpose.msra.mxu0 0.0
    %2530 = vmatprep.subr.mxu0 0.0
    %2531 = vmatpush1.xpose.msra.mxu0 0.0
    %2532 = vmatprep.subr.mxu0 0.0
    %2533 = vmatpush1.xpose.msra.mxu0 0.0
    %2534 = vmatprep.subr.mxu0 0.0
    %2535 = vmatpush1.xpose.msra.mxu0 0.0
    %2536 = vmatprep.subr.mxu0 0.0
    %2537 = vmatpush1.xpose.msra.mxu0 0.0
    %2538 = vmatprep.subr.mxu0 0.0
    %2539 = vmatpush1.xpose.msra.mxu0 0.0
    %2540 = vmatprep.subr.mxu0 0.0
    %2541 = vmatpush1.xpose.msra.mxu0 0.0
    %2542 = vmatprep.subr.mxu0 0.0
    %2543 = vmatpush1.xpose.msra.mxu0 0.0
    %2544 = vmatprep.subr.mxu0 0.0
    %2545 = vmatpush1.xpose.msra.mxu0 0.0
    %2546 = vmatprep.subr.mxu0 0.0
    %2547 = vmatpush1.xpose.msra.mxu0 0.0
    %2548 = vmatprep.subr.mxu0 0.0
    %2549 = vmatpush1.xpose.msra.mxu0 0.0
    %2550 = vmatprep.subr.mxu0 0.0
    %2551 = vmatpush1.xpose.msra.mxu0 0.0
    %2552 = vmatprep.subr.mxu0 0.0
    %2553 = vmatpush1.xpose.msra.mxu0 0.0
    %2554 = vmatprep.subr.mxu0 0.0
    %2555 = vmatpush1.xpose.msra.mxu0 0.0
    %2556 = vmatprep.subr.mxu0 0.0
    %2557 = vmatpush1.xpose.msra.mxu0 0.0
    %2558 = vmatprep.subr.mxu0 0.0
    %2559 = vmatpush1.xpose.msra.mxu0 0.0
    %2560 = vmatprep.subr.mxu0 0.0
    %2561 = vmatpush1.xpose.msra.mxu0 0.0
    %2562 = vmatprep.subr.mxu0 0.0
    %2563 = vmatpush1.xpose.msra.mxu0 0.0
    %2564 = vmatprep.subr.mxu0 0.0
    %2565 = vmatpush1.xpose.msra.mxu0 0.0
    %2566 = vmatprep.mubr.f32.mxu0 0.0
    %2567 = vmatmul.mubr.f32.gmra.mrb[0].mxu0 %v2479
    %v2568 = vpop.f32.mrb[0].mxu0
    %v2569 = vadd.f32 %v2116, %v2568
    %v2570 = vpop.f32.mrb[0].mxu0
    %2571 = vmatprep.mubr.f32.mxu0 0.0
    %2572 = vmatmul.mubr.f32.gmra.mrb[0].mxu0 %v2482
    %v2573 = vpop.f32.mrb[0].mxu0
    %v2574 = vadd.f32 %v2117, %v2573
    %v2575 = vpop.f32.mrb[0].mxu0
    %2576 = vmatprep.mubr.f32.mxu0 0.0
    %2577 = vmatmul.mubr.f32.gmra.mrb[0].mxu0 %v2485
    %v2578 = vpop.f32.mrb[0].mxu0
    %v2579 = vadd.f32 %v2118, %v2578
    %v2580 = vpop.f32.mrb[0].mxu0
    %2581 = vmatprep.mubr.f32.mxu0 0.0
    %2582 = vmatmul.mubr.f32.gmra.mrb[0].mxu0 %v2488
    %v2583 = vpop.f32.mrb[0].mxu0
    %v2584 = vadd.f32 %v2119, %v2583
    %v2585 = vpop.f32.mrb[0].mxu0
    %2586 = vmatprep.mubr.f32.mxu0 0.0
    %2587 = vmatmul.mubr.f32.gmra.mrb[0].mxu0 %v2491
    %v2588 = vpop.f32.mrb[0].mxu0
    %v2589 = vadd.f32 %v2120, %v2588
    %v2590 = vpop.f32.mrb[0].mxu0
    %2591 = vmatprep.mubr.f32.mxu0 0.0
    %2592 = vmatmul.mubr.f32.gmra.mrb[0].mxu0 %v2494
    %v2593 = vpop.f32.mrb[0].mxu0
    %v2594 = vadd.f32 %v2121, %v2593
    %v2595 = vpop.f32.mrb[0].mxu0
    %2596 = vmatprep.mubr.f32.mxu0 0.0
    %2597 = vmatmul.mubr.f32.gmra.mrb[0].mxu0 %v2497
    %v2598 = vpop.f32.mrb[0].mxu0
    %v2599 = vadd.f32 %v2122, %v2598
    %v2600 = vpop.f32.mrb[0].mxu0
    %2601 = vmatprep.mubr.f32.mxu0 0.0
    %2602 = vmatmul.mubr.f32.gmra.mrb[0].mxu0 %v2500
    %v2603 = vpop.f32.mrb[0].mxu0
    %v2604 = vadd.f32 %v2123, %v2603
    %v2605 = vpop.f32.mrb[0].mxu0
    %2606 = vdwg.mxu0
    %v2607 = vsel %vm752, %v2569, -inf
    %2608 = vmax.xlane.f32.xlu0 %v2607
    %v2609 = vpop.xlane.xlu0 %2608
    %v2610 = vsel %vm752, %v2574, -inf
    %2611 = vmax.xlane.f32.xlu0 %v2610
    %v2612 = vpop.xlane.xlu0 %2611
    %v2613 = vsel %vm752, %v2579, -inf
    %2614 = vmax.xlane.f32.xlu0 %v2613
    %v2615 = vpop.xlane.xlu0 %2614
    %v2616 = vsel %vm752, %v2584, -inf
    %2617 = vmax.xlane.f32.xlu0 %v2616
    %v2618 = vpop.xlane.xlu0 %2617
    %v2619 = vsel %vm752, %v2589, -inf
    %2620 = vmax.xlane.f32.xlu0 %v2619
    %v2621 = vpop.xlane.xlu0 %2620
    %v2622 = vsel %vm752, %v2594, -inf
    %2623 = vmax.xlane.f32.xlu0 %v2622
    %v2624 = vpop.xlane.xlu0 %2623
    %v2625 = vsel %vm752, %v2599, -inf
    %2626 = vmax.xlane.f32.xlu0 %v2625
    %v2627 = vpop.xlane.xlu0 %2626
    %v2628 = vsel %vm752, %v2604, -inf
    %2629 = vmax.xlane.f32.xlu0 %v2628
    %v2630 = vpop.xlane.xlu0 %2629
    %v2631 = vsub.f32 %v2569, %v2609
    %v2632 = vsub.f32 %v2574, %v2612
    %v2633 = vsub.f32 %v2579, %v2615
    %v2634 = vsub.f32 %v2584, %v2618
    %v2635 = vsub.f32 %v2589, %v2621
    %v2636 = vsub.f32 %v2594, %v2624
    %v2637 = vsub.f32 %v2599, %v2627
    %v2638 = vsub.f32 %v2604, %v2630
    %v2639 = vmul.f32 %v2631, 1.442695
    %v2640 = vpow.pop %v2639
    %v2641 = vmul.f32 %v2632, 1.442695
    %v2642 = vpow.pop %v2641
    %v2643 = vmul.f32 %v2633, 1.442695
    %v2644 = vpow.pop %v2643
    %v2645 = vmul.f32 %v2634, 1.442695
    %v2646 = vpow.pop %v2645
    %v2647 = vmul.f32 %v2635, 1.442695
    %v2648 = vpow.pop %v2647
    %v2649 = vmul.f32 %v2636, 1.442695
    %v2650 = vpow.pop %v2649
    %v2651 = vmul.f32 %v2637, 1.442695
    %v2652 = vpow.pop %v2651
    %v2653 = vmul.f32 %v2638, 1.442695
    %v2654 = vpow.pop %v2653
    %v2655 = vsel %vm752, %v2640, 0.0
    %2656 = vadd.xlane.f32.xlu0 %v2655
    %v2657 = vpop.xlane.xlu0 %2656
    %v2658 = vsel %vm752, %v2642, 0.0
    %2659 = vadd.xlane.f32.xlu0 %v2658
    %v2660 = vpop.xlane.xlu0 %2659
    %v2661 = vsel %vm752, %v2644, 0.0
    %2662 = vadd.xlane.f32.xlu0 %v2661
    %v2663 = vpop.xlane.xlu0 %2662
    %v2664 = vsel %vm752, %v2646, 0.0
    %2665 = vadd.xlane.f32.xlu0 %v2664
    %v2666 = vpop.xlane.xlu0 %2665
    %v2667 = vsel %vm752, %v2648, 0.0
    %2668 = vadd.xlane.f32.xlu0 %v2667
    %v2669 = vpop.xlane.xlu0 %2668
    %v2670 = vsel %vm752, %v2650, 0.0
    %2671 = vadd.xlane.f32.xlu0 %v2670
    %v2672 = vpop.xlane.xlu0 %2671
    %v2673 = vsel %vm752, %v2652, 0.0
    %2674 = vadd.xlane.f32.xlu0 %v2673
    %v2675 = vpop.xlane.xlu0 %2674
    %v2676 = vsel %vm752, %v2654, 0.0
    %2677 = vadd.xlane.f32.xlu0 %v2676
    %v2678 = vpop.xlane.xlu0 %2677
    %v2679 = vrcp.pop %v2657
    %v2680 = vrcp.pop %v2660
    %v2681 = vrcp.pop %v2663
    %v2682 = vrcp.pop %v2666
    %v2683 = vrcp.pop %v2669
    %v2684 = vrcp.pop %v2672
    %v2685 = vrcp.pop %v2675
    %v2686 = vrcp.pop %v2678
    %v2687 = vmul.f32 %v2640, %v2679
    %v2688 = vmul.f32 %v2642, %v2680
    %v2689 = vmul.f32 %v2644, %v2681
    %v2690 = vmul.f32 %v2646, %v2682
    %v2691 = vmul.f32 %v2648, %v2683
    %v2692 = vmul.f32 %v2650, %v2684
    %v2693 = vmul.f32 %v2652, %v2685
    %v2694 = vmul.f32 %v2654, %v2686
    %v2696 = vsel %vm752, %v2687, 0
    %v2699 = vsel %vm752, %v2688, 0
    %v2702 = vsel %vm752, %v2689, 0
    %v2705 = vsel %vm752, %v2690, 0
    %v2708 = vsel %vm752, %v2691, 0
    %v2711 = vsel %vm752, %v2692, 0
    %v2714 = vsel %vm752, %v2693, 0
    %v2717 = vsel %vm752, %v2694, 0
    %2719 = vmatprep.subr.mxu0 0.0
    %2720 = vmatpush1.msra.mxu0 %v2107
    %2721 = vmatprep.subr.mxu0 0.0
    %2722 = vmatpush1.msra.mxu0 %v2108
    %2723 = vmatprep.subr.mxu0 0.0
    %2724 = vmatpush1.msra.mxu0 %v2109
    %2725 = vmatprep.subr.mxu0 0.0
    %2726 = vmatpush1.msra.mxu0 %v2110
    %2727 = vmatprep.subr.mxu0 0.0
    %2728 = vmatpush1.msra.mxu0 %v2111
    %2729 = vmatprep.subr.mxu0 0.0
    %2730 = vmatpush1.msra.mxu0 %v2112
    %2731 = vmatprep.subr.mxu0 0.0
    %2732 = vmatpush1.msra.mxu0 %v2113
    %2733 = vmatprep.subr.mxu0 0.0
    %2734 = vmatpush1.msra.mxu0 %v2114
    %2735 = vmatprep.subr.mxu0 0.0
    %2736 = vmatpush1.msra.mxu0 0.0
    %2737 = vmatprep.subr.mxu0 0.0
    %2738 = vmatpush1.msra.mxu0 0.0
    %2739 = vmatprep.subr.mxu0 0.0
    %2740 = vmatpush1.msra.mxu0 0.0
    %2741 = vmatprep.subr.mxu0 0.0
    %2742 = vmatpush1.msra.mxu0 0.0
    %2743 = vmatprep.subr.mxu0 0.0
    %2744 = vmatpush1.msra.mxu0 0.0
    %2745 = vmatprep.subr.mxu0 0.0
    %2746 = vmatpush1.msra.mxu0 0.0
    %2747 = vmatprep.subr.mxu0 0.0
    %2748 = vmatpush1.msra.mxu0 0.0
    %2749 = vmatprep.subr.mxu0 0.0
    %2750 = vmatpush1.msra.mxu0 0.0
    %2751 = vmatprep.subr.mxu0 0.0
    %2752 = vmatpush1.msra.mxu0 0.0
    %2753 = vmatprep.subr.mxu0 0.0
    %2754 = vmatpush1.msra.mxu0 0.0
    %2755 = vmatprep.subr.mxu0 0.0
    %2756 = vmatpush1.msra.mxu0 0.0
    %2757 = vmatprep.subr.mxu0 0.0
    %2758 = vmatpush1.msra.mxu0 0.0
    %2759 = vmatprep.subr.mxu0 0.0
    %2760 = vmatpush1.msra.mxu0 0.0
    %2761 = vmatprep.subr.mxu0 0.0
    %2762 = vmatpush1.msra.mxu0 0.0
    %2763 = vmatprep.subr.mxu0 0.0
    %2764 = vmatpush1.msra.mxu0 0.0
    %2765 = vmatprep.subr.mxu0 0.0
    %2766 = vmatpush1.msra.mxu0 0.0
    %2767 = vmatprep.subr.mxu0 0.0
    %2768 = vmatpush1.msra.mxu0 0.0
    %2769 = vmatprep.subr.mxu0 0.0
    %2770 = vmatpush1.msra.mxu0 0.0
    %2771 = vmatprep.subr.mxu0 0.0
    %2772 = vmatpush1.msra.mxu0 0.0
    %2773 = vmatprep.subr.mxu0 0.0
    %2774 = vmatpush1.msra.mxu0 0.0
    %2775 = vmatprep.subr.mxu0 0.0
    %2776 = vmatpush1.msra.mxu0 0.0
    %2777 = vmatprep.subr.mxu0 0.0
    %2778 = vmatpush1.msra.mxu0 0.0
    %2779 = vmatprep.subr.mxu0 0.0
    %2780 = vmatpush1.msra.mxu0 0.0
    %2781 = vmatprep.subr.mxu0 0.0
    %2782 = vmatpush1.msra.mxu0 0.0
    %2783 = vmatprep.mubr.f32.mxu0 0.0
    %2784 = vmatmul.mubr.f32.gmra.mrb[0].mxu0 %v2696
    %v2785 = vpop.f32.mrb[0].mxu0
    %v2786 = vadd.f32 0.0, %v2785
    %v2787 = vpop.f32.mrb[0].mxu0
    %2788 = vmatprep.mubr.f32.mxu0 0.0
    %2789 = vmatmul.mubr.f32.gmra.mrb[0].mxu0 %v2699
    %v2790 = vpop.f32.mrb[0].mxu0
    %v2791 = vadd.f32 0.0, %v2790
    %v2792 = vpop.f32.mrb[0].mxu0
    %2793 = vmatprep.mubr.f32.mxu0 0.0
    %2794 = vmatmul.mubr.f32.gmra.mrb[0].mxu0 %v2702
    %v2795 = vpop.f32.mrb[0].mxu0
    %v2796 = vadd.f32 0.0, %v2795
    %v2797 = vpop.f32.mrb[0].mxu0
    %2798 = vmatprep.mubr.f32.mxu0 0.0
    %2799 = vmatmul.mubr.f32.gmra.mrb[0].mxu0 %v2705
    %v2800 = vpop.f32.mrb[0].mxu0
    %v2801 = vadd.f32 0.0, %v2800
    %v2802 = vpop.f32.mrb[0].mxu0
    %2803 = vmatprep.mubr.f32.mxu0 0.0
    %2804 = vmatmul.mubr.f32.gmra.mrb[0].mxu0 %v2708
    %v2805 = vpop.f32.mrb[0].mxu0
    %v2806 = vadd.f32 0.0, %v2805
    %v2807 = vpop.f32.mrb[0].mxu0
    %2808 = vmatprep.mubr.f32.mxu0 0.0
    %2809 = vmatmul.mubr.f32.gmra.mrb[0].mxu0 %v2711
    %v2810 = vpop.f32.mrb[0].mxu0
    %v2811 = vadd.f32 0.0, %v2810
    %v2812 = vpop.f32.mrb[0].mxu0
    %2813 = vmatprep.mubr.f32.mxu0 0.0
    %2814 = vmatmul.mubr.f32.gmra.mrb[0].mxu0 %v2714
    %v2815 = vpop.f32.mrb[0].mxu0
    %v2816 = vadd.f32 0.0, %v2815
    %v2817 = vpop.f32.mrb[0].mxu0
    %2818 = vmatprep.mubr.f32.mxu0 0.0
    %2819 = vmatmul.mubr.f32.gmra.mrb[0].mxu0 %v2717
    %v2820 = vpop.f32.mrb[0].mxu0
    %v2821 = vadd.f32 0.0, %v2820
    %v2822 = vpop.f32.mrb[0].mxu0
    %2823 = vdwg.mxu0
    %v2824 = vadd.f32 %v2040, %v2786
    %v2825 = vadd.f32 %v2045, %v2791
    %v2826 = vadd.f32 %v2050, %v2796
    %v2827 = vadd.f32 %v2055, %v2801
    %v2828 = vadd.f32 %v2060, %v2806
    %v2829 = vadd.f32 %v2065, %v2811
    %v2830 = vadd.f32 %v2070, %v2816
    %v2831 = vadd.f32 %v2075, %v2821
    %vm2832 = vcmp.ge.s32.totalorder %v553, 12
    %vm2833 = vcmp.lt.s32.totalorder %v553, 16
    %vm2834 = vmand %vm2832, %vm2833
    %v2835 = vsel %vm2834, 0.5, 0.0
    %v2836 = vmul.f32 %v176, %v2835
    %v2837 = vmul.f32 %v181, %v2835
    %v2838 = vmul.f32 %v186, %v2835
    %v2839 = vmul.f32 %v191, %v2835
    %v2840 = vmul.f32 %v196, %v2835
    %v2841 = vmul.f32 %v201, %v2835
    %v2842 = vmul.f32 %v206, %v2835
    %v2843 = vmul.f32 %v211, %v2835
    %v2844 = vmul.f32 %v216, %v2835
    %v2845 = vmul.f32 %v221, %v2835
    %v2846 = vmul.f32 %v226, %v2835
    %v2847 = vmul.f32 %v231, %v2835
    %v2848 = vmul.f32 %v236, %v2835
    %v2849 = vmul.f32 %v241, %v2835
    %v2850 = vmul.f32 %v246, %v2835
    %v2851 = vmul.f32 %v251, %v2835
    %v2852 = vsel %vm2834, 1.0, 0.0
    %v2853 = vmul.f32 %v474, %v2852
    %v2854 = vmul.f32 %v479, %v2852
    %v2855 = vmul.f32 %v484, %v2852
    %v2856 = vmul.f32 %v489, %v2852
    %v2857 = vmul.f32 %v494, %v2852
    %v2858 = vmul.f32 %v499, %v2852
    %v2859 = vmul.f32 %v504, %v2852
    %v2860 = vmul.f32 %v509, %v2852
    %v2861 = vmul.f32 %v514, %v2852
    %v2862 = vmul.f32 %v519, %v2852
    %v2863 = vmul.f32 %v524, %v2852
    %v2864 = vmul.f32 %v529, %v2852
    %v2865 = vmul.f32 %v534, %v2852
    %v2866 = vmul.f32 %v539, %v2852
    %v2867 = vmul.f32 %v544, %v2852
    %v2868 = vmul.f32 %v549, %v2852
    %s2869 = scalar_lea.vmem [#allocation2], 192
    %v2870 = vld [vmem:[%s2869] sm:$0xff]
    %v2871 = vld [vmem:[%s2869 + $0x8] sm:$0xff]
    %v2872 = vld [vmem:[%s2869 + $0x10] sm:$0xff]
    %v2873 = vld [vmem:[%s2869 + $0x18] sm:$0xff]
    %v2874 = vld [vmem:[%s2869 + $0x20] sm:$0xff]
    %v2875 = vld [vmem:[%s2869 + $0x28] sm:$0xff]
    %v2876 = vld [vmem:[%s2869 + $0x30] sm:$0xff]
    %v2877 = vld [vmem:[%s2869 + $0x38] sm:$0xff]
    %v2879 = vsel %vm60, %v2836, 0
    %v2882 = vsel %vm60, %v2837, 0
    %v2885 = vsel %vm60, %v2838, 0
    %v2888 = vsel %vm60, %v2839, 0
    %v2891 = vsel %vm60, %v2840, 0
    %v2894 = vsel %vm60, %v2841, 0
    %v2897 = vsel %vm60, %v2842, 0
    %v2900 = vsel %vm60, %v2843, 0
    %2902 = vmatprep.subr.mxu0 0.0
    %2903 = vmatpush1.xpose.msra.mxu0 %v624
    %2904 = vmatprep.subr.mxu0 0.0
    %2905 = vmatpush1.xpose.msra.mxu0 %v627
    %2906 = vmatprep.subr.mxu0 0.0
    %2907 = vmatpush1.xpose.msra.mxu0 %v630
    %2908 = vmatprep.subr.mxu0 0.0
    %2909 = vmatpush1.xpose.msra.mxu0 %v633
    %2910 = vmatprep.subr.mxu0 0.0
    %2911 = vmatpush1.xpose.msra.mxu0 %v636
    %2912 = vmatprep.subr.mxu0 0.0
    %2913 = vmatpush1.xpose.msra.mxu0 %v639
    %2914 = vmatprep.subr.mxu0 0.0
    %2915 = vmatpush1.xpose.msra.mxu0 %v642
    %2916 = vmatprep.subr.mxu0 0.0
    %2917 = vmatpush1.xpose.msra.mxu0 %v645
    %2918 = vmatprep.subr.mxu0 0.0
    %2919 = vmatpush1.xpose.msra.mxu0 0.0
    %2920 = vmatprep.subr.mxu0 0.0
    %2921 = vmatpush1.xpose.msra.mxu0 0.0
    %2922 = vmatprep.subr.mxu0 0.0
    %2923 = vmatpush1.xpose.msra.mxu0 0.0
    %2924 = vmatprep.subr.mxu0 0.0
    %2925 = vmatpush1.xpose.msra.mxu0 0.0
    %2926 = vmatprep.subr.mxu0 0.0
    %2927 = vmatpush1.xpose.msra.mxu0 0.0
    %2928 = vmatprep.subr.mxu0 0.0
    %2929 = vmatpush1.xpose.msra.mxu0 0.0
    %2930 = vmatprep.subr.mxu0 0.0
    %2931 = vmatpush1.xpose.msra.mxu0 0.0
    %2932 = vmatprep.subr.mxu0 0.0
    %2933 = vmatpush1.xpose.msra.mxu0 0.0
    %2934 = vmatprep.subr.mxu0 0.0
    %2935 = vmatpush1.xpose.msra.mxu0 0.0
    %2936 = vmatprep.subr.mxu0 0.0
    %2937 = vmatpush1.xpose.msra.mxu0 0.0
    %2938 = vmatprep.subr.mxu0 0.0
    %2939 = vmatpush1.xpose.msra.mxu0 0.0
    %2940 = vmatprep.subr.mxu0 0.0
    %2941 = vmatpush1.xpose.msra.mxu0 0.0
    %2942 = vmatprep.subr.mxu0 0.0
    %2943 = vmatpush1.xpose.msra.mxu0 0.0
    %2944 = vmatprep.subr.mxu0 0.0
    %2945 = vmatpush1.xpose.msra.mxu0 0.0
    %2946 = vmatprep.subr.mxu0 0.0
    %2947 = vmatpush1.xpose.msra.mxu0 0.0
    %2948 = vmatprep.subr.mxu0 0.0
    %2949 = vmatpush1.xpose.msra.mxu0 0.0
    %2950 = vmatprep.subr.mxu0 0.0
    %2951 = vmatpush1.xpose.msra.mxu0 0.0
    %2952 = vmatprep.subr.mxu0 0.0
    %2953 = vmatpush1.xpose.msra.mxu0 0.0
    %2954 = vmatprep.subr.mxu0 0.0
    %2955 = vmatpush1.xpose.msra.mxu0 0.0
    %2956 = vmatprep.subr.mxu0 0.0
    %2957 = vmatpush1.xpose.msra.mxu0 0.0
    %2958 = vmatprep.subr.mxu0 0.0
    %2959 = vmatpush1.xpose.msra.mxu0 0.0
    %2960 = vmatprep.subr.mxu0 0.0
    %2961 = vmatpush1.xpose.msra.mxu0 0.0
    %2962 = vmatprep.subr.mxu0 0.0
    %2963 = vmatpush1.xpose.msra.mxu0 0.0
    %2964 = vmatprep.subr.mxu0 0.0
    %2965 = vmatpush1.xpose.msra.mxu0 0.0
    %2966 = vmatprep.mubr.f32.mxu0 0.0
    %2967 = vmatmul.mubr.f32.gmra.mrb[0].mxu0 %v2879
    %v2968 = vpop.f32.mrb[0].mxu0
    %v2969 = vadd.f32 %v2870, %v2968
    %v2970 = vpop.f32.mrb[0].mxu0
    %2971 = vmatprep.mubr.f32.mxu0 0.0
    %2972 = vmatmul.mubr.f32.gmra.mrb[0].mxu0 %v2882
    %v2973 = vpop.f32.mrb[0].mxu0
    %v2974 = vadd.f32 %v2871, %v2973
    %v2975 = vpop.f32.mrb[0].mxu0
    %2976 = vmatprep.mubr.f32.mxu0 0.0
    %2977 = vmatmul.mubr.f32.gmra.mrb[0].mxu0 %v2885
    %v2978 = vpop.f32.mrb[0].mxu0
    %v2979 = vadd.f32 %v2872, %v2978
    %v2980 = vpop.f32.mrb[0].mxu0
    %2981 = vmatprep.mubr.f32.mxu0 0.0
    %2982 = vmatmul.mubr.f32.gmra.mrb[0].mxu0 %v2888
    %v2983 = vpop.f32.mrb[0].mxu0
    %v2984 = vadd.f32 %v2873, %v2983
    %v2985 = vpop.f32.mrb[0].mxu0
    %2986 = vmatprep.mubr.f32.mxu0 0.0
    %2987 = vmatmul.mubr.f32.gmra.mrb[0].mxu0 %v2891
    %v2988 = vpop.f32.mrb[0].mxu0
    %v2989 = vadd.f32 %v2874, %v2988
    %v2990 = vpop.f32.mrb[0].mxu0
    %2991 = vmatprep.mubr.f32.mxu0 0.0
    %2992 = vmatmul.mubr.f32.gmra.mrb[0].mxu0 %v2894
    %v2993 = vpop.f32.mrb[0].mxu0
    %v2994 = vadd.f32 %v2875, %v2993
    %v2995 = vpop.f32.mrb[0].mxu0
    %2996 = vmatprep.mubr.f32.mxu0 0.0
    %2997 = vmatmul.mubr.f32.gmra.mrb[0].mxu0 %v2897
    %v2998 = vpop.f32.mrb[0].mxu0
    %v2999 = vadd.f32 %v2876, %v2998
    %v3000 = vpop.f32.mrb[0].mxu0
    %3001 = vmatprep.mubr.f32.mxu0 0.0
    %3002 = vmatmul.mubr.f32.gmra.mrb[0].mxu0 %v2900
    %v3003 = vpop.f32.mrb[0].mxu0
    %v3004 = vadd.f32 %v2877, %v3003
    %v3005 = vpop.f32.mrb[0].mxu0
    %3006 = vdwg.mxu0
    %v3007 = vsel %vm752, %v2969, -inf
    %3008 = vmax.xlane.f32.xlu0 %v3007
    %v3009 = vpop.xlane.xlu0 %3008
    %v3010 = vsel %vm752, %v2974, -inf
    %3011 = vmax.xlane.f32.xlu0 %v3010
    %v3012 = vpop.xlane.xlu0 %3011
    %v3013 = vsel %vm752, %v2979, -inf
    %3014 = vmax.xlane.f32.xlu0 %v3013
    %v3015 = vpop.xlane.xlu0 %3014
    %v3016 = vsel %vm752, %v2984, -inf
    %3017 = vmax.xlane.f32.xlu0 %v3016
    %v3018 = vpop.xlane.xlu0 %3017
    %v3019 = vsel %vm752, %v2989, -inf
    %3020 = vmax.xlane.f32.xlu0 %v3019
    %v3021 = vpop.xlane.xlu0 %3020
    %v3022 = vsel %vm752, %v2994, -inf
    %3023 = vmax.xlane.f32.xlu0 %v3022
    %v3024 = vpop.xlane.xlu0 %3023
    %v3025 = vsel %vm752, %v2999, -inf
    %3026 = vmax.xlane.f32.xlu0 %v3025
    %v3027 = vpop.xlane.xlu0 %3026
    %v3028 = vsel %vm752, %v3004, -inf
    %3029 = vmax.xlane.f32.xlu0 %v3028
    %v3030 = vpop.xlane.xlu0 %3029
    %v3031 = vsub.f32 %v2969, %v3009
    %v3032 = vsub.f32 %v2974, %v3012
    %v3033 = vsub.f32 %v2979, %v3015
    %v3034 = vsub.f32 %v2984, %v3018
    %v3035 = vsub.f32 %v2989, %v3021
    %v3036 = vsub.f32 %v2994, %v3024
    %v3037 = vsub.f32 %v2999, %v3027
    %v3038 = vsub.f32 %v3004, %v3030
    %v3039 = vmul.f32 %v3031, 1.442695
    %v3040 = vpow.pop %v3039
    %v3041 = vmul.f32 %v3032, 1.442695
    %v3042 = vpow.pop %v3041
    %v3043 = vmul.f32 %v3033, 1.442695
    %v3044 = vpow.pop %v3043
    %v3045 = vmul.f32 %v3034, 1.442695
    %v3046 = vpow.pop %v3045
    %v3047 = vmul.f32 %v3035, 1.442695
    %v3048 = vpow.pop %v3047
    %v3049 = vmul.f32 %v3036, 1.442695
    %v3050 = vpow.pop %v3049
    %v3051 = vmul.f32 %v3037, 1.442695
    %v3052 = vpow.pop %v3051
    %v3053 = vmul.f32 %v3038, 1.442695
    %v3054 = vpow.pop %v3053
    %v3055 = vsel %vm752, %v3040, 0.0
    %3056 = vadd.xlane.f32.xlu0 %v3055
    %v3057 = vpop.xlane.xlu0 %3056
    %v3058 = vsel %vm752, %v3042, 0.0
    %3059 = vadd.xlane.f32.xlu0 %v3058
    %v3060 = vpop.xlane.xlu0 %3059
    %v3061 = vsel %vm752, %v3044, 0.0
    %3062 = vadd.xlane.f32.xlu0 %v3061
    %v3063 = vpop.xlane.xlu0 %3062
    %v3064 = vsel %vm752, %v3046, 0.0
    %3065 = vadd.xlane.f32.xlu0 %v3064
    %v3066 = vpop.xlane.xlu0 %3065
    %v3067 = vsel %vm752, %v3048, 0.0
    %3068 = vadd.xlane.f32.xlu0 %v3067
    %v3069 = vpop.xlane.xlu0 %3068
    %v3070 = vsel %vm752, %v3050, 0.0
    %3071 = vadd.xlane.f32.xlu0 %v3070
    %v3072 = vpop.xlane.xlu0 %3071
    %v3073 = vsel %vm752, %v3052, 0.0
    %3074 = vadd.xlane.f32.xlu0 %v3073
    %v3075 = vpop.xlane.xlu0 %3074
    %v3076 = vsel %vm752, %v3054, 0.0
    %3077 = vadd.xlane.f32.xlu0 %v3076
    %v3078 = vpop.xlane.xlu0 %3077
    %v3079 = vrcp.pop %v3057
    %v3080 = vrcp.pop %v3060
    %v3081 = vrcp.pop %v3063
    %v3082 = vrcp.pop %v3066
    %v3083 = vrcp.pop %v3069
    %v3084 = vrcp.pop %v3072
    %v3085 = vrcp.pop %v3075
    %v3086 = vrcp.pop %v3078
    %v3087 = vmul.f32 %v3040, %v3079
    %v3088 = vmul.f32 %v3042, %v3080
    %v3089 = vmul.f32 %v3044, %v3081
    %v3090 = vmul.f32 %v3046, %v3082
    %v3091 = vmul.f32 %v3048, %v3083
    %v3092 = vmul.f32 %v3050, %v3084
    %v3093 = vmul.f32 %v3052, %v3085
    %v3094 = vmul.f32 %v3054, %v3086
    %v3096 = vsel %vm752, %v3087, 0
    %v3099 = vsel %vm752, %v3088, 0
    %v3102 = vsel %vm752, %v3089, 0
    %v3105 = vsel %vm752, %v3090, 0
    %v3108 = vsel %vm752, %v3091, 0
    %v3111 = vsel %vm752, %v3092, 0
    %v3114 = vsel %vm752, %v3093, 0
    %v3117 = vsel %vm752, %v3094, 0
    %3119 = vmatprep.subr.mxu0 0.0
    %3120 = vmatpush1.msra.mxu0 %v2853
    %3121 = vmatprep.subr.mxu0 0.0
    %3122 = vmatpush1.msra.mxu0 %v2854
    %3123 = vmatprep.subr.mxu0 0.0
    %3124 = vmatpush1.msra.mxu0 %v2855
    %3125 = vmatprep.subr.mxu0 0.0
    %3126 = vmatpush1.msra.mxu0 %v2856
    %3127 = vmatprep.subr.mxu0 0.0
    %3128 = vmatpush1.msra.mxu0 %v2857
    %3129 = vmatprep.subr.mxu0 0.0
    %3130 = vmatpush1.msra.mxu0 %v2858
    %3131 = vmatprep.subr.mxu0 0.0
    %3132 = vmatpush1.msra.mxu0 %v2859
    %3133 = vmatprep.subr.mxu0 0.0
    %3134 = vmatpush1.msra.mxu0 %v2860
    %3135 = vmatprep.subr.mxu0 0.0
    %3136 = vmatpush1.msra.mxu0 0.0
    %3137 = vmatprep.subr.mxu0 0.0
    %3138 = vmatpush1.msra.mxu0 0.0
    %3139 = vmatprep.subr.mxu0 0.0
    %3140 = vmatpush1.msra.mxu0 0.0
    %3141 = vmatprep.subr.mxu0 0.0
    %3142 = vmatpush1.msra.mxu0 0.0
    %3143 = vmatprep.subr.mxu0 0.0
    %3144 = vmatpush1.msra.mxu0 0.0
    %3145 = vmatprep.subr.mxu0 0.0
    %3146 = vmatpush1.msra.mxu0 0.0
    %3147 = vmatprep.subr.mxu0 0.0
    %3148 = vmatpush1.msra.mxu0 0.0
    %3149 = vmatprep.subr.mxu0 0.0
    %3150 = vmatpush1.msra.mxu0 0.0
    %3151 = vmatprep.subr.mxu0 0.0
    %3152 = vmatpush1.msra.mxu0 0.0
    %3153 = vmatprep.subr.mxu0 0.0
    %3154 = vmatpush1.msra.mxu0 0.0
    %3155 = vmatprep.subr.mxu0 0.0
    %3156 = vmatpush1.msra.mxu0 0.0
    %3157 = vmatprep.subr.mxu0 0.0
    %3158 = vmatpush1.msra.mxu0 0.0
    %3159 = vmatprep.subr.mxu0 0.0
    %3160 = vmatpush1.msra.mxu0 0.0
    %3161 = vmatprep.subr.mxu0 0.0
    %3162 = vmatpush1.msra.mxu0 0.0
    %3163 = vmatprep.subr.mxu0 0.0
    %3164 = vmatpush1.msra.mxu0 0.0
    %3165 = vmatprep.subr.mxu0 0.0
    %3166 = vmatpush1.msra.mxu0 0.0
    %3167 = vmatprep.subr.mxu0 0.0
    %3168 = vmatpush1.msra.mxu0 0.0
    %3169 = vmatprep.subr.mxu0 0.0
    %3170 = vmatpush1.msra.mxu0 0.0
    %3171 = vmatprep.subr.mxu0 0.0
    %3172 = vmatpush1.msra.mxu0 0.0
    %3173 = vmatprep.subr.mxu0 0.0
    %3174 = vmatpush1.msra.mxu0 0.0
    %3175 = vmatprep.subr.mxu0 0.0
    %3176 = vmatpush1.msra.mxu0 0.0
    %3177 = vmatprep.subr.mxu0 0.0
    %3178 = vmatpush1.msra.mxu0 0.0
    %3179 = vmatprep.subr.mxu0 0.0
    %3180 = vmatpush1.msra.mxu0 0.0
    %3181 = vmatprep.subr.mxu0 0.0
    %3182 = vmatpush1.msra.mxu0 0.0
    %3183 = vmatprep.mubr.f32.mxu0 0.0
    %3184 = vmatmul.mubr.f32.gmra.mrb[0].mxu0 %v3096
    %v3185 = vpop.f32.mrb[0].mxu0
    %v3186 = vadd.f32 0.0, %v3185
    %v3187 = vpop.f32.mrb[0].mxu0
    %3188 = vmatprep.mubr.f32.mxu0 0.0
    %3189 = vmatmul.mubr.f32.gmra.mrb[0].mxu0 %v3099
    %v3190 = vpop.f32.mrb[0].mxu0
    %v3191 = vadd.f32 0.0, %v3190
    %v3192 = vpop.f32.mrb[0].mxu0
    %3193 = vmatprep.mubr.f32.mxu0 0.0
    %3194 = vmatmul.mubr.f32.gmra.mrb[0].mxu0 %v3102
    %v3195 = vpop.f32.mrb[0].mxu0
    %v3196 = vadd.f32 0.0, %v3195
    %v3197 = vpop.f32.mrb[0].mxu0
    %3198 = vmatprep.mubr.f32.mxu0 0.0
    %3199 = vmatmul.mubr.f32.gmra.mrb[0].mxu0 %v3105
    %v3200 = vpop.f32.mrb[0].mxu0
    %v3201 = vadd.f32 0.0, %v3200
    %v3202 = vpop.f32.mrb[0].mxu0
    %3203 = vmatprep.mubr.f32.mxu0 0.0
    %3204 = vmatmul.mubr.f32.gmra.mrb[0].mxu0 %v3108
    %v3205 = vpop.f32.mrb[0].mxu0
    %v3206 = vadd.f32 0.0, %v3205
    %v3207 = vpop.f32.mrb[0].mxu0
    %3208 = vmatprep.mubr.f32.mxu0 0.0
    %3209 = vmatmul.mubr.f32.gmra.mrb[0].mxu0 %v3111
    %v3210 = vpop.f32.mrb[0].mxu0
    %v3211 = vadd.f32 0.0, %v3210
    %v3212 = vpop.f32.mrb[0].mxu0
    %3213 = vmatprep.mubr.f32.mxu0 0.0
    %3214 = vmatmul.mubr.f32.gmra.mrb[0].mxu0 %v3114
    %v3215 = vpop.f32.mrb[0].mxu0
    %v3216 = vadd.f32 0.0, %v3215
    %v3217 = vpop.f32.mrb[0].mxu0
    %3218 = vmatprep.mubr.f32.mxu0 0.0
    %3219 = vmatmul.mubr.f32.gmra.mrb[0].mxu0 %v3117
    %v3220 = vpop.f32.mrb[0].mxu0
    %v3221 = vadd.f32 0.0, %v3220
    %v3222 = vpop.f32.mrb[0].mxu0
    %3223 = vdwg.mxu0
    %v3224 = vadd.f32 %v2470, %v3186
    %v3225 = vadd.f32 %v2471, %v3191
    %v3226 = vadd.f32 %v2472, %v3196
    %v3227 = vadd.f32 %v2473, %v3201
    %v3228 = vadd.f32 %v2474, %v3206
    %v3229 = vadd.f32 %v2475, %v3211
    %v3230 = vadd.f32 %v2476, %v3216
    %v3231 = vadd.f32 %v2477, %v3221
    %v3233 = vsel %vm60, %v2844, 0
    %v3236 = vsel %vm60, %v2845, 0
    %v3239 = vsel %vm60, %v2846, 0
    %v3242 = vsel %vm60, %v2847, 0
    %v3245 = vsel %vm60, %v2848, 0
    %v3248 = vsel %vm60, %v2849, 0
    %v3251 = vsel %vm60, %v2850, 0
    %v3254 = vsel %vm60, %v2851, 0
    %3256 = vmatprep.subr.mxu0 0.0
    %3257 = vmatpush1.xpose.msra.mxu0 %v866
    %3258 = vmatprep.subr.mxu0 0.0
    %3259 = vmatpush1.xpose.msra.mxu0 %v869
    %3260 = vmatprep.subr.mxu0 0.0
    %3261 = vmatpush1.xpose.msra.mxu0 %v872
    %3262 = vmatprep.subr.mxu0 0.0
    %3263 = vmatpush1.xpose.msra.mxu0 %v875
    %3264 = vmatprep.subr.mxu0 0.0
    %3265 = vmatpush1.xpose.msra.mxu0 %v878
    %3266 = vmatprep.subr.mxu0 0.0
    %3267 = vmatpush1.xpose.msra.mxu0 %v881
    %3268 = vmatprep.subr.mxu0 0.0
    %3269 = vmatpush1.xpose.msra.mxu0 %v884
    %3270 = vmatprep.subr.mxu0 0.0
    %3271 = vmatpush1.xpose.msra.mxu0 %v887
    %3272 = vmatprep.subr.mxu0 0.0
    %3273 = vmatpush1.xpose.msra.mxu0 0.0
    %3274 = vmatprep.subr.mxu0 0.0
    %3275 = vmatpush1.xpose.msra.mxu0 0.0
    %3276 = vmatprep.subr.mxu0 0.0
    %3277 = vmatpush1.xpose.msra.mxu0 0.0
    %3278 = vmatprep.subr.mxu0 0.0
    %3279 = vmatpush1.xpose.msra.mxu0 0.0
    %3280 = vmatprep.subr.mxu0 0.0
    %3281 = vmatpush1.xpose.msra.mxu0 0.0
    %3282 = vmatprep.subr.mxu0 0.0
    %3283 = vmatpush1.xpose.msra.mxu0 0.0
    %3284 = vmatprep.subr.mxu0 0.0
    %3285 = vmatpush1.xpose.msra.mxu0 0.0
    %3286 = vmatprep.subr.mxu0 0.0
    %3287 = vmatpush1.xpose.msra.mxu0 0.0
    %3288 = vmatprep.subr.mxu0 0.0
    %3289 = vmatpush1.xpose.msra.mxu0 0.0
    %3290 = vmatprep.subr.mxu0 0.0
    %3291 = vmatpush1.xpose.msra.mxu0 0.0
    %3292 = vmatprep.subr.mxu0 0.0
    %3293 = vmatpush1.xpose.msra.mxu0 0.0
    %3294 = vmatprep.subr.mxu0 0.0
    %3295 = vmatpush1.xpose.msra.mxu0 0.0
    %3296 = vmatprep.subr.mxu0 0.0
    %3297 = vmatpush1.xpose.msra.mxu0 0.0
    %3298 = vmatprep.subr.mxu0 0.0
    %3299 = vmatpush1.xpose.msra.mxu0 0.0
    %3300 = vmatprep.subr.mxu0 0.0
    %3301 = vmatpush1.xpose.msra.mxu0 0.0
    %3302 = vmatprep.subr.mxu0 0.0
    %3303 = vmatpush1.xpose.msra.mxu0 0.0
    %3304 = vmatprep.subr.mxu0 0.0
    %3305 = vmatpush1.xpose.msra.mxu0 0.0
    %3306 = vmatprep.subr.mxu0 0.0
    %3307 = vmatpush1.xpose.msra.mxu0 0.0
    %3308 = vmatprep.subr.mxu0 0.0
    %3309 = vmatpush1.xpose.msra.mxu0 0.0
    %3310 = vmatprep.subr.mxu0 0.0
    %3311 = vmatpush1.xpose.msra.mxu0 0.0
    %3312 = vmatprep.subr.mxu0 0.0
    %3313 = vmatpush1.xpose.msra.mxu0 0.0
    %3314 = vmatprep.subr.mxu0 0.0
    %3315 = vmatpush1.xpose.msra.mxu0 0.0
    %3316 = vmatprep.subr.mxu0 0.0
    %3317 = vmatpush1.xpose.msra.mxu0 0.0
    %3318 = vmatprep.subr.mxu0 0.0
    %3319 = vmatpush1.xpose.msra.mxu0 0.0
    %3320 = vmatprep.mubr.f32.mxu0 0.0
    %3321 = vmatmul.mubr.f32.gmra.mrb[0].mxu0 %v3233
    %v3322 = vpop.f32.mrb[0].mxu0
    %v3323 = vadd.f32 %v2870, %v3322
    %v3324 = vpop.f32.mrb[0].mxu0
    %3325 = vmatprep.mubr.f32.mxu0 0.0
    %3326 = vmatmul.mubr.f32.gmra.mrb[0].mxu0 %v3236
    %v3327 = vpop.f32.mrb[0].mxu0
    %v3328 = vadd.f32 %v2871, %v3327
    %v3329 = vpop.f32.mrb[0].mxu0
    %3330 = vmatprep.mubr.f32.mxu0 0.0
    %3331 = vmatmul.mubr.f32.gmra.mrb[0].mxu0 %v3239
    %v3332 = vpop.f32.mrb[0].mxu0
    %v3333 = vadd.f32 %v2872, %v3332
    %v3334 = vpop.f32.mrb[0].mxu0
    %3335 = vmatprep.mubr.f32.mxu0 0.0
    %3336 = vmatmul.mubr.f32.gmra.mrb[0].mxu0 %v3242
    %v3337 = vpop.f32.mrb[0].mxu0
    %v3338 = vadd.f32 %v2873, %v3337
    %v3339 = vpop.f32.mrb[0].mxu0
    %3340 = vmatprep.mubr.f32.mxu0 0.0
    %3341 = vmatmul.mubr.f32.gmra.mrb[0].mxu0 %v3245
    %v3342 = vpop.f32.mrb[0].mxu0
    %v3343 = vadd.f32 %v2874, %v3342
    %v3344 = vpop.f32.mrb[0].mxu0
    %3345 = vmatprep.mubr.f32.mxu0 0.0
    %3346 = vmatmul.mubr.f32.gmra.mrb[0].mxu0 %v3248
    %v3347 = vpop.f32.mrb[0].mxu0
    %v3348 = vadd.f32 %v2875, %v3347
    %v3349 = vpop.f32.mrb[0].mxu0
    %3350 = vmatprep.mubr.f32.mxu0 0.0
    %3351 = vmatmul.mubr.f32.gmra.mrb[0].mxu0 %v3251
    %v3352 = vpop.f32.mrb[0].mxu0
    %v3353 = vadd.f32 %v2876, %v3352
    %v3354 = vpop.f32.mrb[0].mxu0
    %3355 = vmatprep.mubr.f32.mxu0 0.0
    %3356 = vmatmul.mubr.f32.gmra.mrb[0].mxu0 %v3254
    %v3357 = vpop.f32.mrb[0].mxu0
    %v3358 = vadd.f32 %v2877, %v3357
    %v3359 = vpop.f32.mrb[0].mxu0
    %3360 = vdwg.mxu0
    %v3361 = vsel %vm752, %v3323, -inf
    %3362 = vmax.xlane.f32.xlu0 %v3361
    %v3363 = vpop.xlane.xlu0 %3362
    %v3364 = vsel %vm752, %v3328, -inf
    %3365 = vmax.xlane.f32.xlu0 %v3364
    %v3366 = vpop.xlane.xlu0 %3365
    %v3367 = vsel %vm752, %v3333, -inf
    %3368 = vmax.xlane.f32.xlu0 %v3367
    %v3369 = vpop.xlane.xlu0 %3368
    %v3370 = vsel %vm752, %v3338, -inf
    %3371 = vmax.xlane.f32.xlu0 %v3370
    %v3372 = vpop.xlane.xlu0 %3371
    %v3373 = vsel %vm752, %v3343, -inf
    %3374 = vmax.xlane.f32.xlu0 %v3373
    %v3375 = vpop.xlane.xlu0 %3374
    %v3376 = vsel %vm752, %v3348, -inf
    %3377 = vmax.xlane.f32.xlu0 %v3376
    %v3378 = vpop.xlane.xlu0 %3377
    %v3379 = vsel %vm752, %v3353, -inf
    %3380 = vmax.xlane.f32.xlu0 %v3379
    %v3381 = vpop.xlane.xlu0 %3380
    %v3382 = vsel %vm752, %v3358, -inf
    %3383 = vmax.xlane.f32.xlu0 %v3382
    %v3384 = vpop.xlane.xlu0 %3383
    %v3385 = vsub.f32 %v3323, %v3363
    %v3386 = vsub.f32 %v3328, %v3366
    %v3387 = vsub.f32 %v3333, %v3369
    %v3388 = vsub.f32 %v3338, %v3372
    %v3389 = vsub.f32 %v3343, %v3375
    %v3390 = vsub.f32 %v3348, %v3378
    %v3391 = vsub.f32 %v3353, %v3381
    %v3392 = vsub.f32 %v3358, %v3384
    %v3393 = vmul.f32 %v3385, 1.442695
    %v3394 = vpow.pop %v3393
    %v3395 = vmul.f32 %v3386, 1.442695
    %v3396 = vpow.pop %v3395
    %v3397 = vmul.f32 %v3387, 1.442695
    %v3398 = vpow.pop %v3397
    %v3399 = vmul.f32 %v3388, 1.442695
    %v3400 = vpow.pop %v3399
    %v3401 = vmul.f32 %v3389, 1.442695
    %v3402 = vpow.pop %v3401
    %v3403 = vmul.f32 %v3390, 1.442695
    %v3404 = vpow.pop %v3403
    %v3405 = vmul.f32 %v3391, 1.442695
    %v3406 = vpow.pop %v3405
    %v3407 = vmul.f32 %v3392, 1.442695
    %v3408 = vpow.pop %v3407
    %v3409 = vsel %vm752, %v3394, 0.0
    %3410 = vadd.xlane.f32.xlu0 %v3409
    %v3411 = vpop.xlane.xlu0 %3410
    %v3412 = vsel %vm752, %v3396, 0.0
    %3413 = vadd.xlane.f32.xlu0 %v3412
    %v3414 = vpop.xlane.xlu0 %3413
    %v3415 = vsel %vm752, %v3398, 0.0
    %3416 = vadd.xlane.f32.xlu0 %v3415
    %v3417 = vpop.xlane.xlu0 %3416
    %v3418 = vsel %vm752, %v3400, 0.0
    %3419 = vadd.xlane.f32.xlu0 %v3418
    %v3420 = vpop.xlane.xlu0 %3419
    %v3421 = vsel %vm752, %v3402, 0.0
    %3422 = vadd.xlane.f32.xlu0 %v3421
    %v3423 = vpop.xlane.xlu0 %3422
    %v3424 = vsel %vm752, %v3404, 0.0
    %3425 = vadd.xlane.f32.xlu0 %v3424
    %v3426 = vpop.xlane.xlu0 %3425
    %v3427 = vsel %vm752, %v3406, 0.0
    %3428 = vadd.xlane.f32.xlu0 %v3427
    %v3429 = vpop.xlane.xlu0 %3428
    %v3430 = vsel %vm752, %v3408, 0.0
    %3431 = vadd.xlane.f32.xlu0 %v3430
    %v3432 = vpop.xlane.xlu0 %3431
    %v3433 = vrcp.pop %v3411
    %v3434 = vrcp.pop %v3414
    %v3435 = vrcp.pop %v3417
    %v3436 = vrcp.pop %v3420
    %v3437 = vrcp.pop %v3423
    %v3438 = vrcp.pop %v3426
    %v3439 = vrcp.pop %v3429
    %v3440 = vrcp.pop %v3432
    %v3441 = vmul.f32 %v3394, %v3433
    %v3442 = vmul.f32 %v3396, %v3434
    %v3443 = vmul.f32 %v3398, %v3435
    %v3444 = vmul.f32 %v3400, %v3436
    %v3445 = vmul.f32 %v3402, %v3437
    %v3446 = vmul.f32 %v3404, %v3438
    %v3447 = vmul.f32 %v3406, %v3439
    %v3448 = vmul.f32 %v3408, %v3440
    %v3450 = vsel %vm752, %v3441, 0
    %v3453 = vsel %vm752, %v3442, 0
    %v3456 = vsel %vm752, %v3443, 0
    %v3459 = vsel %vm752, %v3444, 0
    %v3462 = vsel %vm752, %v3445, 0
    %v3465 = vsel %vm752, %v3446, 0
    %v3468 = vsel %vm752, %v3447, 0
    %v3471 = vsel %vm752, %v3448, 0
    %3473 = vmatprep.subr.mxu0 0.0
    %3474 = vmatpush1.msra.mxu0 %v2861
    %3475 = vmatprep.subr.mxu0 0.0
    %3476 = vmatpush1.msra.mxu0 %v2862
    %3477 = vmatprep.subr.mxu0 0.0
    %3478 = vmatpush1.msra.mxu0 %v2863
    %3479 = vmatprep.subr.mxu0 0.0
    %3480 = vmatpush1.msra.mxu0 %v2864
    %3481 = vmatprep.subr.mxu0 0.0
    %3482 = vmatpush1.msra.mxu0 %v2865
    %3483 = vmatprep.subr.mxu0 0.0
    %3484 = vmatpush1.msra.mxu0 %v2866
    %3485 = vmatprep.subr.mxu0 0.0
    %3486 = vmatpush1.msra.mxu0 %v2867
    %3487 = vmatprep.subr.mxu0 0.0
    %3488 = vmatpush1.msra.mxu0 %v2868
    %3489 = vmatprep.subr.mxu0 0.0
    %3490 = vmatpush1.msra.mxu0 0.0
    %3491 = vmatprep.subr.mxu0 0.0
    %3492 = vmatpush1.msra.mxu0 0.0
    %3493 = vmatprep.subr.mxu0 0.0
    %3494 = vmatpush1.msra.mxu0 0.0
    %3495 = vmatprep.subr.mxu0 0.0
    %3496 = vmatpush1.msra.mxu0 0.0
    %3497 = vmatprep.subr.mxu0 0.0
    %3498 = vmatpush1.msra.mxu0 0.0
    %3499 = vmatprep.subr.mxu0 0.0
    %3500 = vmatpush1.msra.mxu0 0.0
    %3501 = vmatprep.subr.mxu0 0.0
    %3502 = vmatpush1.msra.mxu0 0.0
    %3503 = vmatprep.subr.mxu0 0.0
    %3504 = vmatpush1.msra.mxu0 0.0
    %3505 = vmatprep.subr.mxu0 0.0
    %3506 = vmatpush1.msra.mxu0 0.0
    %3507 = vmatprep.subr.mxu0 0.0
    %3508 = vmatpush1.msra.mxu0 0.0
    %3509 = vmatprep.subr.mxu0 0.0
    %3510 = vmatpush1.msra.mxu0 0.0
    %3511 = vmatprep.subr.mxu0 0.0
    %3512 = vmatpush1.msra.mxu0 0.0
    %3513 = vmatprep.subr.mxu0 0.0
    %3514 = vmatpush1.msra.mxu0 0.0
    %3515 = vmatprep.subr.mxu0 0.0
    %3516 = vmatpush1.msra.mxu0 0.0
    %3517 = vmatprep.subr.mxu0 0.0
    %3518 = vmatpush1.msra.mxu0 0.0
    %3519 = vmatprep.subr.mxu0 0.0
    %3520 = vmatpush1.msra.mxu0 0.0
    %3521 = vmatprep.subr.mxu0 0.0
    %3522 = vmatpush1.msra.mxu0 0.0
    %3523 = vmatprep.subr.mxu0 0.0
    %3524 = vmatpush1.msra.mxu0 0.0
    %3525 = vmatprep.subr.mxu0 0.0
    %3526 = vmatpush1.msra.mxu0 0.0
    %3527 = vmatprep.subr.mxu0 0.0
    %3528 = vmatpush1.msra.mxu0 0.0
    %3529 = vmatprep.subr.mxu0 0.0
    %3530 = vmatpush1.msra.mxu0 0.0
    %3531 = vmatprep.subr.mxu0 0.0
    %3532 = vmatpush1.msra.mxu0 0.0
    %3533 = vmatprep.subr.mxu0 0.0
    %3534 = vmatpush1.msra.mxu0 0.0
    %3535 = vmatprep.subr.mxu0 0.0
    %3536 = vmatpush1.msra.mxu0 0.0
    %3537 = vmatprep.mubr.f32.mxu0 0.0
    %3538 = vmatmul.mubr.f32.gmra.mrb[0].mxu0 %v3450
    %v3539 = vpop.f32.mrb[0].mxu0
    %v3540 = vadd.f32 0.0, %v3539
    %v3541 = vpop.f32.mrb[0].mxu0
    %3542 = vmatprep.mubr.f32.mxu0 0.0
    %3543 = vmatmul.mubr.f32.gmra.mrb[0].mxu0 %v3453
    %v3544 = vpop.f32.mrb[0].mxu0
    %v3545 = vadd.f32 0.0, %v3544
    %v3546 = vpop.f32.mrb[0].mxu0
    %3547 = vmatprep.mubr.f32.mxu0 0.0
    %3548 = vmatmul.mubr.f32.gmra.mrb[0].mxu0 %v3456
    %v3549 = vpop.f32.mrb[0].mxu0
    %v3550 = vadd.f32 0.0, %v3549
    %v3551 = vpop.f32.mrb[0].mxu0
    %3552 = vmatprep.mubr.f32.mxu0 0.0
    %3553 = vmatmul.mubr.f32.gmra.mrb[0].mxu0 %v3459
    %v3554 = vpop.f32.mrb[0].mxu0
    %v3555 = vadd.f32 0.0, %v3554
    %v3556 = vpop.f32.mrb[0].mxu0
    %3557 = vmatprep.mubr.f32.mxu0 0.0
    %3558 = vmatmul.mubr.f32.gmra.mrb[0].mxu0 %v3462
    %v3559 = vpop.f32.mrb[0].mxu0
    %v3560 = vadd.f32 0.0, %v3559
    %v3561 = vpop.f32.mrb[0].mxu0
    %3562 = vmatprep.mubr.f32.mxu0 0.0
    %3563 = vmatmul.mubr.f32.gmra.mrb[0].mxu0 %v3465
    %v3564 = vpop.f32.mrb[0].mxu0
    %v3565 = vadd.f32 0.0, %v3564
    %v3566 = vpop.f32.mrb[0].mxu0
    %3567 = vmatprep.mubr.f32.mxu0 0.0
    %3568 = vmatmul.mubr.f32.gmra.mrb[0].mxu0 %v3468
    %v3569 = vpop.f32.mrb[0].mxu0
    %v3570 = vadd.f32 0.0, %v3569
    %v3571 = vpop.f32.mrb[0].mxu0
    %3572 = vmatprep.mubr.f32.mxu0 0.0
    %3573 = vmatmul.mubr.f32.gmra.mrb[0].mxu0 %v3471
    %v3574 = vpop.f32.mrb[0].mxu0
    %v3575 = vadd.f32 0.0, %v3574
    %v3576 = vpop.f32.mrb[0].mxu0
    %3577 = vdwg.mxu0
    %v3578 = vadd.f32 %v2824, %v3540
    %v3579 = vadd.f32 %v2825, %v3545
    %v3580 = vadd.f32 %v2826, %v3550
    %v3581 = vadd.f32 %v2827, %v3555
    %v3582 = vadd.f32 %v2828, %v3560
    %v3583 = vadd.f32 %v2829, %v3565
    %v3584 = vadd.f32 %v2830, %v3570
    %v3585 = vadd.f32 %v2831, %v3575
    %vm3586 = vcmp.ge.s32.totalorder %v553, 16
    %vm3587 = vcmp.lt.s32.totalorder %v553, 20
    %vm3588 = vmand %vm3586, %vm3587
    %v3589 = vsel %vm3588, 0.5, 0.0
    %v3590 = vmul.f32 %v176, %v3589
    %v3591 = vmul.f32 %v181, %v3589
    %v3592 = vmul.f32 %v186, %v3589
    %v3593 = vmul.f32 %v191, %v3589
    %v3594 = vmul.f32 %v196, %v3589
    %v3595 = vmul.f32 %v201, %v3589
    %v3596 = vmul.f32 %v206, %v3589
    %v3597 = vmul.f32 %v211, %v3589
    %v3598 = vmul.f32 %v216, %v3589
    %v3599 = vmul.f32 %v221, %v3589
    %v3600 = vmul.f32 %v226, %v3589
    %v3601 = vmul.f32 %v231, %v3589
    %v3602 = vmul.f32 %v236, %v3589
    %v3603 = vmul.f32 %v241, %v3589
    %v3604 = vmul.f32 %v246, %v3589
    %v3605 = vmul.f32 %v251, %v3589
    %v3606 = vsel %vm3588, 1.0, 0.0
    %v3607 = vmul.f32 %v474, %v3606
    %v3608 = vmul.f32 %v479, %v3606
    %v3609 = vmul.f32 %v484, %v3606
    %v3610 = vmul.f32 %v489, %v3606
    %v3611 = vmul.f32 %v494, %v3606
    %v3612 = vmul.f32 %v499, %v3606
    %v3613 = vmul.f32 %v504, %v3606
    %v3614 = vmul.f32 %v509, %v3606
    %v3615 = vmul.f32 %v514, %v3606
    %v3616 = vmul.f32 %v519, %v3606
    %v3617 = vmul.f32 %v524, %v3606
    %v3618 = vmul.f32 %v529, %v3606
    %v3619 = vmul.f32 %v534, %v3606
    %v3620 = vmul.f32 %v539, %v3606
    %v3621 = vmul.f32 %v544, %v3606
    %v3622 = vmul.f32 %v549, %v3606
    %s3623 = scalar_lea.vmem [#allocation2], 256
    %v3624 = vld [vmem:[%s3623] sm:$0xff]
    %v3625 = vld [vmem:[%s3623 + $0x8] sm:$0xff]
    %v3626 = vld [vmem:[%s3623 + $0x10] sm:$0xff]
    %v3627 = vld [vmem:[%s3623 + $0x18] sm:$0xff]
    %v3628 = vld [vmem:[%s3623 + $0x20] sm:$0xff]
    %v3629 = vld [vmem:[%s3623 + $0x28] sm:$0xff]
    %v3630 = vld [vmem:[%s3623 + $0x30] sm:$0xff]
    %v3631 = vld [vmem:[%s3623 + $0x38] sm:$0xff]
    %v3633 = vsel %vm60, %v3590, 0
    %v3636 = vsel %vm60, %v3591, 0
    %v3639 = vsel %vm60, %v3592, 0
    %v3642 = vsel %vm60, %v3593, 0
    %v3645 = vsel %vm60, %v3594, 0
    %v3648 = vsel %vm60, %v3595, 0
    %v3651 = vsel %vm60, %v3596, 0
    %v3654 = vsel %vm60, %v3597, 0
    %3656 = vmatprep.subr.mxu0 0.0
    %3657 = vmatpush1.xpose.msra.mxu0 %v624
    %3658 = vmatprep.subr.mxu0 0.0
    %3659 = vmatpush1.xpose.msra.mxu0 %v627
    %3660 = vmatprep.subr.mxu0 0.0
    %3661 = vmatpush1.xpose.msra.mxu0 %v630
    %3662 = vmatprep.subr.mxu0 0.0
    %3663 = vmatpush1.xpose.msra.mxu0 %v633
    %3664 = vmatprep.subr.mxu0 0.0
    %3665 = vmatpush1.xpose.msra.mxu0 %v636
    %3666 = vmatprep.subr.mxu0 0.0
    %3667 = vmatpush1.xpose.msra.mxu0 %v639
    %3668 = vmatprep.subr.mxu0 0.0
    %3669 = vmatpush1.xpose.msra.mxu0 %v642
    %3670 = vmatprep.subr.mxu0 0.0
    %3671 = vmatpush1.xpose.msra.mxu0 %v645
    %3672 = vmatprep.subr.mxu0 0.0
    %3673 = vmatpush1.xpose.msra.mxu0 0.0
    %3674 = vmatprep.subr.mxu0 0.0
    %3675 = vmatpush1.xpose.msra.mxu0 0.0
    %3676 = vmatprep.subr.mxu0 0.0
    %3677 = vmatpush1.xpose.msra.mxu0 0.0
    %3678 = vmatprep.subr.mxu0 0.0
    %3679 = vmatpush1.xpose.msra.mxu0 0.0
    %3680 = vmatprep.subr.mxu0 0.0
    %3681 = vmatpush1.xpose.msra.mxu0 0.0
    %3682 = vmatprep.subr.mxu0 0.0
    %3683 = vmatpush1.xpose.msra.mxu0 0.0
    %3684 = vmatprep.subr.mxu0 0.0
    %3685 = vmatpush1.xpose.msra.mxu0 0.0
    %3686 = vmatprep.subr.mxu0 0.0
    %3687 = vmatpush1.xpose.msra.mxu0 0.0
    %3688 = vmatprep.subr.mxu0 0.0
    %3689 = vmatpush1.xpose.msra.mxu0 0.0
    %3690 = vmatprep.subr.mxu0 0.0
    %3691 = vmatpush1.xpose.msra.mxu0 0.0
    %3692 = vmatprep.subr.mxu0 0.0
    %3693 = vmatpush1.xpose.msra.mxu0 0.0
    %3694 = vmatprep.subr.mxu0 0.0
    %3695 = vmatpush1.xpose.msra.mxu0 0.0
    %3696 = vmatprep.subr.mxu0 0.0
    %3697 = vmatpush1.xpose.msra.mxu0 0.0
    %3698 = vmatprep.subr.mxu0 0.0
    %3699 = vmatpush1.xpose.msra.mxu0 0.0
    %3700 = vmatprep.subr.mxu0 0.0
    %3701 = vmatpush1.xpose.msra.mxu0 0.0
    %3702 = vmatprep.subr.mxu0 0.0
    %3703 = vmatpush1.xpose.msra.mxu0 0.0
    %3704 = vmatprep.subr.mxu0 0.0
    %3705 = vmatpush1.xpose.msra.mxu0 0.0
    %3706 = vmatprep.subr.mxu0 0.0
    %3707 = vmatpush1.xpose.msra.mxu0 0.0
    %3708 = vmatprep.subr.mxu0 0.0
    %3709 = vmatpush1.xpose.msra.mxu0 0.0
    %3710 = vmatprep.subr.mxu0 0.0
    %3711 = vmatpush1.xpose.msra.mxu0 0.0
    %3712 = vmatprep.subr.mxu0 0.0
    %3713 = vmatpush1.xpose.msra.mxu0 0.0
    %3714 = vmatprep.subr.mxu0 0.0
    %3715 = vmatpush1.xpose.msra.mxu0 0.0
    %3716 = vmatprep.subr.mxu0 0.0
    %3717 = vmatpush1.xpose.msra.mxu0 0.0
    %3718 = vmatprep.subr.mxu0 0.0
    %3719 = vmatpush1.xpose.msra.mxu0 0.0
    %3720 = vmatprep.mubr.f32.mxu0 0.0
    %3721 = vmatmul.mubr.f32.gmra.mrb[0].mxu0 %v3633
    %v3722 = vpop.f32.mrb[0].mxu0
    %v3723 = vadd.f32 %v3624, %v3722
    %v3724 = vpop.f32.mrb[0].mxu0
    %3725 = vmatprep.mubr.f32.mxu0 0.0
    %3726 = vmatmul.mubr.f32.gmra.mrb[0].mxu0 %v3636
    %v3727 = vpop.f32.mrb[0].mxu0
    %v3728 = vadd.f32 %v3625, %v3727
    %v3729 = vpop.f32.mrb[0].mxu0
    %3730 = vmatprep.mubr.f32.mxu0 0.0
    %3731 = vmatmul.mubr.f32.gmra.mrb[0].mxu0 %v3639
    %v3732 = vpop.f32.mrb[0].mxu0
    %v3733 = vadd.f32 %v3626, %v3732
    %v3734 = vpop.f32.mrb[0].mxu0
    %3735 = vmatprep.mubr.f32.mxu0 0.0
    %3736 = vmatmul.mubr.f32.gmra.mrb[0].mxu0 %v3642
    %v3737 = vpop.f32.mrb[0].mxu0
    %v3738 = vadd.f32 %v3627, %v3737
    %v3739 = vpop.f32.mrb[0].mxu0
    %3740 = vmatprep.mubr.f32.mxu0 0.0
    %3741 = vmatmul.mubr.f32.gmra.mrb[0].mxu0 %v3645
    %v3742 = vpop.f32.mrb[0].mxu0
    %v3743 = vadd.f32 %v3628, %v3742
    %v3744 = vpop.f32.mrb[0].mxu0
    %3745 = vmatprep.mubr.f32.mxu0 0.0
    %3746 = vmatmul.mubr.f32.gmra.mrb[0].mxu0 %v3648
    %v3747 = vpop.f32.mrb[0].mxu0
    %v3748 = vadd.f32 %v3629, %v3747
    %v3749 = vpop.f32.mrb[0].mxu0
    %3750 = vmatprep.mubr.f32.mxu0 0.0
    %3751 = vmatmul.mubr.f32.gmra.mrb[0].mxu0 %v3651
    %v3752 = vpop.f32.mrb[0].mxu0
    %v3753 = vadd.f32 %v3630, %v3752
    %v3754 = vpop.f32.mrb[0].mxu0
    %3755 = vmatprep.mubr.f32.mxu0 0.0
    %3756 = vmatmul.mubr.f32.gmra.mrb[0].mxu0 %v3654
    %v3757 = vpop.f32.mrb[0].mxu0
    %v3758 = vadd.f32 %v3631, %v3757
    %v3759 = vpop.f32.mrb[0].mxu0
    %3760 = vdwg.mxu0
    %v3761 = vsel %vm752, %v3723, -inf
    %3762 = vmax.xlane.f32.xlu0 %v3761
    %v3763 = vpop.xlane.xlu0 %3762
    %v3764 = vsel %vm752, %v3728, -inf
    %3765 = vmax.xlane.f32.xlu0 %v3764
    %v3766 = vpop.xlane.xlu0 %3765
    %v3767 = vsel %vm752, %v3733, -inf
    %3768 = vmax.xlane.f32.xlu0 %v3767
    %v3769 = vpop.xlane.xlu0 %3768
    %v3770 = vsel %vm752, %v3738, -inf
    %3771 = vmax.xlane.f32.xlu0 %v3770
    %v3772 = vpop.xlane.xlu0 %3771
    %v3773 = vsel %vm752, %v3743, -inf
    %3774 = vmax.xlane.f32.xlu0 %v3773
    %v3775 = vpop.xlane.xlu0 %3774
    %v3776 = vsel %vm752, %v3748, -inf
    %3777 = vmax.xlane.f32.xlu0 %v3776
    %v3778 = vpop.xlane.xlu0 %3777
    %v3779 = vsel %vm752, %v3753, -inf
    %3780 = vmax.xlane.f32.xlu0 %v3779
    %v3781 = vpop.xlane.xlu0 %3780
    %v3782 = vsel %vm752, %v3758, -inf
    %3783 = vmax.xlane.f32.xlu0 %v3782
    %v3784 = vpop.xlane.xlu0 %3783
    %v3785 = vsub.f32 %v3723, %v3763
    %v3786 = vsub.f32 %v3728, %v3766
    %v3787 = vsub.f32 %v3733, %v3769
    %v3788 = vsub.f32 %v3738, %v3772
    %v3789 = vsub.f32 %v3743, %v3775
    %v3790 = vsub.f32 %v3748, %v3778
    %v3791 = vsub.f32 %v3753, %v3781
    %v3792 = vsub.f32 %v3758, %v3784
    %v3793 = vmul.f32 %v3785, 1.442695
    %v3794 = vpow.pop %v3793
    %v3795 = vmul.f32 %v3786, 1.442695
    %v3796 = vpow.pop %v3795
    %v3797 = vmul.f32 %v3787, 1.442695
    %v3798 = vpow.pop %v3797
    %v3799 = vmul.f32 %v3788, 1.442695
    %v3800 = vpow.pop %v3799
    %v3801 = vmul.f32 %v3789, 1.442695
    %v3802 = vpow.pop %v3801
    %v3803 = vmul.f32 %v3790, 1.442695
    %v3804 = vpow.pop %v3803
    %v3805 = vmul.f32 %v3791, 1.442695
    %v3806 = vpow.pop %v3805
    %v3807 = vmul.f32 %v3792, 1.442695
    %v3808 = vpow.pop %v3807
    %v3809 = vsel %vm752, %v3794, 0.0
    %3810 = vadd.xlane.f32.xlu0 %v3809
    %v3811 = vpop.xlane.xlu0 %3810
    %v3812 = vsel %vm752, %v3796, 0.0
    %3813 = vadd.xlane.f32.xlu0 %v3812
    %v3814 = vpop.xlane.xlu0 %3813
    %v3815 = vsel %vm752, %v3798, 0.0
    %3816 = vadd.xlane.f32.xlu0 %v3815
    %v3817 = vpop.xlane.xlu0 %3816
    %v3818 = vsel %vm752, %v3800, 0.0
    %3819 = vadd.xlane.f32.xlu0 %v3818
    %v3820 = vpop.xlane.xlu0 %3819
    %v3821 = vsel %vm752, %v3802, 0.0
    %3822 = vadd.xlane.f32.xlu0 %v3821
    %v3823 = vpop.xlane.xlu0 %3822
    %v3824 = vsel %vm752, %v3804, 0.0
    %3825 = vadd.xlane.f32.xlu0 %v3824
    %v3826 = vpop.xlane.xlu0 %3825
    %v3827 = vsel %vm752, %v3806, 0.0
    %3828 = vadd.xlane.f32.xlu0 %v3827
    %v3829 = vpop.xlane.xlu0 %3828
    %v3830 = vsel %vm752, %v3808, 0.0
    %3831 = vadd.xlane.f32.xlu0 %v3830
    %v3832 = vpop.xlane.xlu0 %3831
    %v3833 = vrcp.pop %v3811
    %v3834 = vrcp.pop %v3814
    %v3835 = vrcp.pop %v3817
    %v3836 = vrcp.pop %v3820
    %v3837 = vrcp.pop %v3823
    %v3838 = vrcp.pop %v3826
    %v3839 = vrcp.pop %v3829
    %v3840 = vrcp.pop %v3832
    %v3841 = vmul.f32 %v3794, %v3833
    %v3842 = vmul.f32 %v3796, %v3834
    %v3843 = vmul.f32 %v3798, %v3835
    %v3844 = vmul.f32 %v3800, %v3836
    %v3845 = vmul.f32 %v3802, %v3837
    %v3846 = vmul.f32 %v3804, %v3838
    %v3847 = vmul.f32 %v3806, %v3839
    %v3848 = vmul.f32 %v3808, %v3840
    %v3850 = vsel %vm752, %v3841, 0
    %v3853 = vsel %vm752, %v3842, 0
    %v3856 = vsel %vm752, %v3843, 0
    %v3859 = vsel %vm752, %v3844, 0
    %v3862 = vsel %vm752, %v3845, 0
    %v3865 = vsel %vm752, %v3846, 0
    %v3868 = vsel %vm752, %v3847, 0
    %v3871 = vsel %vm752, %v3848, 0
    %3873 = vmatprep.subr.mxu0 0.0
    %3874 = vmatpush1.msra.mxu0 %v3607
    %3875 = vmatprep.subr.mxu0 0.0
    %3876 = vmatpush1.msra.mxu0 %v3608
    %3877 = vmatprep.subr.mxu0 0.0
    %3878 = vmatpush1.msra.mxu0 %v3609
    %3879 = vmatprep.subr.mxu0 0.0
    %3880 = vmatpush1.msra.mxu0 %v3610
    %3881 = vmatprep.subr.mxu0 0.0
    %3882 = vmatpush1.msra.mxu0 %v3611
    %3883 = vmatprep.subr.mxu0 0.0
    %3884 = vmatpush1.msra.mxu0 %v3612
    %3885 = vmatprep.subr.mxu0 0.0
    %3886 = vmatpush1.msra.mxu0 %v3613
    %3887 = vmatprep.subr.mxu0 0.0
    %3888 = vmatpush1.msra.mxu0 %v3614
    %3889 = vmatprep.subr.mxu0 0.0
    %3890 = vmatpush1.msra.mxu0 0.0
    %3891 = vmatprep.subr.mxu0 0.0
    %3892 = vmatpush1.msra.mxu0 0.0
    %3893 = vmatprep.subr.mxu0 0.0
    %3894 = vmatpush1.msra.mxu0 0.0
    %3895 = vmatprep.subr.mxu0 0.0
    %3896 = vmatpush1.msra.mxu0 0.0
    %3897 = vmatprep.subr.mxu0 0.0
    %3898 = vmatpush1.msra.mxu0 0.0
    %3899 = vmatprep.subr.mxu0 0.0
    %3900 = vmatpush1.msra.mxu0 0.0
    %3901 = vmatprep.subr.mxu0 0.0
    %3902 = vmatpush1.msra.mxu0 0.0
    %3903 = vmatprep.subr.mxu0 0.0
    %3904 = vmatpush1.msra.mxu0 0.0
    %3905 = vmatprep.subr.mxu0 0.0
    %3906 = vmatpush1.msra.mxu0 0.0
    %3907 = vmatprep.subr.mxu0 0.0
    %3908 = vmatpush1.msra.mxu0 0.0
    %3909 = vmatprep.subr.mxu0 0.0
    %3910 = vmatpush1.msra.mxu0 0.0
    %3911 = vmatprep.subr.mxu0 0.0
    %3912 = vmatpush1.msra.mxu0 0.0
    %3913 = vmatprep.subr.mxu0 0.0
    %3914 = vmatpush1.msra.mxu0 0.0
    %3915 = vmatprep.subr.mxu0 0.0
    %3916 = vmatpush1.msra.mxu0 0.0
    %3917 = vmatprep.subr.mxu0 0.0
    %3918 = vmatpush1.msra.mxu0 0.0
    %3919 = vmatprep.subr.mxu0 0.0
    %3920 = vmatpush1.msra.mxu0 0.0
    %3921 = vmatprep.subr.mxu0 0.0
    %3922 = vmatpush1.msra.mxu0 0.0
    %3923 = vmatprep.subr.mxu0 0.0
    %3924 = vmatpush1.msra.mxu0 0.0
    %3925 = vmatprep.subr.mxu0 0.0
    %3926 = vmatpush1.msra.mxu0 0.0
    %3927 = vmatprep.subr.mxu0 0.0
    %3928 = vmatpush1.msra.mxu0 0.0
    %3929 = vmatprep.subr.mxu0 0.0
    %3930 = vmatpush1.msra.mxu0 0.0
    %3931 = vmatprep.subr.mxu0 0.0
    %3932 = vmatpush1.msra.mxu0 0.0
    %3933 = vmatprep.subr.mxu0 0.0
    %3934 = vmatpush1.msra.mxu0 0.0
    %3935 = vmatprep.subr.mxu0 0.0
    %3936 = vmatpush1.msra.mxu0 0.0
    %3937 = vmatprep.mubr.f32.mxu0 0.0
    %3938 = vmatmul.mubr.f32.gmra.mrb[0].mxu0 %v3850
    %v3939 = vpop.f32.mrb[0].mxu0
    %v3940 = vadd.f32 0.0, %v3939
    %v3941 = vpop.f32.mrb[0].mxu0
    %3942 = vmatprep.mubr.f32.mxu0 0.0
    %3943 = vmatmul.mubr.f32.gmra.mrb[0].mxu0 %v3853
    %v3944 = vpop.f32.mrb[0].mxu0
    %v3945 = vadd.f32 0.0, %v3944
    %v3946 = vpop.f32.mrb[0].mxu0
    %3947 = vmatprep.mubr.f32.mxu0 0.0
    %3948 = vmatmul.mubr.f32.gmra.mrb[0].mxu0 %v3856
    %v3949 = vpop.f32.mrb[0].mxu0
    %v3950 = vadd.f32 0.0, %v3949
    %v3951 = vpop.f32.mrb[0].mxu0
    %3952 = vmatprep.mubr.f32.mxu0 0.0
    %3953 = vmatmul.mubr.f32.gmra.mrb[0].mxu0 %v3859
    %v3954 = vpop.f32.mrb[0].mxu0
    %v3955 = vadd.f32 0.0, %v3954
    %v3956 = vpop.f32.mrb[0].mxu0
    %3957 = vmatprep.mubr.f32.mxu0 0.0
    %3958 = vmatmul.mubr.f32.gmra.mrb[0].mxu0 %v3862
    %v3959 = vpop.f32.mrb[0].mxu0
    %v3960 = vadd.f32 0.0, %v3959
    %v3961 = vpop.f32.mrb[0].mxu0
    %3962 = vmatprep.mubr.f32.mxu0 0.0
    %3963 = vmatmul.mubr.f32.gmra.mrb[0].mxu0 %v3865
    %v3964 = vpop.f32.mrb[0].mxu0
    %v3965 = vadd.f32 0.0, %v3964
    %v3966 = vpop.f32.mrb[0].mxu0
    %3967 = vmatprep.mubr.f32.mxu0 0.0
    %3968 = vmatmul.mubr.f32.gmra.mrb[0].mxu0 %v3868
    %v3969 = vpop.f32.mrb[0].mxu0
    %v3970 = vadd.f32 0.0, %v3969
    %v3971 = vpop.f32.mrb[0].mxu0
    %3972 = vmatprep.mubr.f32.mxu0 0.0
    %3973 = vmatmul.mubr.f32.gmra.mrb[0].mxu0 %v3871
    %v3974 = vpop.f32.mrb[0].mxu0
    %v3975 = vadd.f32 0.0, %v3974
    %v3976 = vpop.f32.mrb[0].mxu0
    %3977 = vdwg.mxu0
    %v3978 = vadd.f32 %v3224, %v3940
    %v3979 = vadd.f32 %v3225, %v3945
    %v3980 = vadd.f32 %v3226, %v3950
    %v3981 = vadd.f32 %v3227, %v3955
    %v3982 = vadd.f32 %v3228, %v3960
    %v3983 = vadd.f32 %v3229, %v3965
    %v3984 = vadd.f32 %v3230, %v3970
    %v3985 = vadd.f32 %v3231, %v3975
    %v3987 = vsel %vm60, %v3598, 0
    %v3990 = vsel %vm60, %v3599, 0
    %v3993 = vsel %vm60, %v3600, 0
    %v3996 = vsel %vm60, %v3601, 0
    %v3999 = vsel %vm60, %v3602, 0
    %v4002 = vsel %vm60, %v3603, 0
    %v4005 = vsel %vm60, %v3604, 0
    %v4008 = vsel %vm60, %v3605, 0
    %4010 = vmatprep.subr.mxu0 0.0
    %4011 = vmatpush1.xpose.msra.mxu0 %v866
    %4012 = vmatprep.subr.mxu0 0.0
    %4013 = vmatpush1.xpose.msra.mxu0 %v869
    %4014 = vmatprep.subr.mxu0 0.0
    %4015 = vmatpush1.xpose.msra.mxu0 %v872
    %4016 = vmatprep.subr.mxu0 0.0
    %4017 = vmatpush1.xpose.msra.mxu0 %v875
    %4018 = vmatprep.subr.mxu0 0.0
    %4019 = vmatpush1.xpose.msra.mxu0 %v878
    %4020 = vmatprep.subr.mxu0 0.0
    %4021 = vmatpush1.xpose.msra.mxu0 %v881
    %4022 = vmatprep.subr.mxu0 0.0
    %4023 = vmatpush1.xpose.msra.mxu0 %v884
    %4024 = vmatprep.subr.mxu0 0.0
    %4025 = vmatpush1.xpose.msra.mxu0 %v887
    %4026 = vmatprep.subr.mxu0 0.0
    %4027 = vmatpush1.xpose.msra.mxu0 0.0
    %4028 = vmatprep.subr.mxu0 0.0
    %4029 = vmatpush1.xpose.msra.mxu0 0.0
    %4030 = vmatprep.subr.mxu0 0.0
    %4031 = vmatpush1.xpose.msra.mxu0 0.0
    %4032 = vmatprep.subr.mxu0 0.0
    %4033 = vmatpush1.xpose.msra.mxu0 0.0
    %4034 = vmatprep.subr.mxu0 0.0
    %4035 = vmatpush1.xpose.msra.mxu0 0.0
    %4036 = vmatprep.subr.mxu0 0.0
    %4037 = vmatpush1.xpose.msra.mxu0 0.0
    %4038 = vmatprep.subr.mxu0 0.0
    %4039 = vmatpush1.xpose.msra.mxu0 0.0
    %4040 = vmatprep.subr.mxu0 0.0
    %4041 = vmatpush1.xpose.msra.mxu0 0.0
    %4042 = vmatprep.subr.mxu0 0.0
    %4043 = vmatpush1.xpose.msra.mxu0 0.0
    %4044 = vmatprep.subr.mxu0 0.0
    %4045 = vmatpush1.xpose.msra.mxu0 0.0
    %4046 = vmatprep.subr.mxu0 0.0
    %4047 = vmatpush1.xpose.msra.mxu0 0.0
    %4048 = vmatprep.subr.mxu0 0.0
    %4049 = vmatpush1.xpose.msra.mxu0 0.0
    %4050 = vmatprep.subr.mxu0 0.0
    %4051 = vmatpush1.xpose.msra.mxu0 0.0
    %4052 = vmatprep.subr.mxu0 0.0
    %4053 = vmatpush1.xpose.msra.mxu0 0.0
    %4054 = vmatprep.subr.mxu0 0.0
    %4055 = vmatpush1.xpose.msra.mxu0 0.0
    %4056 = vmatprep.subr.mxu0 0.0
    %4057 = vmatpush1.xpose.msra.mxu0 0.0
    %4058 = vmatprep.subr.mxu0 0.0
    %4059 = vmatpush1.xpose.msra.mxu0 0.0
    %4060 = vmatprep.subr.mxu0 0.0
    %4061 = vmatpush1.xpose.msra.mxu0 0.0
    %4062 = vmatprep.subr.mxu0 0.0
    %4063 = vmatpush1.xpose.msra.mxu0 0.0
    %4064 = vmatprep.subr.mxu0 0.0
    %4065 = vmatpush1.xpose.msra.mxu0 0.0
    %4066 = vmatprep.subr.mxu0 0.0
    %4067 = vmatpush1.xpose.msra.mxu0 0.0
    %4068 = vmatprep.subr.mxu0 0.0
    %4069 = vmatpush1.xpose.msra.mxu0 0.0
    %4070 = vmatprep.subr.mxu0 0.0
    %4071 = vmatpush1.xpose.msra.mxu0 0.0
    %4072 = vmatprep.subr.mxu0 0.0
    %4073 = vmatpush1.xpose.msra.mxu0 0.0
    %4074 = vmatprep.mubr.f32.mxu0 0.0
    %4075 = vmatmul.mubr.f32.gmra.mrb[0].mxu0 %v3987
    %v4076 = vpop.f32.mrb[0].mxu0
    %v4077 = vadd.f32 %v3624, %v4076
    %v4078 = vpop.f32.mrb[0].mxu0
    %4079 = vmatprep.mubr.f32.mxu0 0.0
    %4080 = vmatmul.mubr.f32.gmra.mrb[0].mxu0 %v3990
    %v4081 = vpop.f32.mrb[0].mxu0
    %v4082 = vadd.f32 %v3625, %v4081
    %v4083 = vpop.f32.mrb[0].mxu0
    %4084 = vmatprep.mubr.f32.mxu0 0.0
    %4085 = vmatmul.mubr.f32.gmra.mrb[0].mxu0 %v3993
    %v4086 = vpop.f32.mrb[0].mxu0
    %v4087 = vadd.f32 %v3626, %v4086
    %v4088 = vpop.f32.mrb[0].mxu0
    %4089 = vmatprep.mubr.f32.mxu0 0.0
    %4090 = vmatmul.mubr.f32.gmra.mrb[0].mxu0 %v3996
    %v4091 = vpop.f32.mrb[0].mxu0
    %v4092 = vadd.f32 %v3627, %v4091
    %v4093 = vpop.f32.mrb[0].mxu0
    %4094 = vmatprep.mubr.f32.mxu0 0.0
    %4095 = vmatmul.mubr.f32.gmra.mrb[0].mxu0 %v3999
    %v4096 = vpop.f32.mrb[0].mxu0
    %v4097 = vadd.f32 %v3628, %v4096
    %v4098 = vpop.f32.mrb[0].mxu0
    %4099 = vmatprep.mubr.f32.mxu0 0.0
    %4100 = vmatmul.mubr.f32.gmra.mrb[0].mxu0 %v4002
    %v4101 = vpop.f32.mrb[0].mxu0
    %v4102 = vadd.f32 %v3629, %v4101
    %v4103 = vpop.f32.mrb[0].mxu0
    %4104 = vmatprep.mubr.f32.mxu0 0.0
    %4105 = vmatmul.mubr.f32.gmra.mrb[0].mxu0 %v4005
    %v4106 = vpop.f32.mrb[0].mxu0
    %v4107 = vadd.f32 %v3630, %v4106
    %v4108 = vpop.f32.mrb[0].mxu0
    %4109 = vmatprep.mubr.f32.mxu0 0.0
    %4110 = vmatmul.mubr.f32.gmra.mrb[0].mxu0 %v4008
    %v4111 = vpop.f32.mrb[0].mxu0
    %v4112 = vadd.f32 %v3631, %v4111
    %v4113 = vpop.f32.mrb[0].mxu0
    %4114 = vdwg.mxu0
    %v4115 = vsel %vm752, %v4077, -inf
    %4116 = vmax.xlane.f32.xlu0 %v4115
    %v4117 = vpop.xlane.xlu0 %4116
    %v4118 = vsel %vm752, %v4082, -inf
    %4119 = vmax.xlane.f32.xlu0 %v4118
    %v4120 = vpop.xlane.xlu0 %4119
    %v4121 = vsel %vm752, %v4087, -inf
    %4122 = vmax.xlane.f32.xlu0 %v4121
    %v4123 = vpop.xlane.xlu0 %4122
    %v4124 = vsel %vm752, %v4092, -inf
    %4125 = vmax.xlane.f32.xlu0 %v4124
    %v4126 = vpop.xlane.xlu0 %4125
    %v4127 = vsel %vm752, %v4097, -inf
    %4128 = vmax.xlane.f32.xlu0 %v4127
    %v4129 = vpop.xlane.xlu0 %4128
    %v4130 = vsel %vm752, %v4102, -inf
    %4131 = vmax.xlane.f32.xlu0 %v4130
    %v4132 = vpop.xlane.xlu0 %4131
    %v4133 = vsel %vm752, %v4107, -inf
    %4134 = vmax.xlane.f32.xlu0 %v4133
    %v4135 = vpop.xlane.xlu0 %4134
    %v4136 = vsel %vm752, %v4112, -inf
    %4137 = vmax.xlane.f32.xlu0 %v4136
    %v4138 = vpop.xlane.xlu0 %4137
    %v4139 = vsub.f32 %v4077, %v4117
    %v4140 = vsub.f32 %v4082, %v4120
    %v4141 = vsub.f32 %v4087, %v4123
    %v4142 = vsub.f32 %v4092, %v4126
    %v4143 = vsub.f32 %v4097, %v4129
    %v4144 = vsub.f32 %v4102, %v4132
    %v4145 = vsub.f32 %v4107, %v4135
    %v4146 = vsub.f32 %v4112, %v4138
    %v4147 = vmul.f32 %v4139, 1.442695
    %v4148 = vpow.pop %v4147
    %v4149 = vmul.f32 %v4140, 1.442695
    %v4150 = vpow.pop %v4149
    %v4151 = vmul.f32 %v4141, 1.442695
    %v4152 = vpow.pop %v4151
    %v4153 = vmul.f32 %v4142, 1.442695
    %v4154 = vpow.pop %v4153
    %v4155 = vmul.f32 %v4143, 1.442695
    %v4156 = vpow.pop %v4155
    %v4157 = vmul.f32 %v4144, 1.442695
    %v4158 = vpow.pop %v4157
    %v4159 = vmul.f32 %v4145, 1.442695
    %v4160 = vpow.pop %v4159
    %v4161 = vmul.f32 %v4146, 1.442695
    %v4162 = vpow.pop %v4161
    %v4163 = vsel %vm752, %v4148, 0.0
    %4164 = vadd.xlane.f32.xlu0 %v4163
    %v4165 = vpop.xlane.xlu0 %4164
    %v4166 = vsel %vm752, %v4150, 0.0
    %4167 = vadd.xlane.f32.xlu0 %v4166
    %v4168 = vpop.xlane.xlu0 %4167
    %v4169 = vsel %vm752, %v4152, 0.0
    %4170 = vadd.xlane.f32.xlu0 %v4169
    %v4171 = vpop.xlane.xlu0 %4170
    %v4172 = vsel %vm752, %v4154, 0.0
    %4173 = vadd.xlane.f32.xlu0 %v4172
    %v4174 = vpop.xlane.xlu0 %4173
    %v4175 = vsel %vm752, %v4156, 0.0
    %4176 = vadd.xlane.f32.xlu0 %v4175
    %v4177 = vpop.xlane.xlu0 %4176
    %v4178 = vsel %vm752, %v4158, 0.0
    %4179 = vadd.xlane.f32.xlu0 %v4178
    %v4180 = vpop.xlane.xlu0 %4179
    %v4181 = vsel %vm752, %v4160, 0.0
    %4182 = vadd.xlane.f32.xlu0 %v4181
    %v4183 = vpop.xlane.xlu0 %4182
    %v4184 = vsel %vm752, %v4162, 0.0
    %4185 = vadd.xlane.f32.xlu0 %v4184
    %v4186 = vpop.xlane.xlu0 %4185
    %v4187 = vrcp.pop %v4165
    %v4188 = vrcp.pop %v4168
    %v4189 = vrcp.pop %v4171
    %v4190 = vrcp.pop %v4174
    %v4191 = vrcp.pop %v4177
    %v4192 = vrcp.pop %v4180
    %v4193 = vrcp.pop %v4183
    %v4194 = vrcp.pop %v4186
    %v4195 = vmul.f32 %v4148, %v4187
    %v4196 = vmul.f32 %v4150, %v4188
    %v4197 = vmul.f32 %v4152, %v4189
    %v4198 = vmul.f32 %v4154, %v4190
    %v4199 = vmul.f32 %v4156, %v4191
    %v4200 = vmul.f32 %v4158, %v4192
    %v4201 = vmul.f32 %v4160, %v4193
    %v4202 = vmul.f32 %v4162, %v4194
    %v4204 = vsel %vm752, %v4195, 0
    %v4207 = vsel %vm752, %v4196, 0
    %v4210 = vsel %vm752, %v4197, 0
    %v4213 = vsel %vm752, %v4198, 0
    %v4216 = vsel %vm752, %v4199, 0
    %v4219 = vsel %vm752, %v4200, 0
    %v4222 = vsel %vm752, %v4201, 0
    %v4225 = vsel %vm752, %v4202, 0
    %4227 = vmatprep.subr.mxu0 0.0
    %4228 = vmatpush1.msra.mxu0 %v3615
    %4229 = vmatprep.subr.mxu0 0.0
    %4230 = vmatpush1.msra.mxu0 %v3616
    %4231 = vmatprep.subr.mxu0 0.0
    %4232 = vmatpush1.msra.mxu0 %v3617
    %4233 = vmatprep.subr.mxu0 0.0
    %4234 = vmatpush1.msra.mxu0 %v3618
    %4235 = vmatprep.subr.mxu0 0.0
    %4236 = vmatpush1.msra.mxu0 %v3619
    %4237 = vmatprep.subr.mxu0 0.0
    %4238 = vmatpush1.msra.mxu0 %v3620
    %4239 = vmatprep.subr.mxu0 0.0
    %4240 = vmatpush1.msra.mxu0 %v3621
    %4241 = vmatprep.subr.mxu0 0.0
    %4242 = vmatpush1.msra.mxu0 %v3622
    %4243 = vmatprep.subr.mxu0 0.0
    %4244 = vmatpush1.msra.mxu0 0.0
    %4245 = vmatprep.subr.mxu0 0.0
    %4246 = vmatpush1.msra.mxu0 0.0
    %4247 = vmatprep.subr.mxu0 0.0
    %4248 = vmatpush1.msra.mxu0 0.0
    %4249 = vmatprep.subr.mxu0 0.0
    %4250 = vmatpush1.msra.mxu0 0.0
    %4251 = vmatprep.subr.mxu0 0.0
    %4252 = vmatpush1.msra.mxu0 0.0
    %4253 = vmatprep.subr.mxu0 0.0
    %4254 = vmatpush1.msra.mxu0 0.0
    %4255 = vmatprep.subr.mxu0 0.0
    %4256 = vmatpush1.msra.mxu0 0.0
    %4257 = vmatprep.subr.mxu0 0.0
    %4258 = vmatpush1.msra.mxu0 0.0
    %4259 = vmatprep.subr.mxu0 0.0
    %4260 = vmatpush1.msra.mxu0 0.0
    %4261 = vmatprep.subr.mxu0 0.0
    %4262 = vmatpush1.msra.mxu0 0.0
    %4263 = vmatprep.subr.mxu0 0.0
    %4264 = vmatpush1.msra.mxu0 0.0
    %4265 = vmatprep.subr.mxu0 0.0
    %4266 = vmatpush1.msra.mxu0 0.0
    %4267 = vmatprep.subr.mxu0 0.0
    %4268 = vmatpush1.msra.mxu0 0.0
    %4269 = vmatprep.subr.mxu0 0.0
    %4270 = vmatpush1.msra.mxu0 0.0
    %4271 = vmatprep.subr.mxu0 0.0
    %4272 = vmatpush1.msra.mxu0 0.0
    %4273 = vmatprep.subr.mxu0 0.0
    %4274 = vmatpush1.msra.mxu0 0.0
    %4275 = vmatprep.subr.mxu0 0.0
    %4276 = vmatpush1.msra.mxu0 0.0
    %4277 = vmatprep.subr.mxu0 0.0
    %4278 = vmatpush1.msra.mxu0 0.0
    %4279 = vmatprep.subr.mxu0 0.0
    %4280 = vmatpush1.msra.mxu0 0.0
    %4281 = vmatprep.subr.mxu0 0.0
    %4282 = vmatpush1.msra.mxu0 0.0
    %4283 = vmatprep.subr.mxu0 0.0
    %4284 = vmatpush1.msra.mxu0 0.0
    %4285 = vmatprep.subr.mxu0 0.0
    %4286 = vmatpush1.msra.mxu0 0.0
    %4287 = vmatprep.subr.mxu0 0.0
    %4288 = vmatpush1.msra.mxu0 0.0
    %4289 = vmatprep.subr.mxu0 0.0
    %4290 = vmatpush1.msra.mxu0 0.0
    %4291 = vmatprep.mubr.f32.mxu0 0.0
    %4292 = vmatmul.mubr.f32.gmra.mrb[0].mxu0 %v4204
    %v4293 = vpop.f32.mrb[0].mxu0
    %v4294 = vadd.f32 0.0, %v4293
    %v4295 = vpop.f32.mrb[0].mxu0
    %4296 = vmatprep.mubr.f32.mxu0 0.0
    %4297 = vmatmul.mubr.f32.gmra.mrb[0].mxu0 %v4207
    %v4298 = vpop.f32.mrb[0].mxu0
    %v4299 = vadd.f32 0.0, %v4298
    %v4300 = vpop.f32.mrb[0].mxu0
    %4301 = vmatprep.mubr.f32.mxu0 0.0
    %4302 = vmatmul.mubr.f32.gmra.mrb[0].mxu0 %v4210
    %v4303 = vpop.f32.mrb[0].mxu0
    %v4304 = vadd.f32 0.0, %v4303
    %v4305 = vpop.f32.mrb[0].mxu0
    %4306 = vmatprep.mubr.f32.mxu0 0.0
    %4307 = vmatmul.mubr.f32.gmra.mrb[0].mxu0 %v4213
    %v4308 = vpop.f32.mrb[0].mxu0
    %v4309 = vadd.f32 0.0, %v4308
    %v4310 = vpop.f32.mrb[0].mxu0
    %4311 = vmatprep.mubr.f32.mxu0 0.0
    %4312 = vmatmul.mubr.f32.gmra.mrb[0].mxu0 %v4216
    %v4313 = vpop.f32.mrb[0].mxu0
    %v4314 = vadd.f32 0.0, %v4313
    %v4315 = vpop.f32.mrb[0].mxu0
    %4316 = vmatprep.mubr.f32.mxu0 0.0
    %4317 = vmatmul.mubr.f32.gmra.mrb[0].mxu0 %v4219
    %v4318 = vpop.f32.mrb[0].mxu0
    %v4319 = vadd.f32 0.0, %v4318
    %v4320 = vpop.f32.mrb[0].mxu0
    %4321 = vmatprep.mubr.f32.mxu0 0.0
    %4322 = vmatmul.mubr.f32.gmra.mrb[0].mxu0 %v4222
    %v4323 = vpop.f32.mrb[0].mxu0
    %v4324 = vadd.f32 0.0, %v4323
    %v4325 = vpop.f32.mrb[0].mxu0
    %4326 = vmatprep.mubr.f32.mxu0 0.0
    %4327 = vmatmul.mubr.f32.gmra.mrb[0].mxu0 %v4225
    %v4328 = vpop.f32.mrb[0].mxu0
    %v4329 = vadd.f32 0.0, %v4328
    %v4330 = vpop.f32.mrb[0].mxu0
    %4331 = vdwg.mxu0
    %v4332 = vadd.f32 %v3578, %v4294
    %v4333 = vadd.f32 %v3579, %v4299
    %v4334 = vadd.f32 %v3580, %v4304
    %v4335 = vadd.f32 %v3581, %v4309
    %v4336 = vadd.f32 %v3582, %v4314
    %v4337 = vadd.f32 %v3583, %v4319
    %v4338 = vadd.f32 %v3584, %v4324
    %v4339 = vadd.f32 %v3585, %v4329
    %vm4340 = vcmp.ge.s32.totalorder %v553, 20
    %vm4341 = vcmp.lt.s32.totalorder %v553, 24
    %vm4342 = vmand %vm4340, %vm4341
    %v4343 = vsel %vm4342, 0.5, 0.0
    %v4344 = vmul.f32 %v176, %v4343
    %v4345 = vmul.f32 %v181, %v4343
    %v4346 = vmul.f32 %v186, %v4343
    %v4347 = vmul.f32 %v191, %v4343
    %v4348 = vmul.f32 %v196, %v4343
    %v4349 = vmul.f32 %v201, %v4343
    %v4350 = vmul.f32 %v206, %v4343
    %v4351 = vmul.f32 %v211, %v4343
    %v4352 = vmul.f32 %v216, %v4343
    %v4353 = vmul.f32 %v221, %v4343
    %v4354 = vmul.f32 %v226, %v4343
    %v4355 = vmul.f32 %v231, %v4343
    %v4356 = vmul.f32 %v236, %v4343
    %v4357 = vmul.f32 %v241, %v4343
    %v4358 = vmul.f32 %v246, %v4343
    %v4359 = vmul.f32 %v251, %v4343
    %v4360 = vsel %vm4342, 1.0, 0.0
    %v4361 = vmul.f32 %v474, %v4360
    %v4362 = vmul.f32 %v479, %v4360
    %v4363 = vmul.f32 %v484, %v4360
    %v4364 = vmul.f32 %v489, %v4360
    %v4365 = vmul.f32 %v494, %v4360
    %v4366 = vmul.f32 %v499, %v4360
    %v4367 = vmul.f32 %v504, %v4360
    %v4368 = vmul.f32 %v509, %v4360
    %v4369 = vmul.f32 %v514, %v4360
    %v4370 = vmul.f32 %v519, %v4360
    %v4371 = vmul.f32 %v524, %v4360
    %v4372 = vmul.f32 %v529, %v4360
    %v4373 = vmul.f32 %v534, %v4360
    %v4374 = vmul.f32 %v539, %v4360
    %v4375 = vmul.f32 %v544, %v4360
    %v4376 = vmul.f32 %v549, %v4360
    %s4377 = scalar_lea.vmem [#allocation2], 320
    %v4378 = vld [vmem:[%s4377] sm:$0xff]
    %v4379 = vld [vmem:[%s4377 + $0x8] sm:$0xff]
    %v4380 = vld [vmem:[%s4377 + $0x10] sm:$0xff]
    %v4381 = vld [vmem:[%s4377 + $0x18] sm:$0xff]
    %v4382 = vld [vmem:[%s4377 + $0x20] sm:$0xff]
    %v4383 = vld [vmem:[%s4377 + $0x28] sm:$0xff]
    %v4384 = vld [vmem:[%s4377 + $0x30] sm:$0xff]
    %v4385 = vld [vmem:[%s4377 + $0x38] sm:$0xff]
    %v4387 = vsel %vm60, %v4344, 0
    %v4390 = vsel %vm60, %v4345, 0
    %v4393 = vsel %vm60, %v4346, 0
    %v4396 = vsel %vm60, %v4347, 0
    %v4399 = vsel %vm60, %v4348, 0
    %v4402 = vsel %vm60, %v4349, 0
    %v4405 = vsel %vm60, %v4350, 0
    %v4408 = vsel %vm60, %v4351, 0
    %4410 = vmatprep.subr.mxu0 0.0
    %4411 = vmatpush1.xpose.msra.mxu0 %v624
    %4412 = vmatprep.subr.mxu0 0.0
    %4413 = vmatpush1.xpose.msra.mxu0 %v627
    %4414 = vmatprep.subr.mxu0 0.0
    %4415 = vmatpush1.xpose.msra.mxu0 %v630
    %4416 = vmatprep.subr.mxu0 0.0
    %4417 = vmatpush1.xpose.msra.mxu0 %v633
    %4418 = vmatprep.subr.mxu0 0.0
    %4419 = vmatpush1.xpose.msra.mxu0 %v636
    %4420 = vmatprep.subr.mxu0 0.0
    %4421 = vmatpush1.xpose.msra.mxu0 %v639
    %4422 = vmatprep.subr.mxu0 0.0
    %4423 = vmatpush1.xpose.msra.mxu0 %v642
    %4424 = vmatprep.subr.mxu0 0.0
    %4425 = vmatpush1.xpose.msra.mxu0 %v645
    %4426 = vmatprep.subr.mxu0 0.0
    %4427 = vmatpush1.xpose.msra.mxu0 0.0
    %4428 = vmatprep.subr.mxu0 0.0
    %4429 = vmatpush1.xpose.msra.mxu0 0.0
    %4430 = vmatprep.subr.mxu0 0.0
    %4431 = vmatpush1.xpose.msra.mxu0 0.0
    %4432 = vmatprep.subr.mxu0 0.0
    %4433 = vmatpush1.xpose.msra.mxu0 0.0
    %4434 = vmatprep.subr.mxu0 0.0
    %4435 = vmatpush1.xpose.msra.mxu0 0.0
    %4436 = vmatprep.subr.mxu0 0.0
    %4437 = vmatpush1.xpose.msra.mxu0 0.0
    %4438 = vmatprep.subr.mxu0 0.0
    %4439 = vmatpush1.xpose.msra.mxu0 0.0
    %4440 = vmatprep.subr.mxu0 0.0
    %4441 = vmatpush1.xpose.msra.mxu0 0.0
    %4442 = vmatprep.subr.mxu0 0.0
    %4443 = vmatpush1.xpose.msra.mxu0 0.0
    %4444 = vmatprep.subr.mxu0 0.0
    %4445 = vmatpush1.xpose.msra.mxu0 0.0
    %4446 = vmatprep.subr.mxu0 0.0
    %4447 = vmatpush1.xpose.msra.mxu0 0.0
    %4448 = vmatprep.subr.mxu0 0.0
    %4449 = vmatpush1.xpose.msra.mxu0 0.0
    %4450 = vmatprep.subr.mxu0 0.0
    %4451 = vmatpush1.xpose.msra.mxu0 0.0
    %4452 = vmatprep.subr.mxu0 0.0
    %4453 = vmatpush1.xpose.msra.mxu0 0.0
    %4454 = vmatprep.subr.mxu0 0.0
    %4455 = vmatpush1.xpose.msra.mxu0 0.0
    %4456 = vmatprep.subr.mxu0 0.0
    %4457 = vmatpush1.xpose.msra.mxu0 0.0
    %4458 = vmatprep.subr.mxu0 0.0
    %4459 = vmatpush1.xpose.msra.mxu0 0.0
    %4460 = vmatprep.subr.mxu0 0.0
    %4461 = vmatpush1.xpose.msra.mxu0 0.0
    %4462 = vmatprep.subr.mxu0 0.0
    %4463 = vmatpush1.xpose.msra.mxu0 0.0
    %4464 = vmatprep.subr.mxu0 0.0
    %4465 = vmatpush1.xpose.msra.mxu0 0.0
    %4466 = vmatprep.subr.mxu0 0.0
    %4467 = vmatpush1.xpose.msra.mxu0 0.0
    %4468 = vmatprep.subr.mxu0 0.0
    %4469 = vmatpush1.xpose.msra.mxu0 0.0
    %4470 = vmatprep.subr.mxu0 0.0
    %4471 = vmatpush1.xpose.msra.mxu0 0.0
    %4472 = vmatprep.subr.mxu0 0.0
    %4473 = vmatpush1.xpose.msra.mxu0 0.0
    %4474 = vmatprep.mubr.f32.mxu0 0.0
    %4475 = vmatmul.mubr.f32.gmra.mrb[0].mxu0 %v4387
    %v4476 = vpop.f32.mrb[0].mxu0
    %v4477 = vadd.f32 %v4378, %v4476
    %v4478 = vpop.f32.mrb[0].mxu0
    %4479 = vmatprep.mubr.f32.mxu0 0.0
    %4480 = vmatmul.mubr.f32.gmra.mrb[0].mxu0 %v4390
    %v4481 = vpop.f32.mrb[0].mxu0
    %v4482 = vadd.f32 %v4379, %v4481
    %v4483 = vpop.f32.mrb[0].mxu0
    %4484 = vmatprep.mubr.f32.mxu0 0.0
    %4485 = vmatmul.mubr.f32.gmra.mrb[0].mxu0 %v4393
    %v4486 = vpop.f32.mrb[0].mxu0
    %v4487 = vadd.f32 %v4380, %v4486
    %v4488 = vpop.f32.mrb[0].mxu0
    %4489 = vmatprep.mubr.f32.mxu0 0.0
    %4490 = vmatmul.mubr.f32.gmra.mrb[0].mxu0 %v4396
    %v4491 = vpop.f32.mrb[0].mxu0
    %v4492 = vadd.f32 %v4381, %v4491
    %v4493 = vpop.f32.mrb[0].mxu0
    %4494 = vmatprep.mubr.f32.mxu0 0.0
    %4495 = vmatmul.mubr.f32.gmra.mrb[0].mxu0 %v4399
    %v4496 = vpop.f32.mrb[0].mxu0
    %v4497 = vadd.f32 %v4382, %v4496
    %v4498 = vpop.f32.mrb[0].mxu0
    %4499 = vmatprep.mubr.f32.mxu0 0.0
    %4500 = vmatmul.mubr.f32.gmra.mrb[0].mxu0 %v4402
    %v4501 = vpop.f32.mrb[0].mxu0
    %v4502 = vadd.f32 %v4383, %v4501
    %v4503 = vpop.f32.mrb[0].mxu0
    %4504 = vmatprep.mubr.f32.mxu0 0.0
    %4505 = vmatmul.mubr.f32.gmra.mrb[0].mxu0 %v4405
    %v4506 = vpop.f32.mrb[0].mxu0
    %v4507 = vadd.f32 %v4384, %v4506
    %v4508 = vpop.f32.mrb[0].mxu0
    %4509 = vmatprep.mubr.f32.mxu0 0.0
    %4510 = vmatmul.mubr.f32.gmra.mrb[0].mxu0 %v4408
    %v4511 = vpop.f32.mrb[0].mxu0
    %v4512 = vadd.f32 %v4385, %v4511
    %v4513 = vpop.f32.mrb[0].mxu0
    %4514 = vdwg.mxu0
    %v4515 = vsel %vm752, %v4477, -inf
    %4516 = vmax.xlane.f32.xlu0 %v4515
    %v4517 = vpop.xlane.xlu0 %4516
    %v4518 = vsel %vm752, %v4482, -inf
    %4519 = vmax.xlane.f32.xlu0 %v4518
    %v4520 = vpop.xlane.xlu0 %4519
    %v4521 = vsel %vm752, %v4487, -inf
    %4522 = vmax.xlane.f32.xlu0 %v4521
    %v4523 = vpop.xlane.xlu0 %4522
    %v4524 = vsel %vm752, %v4492, -inf
    %4525 = vmax.xlane.f32.xlu0 %v4524
    %v4526 = vpop.xlane.xlu0 %4525
    %v4527 = vsel %vm752, %v4497, -inf
    %4528 = vmax.xlane.f32.xlu0 %v4527
    %v4529 = vpop.xlane.xlu0 %4528
    %v4530 = vsel %vm752, %v4502, -inf
    %4531 = vmax.xlane.f32.xlu0 %v4530
    %v4532 = vpop.xlane.xlu0 %4531
    %v4533 = vsel %vm752, %v4507, -inf
    %4534 = vmax.xlane.f32.xlu0 %v4533
    %v4535 = vpop.xlane.xlu0 %4534
    %v4536 = vsel %vm752, %v4512, -inf
    %4537 = vmax.xlane.f32.xlu0 %v4536
    %v4538 = vpop.xlane.xlu0 %4537
    %v4539 = vsub.f32 %v4477, %v4517
    %v4540 = vsub.f32 %v4482, %v4520
    %v4541 = vsub.f32 %v4487, %v4523
    %v4542 = vsub.f32 %v4492, %v4526
    %v4543 = vsub.f32 %v4497, %v4529
    %v4544 = vsub.f32 %v4502, %v4532
    %v4545 = vsub.f32 %v4507, %v4535
    %v4546 = vsub.f32 %v4512, %v4538
    %v4547 = vmul.f32 %v4539, 1.442695
    %v4548 = vpow.pop %v4547
    %v4549 = vmul.f32 %v4540, 1.442695
    %v4550 = vpow.pop %v4549
    %v4551 = vmul.f32 %v4541, 1.442695
    %v4552 = vpow.pop %v4551
    %v4553 = vmul.f32 %v4542, 1.442695
    %v4554 = vpow.pop %v4553
    %v4555 = vmul.f32 %v4543, 1.442695
    %v4556 = vpow.pop %v4555
    %v4557 = vmul.f32 %v4544, 1.442695
    %v4558 = vpow.pop %v4557
    %v4559 = vmul.f32 %v4545, 1.442695
    %v4560 = vpow.pop %v4559
    %v4561 = vmul.f32 %v4546, 1.442695
    %v4562 = vpow.pop %v4561
    %v4563 = vsel %vm752, %v4548, 0.0
    %4564 = vadd.xlane.f32.xlu0 %v4563
    %v4565 = vpop.xlane.xlu0 %4564
    %v4566 = vsel %vm752, %v4550, 0.0
    %4567 = vadd.xlane.f32.xlu0 %v4566
    %v4568 = vpop.xlane.xlu0 %4567
    %v4569 = vsel %vm752, %v4552, 0.0
    %4570 = vadd.xlane.f32.xlu0 %v4569
    %v4571 = vpop.xlane.xlu0 %4570
    %v4572 = vsel %vm752, %v4554, 0.0
    %4573 = vadd.xlane.f32.xlu0 %v4572
    %v4574 = vpop.xlane.xlu0 %4573
    %v4575 = vsel %vm752, %v4556, 0.0
    %4576 = vadd.xlane.f32.xlu0 %v4575
    %v4577 = vpop.xlane.xlu0 %4576
    %v4578 = vsel %vm752, %v4558, 0.0
    %4579 = vadd.xlane.f32.xlu0 %v4578
    %v4580 = vpop.xlane.xlu0 %4579
    %v4581 = vsel %vm752, %v4560, 0.0
    %4582 = vadd.xlane.f32.xlu0 %v4581
    %v4583 = vpop.xlane.xlu0 %4582
    %v4584 = vsel %vm752, %v4562, 0.0
    %4585 = vadd.xlane.f32.xlu0 %v4584
    %v4586 = vpop.xlane.xlu0 %4585
    %v4587 = vrcp.pop %v4565
    %v4588 = vrcp.pop %v4568
    %v4589 = vrcp.pop %v4571
    %v4590 = vrcp.pop %v4574
    %v4591 = vrcp.pop %v4577
    %v4592 = vrcp.pop %v4580
    %v4593 = vrcp.pop %v4583
    %v4594 = vrcp.pop %v4586
    %v4595 = vmul.f32 %v4548, %v4587
    %v4596 = vmul.f32 %v4550, %v4588
    %v4597 = vmul.f32 %v4552, %v4589
    %v4598 = vmul.f32 %v4554, %v4590
    %v4599 = vmul.f32 %v4556, %v4591
    %v4600 = vmul.f32 %v4558, %v4592
    %v4601 = vmul.f32 %v4560, %v4593
    %v4602 = vmul.f32 %v4562, %v4594
    %v4604 = vsel %vm752, %v4595, 0
    %v4607 = vsel %vm752, %v4596, 0
    %v4610 = vsel %vm752, %v4597, 0
    %v4613 = vsel %vm752, %v4598, 0
    %v4616 = vsel %vm752, %v4599, 0
    %v4619 = vsel %vm752, %v4600, 0
    %v4622 = vsel %vm752, %v4601, 0
    %v4625 = vsel %vm752, %v4602, 0
    %4627 = vmatprep.subr.mxu0 0.0
    %4628 = vmatpush1.msra.mxu0 %v4361
    %4629 = vmatprep.subr.mxu0 0.0
    %4630 = vmatpush1.msra.mxu0 %v4362
    %4631 = vmatprep.subr.mxu0 0.0
    %4632 = vmatpush1.msra.mxu0 %v4363
    %4633 = vmatprep.subr.mxu0 0.0
    %4634 = vmatpush1.msra.mxu0 %v4364
    %4635 = vmatprep.subr.mxu0 0.0
    %4636 = vmatpush1.msra.mxu0 %v4365
    %4637 = vmatprep.subr.mxu0 0.0
    %4638 = vmatpush1.msra.mxu0 %v4366
    %4639 = vmatprep.subr.mxu0 0.0
    %4640 = vmatpush1.msra.mxu0 %v4367
    %4641 = vmatprep.subr.mxu0 0.0
    %4642 = vmatpush1.msra.mxu0 %v4368
    %4643 = vmatprep.subr.mxu0 0.0
    %4644 = vmatpush1.msra.mxu0 0.0
    %4645 = vmatprep.subr.mxu0 0.0
    %4646 = vmatpush1.msra.mxu0 0.0
    %4647 = vmatprep.subr.mxu0 0.0
    %4648 = vmatpush1.msra.mxu0 0.0
    %4649 = vmatprep.subr.mxu0 0.0
    %4650 = vmatpush1.msra.mxu0 0.0
    %4651 = vmatprep.subr.mxu0 0.0
    %4652 = vmatpush1.msra.mxu0 0.0
    %4653 = vmatprep.subr.mxu0 0.0
    %4654 = vmatpush1.msra.mxu0 0.0
    %4655 = vmatprep.subr.mxu0 0.0
    %4656 = vmatpush1.msra.mxu0 0.0
    %4657 = vmatprep.subr.mxu0 0.0
    %4658 = vmatpush1.msra.mxu0 0.0
    %4659 = vmatprep.subr.mxu0 0.0
    %4660 = vmatpush1.msra.mxu0 0.0
    %4661 = vmatprep.subr.mxu0 0.0
    %4662 = vmatpush1.msra.mxu0 0.0
    %4663 = vmatprep.subr.mxu0 0.0
    %4664 = vmatpush1.msra.mxu0 0.0
    %4665 = vmatprep.subr.mxu0 0.0
    %4666 = vmatpush1.msra.mxu0 0.0
    %4667 = vmatprep.subr.mxu0 0.0
    %4668 = vmatpush1.msra.mxu0 0.0
    %4669 = vmatprep.subr.mxu0 0.0
    %4670 = vmatpush1.msra.mxu0 0.0
    %4671 = vmatprep.subr.mxu0 0.0
    %4672 = vmatpush1.msra.mxu0 0.0
    %4673 = vmatprep.subr.mxu0 0.0
    %4674 = vmatpush1.msra.mxu0 0.0
    %4675 = vmatprep.subr.mxu0 0.0
    %4676 = vmatpush1.msra.mxu0 0.0
    %4677 = vmatprep.subr.mxu0 0.0
    %4678 = vmatpush1.msra.mxu0 0.0
    %4679 = vmatprep.subr.mxu0 0.0
    %4680 = vmatpush1.msra.mxu0 0.0
    %4681 = vmatprep.subr.mxu0 0.0
    %4682 = vmatpush1.msra.mxu0 0.0
    %4683 = vmatprep.subr.mxu0 0.0
    %4684 = vmatpush1.msra.mxu0 0.0
    %4685 = vmatprep.subr.mxu0 0.0
    %4686 = vmatpush1.msra.mxu0 0.0
    %4687 = vmatprep.subr.mxu0 0.0
    %4688 = vmatpush1.msra.mxu0 0.0
    %4689 = vmatprep.subr.mxu0 0.0
    %4690 = vmatpush1.msra.mxu0 0.0
    %4691 = vmatprep.mubr.f32.mxu0 0.0
    %4692 = vmatmul.mubr.f32.gmra.mrb[0].mxu0 %v4604
    %v4693 = vpop.f32.mrb[0].mxu0
    %v4694 = vadd.f32 0.0, %v4693
    %v4695 = vpop.f32.mrb[0].mxu0
    %4696 = vmatprep.mubr.f32.mxu0 0.0
    %4697 = vmatmul.mubr.f32.gmra.mrb[0].mxu0 %v4607
    %v4698 = vpop.f32.mrb[0].mxu0
    %v4699 = vadd.f32 0.0, %v4698
    %v4700 = vpop.f32.mrb[0].mxu0
    %4701 = vmatprep.mubr.f32.mxu0 0.0
    %4702 = vmatmul.mubr.f32.gmra.mrb[0].mxu0 %v4610
    %v4703 = vpop.f32.mrb[0].mxu0
    %v4704 = vadd.f32 0.0, %v4703
    %v4705 = vpop.f32.mrb[0].mxu0
    %4706 = vmatprep.mubr.f32.mxu0 0.0
    %4707 = vmatmul.mubr.f32.gmra.mrb[0].mxu0 %v4613
    %v4708 = vpop.f32.mrb[0].mxu0
    %v4709 = vadd.f32 0.0, %v4708
    %v4710 = vpop.f32.mrb[0].mxu0
    %4711 = vmatprep.mubr.f32.mxu0 0.0
    %4712 = vmatmul.mubr.f32.gmra.mrb[0].mxu0 %v4616
    %v4713 = vpop.f32.mrb[0].mxu0
    %v4714 = vadd.f32 0.0, %v4713
    %v4715 = vpop.f32.mrb[0].mxu0
    %4716 = vmatprep.mubr.f32.mxu0 0.0
    %4717 = vmatmul.mubr.f32.gmra.mrb[0].mxu0 %v4619
    %v4718 = vpop.f32.mrb[0].mxu0
    %v4719 = vadd.f32 0.0, %v4718
    %v4720 = vpop.f32.mrb[0].mxu0
    %4721 = vmatprep.mubr.f32.mxu0 0.0
    %4722 = vmatmul.mubr.f32.gmra.mrb[0].mxu0 %v4622
    %v4723 = vpop.f32.mrb[0].mxu0
    %v4724 = vadd.f32 0.0, %v4723
    %v4725 = vpop.f32.mrb[0].mxu0
    %4726 = vmatprep.mubr.f32.mxu0 0.0
    %4727 = vmatmul.mubr.f32.gmra.mrb[0].mxu0 %v4625
    %v4728 = vpop.f32.mrb[0].mxu0
    %v4729 = vadd.f32 0.0, %v4728
    %v4730 = vpop.f32.mrb[0].mxu0
    %4731 = vdwg.mxu0
    %v4732 = vadd.f32 %v3978, %v4694
    %v4733 = vadd.f32 %v3979, %v4699
    %v4734 = vadd.f32 %v3980, %v4704
    %v4735 = vadd.f32 %v3981, %v4709
    %v4736 = vadd.f32 %v3982, %v4714
    %v4737 = vadd.f32 %v3983, %v4719
    %v4738 = vadd.f32 %v3984, %v4724
    %v4739 = vadd.f32 %v3985, %v4729
    %v4741 = vsel %vm60, %v4352, 0
    %v4744 = vsel %vm60, %v4353, 0
    %v4747 = vsel %vm60, %v4354, 0
    %v4750 = vsel %vm60, %v4355, 0
    %v4753 = vsel %vm60, %v4356, 0
    %v4756 = vsel %vm60, %v4357, 0
    %v4759 = vsel %vm60, %v4358, 0
    %v4762 = vsel %vm60, %v4359, 0
    %4764 = vmatprep.subr.mxu0 0.0
    %4765 = vmatpush1.xpose.msra.mxu0 %v866
    %4766 = vmatprep.subr.mxu0 0.0
    %4767 = vmatpush1.xpose.msra.mxu0 %v869
    %4768 = vmatprep.subr.mxu0 0.0
    %4769 = vmatpush1.xpose.msra.mxu0 %v872
    %4770 = vmatprep.subr.mxu0 0.0
    %4771 = vmatpush1.xpose.msra.mxu0 %v875
    %4772 = vmatprep.subr.mxu0 0.0
    %4773 = vmatpush1.xpose.msra.mxu0 %v878
    %4774 = vmatprep.subr.mxu0 0.0
    %4775 = vmatpush1.xpose.msra.mxu0 %v881
    %4776 = vmatprep.subr.mxu0 0.0
    %4777 = vmatpush1.xpose.msra.mxu0 %v884
    %4778 = vmatprep.subr.mxu0 0.0
    %4779 = vmatpush1.xpose.msra.mxu0 %v887
    %4780 = vmatprep.subr.mxu0 0.0
    %4781 = vmatpush1.xpose.msra.mxu0 0.0
    %4782 = vmatprep.subr.mxu0 0.0
    %4783 = vmatpush1.xpose.msra.mxu0 0.0
    %4784 = vmatprep.subr.mxu0 0.0
    %4785 = vmatpush1.xpose.msra.mxu0 0.0
    %4786 = vmatprep.subr.mxu0 0.0
    %4787 = vmatpush1.xpose.msra.mxu0 0.0
    %4788 = vmatprep.subr.mxu0 0.0
    %4789 = vmatpush1.xpose.msra.mxu0 0.0
    %4790 = vmatprep.subr.mxu0 0.0
    %4791 = vmatpush1.xpose.msra.mxu0 0.0
    %4792 = vmatprep.subr.mxu0 0.0
    %4793 = vmatpush1.xpose.msra.mxu0 0.0
    %4794 = vmatprep.subr.mxu0 0.0
    %4795 = vmatpush1.xpose.msra.mxu0 0.0
    %4796 = vmatprep.subr.mxu0 0.0
    %4797 = vmatpush1.xpose.msra.mxu0 0.0
    %4798 = vmatprep.subr.mxu0 0.0
    %4799 = vmatpush1.xpose.msra.mxu0 0.0
    %4800 = vmatprep.subr.mxu0 0.0
    %4801 = vmatpush1.xpose.msra.mxu0 0.0
    %4802 = vmatprep.subr.mxu0 0.0
    %4803 = vmatpush1.xpose.msra.mxu0 0.0
    %4804 = vmatprep.subr.mxu0 0.0
    %4805 = vmatpush1.xpose.msra.mxu0 0.0
    %4806 = vmatprep.subr.mxu0 0.0
    %4807 = vmatpush1.xpose.msra.mxu0 0.0
    %4808 = vmatprep.subr.mxu0 0.0
    %4809 = vmatpush1.xpose.msra.mxu0 0.0
    %4810 = vmatprep.subr.mxu0 0.0
    %4811 = vmatpush1.xpose.msra.mxu0 0.0
    %4812 = vmatprep.subr.mxu0 0.0
    %4813 = vmatpush1.xpose.msra.mxu0 0.0
    %4814 = vmatprep.subr.mxu0 0.0
    %4815 = vmatpush1.xpose.msra.mxu0 0.0
    %4816 = vmatprep.subr.mxu0 0.0
    %4817 = vmatpush1.xpose.msra.mxu0 0.0
    %4818 = vmatprep.subr.mxu0 0.0
    %4819 = vmatpush1.xpose.msra.mxu0 0.0
    %4820 = vmatprep.subr.mxu0 0.0
    %4821 = vmatpush1.xpose.msra.mxu0 0.0
    %4822 = vmatprep.subr.mxu0 0.0
    %4823 = vmatpush1.xpose.msra.mxu0 0.0
    %4824 = vmatprep.subr.mxu0 0.0
    %4825 = vmatpush1.xpose.msra.mxu0 0.0
    %4826 = vmatprep.subr.mxu0 0.0
    %4827 = vmatpush1.xpose.msra.mxu0 0.0
    %4828 = vmatprep.mubr.f32.mxu0 0.0
    %4829 = vmatmul.mubr.f32.gmra.mrb[0].mxu0 %v4741
    %v4830 = vpop.f32.mrb[0].mxu0
    %v4831 = vadd.f32 %v4378, %v4830
    %v4832 = vpop.f32.mrb[0].mxu0
    %4833 = vmatprep.mubr.f32.mxu0 0.0
    %4834 = vmatmul.mubr.f32.gmra.mrb[0].mxu0 %v4744
    %v4835 = vpop.f32.mrb[0].mxu0
    %v4836 = vadd.f32 %v4379, %v4835
    %v4837 = vpop.f32.mrb[0].mxu0
    %4838 = vmatprep.mubr.f32.mxu0 0.0
    %4839 = vmatmul.mubr.f32.gmra.mrb[0].mxu0 %v4747
    %v4840 = vpop.f32.mrb[0].mxu0
    %v4841 = vadd.f32 %v4380, %v4840
    %v4842 = vpop.f32.mrb[0].mxu0
    %4843 = vmatprep.mubr.f32.mxu0 0.0
    %4844 = vmatmul.mubr.f32.gmra.mrb[0].mxu0 %v4750
    %v4845 = vpop.f32.mrb[0].mxu0
    %v4846 = vadd.f32 %v4381, %v4845
    %v4847 = vpop.f32.mrb[0].mxu0
    %4848 = vmatprep.mubr.f32.mxu0 0.0
    %4849 = vmatmul.mubr.f32.gmra.mrb[0].mxu0 %v4753
    %v4850 = vpop.f32.mrb[0].mxu0
    %v4851 = vadd.f32 %v4382, %v4850
    %v4852 = vpop.f32.mrb[0].mxu0
    %4853 = vmatprep.mubr.f32.mxu0 0.0
    %4854 = vmatmul.mubr.f32.gmra.mrb[0].mxu0 %v4756
    %v4855 = vpop.f32.mrb[0].mxu0
    %v4856 = vadd.f32 %v4383, %v4855
    %v4857 = vpop.f32.mrb[0].mxu0
    %4858 = vmatprep.mubr.f32.mxu0 0.0
    %4859 = vmatmul.mubr.f32.gmra.mrb[0].mxu0 %v4759
    %v4860 = vpop.f32.mrb[0].mxu0
    %v4861 = vadd.f32 %v4384, %v4860
    %v4862 = vpop.f32.mrb[0].mxu0
    %4863 = vmatprep.mubr.f32.mxu0 0.0
    %4864 = vmatmul.mubr.f32.gmra.mrb[0].mxu0 %v4762
    %v4865 = vpop.f32.mrb[0].mxu0
    %v4866 = vadd.f32 %v4385, %v4865
    %v4867 = vpop.f32.mrb[0].mxu0
    %4868 = vdwg.mxu0
    %v4869 = vsel %vm752, %v4831, -inf
    %4870 = vmax.xlane.f32.xlu0 %v4869
    %v4871 = vpop.xlane.xlu0 %4870
    %v4872 = vsel %vm752, %v4836, -inf
    %4873 = vmax.xlane.f32.xlu0 %v4872
    %v4874 = vpop.xlane.xlu0 %4873
    %v4875 = vsel %vm752, %v4841, -inf
    %4876 = vmax.xlane.f32.xlu0 %v4875
    %v4877 = vpop.xlane.xlu0 %4876
    %v4878 = vsel %vm752, %v4846, -inf
    %4879 = vmax.xlane.f32.xlu0 %v4878
    %v4880 = vpop.xlane.xlu0 %4879
    %v4881 = vsel %vm752, %v4851, -inf
    %4882 = vmax.xlane.f32.xlu0 %v4881
    %v4883 = vpop.xlane.xlu0 %4882
    %v4884 = vsel %vm752, %v4856, -inf
    %4885 = vmax.xlane.f32.xlu0 %v4884
    %v4886 = vpop.xlane.xlu0 %4885
    %v4887 = vsel %vm752, %v4861, -inf
    %4888 = vmax.xlane.f32.xlu0 %v4887
    %v4889 = vpop.xlane.xlu0 %4888
    %v4890 = vsel %vm752, %v4866, -inf
    %4891 = vmax.xlane.f32.xlu0 %v4890
    %v4892 = vpop.xlane.xlu0 %4891
    %v4893 = vsub.f32 %v4831, %v4871
    %v4894 = vsub.f32 %v4836, %v4874
    %v4895 = vsub.f32 %v4841, %v4877
    %v4896 = vsub.f32 %v4846, %v4880
    %v4897 = vsub.f32 %v4851, %v4883
    %v4898 = vsub.f32 %v4856, %v4886
    %v4899 = vsub.f32 %v4861, %v4889
    %v4900 = vsub.f32 %v4866, %v4892
    %v4901 = vmul.f32 %v4893, 1.442695
    %v4902 = vpow.pop %v4901
    %v4903 = vmul.f32 %v4894, 1.442695
    %v4904 = vpow.pop %v4903
    %v4905 = vmul.f32 %v4895, 1.442695
    %v4906 = vpow.pop %v4905
    %v4907 = vmul.f32 %v4896, 1.442695
    %v4908 = vpow.pop %v4907
    %v4909 = vmul.f32 %v4897, 1.442695
    %v4910 = vpow.pop %v4909
    %v4911 = vmul.f32 %v4898, 1.442695
    %v4912 = vpow.pop %v4911
    %v4913 = vmul.f32 %v4899, 1.442695
    %v4914 = vpow.pop %v4913
    %v4915 = vmul.f32 %v4900, 1.442695
    %v4916 = vpow.pop %v4915
    %v4917 = vsel %vm752, %v4902, 0.0
    %4918 = vadd.xlane.f32.xlu0 %v4917
    %v4919 = vpop.xlane.xlu0 %4918
    %v4920 = vsel %vm752, %v4904, 0.0
    %4921 = vadd.xlane.f32.xlu0 %v4920
    %v4922 = vpop.xlane.xlu0 %4921
    %v4923 = vsel %vm752, %v4906, 0.0
    %4924 = vadd.xlane.f32.xlu0 %v4923
    %v4925 = vpop.xlane.xlu0 %4924
    %v4926 = vsel %vm752, %v4908, 0.0
    %4927 = vadd.xlane.f32.xlu0 %v4926
    %v4928 = vpop.xlane.xlu0 %4927
    %v4929 = vsel %vm752, %v4910, 0.0
    %4930 = vadd.xlane.f32.xlu0 %v4929
    %v4931 = vpop.xlane.xlu0 %4930
    %v4932 = vsel %vm752, %v4912, 0.0
    %4933 = vadd.xlane.f32.xlu0 %v4932
    %v4934 = vpop.xlane.xlu0 %4933
    %v4935 = vsel %vm752, %v4914, 0.0
    %4936 = vadd.xlane.f32.xlu0 %v4935
    %v4937 = vpop.xlane.xlu0 %4936
    %v4938 = vsel %vm752, %v4916, 0.0
    %4939 = vadd.xlane.f32.xlu0 %v4938
    %v4940 = vpop.xlane.xlu0 %4939
    %v4941 = vrcp.pop %v4919
    %v4942 = vrcp.pop %v4922
    %v4943 = vrcp.pop %v4925
    %v4944 = vrcp.pop %v4928
    %v4945 = vrcp.pop %v4931
    %v4946 = vrcp.pop %v4934
    %v4947 = vrcp.pop %v4937
    %v4948 = vrcp.pop %v4940
    %v4949 = vmul.f32 %v4902, %v4941
    %v4950 = vmul.f32 %v4904, %v4942
    %v4951 = vmul.f32 %v4906, %v4943
    %v4952 = vmul.f32 %v4908, %v4944
    %v4953 = vmul.f32 %v4910, %v4945
    %v4954 = vmul.f32 %v4912, %v4946
    %v4955 = vmul.f32 %v4914, %v4947
    %v4956 = vmul.f32 %v4916, %v4948
    %v4958 = vsel %vm752, %v4949, 0
    %v4961 = vsel %vm752, %v4950, 0
    %v4964 = vsel %vm752, %v4951, 0
    %v4967 = vsel %vm752, %v4952, 0
    %v4970 = vsel %vm752, %v4953, 0
    %v4973 = vsel %vm752, %v4954, 0
    %v4976 = vsel %vm752, %v4955, 0
    %v4979 = vsel %vm752, %v4956, 0
    %4981 = vmatprep.subr.mxu0 0.0
    %4982 = vmatpush1.msra.mxu0 %v4369
    %4983 = vmatprep.subr.mxu0 0.0
    %4984 = vmatpush1.msra.mxu0 %v4370
    %4985 = vmatprep.subr.mxu0 0.0
    %4986 = vmatpush1.msra.mxu0 %v4371
    %4987 = vmatprep.subr.mxu0 0.0
    %4988 = vmatpush1.msra.mxu0 %v4372
    %4989 = vmatprep.subr.mxu0 0.0
    %4990 = vmatpush1.msra.mxu0 %v4373
    %4991 = vmatprep.subr.mxu0 0.0
    %4992 = vmatpush1.msra.mxu0 %v4374
    %4993 = vmatprep.subr.mxu0 0.0
    %4994 = vmatpush1.msra.mxu0 %v4375
    %4995 = vmatprep.subr.mxu0 0.0
    %4996 = vmatpush1.msra.mxu0 %v4376
    %4997 = vmatprep.subr.mxu0 0.0
    %4998 = vmatpush1.msra.mxu0 0.0
    %4999 = vmatprep.subr.mxu0 0.0
    %5000 = vmatpush1.msra.mxu0 0.0
    %5001 = vmatprep.subr.mxu0 0.0
    %5002 = vmatpush1.msra.mxu0 0.0
    %5003 = vmatprep.subr.mxu0 0.0
    %5004 = vmatpush1.msra.mxu0 0.0
    %5005 = vmatprep.subr.mxu0 0.0
    %5006 = vmatpush1.msra.mxu0 0.0
    %5007 = vmatprep.subr.mxu0 0.0
    %5008 = vmatpush1.msra.mxu0 0.0
    %5009 = vmatprep.subr.mxu0 0.0
    %5010 = vmatpush1.msra.mxu0 0.0
    %5011 = vmatprep.subr.mxu0 0.0
    %5012 = vmatpush1.msra.mxu0 0.0
    %5013 = vmatprep.subr.mxu0 0.0
    %5014 = vmatpush1.msra.mxu0 0.0
    %5015 = vmatprep.subr.mxu0 0.0
    %5016 = vmatpush1.msra.mxu0 0.0
    %5017 = vmatprep.subr.mxu0 0.0
    %5018 = vmatpush1.msra.mxu0 0.0
    %5019 = vmatprep.subr.mxu0 0.0
    %5020 = vmatpush1.msra.mxu0 0.0
    %5021 = vmatprep.subr.mxu0 0.0
    %5022 = vmatpush1.msra.mxu0 0.0
    %5023 = vmatprep.subr.mxu0 0.0
    %5024 = vmatpush1.msra.mxu0 0.0
    %5025 = vmatprep.subr.mxu0 0.0
    %5026 = vmatpush1.msra.mxu0 0.0
    %5027 = vmatprep.subr.mxu0 0.0
    %5028 = vmatpush1.msra.mxu0 0.0
    %5029 = vmatprep.subr.mxu0 0.0
    %5030 = vmatpush1.msra.mxu0 0.0
    %5031 = vmatprep.subr.mxu0 0.0
    %5032 = vmatpush1.msra.mxu0 0.0
    %5033 = vmatprep.subr.mxu0 0.0
    %5034 = vmatpush1.msra.mxu0 0.0
    %5035 = vmatprep.subr.mxu0 0.0
    %5036 = vmatpush1.msra.mxu0 0.0
    %5037 = vmatprep.subr.mxu0 0.0
    %5038 = vmatpush1.msra.mxu0 0.0
    %5039 = vmatprep.subr.mxu0 0.0
    %5040 = vmatpush1.msra.mxu0 0.0
    %5041 = vmatprep.subr.mxu0 0.0
    %5042 = vmatpush1.msra.mxu0 0.0
    %5043 = vmatprep.subr.mxu0 0.0
    %5044 = vmatpush1.msra.mxu0 0.0
    %5045 = vmatprep.mubr.f32.mxu0 0.0
    %5046 = vmatmul.mubr.f32.gmra.mrb[0].mxu0 %v4958
    %v5047 = vpop.f32.mrb[0].mxu0
    %v5048 = vadd.f32 0.0, %v5047
    %v5049 = vpop.f32.mrb[0].mxu0
    %5050 = vmatprep.mubr.f32.mxu0 0.0
    %5051 = vmatmul.mubr.f32.gmra.mrb[0].mxu0 %v4961
    %v5052 = vpop.f32.mrb[0].mxu0
    %v5053 = vadd.f32 0.0, %v5052
    %v5054 = vpop.f32.mrb[0].mxu0
    %5055 = vmatprep.mubr.f32.mxu0 0.0
    %5056 = vmatmul.mubr.f32.gmra.mrb[0].mxu0 %v4964
    %v5057 = vpop.f32.mrb[0].mxu0
    %v5058 = vadd.f32 0.0, %v5057
    %v5059 = vpop.f32.mrb[0].mxu0
    %5060 = vmatprep.mubr.f32.mxu0 0.0
    %5061 = vmatmul.mubr.f32.gmra.mrb[0].mxu0 %v4967
    %v5062 = vpop.f32.mrb[0].mxu0
    %v5063 = vadd.f32 0.0, %v5062
    %v5064 = vpop.f32.mrb[0].mxu0
    %5065 = vmatprep.mubr.f32.mxu0 0.0
    %5066 = vmatmul.mubr.f32.gmra.mrb[0].mxu0 %v4970
    %v5067 = vpop.f32.mrb[0].mxu0
    %v5068 = vadd.f32 0.0, %v5067
    %v5069 = vpop.f32.mrb[0].mxu0
    %5070 = vmatprep.mubr.f32.mxu0 0.0
    %5071 = vmatmul.mubr.f32.gmra.mrb[0].mxu0 %v4973
    %v5072 = vpop.f32.mrb[0].mxu0
    %v5073 = vadd.f32 0.0, %v5072
    %v5074 = vpop.f32.mrb[0].mxu0
    %5075 = vmatprep.mubr.f32.mxu0 0.0
    %5076 = vmatmul.mubr.f32.gmra.mrb[0].mxu0 %v4976
    %v5077 = vpop.f32.mrb[0].mxu0
    %v5078 = vadd.f32 0.0, %v5077
    %v5079 = vpop.f32.mrb[0].mxu0
    %5080 = vmatprep.mubr.f32.mxu0 0.0
    %5081 = vmatmul.mubr.f32.gmra.mrb[0].mxu0 %v4979
    %v5082 = vpop.f32.mrb[0].mxu0
    %v5083 = vadd.f32 0.0, %v5082
    %v5084 = vpop.f32.mrb[0].mxu0
    %5085 = vdwg.mxu0
    %v5086 = vadd.f32 %v4332, %v5048
    %v5087 = vadd.f32 %v4333, %v5053
    %v5088 = vadd.f32 %v4334, %v5058
    %v5089 = vadd.f32 %v4335, %v5063
    %v5090 = vadd.f32 %v4336, %v5068
    %v5091 = vadd.f32 %v4337, %v5073
    %v5092 = vadd.f32 %v4338, %v5078
    %v5093 = vadd.f32 %v4339, %v5083
    %vm5094 = vcmp.ge.s32.totalorder %v553, 24
    %vm5095 = vcmp.lt.s32.totalorder %v553, 28
    %vm5096 = vmand %vm5094, %vm5095
    %v5097 = vsel %vm5096, 0.5, 0.0
    %v5098 = vmul.f32 %v176, %v5097
    %v5099 = vmul.f32 %v181, %v5097
    %v5100 = vmul.f32 %v186, %v5097
    %v5101 = vmul.f32 %v191, %v5097
    %v5102 = vmul.f32 %v196, %v5097
    %v5103 = vmul.f32 %v201, %v5097
    %v5104 = vmul.f32 %v206, %v5097
    %v5105 = vmul.f32 %v211, %v5097
    %v5106 = vmul.f32 %v216, %v5097
    %v5107 = vmul.f32 %v221, %v5097
    %v5108 = vmul.f32 %v226, %v5097
    %v5109 = vmul.f32 %v231, %v5097
    %v5110 = vmul.f32 %v236, %v5097
    %v5111 = vmul.f32 %v241, %v5097
    %v5112 = vmul.f32 %v246, %v5097
    %v5113 = vmul.f32 %v251, %v5097
    %v5114 = vsel %vm5096, 1.0, 0.0
    %v5115 = vmul.f32 %v474, %v5114
    %v5116 = vmul.f32 %v479, %v5114
    %v5117 = vmul.f32 %v484, %v5114
    %v5118 = vmul.f32 %v489, %v5114
    %v5119 = vmul.f32 %v494, %v5114
    %v5120 = vmul.f32 %v499, %v5114
    %v5121 = vmul.f32 %v504, %v5114
    %v5122 = vmul.f32 %v509, %v5114
    %v5123 = vmul.f32 %v514, %v5114
    %v5124 = vmul.f32 %v519, %v5114
    %v5125 = vmul.f32 %v524, %v5114
    %v5126 = vmul.f32 %v529, %v5114
    %v5127 = vmul.f32 %v534, %v5114
    %v5128 = vmul.f32 %v539, %v5114
    %v5129 = vmul.f32 %v544, %v5114
    %v5130 = vmul.f32 %v549, %v5114
    %s5131 = scalar_lea.vmem [#allocation2], 384
    %v5132 = vld [vmem:[%s5131] sm:$0xff]
    %v5133 = vld [vmem:[%s5131 + $0x8] sm:$0xff]
    %v5134 = vld [vmem:[%s5131 + $0x10] sm:$0xff]
    %v5135 = vld [vmem:[%s5131 + $0x18] sm:$0xff]
    %v5136 = vld [vmem:[%s5131 + $0x20] sm:$0xff]
    %v5137 = vld [vmem:[%s5131 + $0x28] sm:$0xff]
    %v5138 = vld [vmem:[%s5131 + $0x30] sm:$0xff]
    %v5139 = vld [vmem:[%s5131 + $0x38] sm:$0xff]
    %v5141 = vsel %vm60, %v5098, 0
    %v5144 = vsel %vm60, %v5099, 0
    %v5147 = vsel %vm60, %v5100, 0
    %v5150 = vsel %vm60, %v5101, 0
    %v5153 = vsel %vm60, %v5102, 0
    %v5156 = vsel %vm60, %v5103, 0
    %v5159 = vsel %vm60, %v5104, 0
    %v5162 = vsel %vm60, %v5105, 0
    %5164 = vmatprep.subr.mxu0 0.0
    %5165 = vmatpush1.xpose.msra.mxu0 %v624
    %5166 = vmatprep.subr.mxu0 0.0
    %5167 = vmatpush1.xpose.msra.mxu0 %v627
    %5168 = vmatprep.subr.mxu0 0.0
    %5169 = vmatpush1.xpose.msra.mxu0 %v630
    %5170 = vmatprep.subr.mxu0 0.0
    %5171 = vmatpush1.xpose.msra.mxu0 %v633
    %5172 = vmatprep.subr.mxu0 0.0
    %5173 = vmatpush1.xpose.msra.mxu0 %v636
    %5174 = vmatprep.subr.mxu0 0.0
    %5175 = vmatpush1.xpose.msra.mxu0 %v639
    %5176 = vmatprep.subr.mxu0 0.0
    %5177 = vmatpush1.xpose.msra.mxu0 %v642
    %5178 = vmatprep.subr.mxu0 0.0
    %5179 = vmatpush1.xpose.msra.mxu0 %v645
    %5180 = vmatprep.subr.mxu0 0.0
    %5181 = vmatpush1.xpose.msra.mxu0 0.0
    %5182 = vmatprep.subr.mxu0 0.0
    %5183 = vmatpush1.xpose.msra.mxu0 0.0
    %5184 = vmatprep.subr.mxu0 0.0
    %5185 = vmatpush1.xpose.msra.mxu0 0.0
    %5186 = vmatprep.subr.mxu0 0.0
    %5187 = vmatpush1.xpose.msra.mxu0 0.0
    %5188 = vmatprep.subr.mxu0 0.0
    %5189 = vmatpush1.xpose.msra.mxu0 0.0
    %5190 = vmatprep.subr.mxu0 0.0
    %5191 = vmatpush1.xpose.msra.mxu0 0.0
    %5192 = vmatprep.subr.mxu0 0.0
    %5193 = vmatpush1.xpose.msra.mxu0 0.0
    %5194 = vmatprep.subr.mxu0 0.0
    %5195 = vmatpush1.xpose.msra.mxu0 0.0
    %5196 = vmatprep.subr.mxu0 0.0
    %5197 = vmatpush1.xpose.msra.mxu0 0.0
    %5198 = vmatprep.subr.mxu0 0.0
    %5199 = vmatpush1.xpose.msra.mxu0 0.0
    %5200 = vmatprep.subr.mxu0 0.0
    %5201 = vmatpush1.xpose.msra.mxu0 0.0
    %5202 = vmatprep.subr.mxu0 0.0
    %5203 = vmatpush1.xpose.msra.mxu0 0.0
    %5204 = vmatprep.subr.mxu0 0.0
    %5205 = vmatpush1.xpose.msra.mxu0 0.0
    %5206 = vmatprep.subr.mxu0 0.0
    %5207 = vmatpush1.xpose.msra.mxu0 0.0
    %5208 = vmatprep.subr.mxu0 0.0
    %5209 = vmatpush1.xpose.msra.mxu0 0.0
    %5210 = vmatprep.subr.mxu0 0.0
    %5211 = vmatpush1.xpose.msra.mxu0 0.0
    %5212 = vmatprep.subr.mxu0 0.0
    %5213 = vmatpush1.xpose.msra.mxu0 0.0
    %5214 = vmatprep.subr.mxu0 0.0
    %5215 = vmatpush1.xpose.msra.mxu0 0.0
    %5216 = vmatprep.subr.mxu0 0.0
    %5217 = vmatpush1.xpose.msra.mxu0 0.0
    %5218 = vmatprep.subr.mxu0 0.0
    %5219 = vmatpush1.xpose.msra.mxu0 0.0
    %5220 = vmatprep.subr.mxu0 0.0
    %5221 = vmatpush1.xpose.msra.mxu0 0.0
    %5222 = vmatprep.subr.mxu0 0.0
    %5223 = vmatpush1.xpose.msra.mxu0 0.0
    %5224 = vmatprep.subr.mxu0 0.0
    %5225 = vmatpush1.xpose.msra.mxu0 0.0
    %5226 = vmatprep.subr.mxu0 0.0
    %5227 = vmatpush1.xpose.msra.mxu0 0.0
    %5228 = vmatprep.mubr.f32.mxu0 0.0
    %5229 = vmatmul.mubr.f32.gmra.mrb[0].mxu0 %v5141
    %v5230 = vpop.f32.mrb[0].mxu0
    %v5231 = vadd.f32 %v5132, %v5230
    %v5232 = vpop.f32.mrb[0].mxu0
    %5233 = vmatprep.mubr.f32.mxu0 0.0
    %5234 = vmatmul.mubr.f32.gmra.mrb[0].mxu0 %v5144
    %v5235 = vpop.f32.mrb[0].mxu0
    %v5236 = vadd.f32 %v5133, %v5235
    %v5237 = vpop.f32.mrb[0].mxu0
    %5238 = vmatprep.mubr.f32.mxu0 0.0
    %5239 = vmatmul.mubr.f32.gmra.mrb[0].mxu0 %v5147
    %v5240 = vpop.f32.mrb[0].mxu0
    %v5241 = vadd.f32 %v5134, %v5240
    %v5242 = vpop.f32.mrb[0].mxu0
    %5243 = vmatprep.mubr.f32.mxu0 0.0
    %5244 = vmatmul.mubr.f32.gmra.mrb[0].mxu0 %v5150
    %v5245 = vpop.f32.mrb[0].mxu0
    %v5246 = vadd.f32 %v5135, %v5245
    %v5247 = vpop.f32.mrb[0].mxu0
    %5248 = vmatprep.mubr.f32.mxu0 0.0
    %5249 = vmatmul.mubr.f32.gmra.mrb[0].mxu0 %v5153
    %v5250 = vpop.f32.mrb[0].mxu0
    %v5251 = vadd.f32 %v5136, %v5250
    %v5252 = vpop.f32.mrb[0].mxu0
    %5253 = vmatprep.mubr.f32.mxu0 0.0
    %5254 = vmatmul.mubr.f32.gmra.mrb[0].mxu0 %v5156
    %v5255 = vpop.f32.mrb[0].mxu0
    %v5256 = vadd.f32 %v5137, %v5255
    %v5257 = vpop.f32.mrb[0].mxu0
    %5258 = vmatprep.mubr.f32.mxu0 0.0
    %5259 = vmatmul.mubr.f32.gmra.mrb[0].mxu0 %v5159
    %v5260 = vpop.f32.mrb[0].mxu0
    %v5261 = vadd.f32 %v5138, %v5260
    %v5262 = vpop.f32.mrb[0].mxu0
    %5263 = vmatprep.mubr.f32.mxu0 0.0
    %5264 = vmatmul.mubr.f32.gmra.mrb[0].mxu0 %v5162
    %v5265 = vpop.f32.mrb[0].mxu0
    %v5266 = vadd.f32 %v5139, %v5265
    %v5267 = vpop.f32.mrb[0].mxu0
    %5268 = vdwg.mxu0
    %v5269 = vsel %vm752, %v5231, -inf
    %5270 = vmax.xlane.f32.xlu0 %v5269
    %v5271 = vpop.xlane.xlu0 %5270
    %v5272 = vsel %vm752, %v5236, -inf
    %5273 = vmax.xlane.f32.xlu0 %v5272
    %v5274 = vpop.xlane.xlu0 %5273
    %v5275 = vsel %vm752, %v5241, -inf
    %5276 = vmax.xlane.f32.xlu0 %v5275
    %v5277 = vpop.xlane.xlu0 %5276
    %v5278 = vsel %vm752, %v5246, -inf
    %5279 = vmax.xlane.f32.xlu0 %v5278
    %v5280 = vpop.xlane.xlu0 %5279
    %v5281 = vsel %vm752, %v5251, -inf
    %5282 = vmax.xlane.f32.xlu0 %v5281
    %v5283 = vpop.xlane.xlu0 %5282
    %v5284 = vsel %vm752, %v5256, -inf
    %5285 = vmax.xlane.f32.xlu0 %v5284
    %v5286 = vpop.xlane.xlu0 %5285
    %v5287 = vsel %vm752, %v5261, -inf
    %5288 = vmax.xlane.f32.xlu0 %v5287
    %v5289 = vpop.xlane.xlu0 %5288
    %v5290 = vsel %vm752, %v5266, -inf
    %5291 = vmax.xlane.f32.xlu0 %v5290
    %v5292 = vpop.xlane.xlu0 %5291
    %v5293 = vsub.f32 %v5231, %v5271
    %v5294 = vsub.f32 %v5236, %v5274
    %v5295 = vsub.f32 %v5241, %v5277
    %v5296 = vsub.f32 %v5246, %v5280
    %v5297 = vsub.f32 %v5251, %v5283
    %v5298 = vsub.f32 %v5256, %v5286
    %v5299 = vsub.f32 %v5261, %v5289
    %v5300 = vsub.f32 %v5266, %v5292
    %v5301 = vmul.f32 %v5293, 1.442695
    %v5302 = vpow.pop %v5301
    %v5303 = vmul.f32 %v5294, 1.442695
    %v5304 = vpow.pop %v5303
    %v5305 = vmul.f32 %v5295, 1.442695
    %v5306 = vpow.pop %v5305
    %v5307 = vmul.f32 %v5296, 1.442695
    %v5308 = vpow.pop %v5307
    %v5309 = vmul.f32 %v5297, 1.442695
    %v5310 = vpow.pop %v5309
    %v5311 = vmul.f32 %v5298, 1.442695
    %v5312 = vpow.pop %v5311
    %v5313 = vmul.f32 %v5299, 1.442695
    %v5314 = vpow.pop %v5313
    %v5315 = vmul.f32 %v5300, 1.442695
    %v5316 = vpow.pop %v5315
    %v5317 = vsel %vm752, %v5302, 0.0
    %5318 = vadd.xlane.f32.xlu0 %v5317
    %v5319 = vpop.xlane.xlu0 %5318
    %v5320 = vsel %vm752, %v5304, 0.0
    %5321 = vadd.xlane.f32.xlu0 %v5320
    %v5322 = vpop.xlane.xlu0 %5321
    %v5323 = vsel %vm752, %v5306, 0.0
    %5324 = vadd.xlane.f32.xlu0 %v5323
    %v5325 = vpop.xlane.xlu0 %5324
    %v5326 = vsel %vm752, %v5308, 0.0
    %5327 = vadd.xlane.f32.xlu0 %v5326
    %v5328 = vpop.xlane.xlu0 %5327
    %v5329 = vsel %vm752, %v5310, 0.0
    %5330 = vadd.xlane.f32.xlu0 %v5329
    %v5331 = vpop.xlane.xlu0 %5330
    %v5332 = vsel %vm752, %v5312, 0.0
    %5333 = vadd.xlane.f32.xlu0 %v5332
    %v5334 = vpop.xlane.xlu0 %5333
    %v5335 = vsel %vm752, %v5314, 0.0
    %5336 = vadd.xlane.f32.xlu0 %v5335
    %v5337 = vpop.xlane.xlu0 %5336
    %v5338 = vsel %vm752, %v5316, 0.0
    %5339 = vadd.xlane.f32.xlu0 %v5338
    %v5340 = vpop.xlane.xlu0 %5339
    %v5341 = vrcp.pop %v5319
    %v5342 = vrcp.pop %v5322
    %v5343 = vrcp.pop %v5325
    %v5344 = vrcp.pop %v5328
    %v5345 = vrcp.pop %v5331
    %v5346 = vrcp.pop %v5334
    %v5347 = vrcp.pop %v5337
    %v5348 = vrcp.pop %v5340
    %v5349 = vmul.f32 %v5302, %v5341
    %v5350 = vmul.f32 %v5304, %v5342
    %v5351 = vmul.f32 %v5306, %v5343
    %v5352 = vmul.f32 %v5308, %v5344
    %v5353 = vmul.f32 %v5310, %v5345
    %v5354 = vmul.f32 %v5312, %v5346
    %v5355 = vmul.f32 %v5314, %v5347
    %v5356 = vmul.f32 %v5316, %v5348
    %v5358 = vsel %vm752, %v5349, 0
    %v5361 = vsel %vm752, %v5350, 0
    %v5364 = vsel %vm752, %v5351, 0
    %v5367 = vsel %vm752, %v5352, 0
    %v5370 = vsel %vm752, %v5353, 0
    %v5373 = vsel %vm752, %v5354, 0
    %v5376 = vsel %vm752, %v5355, 0
    %v5379 = vsel %vm752, %v5356, 0
    %5381 = vmatprep.subr.mxu0 0.0
    %5382 = vmatpush1.msra.mxu0 %v5115
    %5383 = vmatprep.subr.mxu0 0.0
    %5384 = vmatpush1.msra.mxu0 %v5116
    %5385 = vmatprep.subr.mxu0 0.0
    %5386 = vmatpush1.msra.mxu0 %v5117
    %5387 = vmatprep.subr.mxu0 0.0
    %5388 = vmatpush1.msra.mxu0 %v5118
    %5389 = vmatprep.subr.mxu0 0.0
    %5390 = vmatpush1.msra.mxu0 %v5119
    %5391 = vmatprep.subr.mxu0 0.0
    %5392 = vmatpush1.msra.mxu0 %v5120
    %5393 = vmatprep.subr.mxu0 0.0
    %5394 = vmatpush1.msra.mxu0 %v5121
    %5395 = vmatprep.subr.mxu0 0.0
    %5396 = vmatpush1.msra.mxu0 %v5122
    %5397 = vmatprep.subr.mxu0 0.0
    %5398 = vmatpush1.msra.mxu0 0.0
    %5399 = vmatprep.subr.mxu0 0.0
    %5400 = vmatpush1.msra.mxu0 0.0
    %5401 = vmatprep.subr.mxu0 0.0
    %5402 = vmatpush1.msra.mxu0 0.0
    %5403 = vmatprep.subr.mxu0 0.0
    %5404 = vmatpush1.msra.mxu0 0.0
    %5405 = vmatprep.subr.mxu0 0.0
    %5406 = vmatpush1.msra.mxu0 0.0
    %5407 = vmatprep.subr.mxu0 0.0
    %5408 = vmatpush1.msra.mxu0 0.0
    %5409 = vmatprep.subr.mxu0 0.0
    %5410 = vmatpush1.msra.mxu0 0.0
    %5411 = vmatprep.subr.mxu0 0.0
    %5412 = vmatpush1.msra.mxu0 0.0
    %5413 = vmatprep.subr.mxu0 0.0
    %5414 = vmatpush1.msra.mxu0 0.0
    %5415 = vmatprep.subr.mxu0 0.0
    %5416 = vmatpush1.msra.mxu0 0.0
    %5417 = vmatprep.subr.mxu0 0.0
    %5418 = vmatpush1.msra.mxu0 0.0
    %5419 = vmatprep.subr.mxu0 0.0
    %5420 = vmatpush1.msra.mxu0 0.0
    %5421 = vmatprep.subr.mxu0 0.0
    %5422 = vmatpush1.msra.mxu0 0.0
    %5423 = vmatprep.subr.mxu0 0.0
    %5424 = vmatpush1.msra.mxu0 0.0
    %5425 = vmatprep.subr.mxu0 0.0
    %5426 = vmatpush1.msra.mxu0 0.0
    %5427 = vmatprep.subr.mxu0 0.0
    %5428 = vmatpush1.msra.mxu0 0.0
    %5429 = vmatprep.subr.mxu0 0.0
    %5430 = vmatpush1.msra.mxu0 0.0
    %5431 = vmatprep.subr.mxu0 0.0
    %5432 = vmatpush1.msra.mxu0 0.0
    %5433 = vmatprep.subr.mxu0 0.0
    %5434 = vmatpush1.msra.mxu0 0.0
    %5435 = vmatprep.subr.mxu0 0.0
    %5436 = vmatpush1.msra.mxu0 0.0
    %5437 = vmatprep.subr.mxu0 0.0
    %5438 = vmatpush1.msra.mxu0 0.0
    %5439 = vmatprep.subr.mxu0 0.0
    %5440 = vmatpush1.msra.mxu0 0.0
    %5441 = vmatprep.subr.mxu0 0.0
    %5442 = vmatpush1.msra.mxu0 0.0
    %5443 = vmatprep.subr.mxu0 0.0
    %5444 = vmatpush1.msra.mxu0 0.0
    %5445 = vmatprep.mubr.f32.mxu0 0.0
    %5446 = vmatmul.mubr.f32.gmra.mrb[0].mxu0 %v5358
    %v5447 = vpop.f32.mrb[0].mxu0
    %v5448 = vadd.f32 0.0, %v5447
    %v5449 = vpop.f32.mrb[0].mxu0
    %5450 = vmatprep.mubr.f32.mxu0 0.0
    %5451 = vmatmul.mubr.f32.gmra.mrb[0].mxu0 %v5361
    %v5452 = vpop.f32.mrb[0].mxu0
    %v5453 = vadd.f32 0.0, %v5452
    %v5454 = vpop.f32.mrb[0].mxu0
    %5455 = vmatprep.mubr.f32.mxu0 0.0
    %5456 = vmatmul.mubr.f32.gmra.mrb[0].mxu0 %v5364
    %v5457 = vpop.f32.mrb[0].mxu0
    %v5458 = vadd.f32 0.0, %v5457
    %v5459 = vpop.f32.mrb[0].mxu0
    %5460 = vmatprep.mubr.f32.mxu0 0.0
    %5461 = vmatmul.mubr.f32.gmra.mrb[0].mxu0 %v5367
    %v5462 = vpop.f32.mrb[0].mxu0
    %v5463 = vadd.f32 0.0, %v5462
    %v5464 = vpop.f32.mrb[0].mxu0
    %5465 = vmatprep.mubr.f32.mxu0 0.0
    %5466 = vmatmul.mubr.f32.gmra.mrb[0].mxu0 %v5370
    %v5467 = vpop.f32.mrb[0].mxu0
    %v5468 = vadd.f32 0.0, %v5467
    %v5469 = vpop.f32.mrb[0].mxu0
    %5470 = vmatprep.mubr.f32.mxu0 0.0
    %5471 = vmatmul.mubr.f32.gmra.mrb[0].mxu0 %v5373
    %v5472 = vpop.f32.mrb[0].mxu0
    %v5473 = vadd.f32 0.0, %v5472
    %v5474 = vpop.f32.mrb[0].mxu0
    %5475 = vmatprep.mubr.f32.mxu0 0.0
    %5476 = vmatmul.mubr.f32.gmra.mrb[0].mxu0 %v5376
    %v5477 = vpop.f32.mrb[0].mxu0
    %v5478 = vadd.f32 0.0, %v5477
    %v5479 = vpop.f32.mrb[0].mxu0
    %5480 = vmatprep.mubr.f32.mxu0 0.0
    %5481 = vmatmul.mubr.f32.gmra.mrb[0].mxu0 %v5379
    %v5482 = vpop.f32.mrb[0].mxu0
    %v5483 = vadd.f32 0.0, %v5482
    %v5484 = vpop.f32.mrb[0].mxu0
    %5485 = vdwg.mxu0
    %v5486 = vadd.f32 %v4732, %v5448
    %v5487 = vadd.f32 %v4733, %v5453
    %v5488 = vadd.f32 %v4734, %v5458
    %v5489 = vadd.f32 %v4735, %v5463
    %v5490 = vadd.f32 %v4736, %v5468
    %v5491 = vadd.f32 %v4737, %v5473
    %v5492 = vadd.f32 %v4738, %v5478
    %v5493 = vadd.f32 %v4739, %v5483
    %v5495 = vsel %vm60, %v5106, 0
    %v5498 = vsel %vm60, %v5107, 0
    %v5501 = vsel %vm60, %v5108, 0
    %v5504 = vsel %vm60, %v5109, 0
    %v5507 = vsel %vm60, %v5110, 0
    %v5510 = vsel %vm60, %v5111, 0
    %v5513 = vsel %vm60, %v5112, 0
    %v5516 = vsel %vm60, %v5113, 0
    %5518 = vmatprep.subr.mxu0 0.0
    %5519 = vmatpush1.xpose.msra.mxu0 %v866
    %5520 = vmatprep.subr.mxu0 0.0
    %5521 = vmatpush1.xpose.msra.mxu0 %v869
    %5522 = vmatprep.subr.mxu0 0.0
    %5523 = vmatpush1.xpose.msra.mxu0 %v872
    %5524 = vmatprep.subr.mxu0 0.0
    %5525 = vmatpush1.xpose.msra.mxu0 %v875
    %5526 = vmatprep.subr.mxu0 0.0
    %5527 = vmatpush1.xpose.msra.mxu0 %v878
    %5528 = vmatprep.subr.mxu0 0.0
    %5529 = vmatpush1.xpose.msra.mxu0 %v881
    %5530 = vmatprep.subr.mxu0 0.0
    %5531 = vmatpush1.xpose.msra.mxu0 %v884
    %5532 = vmatprep.subr.mxu0 0.0
    %5533 = vmatpush1.xpose.msra.mxu0 %v887
    %5534 = vmatprep.subr.mxu0 0.0
    %5535 = vmatpush1.xpose.msra.mxu0 0.0
    %5536 = vmatprep.subr.mxu0 0.0
    %5537 = vmatpush1.xpose.msra.mxu0 0.0
    %5538 = vmatprep.subr.mxu0 0.0
    %5539 = vmatpush1.xpose.msra.mxu0 0.0
    %5540 = vmatprep.subr.mxu0 0.0
    %5541 = vmatpush1.xpose.msra.mxu0 0.0
    %5542 = vmatprep.subr.mxu0 0.0
    %5543 = vmatpush1.xpose.msra.mxu0 0.0
    %5544 = vmatprep.subr.mxu0 0.0
    %5545 = vmatpush1.xpose.msra.mxu0 0.0
    %5546 = vmatprep.subr.mxu0 0.0
    %5547 = vmatpush1.xpose.msra.mxu0 0.0
    %5548 = vmatprep.subr.mxu0 0.0
    %5549 = vmatpush1.xpose.msra.mxu0 0.0
    %5550 = vmatprep.subr.mxu0 0.0
    %5551 = vmatpush1.xpose.msra.mxu0 0.0
    %5552 = vmatprep.subr.mxu0 0.0
    %5553 = vmatpush1.xpose.msra.mxu0 0.0
    %5554 = vmatprep.subr.mxu0 0.0
    %5555 = vmatpush1.xpose.msra.mxu0 0.0
    %5556 = vmatprep.subr.mxu0 0.0
    %5557 = vmatpush1.xpose.msra.mxu0 0.0
    %5558 = vmatprep.subr.mxu0 0.0
    %5559 = vmatpush1.xpose.msra.mxu0 0.0
    %5560 = vmatprep.subr.mxu0 0.0
    %5561 = vmatpush1.xpose.msra.mxu0 0.0
    %5562 = vmatprep.subr.mxu0 0.0
    %5563 = vmatpush1.xpose.msra.mxu0 0.0
    %5564 = vmatprep.subr.mxu0 0.0
    %5565 = vmatpush1.xpose.msra.mxu0 0.0
    %5566 = vmatprep.subr.mxu0 0.0
    %5567 = vmatpush1.xpose.msra.mxu0 0.0
    %5568 = vmatprep.subr.mxu0 0.0
    %5569 = vmatpush1.xpose.msra.mxu0 0.0
    %5570 = vmatprep.subr.mxu0 0.0
    %5571 = vmatpush1.xpose.msra.mxu0 0.0
    %5572 = vmatprep.subr.mxu0 0.0
    %5573 = vmatpush1.xpose.msra.mxu0 0.0
    %5574 = vmatprep.subr.mxu0 0.0
    %5575 = vmatpush1.xpose.msra.mxu0 0.0
    %5576 = vmatprep.subr.mxu0 0.0
    %5577 = vmatpush1.xpose.msra.mxu0 0.0
    %5578 = vmatprep.subr.mxu0 0.0
    %5579 = vmatpush1.xpose.msra.mxu0 0.0
    %5580 = vmatprep.subr.mxu0 0.0
    %5581 = vmatpush1.xpose.msra.mxu0 0.0
    %5582 = vmatprep.mubr.f32.mxu0 0.0
    %5583 = vmatmul.mubr.f32.gmra.mrb[0].mxu0 %v5495
    %v5584 = vpop.f32.mrb[0].mxu0
    %v5585 = vadd.f32 %v5132, %v5584
    %v5586 = vpop.f32.mrb[0].mxu0
    %5587 = vmatprep.mubr.f32.mxu0 0.0
    %5588 = vmatmul.mubr.f32.gmra.mrb[0].mxu0 %v5498
    %v5589 = vpop.f32.mrb[0].mxu0
    %v5590 = vadd.f32 %v5133, %v5589
    %v5591 = vpop.f32.mrb[0].mxu0
    %5592 = vmatprep.mubr.f32.mxu0 0.0
    %5593 = vmatmul.mubr.f32.gmra.mrb[0].mxu0 %v5501
    %v5594 = vpop.f32.mrb[0].mxu0
    %v5595 = vadd.f32 %v5134, %v5594
    %v5596 = vpop.f32.mrb[0].mxu0
    %5597 = vmatprep.mubr.f32.mxu0 0.0
    %5598 = vmatmul.mubr.f32.gmra.mrb[0].mxu0 %v5504
    %v5599 = vpop.f32.mrb[0].mxu0
    %v5600 = vadd.f32 %v5135, %v5599
    %v5601 = vpop.f32.mrb[0].mxu0
    %5602 = vmatprep.mubr.f32.mxu0 0.0
    %5603 = vmatmul.mubr.f32.gmra.mrb[0].mxu0 %v5507
    %v5604 = vpop.f32.mrb[0].mxu0
    %v5605 = vadd.f32 %v5136, %v5604
    %v5606 = vpop.f32.mrb[0].mxu0
    %5607 = vmatprep.mubr.f32.mxu0 0.0
    %5608 = vmatmul.mubr.f32.gmra.mrb[0].mxu0 %v5510
    %v5609 = vpop.f32.mrb[0].mxu0
    %v5610 = vadd.f32 %v5137, %v5609
    %v5611 = vpop.f32.mrb[0].mxu0
    %5612 = vmatprep.mubr.f32.mxu0 0.0
    %5613 = vmatmul.mubr.f32.gmra.mrb[0].mxu0 %v5513
    %v5614 = vpop.f32.mrb[0].mxu0
    %v5615 = vadd.f32 %v5138, %v5614
    %v5616 = vpop.f32.mrb[0].mxu0
    %5617 = vmatprep.mubr.f32.mxu0 0.0
    %5618 = vmatmul.mubr.f32.gmra.mrb[0].mxu0 %v5516
    %v5619 = vpop.f32.mrb[0].mxu0
    %v5620 = vadd.f32 %v5139, %v5619
    %v5621 = vpop.f32.mrb[0].mxu0
    %5622 = vdwg.mxu0
    %v5623 = vsel %vm752, %v5585, -inf
    %5624 = vmax.xlane.f32.xlu0 %v5623
    %v5625 = vpop.xlane.xlu0 %5624
    %v5626 = vsel %vm752, %v5590, -inf
    %5627 = vmax.xlane.f32.xlu0 %v5626
    %v5628 = vpop.xlane.xlu0 %5627
    %v5629 = vsel %vm752, %v5595, -inf
    %5630 = vmax.xlane.f32.xlu0 %v5629
    %v5631 = vpop.xlane.xlu0 %5630
    %v5632 = vsel %vm752, %v5600, -inf
    %5633 = vmax.xlane.f32.xlu0 %v5632
    %v5634 = vpop.xlane.xlu0 %5633
    %v5635 = vsel %vm752, %v5605, -inf
    %5636 = vmax.xlane.f32.xlu0 %v5635
    %v5637 = vpop.xlane.xlu0 %5636
    %v5638 = vsel %vm752, %v5610, -inf
    %5639 = vmax.xlane.f32.xlu0 %v5638
    %v5640 = vpop.xlane.xlu0 %5639
    %v5641 = vsel %vm752, %v5615, -inf
    %5642 = vmax.xlane.f32.xlu0 %v5641
    %v5643 = vpop.xlane.xlu0 %5642
    %v5644 = vsel %vm752, %v5620, -inf
    %5645 = vmax.xlane.f32.xlu0 %v5644
    %v5646 = vpop.xlane.xlu0 %5645
    %v5647 = vsub.f32 %v5585, %v5625
    %v5648 = vsub.f32 %v5590, %v5628
    %v5649 = vsub.f32 %v5595, %v5631
    %v5650 = vsub.f32 %v5600, %v5634
    %v5651 = vsub.f32 %v5605, %v5637
    %v5652 = vsub.f32 %v5610, %v5640
    %v5653 = vsub.f32 %v5615, %v5643
    %v5654 = vsub.f32 %v5620, %v5646
    %v5655 = vmul.f32 %v5647, 1.442695
    %v5656 = vpow.pop %v5655
    %v5657 = vmul.f32 %v5648, 1.442695
    %v5658 = vpow.pop %v5657
    %v5659 = vmul.f32 %v5649, 1.442695
    %v5660 = vpow.pop %v5659
    %v5661 = vmul.f32 %v5650, 1.442695
    %v5662 = vpow.pop %v5661
    %v5663 = vmul.f32 %v5651, 1.442695
    %v5664 = vpow.pop %v5663
    %v5665 = vmul.f32 %v5652, 1.442695
    %v5666 = vpow.pop %v5665
    %v5667 = vmul.f32 %v5653, 1.442695
    %v5668 = vpow.pop %v5667
    %v5669 = vmul.f32 %v5654, 1.442695
    %v5670 = vpow.pop %v5669
    %v5671 = vsel %vm752, %v5656, 0.0
    %5672 = vadd.xlane.f32.xlu0 %v5671
    %v5673 = vpop.xlane.xlu0 %5672
    %v5674 = vsel %vm752, %v5658, 0.0
    %5675 = vadd.xlane.f32.xlu0 %v5674
    %v5676 = vpop.xlane.xlu0 %5675
    %v5677 = vsel %vm752, %v5660, 0.0
    %5678 = vadd.xlane.f32.xlu0 %v5677
    %v5679 = vpop.xlane.xlu0 %5678
    %v5680 = vsel %vm752, %v5662, 0.0
    %5681 = vadd.xlane.f32.xlu0 %v5680
    %v5682 = vpop.xlane.xlu0 %5681
    %v5683 = vsel %vm752, %v5664, 0.0
    %5684 = vadd.xlane.f32.xlu0 %v5683
    %v5685 = vpop.xlane.xlu0 %5684
    %v5686 = vsel %vm752, %v5666, 0.0
    %5687 = vadd.xlane.f32.xlu0 %v5686
    %v5688 = vpop.xlane.xlu0 %5687
    %v5689 = vsel %vm752, %v5668, 0.0
    %5690 = vadd.xlane.f32.xlu0 %v5689
    %v5691 = vpop.xlane.xlu0 %5690
    %v5692 = vsel %vm752, %v5670, 0.0
    %5693 = vadd.xlane.f32.xlu0 %v5692
    %v5694 = vpop.xlane.xlu0 %5693
    %v5695 = vrcp.pop %v5673
    %v5696 = vrcp.pop %v5676
    %v5697 = vrcp.pop %v5679
    %v5698 = vrcp.pop %v5682
    %v5699 = vrcp.pop %v5685
    %v5700 = vrcp.pop %v5688
    %v5701 = vrcp.pop %v5691
    %v5702 = vrcp.pop %v5694
    %v5703 = vmul.f32 %v5656, %v5695
    %v5704 = vmul.f32 %v5658, %v5696
    %v5705 = vmul.f32 %v5660, %v5697
    %v5706 = vmul.f32 %v5662, %v5698
    %v5707 = vmul.f32 %v5664, %v5699
    %v5708 = vmul.f32 %v5666, %v5700
    %v5709 = vmul.f32 %v5668, %v5701
    %v5710 = vmul.f32 %v5670, %v5702
    %v5712 = vsel %vm752, %v5703, 0
    %v5715 = vsel %vm752, %v5704, 0
    %v5718 = vsel %vm752, %v5705, 0
    %v5721 = vsel %vm752, %v5706, 0
    %v5724 = vsel %vm752, %v5707, 0
    %v5727 = vsel %vm752, %v5708, 0
    %v5730 = vsel %vm752, %v5709, 0
    %v5733 = vsel %vm752, %v5710, 0
    %5735 = vmatprep.subr.mxu0 0.0
    %5736 = vmatpush1.msra.mxu0 %v5123
    %5737 = vmatprep.subr.mxu0 0.0
    %5738 = vmatpush1.msra.mxu0 %v5124
    %5739 = vmatprep.subr.mxu0 0.0
    %5740 = vmatpush1.msra.mxu0 %v5125
    %5741 = vmatprep.subr.mxu0 0.0
    %5742 = vmatpush1.msra.mxu0 %v5126
    %5743 = vmatprep.subr.mxu0 0.0
    %5744 = vmatpush1.msra.mxu0 %v5127
    %5745 = vmatprep.subr.mxu0 0.0
    %5746 = vmatpush1.msra.mxu0 %v5128
    %5747 = vmatprep.subr.mxu0 0.0
    %5748 = vmatpush1.msra.mxu0 %v5129
    %5749 = vmatprep.subr.mxu0 0.0
    %5750 = vmatpush1.msra.mxu0 %v5130
    %5751 = vmatprep.subr.mxu0 0.0
    %5752 = vmatpush1.msra.mxu0 0.0
    %5753 = vmatprep.subr.mxu0 0.0
    %5754 = vmatpush1.msra.mxu0 0.0
    %5755 = vmatprep.subr.mxu0 0.0
    %5756 = vmatpush1.msra.mxu0 0.0
    %5757 = vmatprep.subr.mxu0 0.0
    %5758 = vmatpush1.msra.mxu0 0.0
    %5759 = vmatprep.subr.mxu0 0.0
    %5760 = vmatpush1.msra.mxu0 0.0
    %5761 = vmatprep.subr.mxu0 0.0
    %5762 = vmatpush1.msra.mxu0 0.0
    %5763 = vmatprep.subr.mxu0 0.0
    %5764 = vmatpush1.msra.mxu0 0.0
    %5765 = vmatprep.subr.mxu0 0.0
    %5766 = vmatpush1.msra.mxu0 0.0
    %5767 = vmatprep.subr.mxu0 0.0
    %5768 = vmatpush1.msra.mxu0 0.0
    %5769 = vmatprep.subr.mxu0 0.0
    %5770 = vmatpush1.msra.mxu0 0.0
    %5771 = vmatprep.subr.mxu0 0.0
    %5772 = vmatpush1.msra.mxu0 0.0
    %5773 = vmatprep.subr.mxu0 0.0
    %5774 = vmatpush1.msra.mxu0 0.0
    %5775 = vmatprep.subr.mxu0 0.0
    %5776 = vmatpush1.msra.mxu0 0.0
    %5777 = vmatprep.subr.mxu0 0.0
    %5778 = vmatpush1.msra.mxu0 0.0
    %5779 = vmatprep.subr.mxu0 0.0
    %5780 = vmatpush1.msra.mxu0 0.0
    %5781 = vmatprep.subr.mxu0 0.0
    %5782 = vmatpush1.msra.mxu0 0.0
    %5783 = vmatprep.subr.mxu0 0.0
    %5784 = vmatpush1.msra.mxu0 0.0
    %5785 = vmatprep.subr.mxu0 0.0
    %5786 = vmatpush1.msra.mxu0 0.0
    %5787 = vmatprep.subr.mxu0 0.0
    %5788 = vmatpush1.msra.mxu0 0.0
    %5789 = vmatprep.subr.mxu0 0.0
    %5790 = vmatpush1.msra.mxu0 0.0
    %5791 = vmatprep.subr.mxu0 0.0
    %5792 = vmatpush1.msra.mxu0 0.0
    %5793 = vmatprep.subr.mxu0 0.0
    %5794 = vmatpush1.msra.mxu0 0.0
    %5795 = vmatprep.subr.mxu0 0.0
    %5796 = vmatpush1.msra.mxu0 0.0
    %5797 = vmatprep.subr.mxu0 0.0
    %5798 = vmatpush1.msra.mxu0 0.0
    %5799 = vmatprep.mubr.f32.mxu0 0.0
    %5800 = vmatmul.mubr.f32.gmra.mrb[0].mxu0 %v5712
    %v5801 = vpop.f32.mrb[0].mxu0
    %v5802 = vadd.f32 0.0, %v5801
    %v5803 = vpop.f32.mrb[0].mxu0
    %5804 = vmatprep.mubr.f32.mxu0 0.0
    %5805 = vmatmul.mubr.f32.gmra.mrb[0].mxu0 %v5715
    %v5806 = vpop.f32.mrb[0].mxu0
    %v5807 = vadd.f32 0.0, %v5806
    %v5808 = vpop.f32.mrb[0].mxu0
    %5809 = vmatprep.mubr.f32.mxu0 0.0
    %5810 = vmatmul.mubr.f32.gmra.mrb[0].mxu0 %v5718
    %v5811 = vpop.f32.mrb[0].mxu0
    %v5812 = vadd.f32 0.0, %v5811
    %v5813 = vpop.f32.mrb[0].mxu0
    %5814 = vmatprep.mubr.f32.mxu0 0.0
    %5815 = vmatmul.mubr.f32.gmra.mrb[0].mxu0 %v5721
    %v5816 = vpop.f32.mrb[0].mxu0
    %v5817 = vadd.f32 0.0, %v5816
    %v5818 = vpop.f32.mrb[0].mxu0
    %5819 = vmatprep.mubr.f32.mxu0 0.0
    %5820 = vmatmul.mubr.f32.gmra.mrb[0].mxu0 %v5724
    %v5821 = vpop.f32.mrb[0].mxu0
    %v5822 = vadd.f32 0.0, %v5821
    %v5823 = vpop.f32.mrb[0].mxu0
    %5824 = vmatprep.mubr.f32.mxu0 0.0
    %5825 = vmatmul.mubr.f32.gmra.mrb[0].mxu0 %v5727
    %v5826 = vpop.f32.mrb[0].mxu0
    %v5827 = vadd.f32 0.0, %v5826
    %v5828 = vpop.f32.mrb[0].mxu0
    %5829 = vmatprep.mubr.f32.mxu0 0.0
    %5830 = vmatmul.mubr.f32.gmra.mrb[0].mxu0 %v5730
    %v5831 = vpop.f32.mrb[0].mxu0
    %v5832 = vadd.f32 0.0, %v5831
    %v5833 = vpop.f32.mrb[0].mxu0
    %5834 = vmatprep.mubr.f32.mxu0 0.0
    %5835 = vmatmul.mubr.f32.gmra.mrb[0].mxu0 %v5733
    %v5836 = vpop.f32.mrb[0].mxu0
    %v5837 = vadd.f32 0.0, %v5836
    %v5838 = vpop.f32.mrb[0].mxu0
    %5839 = vdwg.mxu0
    %v5840 = vadd.f32 %v5086, %v5802
    %v5841 = vadd.f32 %v5087, %v5807
    %v5842 = vadd.f32 %v5088, %v5812
    %v5843 = vadd.f32 %v5089, %v5817
    %v5844 = vadd.f32 %v5090, %v5822
    %v5845 = vadd.f32 %v5091, %v5827
    %v5846 = vadd.f32 %v5092, %v5832
    %v5847 = vadd.f32 %v5093, %v5837
    %vm5848 = vcmp.ge.s32.totalorder %v553, 28
    %vm5849 = vcmp.lt.s32.totalorder %v553, 32
    %vm5850 = vmand %vm5848, %vm5849
    %v5851 = vsel %vm5850, 0.5, 0.0
    %v5852 = vmul.f32 %v176, %v5851
    %v5853 = vmul.f32 %v181, %v5851
    %v5854 = vmul.f32 %v186, %v5851
    %v5855 = vmul.f32 %v191, %v5851
    %v5856 = vmul.f32 %v196, %v5851
    %v5857 = vmul.f32 %v201, %v5851
    %v5858 = vmul.f32 %v206, %v5851
    %v5859 = vmul.f32 %v211, %v5851
    %v5860 = vmul.f32 %v216, %v5851
    %v5861 = vmul.f32 %v221, %v5851
    %v5862 = vmul.f32 %v226, %v5851
    %v5863 = vmul.f32 %v231, %v5851
    %v5864 = vmul.f32 %v236, %v5851
    %v5865 = vmul.f32 %v241, %v5851
    %v5866 = vmul.f32 %v246, %v5851
    %v5867 = vmul.f32 %v251, %v5851
    %v5868 = vsel %vm5850, 1.0, 0.0
    %v5869 = vmul.f32 %v474, %v5868
    %v5870 = vmul.f32 %v479, %v5868
    %v5871 = vmul.f32 %v484, %v5868
    %v5872 = vmul.f32 %v489, %v5868
    %v5873 = vmul.f32 %v494, %v5868
    %v5874 = vmul.f32 %v499, %v5868
    %v5875 = vmul.f32 %v504, %v5868
    %v5876 = vmul.f32 %v509, %v5868
    %v5877 = vmul.f32 %v514, %v5868
    %v5878 = vmul.f32 %v519, %v5868
    %v5879 = vmul.f32 %v524, %v5868
    %v5880 = vmul.f32 %v529, %v5868
    %v5881 = vmul.f32 %v534, %v5868
    %v5882 = vmul.f32 %v539, %v5868
    %v5883 = vmul.f32 %v544, %v5868
    %v5884 = vmul.f32 %v549, %v5868
    %s5885 = scalar_lea.vmem [#allocation2], 448
    %v5886 = vld [vmem:[%s5885] sm:$0xff]
    %v5887 = vld [vmem:[%s5885 + $0x8] sm:$0xff]
    %v5888 = vld [vmem:[%s5885 + $0x10] sm:$0xff]
    %v5889 = vld [vmem:[%s5885 + $0x18] sm:$0xff]
    %v5890 = vld [vmem:[%s5885 + $0x20] sm:$0xff]
    %v5891 = vld [vmem:[%s5885 + $0x28] sm:$0xff]
    %v5892 = vld [vmem:[%s5885 + $0x30] sm:$0xff]
    %v5893 = vld [vmem:[%s5885 + $0x38] sm:$0xff]
    %v5895 = vsel %vm60, %v5852, 0
    %v5898 = vsel %vm60, %v5853, 0
    %v5901 = vsel %vm60, %v5854, 0
    %v5904 = vsel %vm60, %v5855, 0
    %v5907 = vsel %vm60, %v5856, 0
    %v5910 = vsel %vm60, %v5857, 0
    %v5913 = vsel %vm60, %v5858, 0
    %v5916 = vsel %vm60, %v5859, 0
    %5918 = vmatprep.subr.mxu0 0.0
    %5919 = vmatpush1.xpose.msra.mxu0 %v624
    %5920 = vmatprep.subr.mxu0 0.0
    %5921 = vmatpush1.xpose.msra.mxu0 %v627
    %5922 = vmatprep.subr.mxu0 0.0
    %5923 = vmatpush1.xpose.msra.mxu0 %v630
    %5924 = vmatprep.subr.mxu0 0.0
    %5925 = vmatpush1.xpose.msra.mxu0 %v633
    %5926 = vmatprep.subr.mxu0 0.0
    %5927 = vmatpush1.xpose.msra.mxu0 %v636
    %5928 = vmatprep.subr.mxu0 0.0
    %5929 = vmatpush1.xpose.msra.mxu0 %v639
    %5930 = vmatprep.subr.mxu0 0.0
    %5931 = vmatpush1.xpose.msra.mxu0 %v642
    %5932 = vmatprep.subr.mxu0 0.0
    %5933 = vmatpush1.xpose.msra.mxu0 %v645
    %5934 = vmatprep.subr.mxu0 0.0
    %5935 = vmatpush1.xpose.msra.mxu0 0.0
    %5936 = vmatprep.subr.mxu0 0.0
    %5937 = vmatpush1.xpose.msra.mxu0 0.0
    %5938 = vmatprep.subr.mxu0 0.0
    %5939 = vmatpush1.xpose.msra.mxu0 0.0
    %5940 = vmatprep.subr.mxu0 0.0
    %5941 = vmatpush1.xpose.msra.mxu0 0.0
    %5942 = vmatprep.subr.mxu0 0.0
    %5943 = vmatpush1.xpose.msra.mxu0 0.0
    %5944 = vmatprep.subr.mxu0 0.0
    %5945 = vmatpush1.xpose.msra.mxu0 0.0
    %5946 = vmatprep.subr.mxu0 0.0
    %5947 = vmatpush1.xpose.msra.mxu0 0.0
    %5948 = vmatprep.subr.mxu0 0.0
    %5949 = vmatpush1.xpose.msra.mxu0 0.0
    %5950 = vmatprep.subr.mxu0 0.0
    %5951 = vmatpush1.xpose.msra.mxu0 0.0
    %5952 = vmatprep.subr.mxu0 0.0
    %5953 = vmatpush1.xpose.msra.mxu0 0.0
    %5954 = vmatprep.subr.mxu0 0.0
    %5955 = vmatpush1.xpose.msra.mxu0 0.0
    %5956 = vmatprep.subr.mxu0 0.0
    %5957 = vmatpush1.xpose.msra.mxu0 0.0
    %5958 = vmatprep.subr.mxu0 0.0
    %5959 = vmatpush1.xpose.msra.mxu0 0.0
    %5960 = vmatprep.subr.mxu0 0.0
    %5961 = vmatpush1.xpose.msra.mxu0 0.0
    %5962 = vmatprep.subr.mxu0 0.0
    %5963 = vmatpush1.xpose.msra.mxu0 0.0
    %5964 = vmatprep.subr.mxu0 0.0
    %5965 = vmatpush1.xpose.msra.mxu0 0.0
    %5966 = vmatprep.subr.mxu0 0.0
    %5967 = vmatpush1.xpose.msra.mxu0 0.0
    %5968 = vmatprep.subr.mxu0 0.0
    %5969 = vmatpush1.xpose.msra.mxu0 0.0
    %5970 = vmatprep.subr.mxu0 0.0
    %5971 = vmatpush1.xpose.msra.mxu0 0.0
    %5972 = vmatprep.subr.mxu0 0.0
    %5973 = vmatpush1.xpose.msra.mxu0 0.0
    %5974 = vmatprep.subr.mxu0 0.0
    %5975 = vmatpush1.xpose.msra.mxu0 0.0
    %5976 = vmatprep.subr.mxu0 0.0
    %5977 = vmatpush1.xpose.msra.mxu0 0.0
    %5978 = vmatprep.subr.mxu0 0.0
    %5979 = vmatpush1.xpose.msra.mxu0 0.0
    %5980 = vmatprep.subr.mxu0 0.0
    %5981 = vmatpush1.xpose.msra.mxu0 0.0
    %5982 = vmatprep.mubr.f32.mxu0 0.0
    %5983 = vmatmul.mubr.f32.gmra.mrb[0].mxu0 %v5895
    %v5984 = vpop.f32.mrb[0].mxu0
    %v5985 = vadd.f32 %v5886, %v5984
    %v5986 = vpop.f32.mrb[0].mxu0
    %5987 = vmatprep.mubr.f32.mxu0 0.0
    %5988 = vmatmul.mubr.f32.gmra.mrb[0].mxu0 %v5898
    %v5989 = vpop.f32.mrb[0].mxu0
    %v5990 = vadd.f32 %v5887, %v5989
    %v5991 = vpop.f32.mrb[0].mxu0
    %5992 = vmatprep.mubr.f32.mxu0 0.0
    %5993 = vmatmul.mubr.f32.gmra.mrb[0].mxu0 %v5901
    %v5994 = vpop.f32.mrb[0].mxu0
    %v5995 = vadd.f32 %v5888, %v5994
    %v5996 = vpop.f32.mrb[0].mxu0
    %5997 = vmatprep.mubr.f32.mxu0 0.0
    %5998 = vmatmul.mubr.f32.gmra.mrb[0].mxu0 %v5904
    %v5999 = vpop.f32.mrb[0].mxu0
    %v6000 = vadd.f32 %v5889, %v5999
    %v6001 = vpop.f32.mrb[0].mxu0
    %6002 = vmatprep.mubr.f32.mxu0 0.0
    %6003 = vmatmul.mubr.f32.gmra.mrb[0].mxu0 %v5907
    %v6004 = vpop.f32.mrb[0].mxu0
    %v6005 = vadd.f32 %v5890, %v6004
    %v6006 = vpop.f32.mrb[0].mxu0
    %6007 = vmatprep.mubr.f32.mxu0 0.0
    %6008 = vmatmul.mubr.f32.gmra.mrb[0].mxu0 %v5910
    %v6009 = vpop.f32.mrb[0].mxu0
    %v6010 = vadd.f32 %v5891, %v6009
    %v6011 = vpop.f32.mrb[0].mxu0
    %6012 = vmatprep.mubr.f32.mxu0 0.0
    %6013 = vmatmul.mubr.f32.gmra.mrb[0].mxu0 %v5913
    %v6014 = vpop.f32.mrb[0].mxu0
    %v6015 = vadd.f32 %v5892, %v6014
    %v6016 = vpop.f32.mrb[0].mxu0
    %6017 = vmatprep.mubr.f32.mxu0 0.0
    %6018 = vmatmul.mubr.f32.gmra.mrb[0].mxu0 %v5916
    %v6019 = vpop.f32.mrb[0].mxu0
    %v6020 = vadd.f32 %v5893, %v6019
    %v6021 = vpop.f32.mrb[0].mxu0
    %6022 = vdwg.mxu0
    %v6023 = vsel %vm752, %v5985, -inf
    %6024 = vmax.xlane.f32.xlu0 %v6023
    %v6025 = vpop.xlane.xlu0 %6024
    %v6026 = vsel %vm752, %v5990, -inf
    %6027 = vmax.xlane.f32.xlu0 %v6026
    %v6028 = vpop.xlane.xlu0 %6027
    %v6029 = vsel %vm752, %v5995, -inf
    %6030 = vmax.xlane.f32.xlu0 %v6029
    %v6031 = vpop.xlane.xlu0 %6030
    %v6032 = vsel %vm752, %v6000, -inf
    %6033 = vmax.xlane.f32.xlu0 %v6032
    %v6034 = vpop.xlane.xlu0 %6033
    %v6035 = vsel %vm752, %v6005, -inf
    %6036 = vmax.xlane.f32.xlu0 %v6035
    %v6037 = vpop.xlane.xlu0 %6036
    %v6038 = vsel %vm752, %v6010, -inf
    %6039 = vmax.xlane.f32.xlu0 %v6038
    %v6040 = vpop.xlane.xlu0 %6039
    %v6041 = vsel %vm752, %v6015, -inf
    %6042 = vmax.xlane.f32.xlu0 %v6041
    %v6043 = vpop.xlane.xlu0 %6042
    %v6044 = vsel %vm752, %v6020, -inf
    %6045 = vmax.xlane.f32.xlu0 %v6044
    %v6046 = vpop.xlane.xlu0 %6045
    %v6047 = vsub.f32 %v5985, %v6025
    %v6048 = vsub.f32 %v5990, %v6028
    %v6049 = vsub.f32 %v5995, %v6031
    %v6050 = vsub.f32 %v6000, %v6034
    %v6051 = vsub.f32 %v6005, %v6037
    %v6052 = vsub.f32 %v6010, %v6040
    %v6053 = vsub.f32 %v6015, %v6043
    %v6054 = vsub.f32 %v6020, %v6046
    %v6055 = vmul.f32 %v6047, 1.442695
    %v6056 = vpow.pop %v6055
    %v6057 = vmul.f32 %v6048, 1.442695
    %v6058 = vpow.pop %v6057
    %v6059 = vmul.f32 %v6049, 1.442695
    %v6060 = vpow.pop %v6059
    %v6061 = vmul.f32 %v6050, 1.442695
    %v6062 = vpow.pop %v6061
    %v6063 = vmul.f32 %v6051, 1.442695
    %v6064 = vpow.pop %v6063
    %v6065 = vmul.f32 %v6052, 1.442695
    %v6066 = vpow.pop %v6065
    %v6067 = vmul.f32 %v6053, 1.442695
    %v6068 = vpow.pop %v6067
    %v6069 = vmul.f32 %v6054, 1.442695
    %v6070 = vpow.pop %v6069
    %v6071 = vsel %vm752, %v6056, 0.0
    %6072 = vadd.xlane.f32.xlu0 %v6071
    %v6073 = vpop.xlane.xlu0 %6072
    %v6074 = vsel %vm752, %v6058, 0.0
    %6075 = vadd.xlane.f32.xlu0 %v6074
    %v6076 = vpop.xlane.xlu0 %6075
    %v6077 = vsel %vm752, %v6060, 0.0
    %6078 = vadd.xlane.f32.xlu0 %v6077
    %v6079 = vpop.xlane.xlu0 %6078
    %v6080 = vsel %vm752, %v6062, 0.0
    %6081 = vadd.xlane.f32.xlu0 %v6080
    %v6082 = vpop.xlane.xlu0 %6081
    %v6083 = vsel %vm752, %v6064, 0.0
    %6084 = vadd.xlane.f32.xlu0 %v6083
    %v6085 = vpop.xlane.xlu0 %6084
    %v6086 = vsel %vm752, %v6066, 0.0
    %6087 = vadd.xlane.f32.xlu0 %v6086
    %v6088 = vpop.xlane.xlu0 %6087
    %v6089 = vsel %vm752, %v6068, 0.0
    %6090 = vadd.xlane.f32.xlu0 %v6089
    %v6091 = vpop.xlane.xlu0 %6090
    %v6092 = vsel %vm752, %v6070, 0.0
    %6093 = vadd.xlane.f32.xlu0 %v6092
    %v6094 = vpop.xlane.xlu0 %6093
    %v6095 = vrcp.pop %v6073
    %v6096 = vrcp.pop %v6076
    %v6097 = vrcp.pop %v6079
    %v6098 = vrcp.pop %v6082
    %v6099 = vrcp.pop %v6085
    %v6100 = vrcp.pop %v6088
    %v6101 = vrcp.pop %v6091
    %v6102 = vrcp.pop %v6094
    %v6103 = vmul.f32 %v6056, %v6095
    %v6104 = vmul.f32 %v6058, %v6096
    %v6105 = vmul.f32 %v6060, %v6097
    %v6106 = vmul.f32 %v6062, %v6098
    %v6107 = vmul.f32 %v6064, %v6099
    %v6108 = vmul.f32 %v6066, %v6100
    %v6109 = vmul.f32 %v6068, %v6101
    %v6110 = vmul.f32 %v6070, %v6102
    %v6112 = vsel %vm752, %v6103, 0
    %v6115 = vsel %vm752, %v6104, 0
    %v6118 = vsel %vm752, %v6105, 0
    %v6121 = vsel %vm752, %v6106, 0
    %v6124 = vsel %vm752, %v6107, 0
    %v6127 = vsel %vm752, %v6108, 0
    %v6130 = vsel %vm752, %v6109, 0
    %v6133 = vsel %vm752, %v6110, 0
    %6135 = vmatprep.subr.mxu0 0.0
    %6136 = vmatpush1.msra.mxu0 %v5869
    %6137 = vmatprep.subr.mxu0 0.0
    %6138 = vmatpush1.msra.mxu0 %v5870
    %6139 = vmatprep.subr.mxu0 0.0
    %6140 = vmatpush1.msra.mxu0 %v5871
    %6141 = vmatprep.subr.mxu0 0.0
    %6142 = vmatpush1.msra.mxu0 %v5872
    %6143 = vmatprep.subr.mxu0 0.0
    %6144 = vmatpush1.msra.mxu0 %v5873
    %6145 = vmatprep.subr.mxu0 0.0
    %6146 = vmatpush1.msra.mxu0 %v5874
    %6147 = vmatprep.subr.mxu0 0.0
    %6148 = vmatpush1.msra.mxu0 %v5875
    %6149 = vmatprep.subr.mxu0 0.0
    %6150 = vmatpush1.msra.mxu0 %v5876
    %6151 = vmatprep.subr.mxu0 0.0
    %6152 = vmatpush1.msra.mxu0 0.0
    %6153 = vmatprep.subr.mxu0 0.0
    %6154 = vmatpush1.msra.mxu0 0.0
    %6155 = vmatprep.subr.mxu0 0.0
    %6156 = vmatpush1.msra.mxu0 0.0
    %6157 = vmatprep.subr.mxu0 0.0
    %6158 = vmatpush1.msra.mxu0 0.0
    %6159 = vmatprep.subr.mxu0 0.0
    %6160 = vmatpush1.msra.mxu0 0.0
    %6161 = vmatprep.subr.mxu0 0.0
    %6162 = vmatpush1.msra.mxu0 0.0
    %6163 = vmatprep.subr.mxu0 0.0
    %6164 = vmatpush1.msra.mxu0 0.0
    %6165 = vmatprep.subr.mxu0 0.0
    %6166 = vmatpush1.msra.mxu0 0.0
    %6167 = vmatprep.subr.mxu0 0.0
    %6168 = vmatpush1.msra.mxu0 0.0
    %6169 = vmatprep.subr.mxu0 0.0
    %6170 = vmatpush1.msra.mxu0 0.0
    %6171 = vmatprep.subr.mxu0 0.0
    %6172 = vmatpush1.msra.mxu0 0.0
    %6173 = vmatprep.subr.mxu0 0.0
    %6174 = vmatpush1.msra.mxu0 0.0
    %6175 = vmatprep.subr.mxu0 0.0
    %6176 = vmatpush1.msra.mxu0 0.0
    %6177 = vmatprep.subr.mxu0 0.0
    %6178 = vmatpush1.msra.mxu0 0.0
    %6179 = vmatprep.subr.mxu0 0.0
    %6180 = vmatpush1.msra.mxu0 0.0
    %6181 = vmatprep.subr.mxu0 0.0
    %6182 = vmatpush1.msra.mxu0 0.0
    %6183 = vmatprep.subr.mxu0 0.0
    %6184 = vmatpush1.msra.mxu0 0.0
    %6185 = vmatprep.subr.mxu0 0.0
    %6186 = vmatpush1.msra.mxu0 0.0
    %6187 = vmatprep.subr.mxu0 0.0
    %6188 = vmatpush1.msra.mxu0 0.0
    %6189 = vmatprep.subr.mxu0 0.0
    %6190 = vmatpush1.msra.mxu0 0.0
    %6191 = vmatprep.subr.mxu0 0.0
    %6192 = vmatpush1.msra.mxu0 0.0
    %6193 = vmatprep.subr.mxu0 0.0
    %6194 = vmatpush1.msra.mxu0 0.0
    %6195 = vmatprep.subr.mxu0 0.0
    %6196 = vmatpush1.msra.mxu0 0.0
    %6197 = vmatprep.subr.mxu0 0.0
    %6198 = vmatpush1.msra.mxu0 0.0
    %6199 = vmatprep.mubr.f32.mxu0 0.0
    %6200 = vmatmul.mubr.f32.gmra.mrb[0].mxu0 %v6112
    %v6201 = vpop.f32.mrb[0].mxu0
    %v6202 = vadd.f32 0.0, %v6201
    %v6203 = vpop.f32.mrb[0].mxu0
    %6204 = vmatprep.mubr.f32.mxu0 0.0
    %6205 = vmatmul.mubr.f32.gmra.mrb[0].mxu0 %v6115
    %v6206 = vpop.f32.mrb[0].mxu0
    %v6207 = vadd.f32 0.0, %v6206
    %v6208 = vpop.f32.mrb[0].mxu0
    %6209 = vmatprep.mubr.f32.mxu0 0.0
    %6210 = vmatmul.mubr.f32.gmra.mrb[0].mxu0 %v6118
    %v6211 = vpop.f32.mrb[0].mxu0
    %v6212 = vadd.f32 0.0, %v6211
    %v6213 = vpop.f32.mrb[0].mxu0
    %6214 = vmatprep.mubr.f32.mxu0 0.0
    %6215 = vmatmul.mubr.f32.gmra.mrb[0].mxu0 %v6121
    %v6216 = vpop.f32.mrb[0].mxu0
    %v6217 = vadd.f32 0.0, %v6216
    %v6218 = vpop.f32.mrb[0].mxu0
    %6219 = vmatprep.mubr.f32.mxu0 0.0
    %6220 = vmatmul.mubr.f32.gmra.mrb[0].mxu0 %v6124
    %v6221 = vpop.f32.mrb[0].mxu0
    %v6222 = vadd.f32 0.0, %v6221
    %v6223 = vpop.f32.mrb[0].mxu0
    %6224 = vmatprep.mubr.f32.mxu0 0.0
    %6225 = vmatmul.mubr.f32.gmra.mrb[0].mxu0 %v6127
    %v6226 = vpop.f32.mrb[0].mxu0
    %v6227 = vadd.f32 0.0, %v6226
    %v6228 = vpop.f32.mrb[0].mxu0
    %6229 = vmatprep.mubr.f32.mxu0 0.0
    %6230 = vmatmul.mubr.f32.gmra.mrb[0].mxu0 %v6130
    %v6231 = vpop.f32.mrb[0].mxu0
    %v6232 = vadd.f32 0.0, %v6231
    %v6233 = vpop.f32.mrb[0].mxu0
    %6234 = vmatprep.mubr.f32.mxu0 0.0
    %6235 = vmatmul.mubr.f32.gmra.mrb[0].mxu0 %v6133
    %v6236 = vpop.f32.mrb[0].mxu0
    %v6237 = vadd.f32 0.0, %v6236
    %v6238 = vpop.f32.mrb[0].mxu0
    %6239 = vdwg.mxu0
    %v6240 = vadd.f32 %v5486, %v6202
    %v6241 = vadd.f32 %v5487, %v6207
    %v6242 = vadd.f32 %v5488, %v6212
    %v6243 = vadd.f32 %v5489, %v6217
    %v6244 = vadd.f32 %v5490, %v6222
    %v6245 = vadd.f32 %v5491, %v6227
    %v6246 = vadd.f32 %v5492, %v6232
    %v6247 = vadd.f32 %v5493, %v6237
    %v6249 = vsel %vm60, %v5860, 0
    %v6252 = vsel %vm60, %v5861, 0
    %v6255 = vsel %vm60, %v5862, 0
    %v6258 = vsel %vm60, %v5863, 0
    %v6261 = vsel %vm60, %v5864, 0
    %v6264 = vsel %vm60, %v5865, 0
    %v6267 = vsel %vm60, %v5866, 0
    %v6270 = vsel %vm60, %v5867, 0
    %6272 = vmatprep.subr.mxu0 0.0
    %6273 = vmatpush1.xpose.msra.mxu0 %v866
    %6274 = vmatprep.subr.mxu0 0.0
    %6275 = vmatpush1.xpose.msra.mxu0 %v869
    %6276 = vmatprep.subr.mxu0 0.0
    %6277 = vmatpush1.xpose.msra.mxu0 %v872
    %6278 = vmatprep.subr.mxu0 0.0
    %6279 = vmatpush1.xpose.msra.mxu0 %v875
    %6280 = vmatprep.subr.mxu0 0.0
    %6281 = vmatpush1.xpose.msra.mxu0 %v878
    %6282 = vmatprep.subr.mxu0 0.0
    %6283 = vmatpush1.xpose.msra.mxu0 %v881
    %6284 = vmatprep.subr.mxu0 0.0
    %6285 = vmatpush1.xpose.msra.mxu0 %v884
    %6286 = vmatprep.subr.mxu0 0.0
    %6287 = vmatpush1.xpose.msra.mxu0 %v887
    %6288 = vmatprep.subr.mxu0 0.0
    %6289 = vmatpush1.xpose.msra.mxu0 0.0
    %6290 = vmatprep.subr.mxu0 0.0
    %6291 = vmatpush1.xpose.msra.mxu0 0.0
    %6292 = vmatprep.subr.mxu0 0.0
    %6293 = vmatpush1.xpose.msra.mxu0 0.0
    %6294 = vmatprep.subr.mxu0 0.0
    %6295 = vmatpush1.xpose.msra.mxu0 0.0
    %6296 = vmatprep.subr.mxu0 0.0
    %6297 = vmatpush1.xpose.msra.mxu0 0.0
    %6298 = vmatprep.subr.mxu0 0.0
    %6299 = vmatpush1.xpose.msra.mxu0 0.0
    %6300 = vmatprep.subr.mxu0 0.0
    %6301 = vmatpush1.xpose.msra.mxu0 0.0
    %6302 = vmatprep.subr.mxu0 0.0
    %6303 = vmatpush1.xpose.msra.mxu0 0.0
    %6304 = vmatprep.subr.mxu0 0.0
    %6305 = vmatpush1.xpose.msra.mxu0 0.0
    %6306 = vmatprep.subr.mxu0 0.0
    %6307 = vmatpush1.xpose.msra.mxu0 0.0
    %6308 = vmatprep.subr.mxu0 0.0
    %6309 = vmatpush1.xpose.msra.mxu0 0.0
    %6310 = vmatprep.subr.mxu0 0.0
    %6311 = vmatpush1.xpose.msra.mxu0 0.0
    %6312 = vmatprep.subr.mxu0 0.0
    %6313 = vmatpush1.xpose.msra.mxu0 0.0
    %6314 = vmatprep.subr.mxu0 0.0
    %6315 = vmatpush1.xpose.msra.mxu0 0.0
    %6316 = vmatprep.subr.mxu0 0.0
    %6317 = vmatpush1.xpose.msra.mxu0 0.0
    %6318 = vmatprep.subr.mxu0 0.0
    %6319 = vmatpush1.xpose.msra.mxu0 0.0
    %6320 = vmatprep.subr.mxu0 0.0
    %6321 = vmatpush1.xpose.msra.mxu0 0.0
    %6322 = vmatprep.subr.mxu0 0.0
    %6323 = vmatpush1.xpose.msra.mxu0 0.0
    %6324 = vmatprep.subr.mxu0 0.0
    %6325 = vmatpush1.xpose.msra.mxu0 0.0
    %6326 = vmatprep.subr.mxu0 0.0
    %6327 = vmatpush1.xpose.msra.mxu0 0.0
    %6328 = vmatprep.subr.mxu0 0.0
    %6329 = vmatpush1.xpose.msra.mxu0 0.0
    %6330 = vmatprep.subr.mxu0 0.0
    %6331 = vmatpush1.xpose.msra.mxu0 0.0
    %6332 = vmatprep.subr.mxu0 0.0
    %6333 = vmatpush1.xpose.msra.mxu0 0.0
    %6334 = vmatprep.subr.mxu0 0.0
    %6335 = vmatpush1.xpose.msra.mxu0 0.0
    %6336 = vmatprep.mubr.f32.mxu0 0.0
    %6337 = vmatmul.mubr.f32.gmra.mrb[0].mxu0 %v6249
    %v6338 = vpop.f32.mrb[0].mxu0
    %v6339 = vadd.f32 %v5886, %v6338
    %v6340 = vpop.f32.mrb[0].mxu0
    %6341 = vmatprep.mubr.f32.mxu0 0.0
    %6342 = vmatmul.mubr.f32.gmra.mrb[0].mxu0 %v6252
    %v6343 = vpop.f32.mrb[0].mxu0
    %v6344 = vadd.f32 %v5887, %v6343
    %v6345 = vpop.f32.mrb[0].mxu0
    %6346 = vmatprep.mubr.f32.mxu0 0.0
    %6347 = vmatmul.mubr.f32.gmra.mrb[0].mxu0 %v6255
    %v6348 = vpop.f32.mrb[0].mxu0
    %v6349 = vadd.f32 %v5888, %v6348
    %v6350 = vpop.f32.mrb[0].mxu0
    %6351 = vmatprep.mubr.f32.mxu0 0.0
    %6352 = vmatmul.mubr.f32.gmra.mrb[0].mxu0 %v6258
    %v6353 = vpop.f32.mrb[0].mxu0
    %v6354 = vadd.f32 %v5889, %v6353
    %v6355 = vpop.f32.mrb[0].mxu0
    %6356 = vmatprep.mubr.f32.mxu0 0.0
    %6357 = vmatmul.mubr.f32.gmra.mrb[0].mxu0 %v6261
    %v6358 = vpop.f32.mrb[0].mxu0
    %v6359 = vadd.f32 %v5890, %v6358
    %v6360 = vpop.f32.mrb[0].mxu0
    %6361 = vmatprep.mubr.f32.mxu0 0.0
    %6362 = vmatmul.mubr.f32.gmra.mrb[0].mxu0 %v6264
    %v6363 = vpop.f32.mrb[0].mxu0
    %v6364 = vadd.f32 %v5891, %v6363
    %v6365 = vpop.f32.mrb[0].mxu0
    %6366 = vmatprep.mubr.f32.mxu0 0.0
    %6367 = vmatmul.mubr.f32.gmra.mrb[0].mxu0 %v6267
    %v6368 = vpop.f32.mrb[0].mxu0
    %v6369 = vadd.f32 %v5892, %v6368
    %v6370 = vpop.f32.mrb[0].mxu0
    %6371 = vmatprep.mubr.f32.mxu0 0.0
    %6372 = vmatmul.mubr.f32.gmra.mrb[0].mxu0 %v6270
    %v6373 = vpop.f32.mrb[0].mxu0
    %v6374 = vadd.f32 %v5893, %v6373
    %v6375 = vpop.f32.mrb[0].mxu0
    %6376 = vdwg.mxu0
    %v6377 = vsel %vm752, %v6339, -inf
    %6378 = vmax.xlane.f32.xlu0 %v6377
    %v6379 = vpop.xlane.xlu0 %6378
    %v6380 = vsel %vm752, %v6344, -inf
    %6381 = vmax.xlane.f32.xlu0 %v6380
    %v6382 = vpop.xlane.xlu0 %6381
    %v6383 = vsel %vm752, %v6349, -inf
    %6384 = vmax.xlane.f32.xlu0 %v6383
    %v6385 = vpop.xlane.xlu0 %6384
    %v6386 = vsel %vm752, %v6354, -inf
    %6387 = vmax.xlane.f32.xlu0 %v6386
    %v6388 = vpop.xlane.xlu0 %6387
    %v6389 = vsel %vm752, %v6359, -inf
    %6390 = vmax.xlane.f32.xlu0 %v6389
    %v6391 = vpop.xlane.xlu0 %6390
    %v6392 = vsel %vm752, %v6364, -inf
    %6393 = vmax.xlane.f32.xlu0 %v6392
    %v6394 = vpop.xlane.xlu0 %6393
    %v6395 = vsel %vm752, %v6369, -inf
    %6396 = vmax.xlane.f32.xlu0 %v6395
    %v6397 = vpop.xlane.xlu0 %6396
    %v6398 = vsel %vm752, %v6374, -inf
    %6399 = vmax.xlane.f32.xlu0 %v6398
    %v6400 = vpop.xlane.xlu0 %6399
    %v6401 = vsub.f32 %v6339, %v6379
    %v6402 = vsub.f32 %v6344, %v6382
    %v6403 = vsub.f32 %v6349, %v6385
    %v6404 = vsub.f32 %v6354, %v6388
    %v6405 = vsub.f32 %v6359, %v6391
    %v6406 = vsub.f32 %v6364, %v6394
    %v6407 = vsub.f32 %v6369, %v6397
    %v6408 = vsub.f32 %v6374, %v6400
    %v6409 = vmul.f32 %v6401, 1.442695
    %v6410 = vpow.pop %v6409
    %v6411 = vmul.f32 %v6402, 1.442695
    %v6412 = vpow.pop %v6411
    %v6413 = vmul.f32 %v6403, 1.442695
    %v6414 = vpow.pop %v6413
    %v6415 = vmul.f32 %v6404, 1.442695
    %v6416 = vpow.pop %v6415
    %v6417 = vmul.f32 %v6405, 1.442695
    %v6418 = vpow.pop %v6417
    %v6419 = vmul.f32 %v6406, 1.442695
    %v6420 = vpow.pop %v6419
    %v6421 = vmul.f32 %v6407, 1.442695
    %v6422 = vpow.pop %v6421
    %v6423 = vmul.f32 %v6408, 1.442695
    %v6424 = vpow.pop %v6423
    %v6425 = vsel %vm752, %v6410, 0.0
    %6426 = vadd.xlane.f32.xlu0 %v6425
    %v6427 = vpop.xlane.xlu0 %6426
    %v6428 = vsel %vm752, %v6412, 0.0
    %6429 = vadd.xlane.f32.xlu0 %v6428
    %v6430 = vpop.xlane.xlu0 %6429
    %v6431 = vsel %vm752, %v6414, 0.0
    %6432 = vadd.xlane.f32.xlu0 %v6431
    %v6433 = vpop.xlane.xlu0 %6432
    %v6434 = vsel %vm752, %v6416, 0.0
    %6435 = vadd.xlane.f32.xlu0 %v6434
    %v6436 = vpop.xlane.xlu0 %6435
    %v6437 = vsel %vm752, %v6418, 0.0
    %6438 = vadd.xlane.f32.xlu0 %v6437
    %v6439 = vpop.xlane.xlu0 %6438
    %v6440 = vsel %vm752, %v6420, 0.0
    %6441 = vadd.xlane.f32.xlu0 %v6440
    %v6442 = vpop.xlane.xlu0 %6441
    %v6443 = vsel %vm752, %v6422, 0.0
    %6444 = vadd.xlane.f32.xlu0 %v6443
    %v6445 = vpop.xlane.xlu0 %6444
    %v6446 = vsel %vm752, %v6424, 0.0
    %6447 = vadd.xlane.f32.xlu0 %v6446
    %v6448 = vpop.xlane.xlu0 %6447
    %v6449 = vrcp.pop %v6427
    %v6450 = vrcp.pop %v6430
    %v6451 = vrcp.pop %v6433
    %v6452 = vrcp.pop %v6436
    %v6453 = vrcp.pop %v6439
    %v6454 = vrcp.pop %v6442
    %v6455 = vrcp.pop %v6445
    %v6456 = vrcp.pop %v6448
    %v6457 = vmul.f32 %v6410, %v6449
    %v6458 = vmul.f32 %v6412, %v6450
    %v6459 = vmul.f32 %v6414, %v6451
    %v6460 = vmul.f32 %v6416, %v6452
    %v6461 = vmul.f32 %v6418, %v6453
    %v6462 = vmul.f32 %v6420, %v6454
    %v6463 = vmul.f32 %v6422, %v6455
    %v6464 = vmul.f32 %v6424, %v6456
    %v6466 = vsel %vm752, %v6457, 0
    %v6469 = vsel %vm752, %v6458, 0
    %v6472 = vsel %vm752, %v6459, 0
    %v6475 = vsel %vm752, %v6460, 0
    %v6478 = vsel %vm752, %v6461, 0
    %v6481 = vsel %vm752, %v6462, 0
    %v6484 = vsel %vm752, %v6463, 0
    %v6487 = vsel %vm752, %v6464, 0
    %6489 = vmatprep.subr.mxu0 0.0
    %6490 = vmatpush1.msra.mxu0 %v5877
    %6491 = vmatprep.subr.mxu0 0.0
    %6492 = vmatpush1.msra.mxu0 %v5878
    %6493 = vmatprep.subr.mxu0 0.0
    %6494 = vmatpush1.msra.mxu0 %v5879
    %6495 = vmatprep.subr.mxu0 0.0
    %6496 = vmatpush1.msra.mxu0 %v5880
    %6497 = vmatprep.subr.mxu0 0.0
    %6498 = vmatpush1.msra.mxu0 %v5881
    %6499 = vmatprep.subr.mxu0 0.0
    %6500 = vmatpush1.msra.mxu0 %v5882
    %6501 = vmatprep.subr.mxu0 0.0
    %6502 = vmatpush1.msra.mxu0 %v5883
    %6503 = vmatprep.subr.mxu0 0.0
    %6504 = vmatpush1.msra.mxu0 %v5884
    %6505 = vmatprep.subr.mxu0 0.0
    %6506 = vmatpush1.msra.mxu0 0.0
    %6507 = vmatprep.subr.mxu0 0.0
    %6508 = vmatpush1.msra.mxu0 0.0
    %6509 = vmatprep.subr.mxu0 0.0
    %6510 = vmatpush1.msra.mxu0 0.0
    %6511 = vmatprep.subr.mxu0 0.0
    %6512 = vmatpush1.msra.mxu0 0.0
    %6513 = vmatprep.subr.mxu0 0.0
    %6514 = vmatpush1.msra.mxu0 0.0
    %6515 = vmatprep.subr.mxu0 0.0
    %6516 = vmatpush1.msra.mxu0 0.0
    %6517 = vmatprep.subr.mxu0 0.0
    %6518 = vmatpush1.msra.mxu0 0.0
    %6519 = vmatprep.subr.mxu0 0.0
    %6520 = vmatpush1.msra.mxu0 0.0
    %6521 = vmatprep.subr.mxu0 0.0
    %6522 = vmatpush1.msra.mxu0 0.0
    %6523 = vmatprep.subr.mxu0 0.0
    %6524 = vmatpush1.msra.mxu0 0.0
    %6525 = vmatprep.subr.mxu0 0.0
    %6526 = vmatpush1.msra.mxu0 0.0
    %6527 = vmatprep.subr.mxu0 0.0
    %6528 = vmatpush1.msra.mxu0 0.0
    %6529 = vmatprep.subr.mxu0 0.0
    %6530 = vmatpush1.msra.mxu0 0.0
    %6531 = vmatprep.subr.mxu0 0.0
    %6532 = vmatpush1.msra.mxu0 0.0
    %6533 = vmatprep.subr.mxu0 0.0
    %6534 = vmatpush1.msra.mxu0 0.0
    %6535 = vmatprep.subr.mxu0 0.0
    %6536 = vmatpush1.msra.mxu0 0.0
    %6537 = vmatprep.subr.mxu0 0.0
    %6538 = vmatpush1.msra.mxu0 0.0
    %6539 = vmatprep.subr.mxu0 0.0
    %6540 = vmatpush1.msra.mxu0 0.0
    %6541 = vmatprep.subr.mxu0 0.0
    %6542 = vmatpush1.msra.mxu0 0.0
    %6543 = vmatprep.subr.mxu0 0.0
    %6544 = vmatpush1.msra.mxu0 0.0
    %6545 = vmatprep.subr.mxu0 0.0
    %6546 = vmatpush1.msra.mxu0 0.0
    %6547 = vmatprep.subr.mxu0 0.0
    %6548 = vmatpush1.msra.mxu0 0.0
    %6549 = vmatprep.subr.mxu0 0.0
    %6550 = vmatpush1.msra.mxu0 0.0
    %6551 = vmatprep.subr.mxu0 0.0
    %6552 = vmatpush1.msra.mxu0 0.0
    %6553 = vmatprep.mubr.f32.mxu0 0.0
    %6554 = vmatmul.mubr.f32.gmra.mrb[0].mxu0 %v6466
    %v6555 = vpop.f32.mrb[0].mxu0
    %v6556 = vadd.f32 0.0, %v6555
    %v6557 = vpop.f32.mrb[0].mxu0
    %6558 = vmatprep.mubr.f32.mxu0 0.0
    %6559 = vmatmul.mubr.f32.gmra.mrb[0].mxu0 %v6469
    %v6560 = vpop.f32.mrb[0].mxu0
    %v6561 = vadd.f32 0.0, %v6560
    %v6562 = vpop.f32.mrb[0].mxu0
    %6563 = vmatprep.mubr.f32.mxu0 0.0
    %6564 = vmatmul.mubr.f32.gmra.mrb[0].mxu0 %v6472
    %v6565 = vpop.f32.mrb[0].mxu0
    %v6566 = vadd.f32 0.0, %v6565
    %v6567 = vpop.f32.mrb[0].mxu0
    %6568 = vmatprep.mubr.f32.mxu0 0.0
    %6569 = vmatmul.mubr.f32.gmra.mrb[0].mxu0 %v6475
    %v6570 = vpop.f32.mrb[0].mxu0
    %v6571 = vadd.f32 0.0, %v6570
    %v6572 = vpop.f32.mrb[0].mxu0
    %6573 = vmatprep.mubr.f32.mxu0 0.0
    %6574 = vmatmul.mubr.f32.gmra.mrb[0].mxu0 %v6478
    %v6575 = vpop.f32.mrb[0].mxu0
    %v6576 = vadd.f32 0.0, %v6575
    %v6577 = vpop.f32.mrb[0].mxu0
    %6578 = vmatprep.mubr.f32.mxu0 0.0
    %6579 = vmatmul.mubr.f32.gmra.mrb[0].mxu0 %v6481
    %v6580 = vpop.f32.mrb[0].mxu0
    %v6581 = vadd.f32 0.0, %v6580
    %v6582 = vpop.f32.mrb[0].mxu0
    %6583 = vmatprep.mubr.f32.mxu0 0.0
    %6584 = vmatmul.mubr.f32.gmra.mrb[0].mxu0 %v6484
    %v6585 = vpop.f32.mrb[0].mxu0
    %v6586 = vadd.f32 0.0, %v6585
    %v6587 = vpop.f32.mrb[0].mxu0
    %6588 = vmatprep.mubr.f32.mxu0 0.0
    %6589 = vmatmul.mubr.f32.gmra.mrb[0].mxu0 %v6487
    %v6590 = vpop.f32.mrb[0].mxu0
    %v6591 = vadd.f32 0.0, %v6590
    %v6592 = vpop.f32.mrb[0].mxu0
    %6593 = vdwg.mxu0
    %v6594 = vadd.f32 %v5840, %v6556
    %v6595 = vadd.f32 %v5841, %v6561
    %v6596 = vadd.f32 %v5842, %v6566
    %v6597 = vadd.f32 %v5843, %v6571
    %v6598 = vadd.f32 %v5844, %v6576
    %v6599 = vadd.f32 %v5845, %v6581
    %v6600 = vadd.f32 %v5846, %v6586
    %v6601 = vadd.f32 %v5847, %v6591
    %v6602 = vld [vmem:[%s5] sm:$0xff]
    %v6603 = vld [vmem:[%s5 + $0x8] sm:$0xff]
    %v6604 = vld [vmem:[%s5 + $0x10] sm:$0xff]
    %v6605 = vld [vmem:[%s5 + $0x18] sm:$0xff]
    %v6606 = vld [vmem:[%s6] sm:$0x1]
    %v6608 = vlaneseq
    %v6609 = vshrl.u32 %v6608, 7
    %v6610 = vsub.s32 0, %v6609
    %v6611 = vrot.slane %v6606, %v6610
    %v6614 = vsel %vm60, %v6240, 0
    %v6617 = vsel %vm60, %v6241, 0
    %v6620 = vsel %vm60, %v6242, 0
    %v6623 = vsel %vm60, %v6243, 0
    %v6626 = vsel %vm60, %v6244, 0
    %v6629 = vsel %vm60, %v6245, 0
    %v6632 = vsel %vm60, %v6246, 0
    %v6635 = vsel %vm60, %v6247, 0
    %v6638 = vsel %vm60, %v6594, 0
    %v6641 = vsel %vm60, %v6595, 0
    %v6644 = vsel %vm60, %v6596, 0
    %v6647 = vsel %vm60, %v6597, 0
    %v6650 = vsel %vm60, %v6598, 0
    %v6653 = vsel %vm60, %v6599, 0
    %v6656 = vsel %vm60, %v6600, 0
    %v6659 = vsel %vm60, %v6601, 0
    %6661 = vmatprep.subr.mxu0 0.0
    %6662 = vmatpush1.msra.mxu0 %v6602
    %6663 = vmatprep.subr.mxu0 0.0
    %6664 = vmatpush1.msra.mxu0 %v6603
    %6665 = vmatprep.subr.mxu0 0.0
    %6666 = vmatpush1.msra.mxu0 %v6604
    %6667 = vmatprep.subr.mxu0 0.0
    %6668 = vmatpush1.msra.mxu0 %v6605
    %6669 = vmatprep.subr.mxu0 0.0
    %6670 = vmatpush1.msra.mxu0 0.0
    %6671 = vmatprep.subr.mxu0 0.0
    %6672 = vmatpush1.msra.mxu0 0.0
    %6673 = vmatprep.subr.mxu0 0.0
    %6674 = vmatpush1.msra.mxu0 0.0
    %6675 = vmatprep.subr.mxu0 0.0
    %6676 = vmatpush1.msra.mxu0 0.0
    %6677 = vmatprep.subr.mxu0 0.0
    %6678 = vmatpush1.msra.mxu0 0.0
    %6679 = vmatprep.subr.mxu0 0.0
    %6680 = vmatpush1.msra.mxu0 0.0
    %6681 = vmatprep.subr.mxu0 0.0
    %6682 = vmatpush1.msra.mxu0 0.0
    %6683 = vmatprep.subr.mxu0 0.0
    %6684 = vmatpush1.msra.mxu0 0.0
    %6685 = vmatprep.subr.mxu0 0.0
    %6686 = vmatpush1.msra.mxu0 0.0
    %6687 = vmatprep.subr.mxu0 0.0
    %6688 = vmatpush1.msra.mxu0 0.0
    %6689 = vmatprep.subr.mxu0 0.0
    %6690 = vmatpush1.msra.mxu0 0.0
    %6691 = vmatprep.subr.mxu0 0.0
    %6692 = vmatpush1.msra.mxu0 0.0
    %6693 = vmatprep.subr.mxu0 0.0
    %6694 = vmatpush1.msra.mxu0 0.0
    %6695 = vmatprep.subr.mxu0 0.0
    %6696 = vmatpush1.msra.mxu0 0.0
    %6697 = vmatprep.subr.mxu0 0.0
    %6698 = vmatpush1.msra.mxu0 0.0
    %6699 = vmatprep.subr.mxu0 0.0
    %6700 = vmatpush1.msra.mxu0 0.0
    %6701 = vmatprep.subr.mxu0 0.0
    %6702 = vmatpush1.msra.mxu0 0.0
    %6703 = vmatprep.subr.mxu0 0.0
    %6704 = vmatpush1.msra.mxu0 0.0
    %6705 = vmatprep.subr.mxu0 0.0
    %6706 = vmatpush1.msra.mxu0 0.0
    %6707 = vmatprep.subr.mxu0 0.0
    %6708 = vmatpush1.msra.mxu0 0.0
    %6709 = vmatprep.subr.mxu0 0.0
    %6710 = vmatpush1.msra.mxu0 0.0
    %6711 = vmatprep.subr.mxu0 0.0
    %6712 = vmatpush1.msra.mxu0 0.0
    %6713 = vmatprep.subr.mxu0 0.0
    %6714 = vmatpush1.msra.mxu0 0.0
    %6715 = vmatprep.subr.mxu0 0.0
    %6716 = vmatpush1.msra.mxu0 0.0
    %6717 = vmatprep.subr.mxu0 0.0
    %6718 = vmatpush1.msra.mxu0 0.0
    %6719 = vmatprep.subr.mxu0 0.0
    %6720 = vmatpush1.msra.mxu0 0.0
    %6721 = vmatprep.subr.mxu0 0.0
    %6722 = vmatpush1.msra.mxu0 0.0
    %6723 = vmatprep.subr.mxu0 0.0
    %6724 = vmatpush1.msra.mxu0 0.0
    %6725 = vmatprep.mubr.f32.mxu0 0.0
    %6726 = vmatmul.mubr.f32.gmra.mrb[0].mxu0 %v6614
    %v6727 = vpop.f32.mrb[0].mxu0
    %v6728 = vadd.f32 %v6611, %v6727
    %v6729 = vpop.f32.mrb[0].mxu0
    %6730 = vmatprep.mubr.f32.mxu0 0.0
    %6731 = vmatmul.mubr.f32.gmra.mrb[0].mxu0 %v6617
    %v6732 = vpop.f32.mrb[0].mxu0
    %v6733 = vadd.f32 %v6611, %v6732
    %v6734 = vpop.f32.mrb[0].mxu0
    %6735 = vmatprep.mubr.f32.mxu0 0.0
    %6736 = vmatmul.mubr.f32.gmra.mrb[0].mxu0 %v6620
    %v6737 = vpop.f32.mrb[0].mxu0
    %v6738 = vadd.f32 %v6611, %v6737
    %v6739 = vpop.f32.mrb[0].mxu0
    %6740 = vmatprep.mubr.f32.mxu0 0.0
    %6741 = vmatmul.mubr.f32.gmra.mrb[0].mxu0 %v6623
    %v6742 = vpop.f32.mrb[0].mxu0
    %v6743 = vadd.f32 %v6611, %v6742
    %v6744 = vpop.f32.mrb[0].mxu0
    %6745 = vmatprep.mubr.f32.mxu0 0.0
    %6746 = vmatmul.mubr.f32.gmra.mrb[0].mxu0 %v6626
    %v6747 = vpop.f32.mrb[0].mxu0
    %v6748 = vadd.f32 %v6611, %v6747
    %v6749 = vpop.f32.mrb[0].mxu0
    %6750 = vmatprep.mubr.f32.mxu0 0.0
    %6751 = vmatmul.mubr.f32.gmra.mrb[0].mxu0 %v6629
    %v6752 = vpop.f32.mrb[0].mxu0
    %v6753 = vadd.f32 %v6611, %v6752
    %v6754 = vpop.f32.mrb[0].mxu0
    %6755 = vmatprep.mubr.f32.mxu0 0.0
    %6756 = vmatmul.mubr.f32.gmra.mrb[0].mxu0 %v6632
    %v6757 = vpop.f32.mrb[0].mxu0
    %v6758 = vadd.f32 %v6611, %v6757
    %v6759 = vpop.f32.mrb[0].mxu0
    %6760 = vmatprep.mubr.f32.mxu0 0.0
    %6761 = vmatmul.mubr.f32.gmra.mrb[0].mxu0 %v6635
    %v6762 = vpop.f32.mrb[0].mxu0
    %v6763 = vadd.f32 %v6611, %v6762
    %v6764 = vpop.f32.mrb[0].mxu0
    %6765 = vmatprep.mubr.f32.mxu0 0.0
    %6766 = vmatmul.mubr.f32.gmra.mrb[0].mxu0 %v6638
    %v6767 = vpop.f32.mrb[0].mxu0
    %v6768 = vadd.f32 %v6611, %v6767
    %v6769 = vpop.f32.mrb[0].mxu0
    %6770 = vmatprep.mubr.f32.mxu0 0.0
    %6771 = vmatmul.mubr.f32.gmra.mrb[0].mxu0 %v6641
    %v6772 = vpop.f32.mrb[0].mxu0
    %v6773 = vadd.f32 %v6611, %v6772
    %v6774 = vpop.f32.mrb[0].mxu0
    %6775 = vmatprep.mubr.f32.mxu0 0.0
    %6776 = vmatmul.mubr.f32.gmra.mrb[0].mxu0 %v6644
    %v6777 = vpop.f32.mrb[0].mxu0
    %v6778 = vadd.f32 %v6611, %v6777
    %v6779 = vpop.f32.mrb[0].mxu0
    %6780 = vmatprep.mubr.f32.mxu0 0.0
    %6781 = vmatmul.mubr.f32.gmra.mrb[0].mxu0 %v6647
    %v6782 = vpop.f32.mrb[0].mxu0
    %v6783 = vadd.f32 %v6611, %v6782
    %v6784 = vpop.f32.mrb[0].mxu0
    %6785 = vmatprep.mubr.f32.mxu0 0.0
    %6786 = vmatmul.mubr.f32.gmra.mrb[0].mxu0 %v6650
    %v6787 = vpop.f32.mrb[0].mxu0
    %v6788 = vadd.f32 %v6611, %v6787
    %v6789 = vpop.f32.mrb[0].mxu0
    %6790 = vmatprep.mubr.f32.mxu0 0.0
    %6791 = vmatmul.mubr.f32.gmra.mrb[0].mxu0 %v6653
    %v6792 = vpop.f32.mrb[0].mxu0
    %v6793 = vadd.f32 %v6611, %v6792
    %v6794 = vpop.f32.mrb[0].mxu0
    %6795 = vmatprep.mubr.f32.mxu0 0.0
    %6796 = vmatmul.mubr.f32.gmra.mrb[0].mxu0 %v6656
    %v6797 = vpop.f32.mrb[0].mxu0
    %v6798 = vadd.f32 %v6611, %v6797
    %v6799 = vpop.f32.mrb[0].mxu0
    %6800 = vmatprep.mubr.f32.mxu0 0.0
    %6801 = vmatmul.mubr.f32.gmra.mrb[0].mxu0 %v6659
    %v6802 = vpop.f32.mrb[0].mxu0
    %v6803 = vadd.f32 %v6611, %v6802
    %v6804 = vpop.f32.mrb[0].mxu0
    %6805 = vdwg.mxu0
    %6806 = vst.msk [vmem:[%s7] sm:$0xff] %vm60, %v6728
    %6807 = vst.msk [vmem:[%s7 + $0x8] sm:$0xff] %vm60, %v6733
    %6808 = vst.msk [vmem:[%s7 + $0x10] sm:$0xff] %vm60, %v6738
    %6809 = vst.msk [vmem:[%s7 + $0x18] sm:$0xff] %vm60, %v6743
    %6810 = vst.msk [vmem:[%s7 + $0x20] sm:$0xff] %vm60, %v6748
    %6811 = vst.msk [vmem:[%s7 + $0x28] sm:$0xff] %vm60, %v6753
    %6812 = vst.msk [vmem:[%s7 + $0x30] sm:$0xff] %vm60, %v6758
    %6813 = vst.msk [vmem:[%s7 + $0x38] sm:$0xff] %vm60, %v6763
    %6814 = vst.msk [vmem:[%s7 + $0x40] sm:$0xff] %vm60, %v6768
    %6815 = vst.msk [vmem:[%s7 + $0x48] sm:$0xff] %vm60, %v6773
    %6816 = vst.msk [vmem:[%s7 + $0x50] sm:$0xff] %vm60, %v6778
    %6817 = vst.msk [vmem:[%s7 + $0x58] sm:$0xff] %vm60, %v6783
    %6818 = vst.msk [vmem:[%s7 + $0x60] sm:$0xff] %vm60, %v6788
    %6819 = vst.msk [vmem:[%s7 + $0x68] sm:$0xff] %vm60, %v6793
    %6820 = vst.msk [vmem:[%s7 + $0x70] sm:$0xff] %vm60, %v6798
    %6821 = vst.msk [vmem:[%s7 + $0x78] sm:$0xff] %vm60, %v6803
    // Predicated region
    $region34: #{tpu_custom_call.1} parent=1 // pred_check
      _
    $region35: #{tpu_custom_call.1} parent=1 // pred_check_branch
      %6823 = sbr.rel (0) target = $region37
    $region36: #{tpu_custom_call.1} parent=1 // pred_region
      _
    $region37: #{tpu_custom_call.1} parent=1 // pred_fallthru
      _
    // Predicated region
    $region38: #{tpu_custom_call.1} parent=1 // pred_check
      _
    $region39: #{tpu_custom_call.1} parent=1 // pred_check_branch
      %6825 = sbr.rel (0) target = $region41
    $region40: #{tpu_custom_call.1} parent=1 // pred_region
      _
    $region41: #{tpu_custom_call.1} parent=1 // pred_fallthru
      _
    %6826 = vsyncpa [#allocation3], 1

</llo_original>
